<compile_context>
chip_gen: v6e
topology: v6e:2x2x1
jax: 0.10.0
libtpu: 0.0.40
codegen_flags: <defaults>
</compile_context>

<pallas_src>
import math

import jax
import jax.numpy as jnp
from jax.experimental import pallas as pl
from jax.experimental.pallas import tpu as pltpu

INV_SQRT2 = 0.7071067811865476
LN_EPS = 1e-5
HALO = 8                        # sublane-aligned halo rows (>= kernel_size // 2)
GELU_APPROXIMATE = True         # tanh GELU (EUP) vs PyTorch's exact erf GELU


# -----------------------------------------------------------------------------
# Generation-aware VMEM budget / tile selection.
# -----------------------------------------------------------------------------
_VMEM_LIMIT = [None]


def _vmem_limit_bytes():
    if _VMEM_LIMIT[0] is None:
        try:
            cap = int(pltpu.get_tpu_info().vmem_capacity_bytes)
            if cap >= 128 * 1024 * 1024:          # v5e / v6e: 128 MiB physical
                lim = 96 * 1024 * 1024
            else:                                 # v7x: 64 MiB physical
                lim = 48 * 1024 * 1024
        except Exception:
            lim = 32 * 1024 * 1024                # unknown generation: safe default
        _VMEM_LIMIT[0] = lim
    return _VMEM_LIMIT[0]


def _pick_tile(B, L, D, H, itemsize, vmem_limit):
    """Largest L-tile (multiple of 8, divides L) whose pipelined working set
    fits in ~60% of the scoped-VMEM budget, keeping B * num_tiles >= 2 so both
    v7x TensorCores get work."""
    fixed = 4 * (D * H + H * D) + 64 * D          # weights (worst-case 2x bf16) + params
    best = HALO
    for t in (8, 16, 32, 64, 128, 256, 512, 1024):
        if L % t:
            continue
        work = (4 * t * D * itemsize              # double-buffered in + out tiles
                + 4 * HALO * D * itemsize         # double-buffered halo blocks
                + (t + 2 * HALO) * D * 4          # f32 staging scratch
                + 4 * t * H)                      # f32 hidden tensor
        if fixed + work <= 0.6 * vmem_limit:
            best = t
    while (B * (L // best) < 2 and best > HALO
           and (best // 2) % HALO == 0 and L % (best // 2) == 0):
        best //= 2
    return best


# -----------------------------------------------------------------------------
# Optional single-buffering of constant-index (weight / bias) blocks.
# -----------------------------------------------------------------------------
def _probe_single_buffer():
    if not hasattr(pl, "Buffered"):
        return False
    try:
        pl.BlockSpec((8, 128), lambda b, l: (0, 0), pipeline_mode=pl.Buffered(1))
        return True
    except Exception:
        return False


_SINGLE_BUFFER_OK = [_probe_single_buffer()]


def _const_spec(shape, single_buffer):
    idx = lambda b, l: (0,) * len(shape)
    if single_buffer:
        return pl.BlockSpec(shape, idx, pipeline_mode=pl.Buffered(1))
    return pl.BlockSpec(shape, idx)


def _run_pallas(run):
    """run(single_buffer: bool) -> result.  Tries single-buffered constant
    weight blocks first; falls back to default double-buffering if this
    JAX/Mosaic build rejects pipeline_mode."""
    if _SINGLE_BUFFER_OK[0]:
        try:
            return run(True)
        except Exception:
            _SINGLE_BUFFER_OK[0] = False
    return run(False)


# -----------------------------------------------------------------------------
# In-kernel math helpers.
# -----------------------------------------------------------------------------
def _gelu(x):
    if GELU_APPROXIMATE:
        return jax.nn.gelu(x, approximate=True)          # tanh form -> EUP slot
    return 0.5 * x * (1.0 + jax.lax.erf(x * INV_SQRT2))  # exact erf (VPU polynomial)


def _gelu_exact(x):
    return 0.5 * x * (1.0 + jax.lax.erf(x * INV_SQRT2))


def _layernorm(x, gamma, beta):
    # Variance as E[x^2] - mean^2: two independent lane reductions.
    mean = jnp.mean(x, axis=-1, keepdims=True)
    ex2 = jnp.mean(x * x, axis=-1, keepdims=True)
    var = jnp.maximum(ex2 - mean * mean, 0.0)
    return (x - mean) * jax.lax.rsqrt(var + LN_EPS) * gamma + beta


# -----------------------------------------------------------------------------
# Block body: out = x + pconv2(GELU(pconv1(LN_D(dwconv_L(x)))))   per L-tile
# -----------------------------------------------------------------------------
def _block_body(x_ref, xlo_ref, xhi_ref, dw_ref, db_ref, g_ref, beta_ref,
                w1_ref, b1_ref, w2_ref, b2_ref, xe_ref):
    tl, d = x_ref.shape[1], x_ref.shape[2]
    k_sz = dw_ref.shape[0]
    pad = k_sz // 2
    l = pl.program_id(1)
    nl = pl.num_programs(1)

    x = x_ref[0].astype(jnp.float32)                       # (TL, D)

    # Stage haloed window [tile_start - HALO, tile_end + HALO) into VMEM;
    # halo rows outside the sequence are zero (Conv1d zero padding).
    xe_ref[HALO:HALO + tl, :] = x

    @pl.when(l > 0)
    def _():
        xe_ref[0:HALO, :] = xlo_ref[0].astype(jnp.float32)

    @pl.when(l == 0)
    def _():
        xe_ref[0:HALO, :] = jnp.zeros((HALO, d), jnp.float32)

    @pl.when(l < nl - 1)
    def _():
        xe_ref[HALO + tl:HALO + tl + HALO, :] = xhi_ref[0].astype(jnp.float32)

    @pl.when(l == nl - 1)
    def _():
        xe_ref[HALO + tl:HALO + tl + HALO, :] = jnp.zeros((HALO, d), jnp.float32)

    # Depthwise conv along L (groups=dim): static-offset taps from the scratch,
    # accumulator initialized from the first tap.
    dw = dw_ref[...].astype(jnp.float32)                   # (K, D)
    y = xe_ref[HALO - pad:HALO - pad + tl, :] * dw[0][None, :]
    for k in range(1, k_sz):
        s = HALO - pad + k
        y = y + xe_ref[s:s + tl, :] * dw[k][None, :]
    y = y + db_ref[0, :][None, :]

    # LayerNorm over channel dim D (f32).
    yn = _layernorm(y, g_ref[0, :][None, :], beta_ref[0, :][None, :])

    # 1x1 conv (D -> 4D) + GELU + 1x1 conv (4D -> D).  bf16 MXU, f32 accumulate.
    h = jnp.dot(yn.astype(jnp.bfloat16), w1_ref[...],
                preferred_element_type=jnp.float32)
    h = _gelu(h + b1_ref[0, :][None, :])
    o = jnp.dot(h.astype(jnp.bfloat16), w2_ref[...],
                preferred_element_type=jnp.float32)
    o = o + b2_ref[0, :][None, :]
    return x + o


def _block_kernel(x_ref, xlo_ref, xhi_ref, dw_ref, db_ref, g_ref, beta_ref,
                  w1_ref, b1_ref, w2_ref, b2_ref, out_ref, xe_ref):
    res = _block_body(x_ref, xlo_ref, xhi_ref, dw_ref, db_ref, g_ref, beta_ref,
                      w1_ref, b1_ref, w2_ref, b2_ref, xe_ref)
    out_ref[0] = res.astype(out_ref.dtype)


def _block_tail_kernel(x_ref, xlo_ref, xhi_ref, dw_ref, db_ref, g_ref, beta_ref,
                       w1_ref, b1_ref, w2_ref, b2_ref, fg_ref, fb_ref,
                       psum_ref, xe_ref):
    """Last block fused with the head prologue: final LayerNorm over D and a
    partial sum over this L-tile; mean-over-L and the tiny head matmul run in
    plain XLA on (B, D)."""
    res = _block_body(x_ref, xlo_ref, xhi_ref, dw_ref, db_ref, g_ref, beta_ref,
                      w1_ref, b1_ref, w2_ref, b2_ref, xe_ref)
    rn = _layernorm(res, fg_ref[0, :][None, :], fb_ref[0, :][None, :])
    psum_ref[0, 0] = jnp.sum(rn, axis=0, keepdims=True)


# -----------------------------------------------------------------------------
# Wrappers.
# -----------------------------------------------------------------------------
def _in_specs(tile_l, D, K, H, lb, n_halo, single_buffer, with_final_norm):
    specs = [
        pl.BlockSpec((1, tile_l, D), lambda b, l: (b, l, 0)),            # x tile
        pl.BlockSpec((1, HALO, D),                                       # prev halo
                     lambda b, l: (b, jnp.maximum(l * lb - 1, 0), 0)),
        pl.BlockSpec((1, HALO, D),                                       # next halo
                     lambda b, l: (b, jnp.minimum((l + 1) * lb, n_halo - 1), 0)),
        _const_spec((K, D), single_buffer),       # depthwise weight
        _const_spec((1, D), single_buffer),       # depthwise bias
        _const_spec((1, D), single_buffer),       # LN gamma
        _const_spec((1, D), single_buffer),       # LN beta
        _const_spec((D, H), single_buffer),       # point_conv1 W (bf16)
        _const_spec((1, H), single_buffer),       # point_conv1 b
        _const_spec((H, D), single_buffer),       # point_conv2 W (bf16)
        _const_spec((1, D), single_buffer),       # point_conv2 b
    ]
    if with_final_norm:
        specs += [_const_spec((1, D), single_buffer),     # final LN gamma
                  _const_spec((1, D), single_buffer)]     # final LN beta
    return specs


def _tiling(x_bld, params, tile_l):
    dw, _, _, _, w1, _, _, _ = params
    B, L, D = x_bld.shape
    K, H = dw.shape[0], w1.shape[1]
    assert K % 2 == 1 and K // 2 <= HALO, "odd kernel_size <= 17 required"
    assert L % HALO == 0, "sequence length must be a multiple of 8"
    if tile_l is None:
        tile_l = _pick_tile(B, L, D, H, x_bld.dtype.itemsize, _vmem_limit_bytes())
    assert L % tile_l == 0 and tile_l % HALO == 0
    return B, L, D, K, H, tile_l, L // tile_l, tile_l // HALO, L // HALO


def block_forward(x_bld, params, *, tile_l=None):
    """One `Block` (shift=False).  x_bld: (B, L, D) channels-last."""
    dw, db, g, beta, w1, b1, w2, b2 = params
    B, L, D, K, H, tile_l, nl, lb, n_halo = _tiling(x_bld, params, tile_l)
    w1b, w2b = w1.astype(jnp.bfloat16), w2.astype(jnp.bfloat16)

    def run(single_buffer):
        out = pl.pallas_call(
            _block_kernel,
            out_shape=jax.ShapeDtypeStruct((B, L, D), x_bld.dtype),
            grid_spec=pltpu.PrefetchScalarGridSpec(
                num_scalar_prefetch=0,
                grid=(B, nl),
                in_specs=_in_specs(tile_l, D, K, H, lb, n_halo,
                                   single_buffer, with_final_norm=False),
                out_specs=pl.BlockSpec((1, tile_l, D), lambda b, l: (b, l, 0)),
                scratch_shapes=[pltpu.VMEM((tile_l + 2 * HALO, D), jnp.float32)]),
            compiler_params=pltpu.CompilerParams(
                dimension_semantics=("parallel", "parallel"),
                vmem_limit_bytes=_vmem_limit_bytes()),
        )(x_bld, x_bld, x_bld, dw, db, g, beta, w1b, b1, w2b, b2)
        return jax.block_until_ready(out)

    return _run_pallas(run)


def block_tail_forward(x_bld, params, norm_g, norm_b, *, tile_l=None):
    """Last `Block` fused with the final LayerNorm + mean-over-L prologue.
    Returns feat: (B, D) = mean_L(LN_D(block(x)))."""
    dw, db, g, beta, w1, b1, w2, b2 = params
    B, L, D, K, H, tile_l, nl, lb, n_halo = _tiling(x_bld, params, tile_l)
    w1b, w2b = w1.astype(jnp.bfloat16), w2.astype(jnp.bfloat16)

    def run(single_buffer):
        psum = pl.pallas_call(
            _block_tail_kernel,
            out_shape=jax.ShapeDtypeStruct((B, nl, 1, D), jnp.float32),
            grid_spec=pltpu.PrefetchScalarGridSpec(
                num_scalar_prefetch=0,
                grid=(B, nl),
                in_specs=_in_specs(tile_l, D, K, H, lb, n_halo,
                                   single_buffer, with_final_norm=True),
                out_specs=pl.BlockSpec((1, 1, 1, D), lambda b, l: (b, l, 0, 0)),
                scratch_shapes=[pltpu.VMEM((tile_l + 2 * HALO, D), jnp.float32)]),
            compiler_params=pltpu.CompilerParams(
                dimension_semantics=("parallel", "parallel"),
                vmem_limit_bytes=_vmem_limit_bytes()),
        )(x_bld, x_bld, x_bld, dw, db, g, beta, w1b, b1, w2b, b2, norm_g, norm_b)
        return jax.block_until_ready(psum)

    psum = _run_pallas(run)
    return jnp.sum(psum[:, :, 0, :], axis=1) * (1.0 / L)        # (B, D)


def convolution_forward(x_bld, params, *, tile_l=None):
    """Full `Convolution` eval forward.  x_bld: (B, L, D) -> (B, num_classes)."""
    # TODO(synk): Specaugment is a training-time augmentation whose class is not
    # part of the provided spec; it is treated as identity here (eval mode).
    h = x_bld
    blocks = params["blocks"]
    for bp in blocks[:-1]:
        h = block_forward(h, bp, tile_l=tile_l)
    feat = block_tail_forward(h, blocks[-1], params["norm_g"], params["norm_b"],
                              tile_l=tile_l)
    return feat @ params["head_w"] + params["head_b"][0]


# -----------------------------------------------------------------------------
# Pure-JAX references (mxu_bf16=True mirrors the kernel's mixed precision and
# GELU variant; mxu_bf16=False is the exact f32 / PyTorch semantics).
# -----------------------------------------------------------------------------
def _reference_block(x, params, *, mxu_bf16):
    dw, db, g, beta, w1, b1, w2, b2 = params
    _, L, _ = x.shape
    K = dw.shape[0]
    pad = K // 2
    xp = jnp.pad(x, ((0, 0), (pad, pad), (0, 0)))
    y = jnp.zeros_like(x)
    for k in range(K):
        y = y + xp[:, k:k + L, :] * dw[k][None, None, :]
    y = y + db[0][None, None, :]
    mean = jnp.mean(y, axis=-1, keepdims=True)
    var = jnp.mean((y - mean) ** 2, axis=-1, keepdims=True)
    yn = (y - mean) / jnp.sqrt(var + LN_EPS)
    yn = yn * g[0] + beta[0]
    if mxu_bf16:
        h = jnp.einsum("bld,dh->blh", yn.astype(jnp.bfloat16),
                       w1.astype(jnp.bfloat16),
                       preferred_element_type=jnp.float32) + b1[0]
        h = _gelu(h)
        o = jnp.einsum("blh,hd->bld", h.astype(jnp.bfloat16),
                       w2.astype(jnp.bfloat16),
                       preferred_element_type=jnp.float32) + b2[0]
    else:
        h = jnp.einsum("bld,dh->blh", yn, w1) + b1[0]
        h = _gelu_exact(h)
        o = jnp.einsum("blh,hd->bld", h, w2) + b2[0]
    return x + o


def reference_convolution(x, params, *, mxu_bf16=False):
    h = x
    for bp in params["blocks"]:
        h = _reference_block(h, bp, mxu_bf16=mxu_bf16)
    mean = jnp.mean(h, axis=-1, keepdims=True)
    var = jnp.mean((h - mean) ** 2, axis=-1, keepdims=True)
    hn = (h - mean) / jnp.sqrt(var + LN_EPS)
    hn = hn * params["norm_g"][0] + params["norm_b"][0]
    feat = jnp.mean(hn, axis=1)
    return feat @ params["head_w"] + params["head_b"][0]


def init_params(key, dim, kernel_size, num_classes):
    hidden = dim * 4
    keys = iter(jax.random.split(key, 20))

    def block_params():
        dw = jax.random.normal(next(keys), (kernel_size, dim), jnp.float32) / math.sqrt(kernel_size)
        db = 0.01 * jax.random.normal(next(keys), (1, dim), jnp.float32)
        g = 1.0 + 0.1 * jax.random.normal(next(keys), (1, dim), jnp.float32)
        beta = 0.01 * jax.random.normal(next(keys), (1, dim), jnp.float32)
        w1 = jax.random.normal(next(keys), (dim, hidden), jnp.float32) / math.sqrt(dim)
        b1 = 0.01 * jax.random.normal(next(keys), (1, hidden), jnp.float32)
        w2 = jax.random.normal(next(keys), (hidden, dim), jnp.float32) / math.sqrt(hidden)
        b2 = 0.01 * jax.random.normal(next(keys), (1, dim), jnp.float32)
        return (dw, db, g, beta, w1, b1, w2, b2)

    blocks = [block_params(), block_params()]
    norm_g = 1.0 + 0.1 * jax.random.normal(next(keys), (1, dim), jnp.float32)
    norm_b = 0.01 * jax.random.normal(next(keys), (1, dim), jnp.float32)
    head_w = jax.random.normal(next(keys), (dim, num_classes), jnp.float32) / math.sqrt(dim)
    head_b = 0.01 * jax.random.normal(next(keys), (1, num_classes), jnp.float32)
    return {"blocks": blocks, "norm_g": norm_g, "norm_b": norm_b,
            "head_w": head_w, "head_b": head_b}


if __name__ == "__main__":
    B, L, D = 2, 256, 128          # Convolution.forward takes x: (B, L, D)
    NUM_CLASSES = 4
    KERNEL_SIZE = 7
    TILE_L = 128                   # 2 L-tiles -> exercises the cross-tile conv halo

    key = jax.random.PRNGKey(0)
    kx, kp = jax.random.split(key)
    x = jax.random.normal(kx, (B, L, D), jnp.float32)
    params = init_params(kp, D, KERNEL_SIZE, NUM_CLASSES)

    # Single-Block check against the mixed-precision (bf16 MXU / f32 accum,
    # tanh-GELU) reference.
    blk = jax.block_until_ready(block_forward(x, params["blocks"][0], tile_l=TILE_L))
    blk_ref = _reference_block(x, params["blocks"][0], mxu_bf16=True)
    assert blk.shape == (B, L, D)
    assert jnp.allclose(blk, blk_ref, atol=5e-3, rtol=5e-3), "block mismatch"

    # Full Convolution forward (block 2 fused with final LN + mean + head).
    logits = jax.block_until_ready(convolution_forward(x, params, tile_l=TILE_L))
    assert logits.shape == (B, NUM_CLASSES)
    mixed_ref = reference_convolution(x, params, mxu_bf16=True)
    f32_ref = reference_convolution(x, params, mxu_bf16=False)
    assert jnp.allclose(logits, mixed_ref, atol=5e-3, rtol=5e-3), \
        "mismatch vs mixed-precision reference"
    assert jnp.allclose(logits, f32_ref, atol=1.5e-1, rtol=1.5e-1), \
        "mismatch vs f32 reference"

    print("KERNEL_OK")
</pallas_src>

<mosaic_0001>
module attributes {stable_mosaic.version = 11 : i64} {
  func.func @_block_kernel(%arg0: i32, %arg1: i32, %arg2: memref<1x128x128xf32, #tpu.memory_space<vmem>>, %arg3: memref<1x8x128xf32, #tpu.memory_space<vmem>>, %arg4: memref<1x8x128xf32, #tpu.memory_space<vmem>>, %arg5: memref<7x128xf32, #tpu.memory_space<vmem>>, %arg6: memref<1x128xf32, #tpu.memory_space<vmem>>, %arg7: memref<1x128xf32, #tpu.memory_space<vmem>>, %arg8: memref<1x128xf32, #tpu.memory_space<vmem>>, %arg9: memref<128x512xbf16, #tpu.memory_space<vmem>>, %arg10: memref<1x512xf32, #tpu.memory_space<vmem>>, %arg11: memref<512x128xbf16, #tpu.memory_space<vmem>>, %arg12: memref<1x128xf32, #tpu.memory_space<vmem>>, %arg13: memref<1x128x128xf32, #tpu.memory_space<vmem>>, %arg14: memref<144x128xf32, #tpu.memory_space<vmem>>) attributes {dimension_semantics = [#tpu.dimension_semantics<parallel>, #tpu.dimension_semantics<parallel>], iteration_bounds = array<i64: 2, 2>, scalar_prefetch = 0 : i64, scratch_operands = 1 : i64, tpu.core_type = #tpu.core_type<tc>, window_params = [{transform_indices = @transform_0, window_bounds = array<i64: 1, 128, 128>}, {transform_indices = @transform_1, window_bounds = array<i64: 1, 8, 128>}, {transform_indices = @transform_2, window_bounds = array<i64: 1, 8, 128>}, {pipeline_mode = #tpu.pipeline_mode<synchronous>, transform_indices = @transform_3, window_bounds = array<i64: 7, 128>}, {pipeline_mode = #tpu.pipeline_mode<synchronous>, transform_indices = @transform_4, window_bounds = array<i64: 1, 128>}, {pipeline_mode = #tpu.pipeline_mode<synchronous>, transform_indices = @transform_5, window_bounds = array<i64: 1, 128>}, {pipeline_mode = #tpu.pipeline_mode<synchronous>, transform_indices = @transform_6, window_bounds = array<i64: 1, 128>}, {pipeline_mode = #tpu.pipeline_mode<synchronous>, transform_indices = @transform_7, window_bounds = array<i64: 128, 512>}, {pipeline_mode = #tpu.pipeline_mode<synchronous>, transform_indices = @transform_8, window_bounds = array<i64: 1, 512>}, {pipeline_mode = #tpu.pipeline_mode<synchronous>, transform_indices = @transform_9, window_bounds = array<i64: 512, 128>}, {pipeline_mode = #tpu.pipeline_mode<synchronous>, transform_indices = @transform_10, window_bounds = array<i64: 1, 128>}, {transform_indices = @transform_11, window_bounds = array<i64: 1, 128, 128>}]} {
    %c0 = arith.constant 0 : index
    %c0_0 = arith.constant 0 : index
    %c0_1 = arith.constant 0 : index
    %0 = vector.load %arg2[%c0, %c0_0, %c0_1] : memref<1x128x128xf32, #tpu.memory_space<vmem>>, vector<1x128x128xf32>
    %1 = vector.shape_cast %0 : vector<1x128x128xf32> to vector<128x128xf32>
    %c8 = arith.constant 8 : index
    %c0_2 = arith.constant 0 : index
    %2 = vector.load %arg14[%c8, %c0_2] : memref<144x128xf32, #tpu.memory_space<vmem>>, vector<128x128xf32>
    tpu.vector_store %arg14[%c8, %c0_2], %1 {strides = array<i32>} : memref<144x128xf32, #tpu.memory_space<vmem>>, vector<128x128xf32>,
    %c0_i32 = arith.constant 0 : i32
    %3 = arith.cmpi sgt, %arg1, %c0_i32 : i32
    %4 = arith.extui %3 : i1 to i32
    %c0_i32_3 = arith.constant 0 : i32
    %5 = arith.cmpi ne, %4, %c0_i32_3 : i32
    scf.if %5 {
      %c0_47 = arith.constant 0 : index
      %c0_48 = arith.constant 0 : index
      %c0_49 = arith.constant 0 : index
      %132 = vector.load %arg3[%c0_47, %c0_48, %c0_49] : memref<1x8x128xf32, #tpu.memory_space<vmem>>, vector<1x8x128xf32>
      %133 = vector.shape_cast %132 : vector<1x8x128xf32> to vector<8x128xf32>
      %c0_50 = arith.constant 0 : index
      %c0_51 = arith.constant 0 : index
      %134 = vector.load %arg14[%c0_50, %c0_51] : memref<144x128xf32, #tpu.memory_space<vmem>>, vector<8x128xf32>
      tpu.vector_store %arg14[%c0_50, %c0_51], %133 {strides = array<i32>} : memref<144x128xf32, #tpu.memory_space<vmem>>, vector<8x128xf32>,
    } else {
    }
    %c0_i32_4 = arith.constant 0 : i32
    %6 = arith.cmpi eq, %arg1, %c0_i32_4 : i32
    %7 = arith.extui %6 : i1 to i32
    %c0_i32_5 = arith.constant 0 : i32
    %8 = arith.cmpi ne, %7, %c0_i32_5 : i32
    scf.if %8 {
      %cst_47 = arith.constant 0.000000e+00 : f32
      %132 = vector.broadcast %cst_47 : f32 to vector<8x128xf32>
      %c0_48 = arith.constant 0 : index
      %c0_49 = arith.constant 0 : index
      %133 = vector.load %arg14[%c0_48, %c0_49] : memref<144x128xf32, #tpu.memory_space<vmem>>, vector<8x128xf32>
      tpu.vector_store %arg14[%c0_48, %c0_49], %132 {strides = array<i32>} : memref<144x128xf32, #tpu.memory_space<vmem>>, vector<8x128xf32>,
    } else {
    }
    %c1_i32 = arith.constant 1 : i32
    %9 = arith.cmpi slt, %arg1, %c1_i32 : i32
    %10 = arith.extui %9 : i1 to i32
    %c0_i32_6 = arith.constant 0 : i32
    %11 = arith.cmpi ne, %10, %c0_i32_6 : i32
    scf.if %11 {
      %c0_47 = arith.constant 0 : index
      %c0_48 = arith.constant 0 : index
      %c0_49 = arith.constant 0 : index
      %132 = vector.load %arg4[%c0_47, %c0_48, %c0_49] : memref<1x8x128xf32, #tpu.memory_space<vmem>>, vector<1x8x128xf32>
      %133 = vector.shape_cast %132 : vector<1x8x128xf32> to vector<8x128xf32>
      %c136 = arith.constant 136 : index
      %c0_50 = arith.constant 0 : index
      %134 = vector.load %arg14[%c136, %c0_50] : memref<144x128xf32, #tpu.memory_space<vmem>>, vector<8x128xf32>
      tpu.vector_store %arg14[%c136, %c0_50], %133 {strides = array<i32>} : memref<144x128xf32, #tpu.memory_space<vmem>>, vector<8x128xf32>,
    } else {
    }
    %c1_i32_7 = arith.constant 1 : i32
    %12 = arith.cmpi eq, %arg1, %c1_i32_7 : i32
    %13 = arith.extui %12 : i1 to i32
    %c0_i32_8 = arith.constant 0 : i32
    %14 = arith.cmpi ne, %13, %c0_i32_8 : i32
    scf.if %14 {
      %cst_47 = arith.constant 0.000000e+00 : f32
      %132 = vector.broadcast %cst_47 : f32 to vector<8x128xf32>
      %c136 = arith.constant 136 : index
      %c0_48 = arith.constant 0 : index
      %133 = vector.load %arg14[%c136, %c0_48] : memref<144x128xf32, #tpu.memory_space<vmem>>, vector<8x128xf32>
      tpu.vector_store %arg14[%c136, %c0_48], %132 {strides = array<i32>} : memref<144x128xf32, #tpu.memory_space<vmem>>, vector<8x128xf32>,
    } else {
    }
    %c0_9 = arith.constant 0 : index
    %c0_10 = arith.constant 0 : index
    %15 = vector.load %arg5[%c0_9, %c0_10] : memref<7x128xf32, #tpu.memory_space<vmem>>, vector<7x128xf32>
    %c5 = arith.constant 5 : index
    %c0_11 = arith.constant 0 : index
    %16 = vector.load %arg14[%c5, %c0_11] : memref<144x128xf32, #tpu.memory_space<vmem>>, vector<128x128xf32>
    %17 = vector.extract_strided_slice %15 {offsets = [0, 0], sizes = [1, 128], strides = [1, 1]} : vector<7x128xf32> to vector<1x128xf32>
    %18 = vector.shape_cast %17 : vector<1x128xf32> to vector<128xf32>
    %19 = vector.shape_cast %18 : vector<128xf32> to vector<1x128xf32>
    %20 = vector.broadcast %19 : vector<1x128xf32> to vector<128x128xf32>
    %21 = arith.mulf %16, %20 : vector<128x128xf32>
    %c6 = arith.constant 6 : index
    %c0_12 = arith.constant 0 : index
    %22 = vector.load %arg14[%c6, %c0_12] : memref<144x128xf32, #tpu.memory_space<vmem>>, vector<128x128xf32>
    %23 = vector.extract_strided_slice %15 {offsets = [1, 0], sizes = [1, 128], strides = [1, 1]} : vector<7x128xf32> to vector<1x128xf32>
    %24 = vector.shape_cast %23 : vector<1x128xf32> to vector<128xf32>
    %25 = vector.shape_cast %24 : vector<128xf32> to vector<1x128xf32>
    %26 = vector.broadcast %25 : vector<1x128xf32> to vector<128x128xf32>
    %27 = arith.mulf %22, %26 : vector<128x128xf32>
    %28 = arith.addf %21, %27 : vector<128x128xf32>
    %c7 = arith.constant 7 : index
    %c0_13 = arith.constant 0 : index
    %29 = vector.load %arg14[%c7, %c0_13] : memref<144x128xf32, #tpu.memory_space<vmem>>, vector<128x128xf32>
    %30 = vector.extract_strided_slice %15 {offsets = [2, 0], sizes = [1, 128], strides = [1, 1]} : vector<7x128xf32> to vector<1x128xf32>
    %31 = vector.shape_cast %30 : vector<1x128xf32> to vector<128xf32>
    %32 = vector.shape_cast %31 : vector<128xf32> to vector<1x128xf32>
    %33 = vector.broadcast %32 : vector<1x128xf32> to vector<128x128xf32>
    %34 = arith.mulf %29, %33 : vector<128x128xf32>
    %35 = arith.addf %28, %34 : vector<128x128xf32>
    %c8_14 = arith.constant 8 : index
    %c0_15 = arith.constant 0 : index
    %36 = vector.load %arg14[%c8_14, %c0_15] : memref<144x128xf32, #tpu.memory_space<vmem>>, vector<128x128xf32>
    %37 = vector.extract_strided_slice %15 {offsets = [3, 0], sizes = [1, 128], strides = [1, 1]} : vector<7x128xf32> to vector<1x128xf32>
    %38 = vector.shape_cast %37 : vector<1x128xf32> to vector<128xf32>
    %39 = vector.shape_cast %38 : vector<128xf32> to vector<1x128xf32>
    %40 = vector.broadcast %39 : vector<1x128xf32> to vector<128x128xf32>
    %41 = arith.mulf %36, %40 : vector<128x128xf32>
    %42 = arith.addf %35, %41 : vector<128x128xf32>
    %c9 = arith.constant 9 : index
    %c0_16 = arith.constant 0 : index
    %43 = vector.load %arg14[%c9, %c0_16] : memref<144x128xf32, #tpu.memory_space<vmem>>, vector<128x128xf32>
    %44 = vector.extract_strided_slice %15 {offsets = [4, 0], sizes = [1, 128], strides = [1, 1]} : vector<7x128xf32> to vector<1x128xf32>
    %45 = vector.shape_cast %44 : vector<1x128xf32> to vector<128xf32>
    %46 = vector.shape_cast %45 : vector<128xf32> to vector<1x128xf32>
    %47 = vector.broadcast %46 : vector<1x128xf32> to vector<128x128xf32>
    %48 = arith.mulf %43, %47 : vector<128x128xf32>
    %49 = arith.addf %42, %48 : vector<128x128xf32>
    %c10 = arith.constant 10 : index
    %c0_17 = arith.constant 0 : index
    %50 = vector.load %arg14[%c10, %c0_17] : memref<144x128xf32, #tpu.memory_space<vmem>>, vector<128x128xf32>
    %51 = vector.extract_strided_slice %15 {offsets = [5, 0], sizes = [1, 128], strides = [1, 1]} : vector<7x128xf32> to vector<1x128xf32>
    %52 = vector.shape_cast %51 : vector<1x128xf32> to vector<128xf32>
    %53 = vector.shape_cast %52 : vector<128xf32> to vector<1x128xf32>
    %54 = vector.broadcast %53 : vector<1x128xf32> to vector<128x128xf32>
    %55 = arith.mulf %50, %54 : vector<128x128xf32>
    %56 = arith.addf %49, %55 : vector<128x128xf32>
    %c11 = arith.constant 11 : index
    %c0_18 = arith.constant 0 : index
    %57 = vector.load %arg14[%c11, %c0_18] : memref<144x128xf32, #tpu.memory_space<vmem>>, vector<128x128xf32>
    %58 = vector.extract_strided_slice %15 {offsets = [6, 0], sizes = [1, 128], strides = [1, 1]} : vector<7x128xf32> to vector<1x128xf32>
    %59 = vector.shape_cast %58 : vector<1x128xf32> to vector<128xf32>
    %60 = vector.shape_cast %59 : vector<128xf32> to vector<1x128xf32>
    %61 = vector.broadcast %60 : vector<1x128xf32> to vector<128x128xf32>
    %62 = arith.mulf %57, %61 : vector<128x128xf32>
    %63 = arith.addf %56, %62 : vector<128x128xf32>
    %c0_19 = arith.constant 0 : index
    %c0_20 = arith.constant 0 : index
    %64 = vector.load %arg6[%c0_19, %c0_20] : memref<1x128xf32, #tpu.memory_space<vmem>>, vector<1x128xf32>
    %65 = vector.shape_cast %64 : vector<1x128xf32> to vector<128xf32>
    %66 = vector.shape_cast %65 : vector<128xf32> to vector<1x128xf32>
    %67 = vector.broadcast %66 : vector<1x128xf32> to vector<128x128xf32>
    %68 = arith.addf %63, %67 : vector<128x128xf32>
    %c0_21 = arith.constant 0 : index
    %c0_22 = arith.constant 0 : index
    %69 = vector.load %arg7[%c0_21, %c0_22] : memref<1x128xf32, #tpu.memory_space<vmem>>, vector<1x128xf32>
    %70 = vector.shape_cast %69 : vector<1x128xf32> to vector<128xf32>
    %71 = vector.shape_cast %70 : vector<128xf32> to vector<1x128xf32>
    %c0_23 = arith.constant 0 : index
    %c0_24 = arith.constant 0 : index
    %72 = vector.load %arg8[%c0_23, %c0_24] : memref<1x128xf32, #tpu.memory_space<vmem>>, vector<1x128xf32>
    %73 = vector.shape_cast %72 : vector<1x128xf32> to vector<128xf32>
    %74 = vector.shape_cast %73 : vector<128xf32> to vector<1x128xf32>
    %cst = arith.constant dense<0.000000e+00> : vector<128xf32>
    %75 = vector.multi_reduction <add>, %68, %cst [1] : vector<128x128xf32> to vector<128xf32>
    %76 = vector.shape_cast %75 : vector<128xf32> to vector<128x1xf32>
    %cst_25 = arith.constant 1.280000e+02 : f32
    %77 = vector.broadcast %cst_25 : f32 to vector<128x1xf32>
    %78 = arith.divf %76, %77 : vector<128x1xf32>
    %79 = arith.mulf %68, %68 : vector<128x128xf32>
    %cst_26 = arith.constant dense<0.000000e+00> : vector<128xf32>
    %80 = vector.multi_reduction <add>, %79, %cst_26 [1] : vector<128x128xf32> to vector<128xf32>
    %81 = vector.shape_cast %80 : vector<128xf32> to vector<128x1xf32>
    %cst_27 = arith.constant 1.280000e+02 : f32
    %82 = vector.broadcast %cst_27 : f32 to vector<128x1xf32>
    %83 = arith.divf %81, %82 : vector<128x1xf32>
    %84 = arith.mulf %78, %78 : vector<128x1xf32>
    %85 = arith.subf %83, %84 : vector<128x1xf32>
    %cst_28 = arith.constant 0.000000e+00 : f32
    %86 = vector.broadcast %cst_28 : f32 to vector<128x1xf32>
    %87 = arith.maximumf %85, %86 : vector<128x1xf32>
    %88 = vector.broadcast %78 : vector<128x1xf32> to vector<128x128xf32>
    %89 = arith.subf %68, %88 : vector<128x128xf32>
    %cst_29 = arith.constant 9.99999974E-6 : f32
    %90 = vector.broadcast %cst_29 : f32 to vector<128x1xf32>
    %91 = arith.addf %87, %90 : vector<128x1xf32>
    %92 = math.rsqrt %91 : vector<128x1xf32>
    %93 = vector.broadcast %92 : vector<128x1xf32> to vector<128x128xf32>
    %94 = arith.mulf %89, %93 : vector<128x128xf32>
    %95 = vector.broadcast %71 : vector<1x128xf32> to vector<128x128xf32>
    %96 = arith.mulf %94, %95 : vector<128x128xf32>
    %97 = vector.broadcast %74 : vector<1x128xf32> to vector<128x128xf32>
    %98 = arith.addf %96, %97 : vector<128x128xf32>
    %99 = arith.truncf %98 : vector<128x128xf32> to vector<128x128xbf16>
    %c0_30 = arith.constant 0 : index
    %c0_31 = arith.constant 0 : index
    %100 = vector.load %arg9[%c0_30, %c0_31] : memref<128x512xbf16, #tpu.memory_space<vmem>>, vector<128x512xbf16>
    %cst_32 = arith.constant dense<0.000000e+00> : vector<128x512xf32>
    %101 = tpu.matmul %99, %100, %cst_32 {dimension_numbers = #tpu.dot_dimension_numbers<[1], [0], [0], [1], [0, 0, 1, 1], [], []>} : vector<128x128xbf16>, vector<128x512xbf16>, vector<128x512xf32> -> vector<128x512xf32>
    %c0_33 = arith.constant 0 : index
    %c0_34 = arith.constant 0 : index
    %102 = vector.load %arg10[%c0_33, %c0_34] : memref<1x512xf32, #tpu.memory_space<vmem>>, vector<1x512xf32>
    %103 = vector.shape_cast %102 : vector<1x512xf32> to vector<512xf32>
    %104 = vector.shape_cast %103 : vector<512xf32> to vector<1x512xf32>
    %105 = vector.broadcast %104 : vector<1x512xf32> to vector<128x512xf32>
    %106 = arith.addf %101, %105 : vector<128x512xf32>
    %107 = arith.mulf %106, %106 : vector<128x512xf32>
    %108 = arith.mulf %106, %107 : vector<128x512xf32>
    %cst_35 = arith.constant 4.471500e-02 : f32
    %109 = vector.broadcast %cst_35 : f32 to vector<128x512xf32>
    %110 = arith.mulf %109, %108 : vector<128x512xf32>
    %111 = arith.addf %106, %110 : vector<128x512xf32>
    %cst_36 = arith.constant 0.797884583 : f32
    %112 = vector.broadcast %cst_36 : f32 to vector<128x512xf32>
    %113 = arith.mulf %112, %111 : vector<128x512xf32>
    %114 = math.tanh %113 : vector<128x512xf32>
    %cst_37 = arith.constant 1.000000e+00 : f32
    %115 = vector.broadcast %cst_37 : f32 to vector<128x512xf32>
    %116 = arith.addf %115, %114 : vector<128x512xf32>
    %cst_38 = arith.constant 5.000000e-01 : f32
    %117 = vector.broadcast %cst_38 : f32 to vector<128x512xf32>
    %118 = arith.mulf %117, %116 : vector<128x512xf32>
    %119 = arith.mulf %106, %118 : vector<128x512xf32>
    %120 = arith.truncf %119 : vector<128x512xf32> to vector<128x512xbf16>
    %c0_39 = arith.constant 0 : index
    %c0_40 = arith.constant 0 : index
    %121 = vector.load %arg11[%c0_39, %c0_40] : memref<512x128xbf16, #tpu.memory_space<vmem>>, vector<512x128xbf16>
    %cst_41 = arith.constant dense<0.000000e+00> : vector<128x128xf32>
    %122 = tpu.matmul %120, %121, %cst_41 {dimension_numbers = #tpu.dot_dimension_numbers<[1], [0], [0], [1], [0, 0, 1, 1], [], []>} : vector<128x512xbf16>, vector<512x128xbf16>, vector<128x128xf32> -> vector<128x128xf32>
    %c0_42 = arith.constant 0 : index
    %c0_43 = arith.constant 0 : index
    %123 = vector.load %arg12[%c0_42, %c0_43] : memref<1x128xf32, #tpu.memory_space<vmem>>, vector<1x128xf32>
    %124 = vector.shape_cast %123 : vector<1x128xf32> to vector<128xf32>
    %125 = vector.shape_cast %124 : vector<128xf32> to vector<1x128xf32>
    %126 = vector.broadcast %125 : vector<1x128xf32> to vector<128x128xf32>
    %127 = arith.addf %122, %126 : vector<128x128xf32>
    %128 = arith.addf %1, %127 : vector<128x128xf32>
    %c0_44 = arith.constant 0 : index
    %c0_45 = arith.constant 0 : index
    %c0_46 = arith.constant 0 : index
    %129 = vector.load %arg13[%c0_44, %c0_45, %c0_46] : memref<1x128x128xf32, #tpu.memory_space<vmem>>, vector<1x128x128xf32>
    %130 = vector.shape_cast %129 : vector<1x128x128xf32> to vector<128x128xf32>
    %131 = vector.shape_cast %128 : vector<128x128xf32> to vector<1x128x128xf32>
    tpu.vector_store %arg13[%c0_44, %c0_45, %c0_46], %131 {strides = array<i32>} : memref<1x128x128xf32, #tpu.memory_space<vmem>>, vector<1x128x128xf32>,
    return
  }
  func.func @transform_0(%arg0: i32, %arg1: i32) -> (i32, i32, i32) {
    %c0_i32 = arith.constant 0 : i32
    %c0_i32_0 = arith.constant 0 : i32
    return %arg0, %arg1, %c0_i32 : i32, i32, i32
  }
  func.func @transform_1(%arg0: i32, %arg1: i32) -> (i32, i32, i32) {
    %c16_i32 = arith.constant 16 : i32
    %0 = arith.muli %arg1, %c16_i32 : i32
    %c1_i32 = arith.constant 1 : i32
    %1 = arith.subi %0, %c1_i32 : i32
    %c0_i32 = arith.constant 0 : i32
    %2 = arith.maxsi %1, %c0_i32 : i32
    %c0_i32_0 = arith.constant 0 : i32
    %c0_i32_1 = arith.constant 0 : i32
    return %arg0, %2, %c0_i32_0 : i32, i32, i32
  }
  func.func @transform_2(%arg0: i32, %arg1: i32) -> (i32, i32, i32) {
    %c1_i32 = arith.constant 1 : i32
    %0 = arith.addi %arg1, %c1_i32 : i32
    %c16_i32 = arith.constant 16 : i32
    %1 = arith.muli %0, %c16_i32 : i32
    %c31_i32 = arith.constant 31 : i32
    %2 = arith.minsi %1, %c31_i32 : i32
    %c0_i32 = arith.constant 0 : i32
    %c0_i32_0 = arith.constant 0 : i32
    return %arg0, %2, %c0_i32 : i32, i32, i32
  }
  func.func @transform_3(%arg0: i32, %arg1: i32) -> (i32, i32) {
    %c0_i32 = arith.constant 0 : i32
    %c0_i32_0 = arith.constant 0 : i32
    %c0_i32_1 = arith.constant 0 : i32
    return %c0_i32, %c0_i32_0 : i32, i32
  }
  func.func @transform_4(%arg0: i32, %arg1: i32) -> (i32, i32) {
    %c0_i32 = arith.constant 0 : i32
    %c0_i32_0 = arith.constant 0 : i32
    %c0_i32_1 = arith.constant 0 : i32
    return %c0_i32, %c0_i32_0 : i32, i32
  }
  func.func @transform_5(%arg0: i32, %arg1: i32) -> (i32, i32) {
    %c0_i32 = arith.constant 0 : i32
    %c0_i32_0 = arith.constant 0 : i32
    %c0_i32_1 = arith.constant 0 : i32
    return %c0_i32, %c0_i32_0 : i32, i32
  }
  func.func @transform_6(%arg0: i32, %arg1: i32) -> (i32, i32) {
    %c0_i32 = arith.constant 0 : i32
    %c0_i32_0 = arith.constant 0 : i32
    %c0_i32_1 = arith.constant 0 : i32
    return %c0_i32, %c0_i32_0 : i32, i32
  }
  func.func @transform_7(%arg0: i32, %arg1: i32) -> (i32, i32) {
    %c0_i32 = arith.constant 0 : i32
    %c0_i32_0 = arith.constant 0 : i32
    %c0_i32_1 = arith.constant 0 : i32
    return %c0_i32, %c0_i32_0 : i32, i32
  }
  func.func @transform_8(%arg0: i32, %arg1: i32) -> (i32, i32) {
    %c0_i32 = arith.constant 0 : i32
    %c0_i32_0 = arith.constant 0 : i32
    %c0_i32_1 = arith.constant 0 : i32
    return %c0_i32, %c0_i32_0 : i32, i32
  }
  func.func @transform_9(%arg0: i32, %arg1: i32) -> (i32, i32) {
    %c0_i32 = arith.constant 0 : i32
    %c0_i32_0 = arith.constant 0 : i32
    %c0_i32_1 = arith.constant 0 : i32
    return %c0_i32, %c0_i32_0 : i32, i32
  }
  func.func @transform_10(%arg0: i32, %arg1: i32) -> (i32, i32) {
    %c0_i32 = arith.constant 0 : i32
    %c0_i32_0 = arith.constant 0 : i32
    %c0_i32_1 = arith.constant 0 : i32
    return %c0_i32, %c0_i32_0 : i32, i32
  }
  func.func @transform_11(%arg0: i32, %arg1: i32) -> (i32, i32, i32) {
    %c0_i32 = arith.constant 0 : i32
    %c0_i32_0 = arith.constant 0 : i32
    return %arg0, %arg1, %c0_i32 : i32, i32, i32
  }
}

module attributes {stable_mosaic.version = 11 : i64} {
  func.func @_block_kernel(%arg0: i32, %arg1: i32, %arg2: memref<1x128x128xf32, #tpu.memory_space<vmem>>, %arg3: memref<1x8x128xf32, #tpu.memory_space<vmem>>, %arg4: memref<1x8x128xf32, #tpu.memory_space<vmem>>, %arg5: memref<7x128xf32, #tpu.memory_space<vmem>>, %arg6: memref<1x128xf32, #tpu.memory_space<vmem>>, %arg7: memref<1x128xf32, #tpu.memory_space<vmem>>, %arg8: memref<1x128xf32, #tpu.memory_space<vmem>>, %arg9: memref<128x512xbf16, #tpu.memory_space<vmem>>, %arg10: memref<1x512xf32, #tpu.memory_space<vmem>>, %arg11: memref<512x128xbf16, #tpu.memory_space<vmem>>, %arg12: memref<1x128xf32, #tpu.memory_space<vmem>>, %arg13: memref<1x128x128xf32, #tpu.memory_space<vmem>>, %arg14: memref<144x128xf32, #tpu.memory_space<vmem>>) attributes {dimension_semantics = [#tpu.dimension_semantics<parallel>, #tpu.dimension_semantics<parallel>], iteration_bounds = array<i64: 2, 2>, scalar_prefetch = 0 : i64, scratch_operands = 1 : i64, tpu.core_type = #tpu.core_type<tc>, window_params = [{transform_indices = @transform_0, window_bounds = array<i64: 1, 128, 128>}, {transform_indices = @transform_1, window_bounds = array<i64: 1, 8, 128>}, {transform_indices = @transform_2, window_bounds = array<i64: 1, 8, 128>}, {pipeline_mode = #tpu.pipeline_mode<synchronous>, transform_indices = @transform_3, window_bounds = array<i64: 7, 128>}, {pipeline_mode = #tpu.pipeline_mode<synchronous>, transform_indices = @transform_4, window_bounds = array<i64: 1, 128>}, {pipeline_mode = #tpu.pipeline_mode<synchronous>, transform_indices = @transform_5, window_bounds = array<i64: 1, 128>}, {pipeline_mode = #tpu.pipeline_mode<synchronous>, transform_indices = @transform_6, window_bounds = array<i64: 1, 128>}, {pipeline_mode = #tpu.pipeline_mode<synchronous>, transform_indices = @transform_7, window_bounds = array<i64: 128, 512>}, {pipeline_mode = #tpu.pipeline_mode<synchronous>, transform_indices = @transform_8, window_bounds = array<i64: 1, 512>}, {pipeline_mode = #tpu.pipeline_mode<synchronous>, transform_indices = @transform_9, window_bounds = array<i64: 512, 128>}, {pipeline_mode = #tpu.pipeline_mode<synchronous>, transform_indices = @transform_10, window_bounds = array<i64: 1, 128>}, {transform_indices = @transform_11, window_bounds = array<i64: 1, 128, 128>}]} {
    %c0 = arith.constant 0 : index
    %c0_0 = arith.constant 0 : index
    %c0_1 = arith.constant 0 : index
    %0 = vector.load %arg2[%c0, %c0_0, %c0_1] : memref<1x128x128xf32, #tpu.memory_space<vmem>>, vector<1x128x128xf32>
    %1 = vector.shape_cast %0 : vector<1x128x128xf32> to vector<128x128xf32>
    %c8 = arith.constant 8 : index
    %c0_2 = arith.constant 0 : index
    %2 = vector.load %arg14[%c8, %c0_2] : memref<144x128xf32, #tpu.memory_space<vmem>>, vector<128x128xf32>
    tpu.vector_store %arg14[%c8, %c0_2], %1 {strides = array<i32>} : memref<144x128xf32, #tpu.memory_space<vmem>>, vector<128x128xf32>,
    %c0_i32 = arith.constant 0 : i32
    %3 = arith.cmpi sgt, %arg1, %c0_i32 : i32
    %4 = arith.extui %3 : i1 to i32
    %c0_i32_3 = arith.constant 0 : i32
    %5 = arith.cmpi ne, %4, %c0_i32_3 : i32
    scf.if %5 {
      %c0_47 = arith.constant 0 : index
      %c0_48 = arith.constant 0 : index
      %c0_49 = arith.constant 0 : index
      %132 = vector.load %arg3[%c0_47, %c0_48, %c0_49] : memref<1x8x128xf32, #tpu.memory_space<vmem>>, vector<1x8x128xf32>
      %133 = vector.shape_cast %132 : vector<1x8x128xf32> to vector<8x128xf32>
      %c0_50 = arith.constant 0 : index
      %c0_51 = arith.constant 0 : index
      %134 = vector.load %arg14[%c0_50, %c0_51] : memref<144x128xf32, #tpu.memory_space<vmem>>, vector<8x128xf32>
      tpu.vector_store %arg14[%c0_50, %c0_51], %133 {strides = array<i32>} : memref<144x128xf32, #tpu.memory_space<vmem>>, vector<8x128xf32>,
    } else {
    }
    %c0_i32_4 = arith.constant 0 : i32
    %6 = arith.cmpi eq, %arg1, %c0_i32_4 : i32
    %7 = arith.extui %6 : i1 to i32
    %c0_i32_5 = arith.constant 0 : i32
    %8 = arith.cmpi ne, %7, %c0_i32_5 : i32
    scf.if %8 {
      %cst_47 = arith.constant 0.000000e+00 : f32
      %132 = vector.broadcast %cst_47 : f32 to vector<8x128xf32>
      %c0_48 = arith.constant 0 : index
      %c0_49 = arith.constant 0 : index
      %133 = vector.load %arg14[%c0_48, %c0_49] : memref<144x128xf32, #tpu.memory_space<vmem>>, vector<8x128xf32>
      tpu.vector_store %arg14[%c0_48, %c0_49], %132 {strides = array<i32>} : memref<144x128xf32, #tpu.memory_space<vmem>>, vector<8x128xf32>,
    } else {
    }
    %c1_i32 = arith.constant 1 : i32
    %9 = arith.cmpi slt, %arg1, %c1_i32 : i32
    %10 = arith.extui %9 : i1 to i32
    %c0_i32_6 = arith.constant 0 : i32
    %11 = arith.cmpi ne, %10, %c0_i32_6 : i32
    scf.if %11 {
      %c0_47 = arith.constant 0 : index
      %c0_48 = arith.constant 0 : index
      %c0_49 = arith.constant 0 : index
      %132 = vector.load %arg4[%c0_47, %c0_48, %c0_49] : memref<1x8x128xf32, #tpu.memory_space<vmem>>, vector<1x8x128xf32>
      %133 = vector.shape_cast %132 : vector<1x8x128xf32> to vector<8x128xf32>
      %c136 = arith.constant 136 : index
      %c0_50 = arith.constant 0 : index
      %134 = vector.load %arg14[%c136, %c0_50] : memref<144x128xf32, #tpu.memory_space<vmem>>, vector<8x128xf32>
      tpu.vector_store %arg14[%c136, %c0_50], %133 {strides = array<i32>} : memref<144x128xf32, #tpu.memory_space<vmem>>, vector<8x128xf32>,
    } else {
    }
    %c1_i32_7 = arith.constant 1 : i32
    %12 = arith.cmpi eq, %arg1, %c1_i32_7 : i32
    %13 = arith.extui %12 : i1 to i32
    %c0_i32_8 = arith.constant 0 : i32
    %14 = arith.cmpi ne, %13, %c0_i32_8 : i32
    scf.if %14 {
      %cst_47 = arith.constant 0.000000e+00 : f32
      %132 = vector.broadcast %cst_47 : f32 to vector<8x128xf32>
      %c136 = arith.constant 136 : index
      %c0_48 = arith.constant 0 : index
      %133 = vector.load %arg14[%c136, %c0_48] : memref<144x128xf32, #tpu.memory_space<vmem>>, vector<8x128xf32>
      tpu.vector_store %arg14[%c136, %c0_48], %132 {strides = array<i32>} : memref<144x128xf32, #tpu.memory_space<vmem>>, vector<8x128xf32>,
    } else {
    }
    %c0_9 = arith.constant 0 : index
    %c0_10 = arith.constant 0 : index
    %15 = vector.load %arg5[%c0_9, %c0_10] : memref<7x128xf32, #tpu.memory_space<vmem>>, vector<7x128xf32>
    %c5 = arith.constant 5 : index
    %c0_11 = arith.constant 0 : index
    %16 = vector.load %arg14[%c5, %c0_11] : memref<144x128xf32, #tpu.memory_space<vmem>>, vector<128x128xf32>
    %17 = vector.extract_strided_slice %15 {offsets = [0, 0], sizes = [1, 128], strides = [1, 1]} : vector<7x128xf32> to vector<1x128xf32>
    %18 = vector.shape_cast %17 : vector<1x128xf32> to vector<128xf32>
    %19 = vector.shape_cast %18 : vector<128xf32> to vector<1x128xf32>
    %20 = vector.broadcast %19 : vector<1x128xf32> to vector<128x128xf32>
    %21 = arith.mulf %16, %20 : vector<128x128xf32>
    %c6 = arith.constant 6 : index
    %c0_12 = arith.constant 0 : index
    %22 = vector.load %arg14[%c6, %c0_12] : memref<144x128xf32, #tpu.memory_space<vmem>>, vector<128x128xf32>
    %23 = vector.extract_strided_slice %15 {offsets = [1, 0], sizes = [1, 128], strides = [1, 1]} : vector<7x128xf32> to vector<1x128xf32>
    %24 = vector.shape_cast %23 : vector<1x128xf32> to vector<128xf32>
    %25 = vector.shape_cast %24 : vector<128xf32> to vector<1x128xf32>
    %26 = vector.broadcast %25 : vector<1x128xf32> to vector<128x128xf32>
    %27 = arith.mulf %22, %26 : vector<128x128xf32>
    %28 = arith.addf %21, %27 : vector<128x128xf32>
    %c7 = arith.constant 7 : index
    %c0_13 = arith.constant 0 : index
    %29 = vector.load %arg14[%c7, %c0_13] : memref<144x128xf32, #tpu.memory_space<vmem>>, vector<128x128xf32>
    %30 = vector.extract_strided_slice %15 {offsets = [2, 0], sizes = [1, 128], strides = [1, 1]} : vector<7x128xf32> to vector<1x128xf32>
    %31 = vector.shape_cast %30 : vector<1x128xf32> to vector<128xf32>
    %32 = vector.shape_cast %31 : vector<128xf32> to vector<1x128xf32>
    %33 = vector.broadcast %32 : vector<1x128xf32> to vector<128x128xf32>
    %34 = arith.mulf %29, %33 : vector<128x128xf32>
    %35 = arith.addf %28, %34 : vector<128x128xf32>
    %c8_14 = arith.constant 8 : index
    %c0_15 = arith.constant 0 : index
    %36 = vector.load %arg14[%c8_14, %c0_15] : memref<144x128xf32, #tpu.memory_space<vmem>>, vector<128x128xf32>
    %37 = vector.extract_strided_slice %15 {offsets = [3, 0], sizes = [1, 128], strides = [1, 1]} : vector<7x128xf32> to vector<1x128xf32>
    %38 = vector.shape_cast %37 : vector<1x128xf32> to vector<128xf32>
    %39 = vector.shape_cast %38 : vector<128xf32> to vector<1x128xf32>
    %40 = vector.broadcast %39 : vector<1x128xf32> to vector<128x128xf32>
    %41 = arith.mulf %36, %40 : vector<128x128xf32>
    %42 = arith.addf %35, %41 : vector<128x128xf32>
    %c9 = arith.constant 9 : index
    %c0_16 = arith.constant 0 : index
    %43 = vector.load %arg14[%c9, %c0_16] : memref<144x128xf32, #tpu.memory_space<vmem>>, vector<128x128xf32>
    %44 = vector.extract_strided_slice %15 {offsets = [4, 0], sizes = [1, 128], strides = [1, 1]} : vector<7x128xf32> to vector<1x128xf32>
    %45 = vector.shape_cast %44 : vector<1x128xf32> to vector<128xf32>
    %46 = vector.shape_cast %45 : vector<128xf32> to vector<1x128xf32>
    %47 = vector.broadcast %46 : vector<1x128xf32> to vector<128x128xf32>
    %48 = arith.mulf %43, %47 : vector<128x128xf32>
    %49 = arith.addf %42, %48 : vector<128x128xf32>
    %c10 = arith.constant 10 : index
    %c0_17 = arith.constant 0 : index
    %50 = vector.load %arg14[%c10, %c0_17] : memref<144x128xf32, #tpu.memory_space<vmem>>, vector<128x128xf32>
    %51 = vector.extract_strided_slice %15 {offsets = [5, 0], sizes = [1, 128], strides = [1, 1]} : vector<7x128xf32> to vector<1x128xf32>
    %52 = vector.shape_cast %51 : vector<1x128xf32> to vector<128xf32>
    %53 = vector.shape_cast %52 : vector<128xf32> to vector<1x128xf32>
    %54 = vector.broadcast %53 : vector<1x128xf32> to vector<128x128xf32>
    %55 = arith.mulf %50, %54 : vector<128x128xf32>
    %56 = arith.addf %49, %55 : vector<128x128xf32>
    %c11 = arith.constant 11 : index
    %c0_18 = arith.constant 0 : index
    %57 = vector.load %arg14[%c11, %c0_18] : memref<144x128xf32, #tpu.memory_space<vmem>>, vector<128x128xf32>
    %58 = vector.extract_strided_slice %15 {offsets = [6, 0], sizes = [1, 128], strides = [1, 1]} : vector<7x128xf32> to vector<1x128xf32>
    %59 = vector.shape_cast %58 : vector<1x128xf32> to vector<128xf32>
    %60 = vector.shape_cast %59 : vector<128xf32> to vector<1x128xf32>
    %61 = vector.broadcast %60 : vector<1x128xf32> to vector<128x128xf32>
    %62 = arith.mulf %57, %61 : vector<128x128xf32>
    %63 = arith.addf %56, %62 : vector<128x128xf32>
    %c0_19 = arith.constant 0 : index
    %c0_20 = arith.constant 0 : index
    %64 = vector.load %arg6[%c0_19, %c0_20] : memref<1x128xf32, #tpu.memory_space<vmem>>, vector<1x128xf32>
    %65 = vector.shape_cast %64 : vector<1x128xf32> to vector<128xf32>
    %66 = vector.shape_cast %65 : vector<128xf32> to vector<1x128xf32>
    %67 = vector.broadcast %66 : vector<1x128xf32> to vector<128x128xf32>
    %68 = arith.addf %63, %67 : vector<128x128xf32>
    %c0_21 = arith.constant 0 : index
    %c0_22 = arith.constant 0 : index
    %69 = vector.load %arg7[%c0_21, %c0_22] : memref<1x128xf32, #tpu.memory_space<vmem>>, vector<1x128xf32>
    %70 = vector.shape_cast %69 : vector<1x128xf32> to vector<128xf32>
    %71 = vector.shape_cast %70 : vector<128xf32> to vector<1x128xf32>
    %c0_23 = arith.constant 0 : index
    %c0_24 = arith.constant 0 : index
    %72 = vector.load %arg8[%c0_23, %c0_24] : memref<1x128xf32, #tpu.memory_space<vmem>>, vector<1x128xf32>
    %73 = vector.shape_cast %72 : vector<1x128xf32> to vector<128xf32>
    %74 = vector.shape_cast %73 : vector<128xf32> to vector<1x128xf32>
    %cst = arith.constant dense<0.000000e+00> : vector<128xf32>
    %75 = vector.multi_reduction <add>, %68, %cst [1] : vector<128x128xf32> to vector<128xf32>
    %76 = vector.shape_cast %75 : vector<128xf32> to vector<128x1xf32>
    %cst_25 = arith.constant 1.280000e+02 : f32
    %77 = vector.broadcast %cst_25 : f32 to vector<128x1xf32>
    %78 = arith.divf %76, %77 : vector<128x1xf32>
    %79 = arith.mulf %68, %68 : vector<128x128xf32>
    %cst_26 = arith.constant dense<0.000000e+00> : vector<128xf32>
    %80 = vector.multi_reduction <add>, %79, %cst_26 [1] : vector<128x128xf32> to vector<128xf32>
    %81 = vector.shape_cast %80 : vector<128xf32> to vector<128x1xf32>
    %cst_27 = arith.constant 1.280000e+02 : f32
    %82 = vector.broadcast %cst_27 : f32 to vector<128x1xf32>
    %83 = arith.divf %81, %82 : vector<128x1xf32>
    %84 = arith.mulf %78, %78 : vector<128x1xf32>
    %85 = arith.subf %83, %84 : vector<128x1xf32>
    %cst_28 = arith.constant 0.000000e+00 : f32
    %86 = vector.broadcast %cst_28 : f32 to vector<128x1xf32>
    %87 = arith.maximumf %85, %86 : vector<128x1xf32>
    %88 = vector.broadcast %78 : vector<128x1xf32> to vector<128x128xf32>
    %89 = arith.subf %68, %88 : vector<128x128xf32>
    %cst_29 = arith.constant 9.99999974E-6 : f32
    %90 = vector.broadcast %cst_29 : f32 to vector<128x1xf32>
    %91 = arith.addf %87, %90 : vector<128x1xf32>
    %92 = math.rsqrt %91 : vector<128x1xf32>
    %93 = vector.broadcast %92 : vector<128x1xf32> to vector<128x128xf32>
    %94 = arith.mulf %89, %93 : vector<128x128xf32>
    %95 = vector.broadcast %71 : vector<1x128xf32> to vector<128x128xf32>
    %96 = arith.mulf %94, %95 : vector<128x128xf32>
    %97 = vector.broadcast %74 : vector<1x128xf32> to vector<128x128xf32>
    %98 = arith.addf %96, %97 : vector<128x128xf32>
    %99 = arith.truncf %98 : vector<128x128xf32> to vector<128x128xbf16>
    %c0_30 = arith.constant 0 : index
    %c0_31 = arith.constant 0 : index
    %100 = vector.load %arg9[%c0_30, %c0_31] : memref<128x512xbf16, #tpu.memory_space<vmem>>, vector<128x512xbf16>
    %cst_32 = arith.constant dense<0.000000e+00> : vector<128x512xf32>
    %101 = tpu.matmul %99, %100, %cst_32 {dimension_numbers = #tpu.dot_dimension_numbers<[1], [0], [0], [1], [0, 0, 1, 1], [], []>} : vector<128x128xbf16>, vector<128x512xbf16>, vector<128x512xf32> -> vector<128x512xf32>
    %c0_33 = arith.constant 0 : index
    %c0_34 = arith.constant 0 : index
    %102 = vector.load %arg10[%c0_33, %c0_34] : memref<1x512xf32, #tpu.memory_space<vmem>>, vector<1x512xf32>
    %103 = vector.shape_cast %102 : vector<1x512xf32> to vector<512xf32>
    %104 = vector.shape_cast %103 : vector<512xf32> to vector<1x512xf32>
    %105 = vector.broadcast %104 : vector<1x512xf32> to vector<128x512xf32>
    %106 = arith.addf %101, %105 : vector<128x512xf32>
    %107 = arith.mulf %106, %106 : vector<128x512xf32>
    %108 = arith.mulf %106, %107 : vector<128x512xf32>
    %cst_35 = arith.constant 4.471500e-02 : f32
    %109 = vector.broadcast %cst_35 : f32 to vector<128x512xf32>
    %110 = arith.mulf %109, %108 : vector<128x512xf32>
    %111 = arith.addf %106, %110 : vector<128x512xf32>
    %cst_36 = arith.constant 0.797884583 : f32
    %112 = vector.broadcast %cst_36 : f32 to vector<128x512xf32>
    %113 = arith.mulf %112, %111 : vector<128x512xf32>
    %114 = math.tanh %113 : vector<128x512xf32>
    %cst_37 = arith.constant 1.000000e+00 : f32
    %115 = vector.broadcast %cst_37 : f32 to vector<128x512xf32>
    %116 = arith.addf %115, %114 : vector<128x512xf32>
    %cst_38 = arith.constant 5.000000e-01 : f32
    %117 = vector.broadcast %cst_38 : f32 to vector<128x512xf32>
    %118 = arith.mulf %117, %116 : vector<128x512xf32>
    %119 = arith.mulf %106, %118 : vector<128x512xf32>
    %120 = arith.truncf %119 : vector<128x512xf32> to vector<128x512xbf16>
    %c0_39 = arith.constant 0 : index
    %c0_40 = arith.constant 0 : index
    %121 = vector.load %arg11[%c0_39, %c0_40] : memref<512x128xbf16, #tpu.memory_space<vmem>>, vector<512x128xbf16>
    %cst_41 = arith.constant dense<0.000000e+00> : vector<128x128xf32>
    %122 = tpu.matmul %120, %121, %cst_41 {dimension_numbers = #tpu.dot_dimension_numbers<[1], [0], [0], [1], [0, 0, 1, 1], [], []>} : vector<128x512xbf16>, vector<512x128xbf16>, vector<128x128xf32> -> vector<128x128xf32>
    %c0_42 = arith.constant 0 : index
    %c0_43 = arith.constant 0 : index
    %123 = vector.load %arg12[%c0_42, %c0_43] : memref<1x128xf32, #tpu.memory_space<vmem>>, vector<1x128xf32>
    %124 = vector.shape_cast %123 : vector<1x128xf32> to vector<128xf32>
    %125 = vector.shape_cast %124 : vector<128xf32> to vector<1x128xf32>
    %126 = vector.broadcast %125 : vector<1x128xf32> to vector<128x128xf32>
    %127 = arith.addf %122, %126 : vector<128x128xf32>
    %128 = arith.addf %1, %127 : vector<128x128xf32>
    %c0_44 = arith.constant 0 : index
    %c0_45 = arith.constant 0 : index
    %c0_46 = arith.constant 0 : index
    %129 = vector.load %arg13[%c0_44, %c0_45, %c0_46] : memref<1x128x128xf32, #tpu.memory_space<vmem>>, vector<1x128x128xf32>
    %130 = vector.shape_cast %129 : vector<1x128x128xf32> to vector<128x128xf32>
    %131 = vector.shape_cast %128 : vector<128x128xf32> to vector<1x128x128xf32>
    tpu.vector_store %arg13[%c0_44, %c0_45, %c0_46], %131 {strides = array<i32>} : memref<1x128x128xf32, #tpu.memory_space<vmem>>, vector<1x128x128xf32>,
    return
  }
  func.func @transform_0(%arg0: i32, %arg1: i32) -> (i32, i32, i32) {
    %c0_i32 = arith.constant 0 : i32
    %c0_i32_0 = arith.constant 0 : i32
    return %arg0, %arg1, %c0_i32 : i32, i32, i32
  }
  func.func @transform_1(%arg0: i32, %arg1: i32) -> (i32, i32, i32) {
    %c16_i32 = arith.constant 16 : i32
    %0 = arith.muli %arg1, %c16_i32 : i32
    %c1_i32 = arith.constant 1 : i32
    %1 = arith.subi %0, %c1_i32 : i32
    %c0_i32 = arith.constant 0 : i32
    %2 = arith.maxsi %1, %c0_i32 : i32
    %c0_i32_0 = arith.constant 0 : i32
    %c0_i32_1 = arith.constant 0 : i32
    return %arg0, %2, %c0_i32_0 : i32, i32, i32
  }
  func.func @transform_2(%arg0: i32, %arg1: i32) -> (i32, i32, i32) {
    %c1_i32 = arith.constant 1 : i32
    %0 = arith.addi %arg1, %c1_i32 : i32
    %c16_i32 = arith.constant 16 : i32
    %1 = arith.muli %0, %c16_i32 : i32
    %c31_i32 = arith.constant 31 : i32
    %2 = arith.minsi %1, %c31_i32 : i32
    %c0_i32 = arith.constant 0 : i32
    %c0_i32_0 = arith.constant 0 : i32
    return %arg0, %2, %c0_i32 : i32, i32, i32
  }
  func.func @transform_3(%arg0: i32, %arg1: i32) -> (i32, i32) {
    %c0_i32 = arith.constant 0 : i32
    %c0_i32_0 = arith.constant 0 : i32
    %c0_i32_1 = arith.constant 0 : i32
    return %c0_i32, %c0_i32_0 : i32, i32
  }
  func.func @transform_4(%arg0: i32, %arg1: i32) -> (i32, i32) {
    %c0_i32 = arith.constant 0 : i32
    %c0_i32_0 = arith.constant 0 : i32
    %c0_i32_1 = arith.constant 0 : i32
    return %c0_i32, %c0_i32_0 : i32, i32
  }
  func.func @transform_5(%arg0: i32, %arg1: i32) -> (i32, i32) {
    %c0_i32 = arith.constant 0 : i32
    %c0_i32_0 = arith.constant 0 : i32
    %c0_i32_1 = arith.constant 0 : i32
    return %c0_i32, %c0_i32_0 : i32, i32
  }
  func.func @transform_6(%arg0: i32, %arg1: i32) -> (i32, i32) {
    %c0_i32 = arith.constant 0 : i32
    %c0_i32_0 = arith.constant 0 : i32
    %c0_i32_1 = arith.constant 0 : i32
    return %c0_i32, %c0_i32_0 : i32, i32
  }
  func.func @transform_7(%arg0: i32, %arg1: i32) -> (i32, i32) {
    %c0_i32 = arith.constant 0 : i32
    %c0_i32_0 = arith.constant 0 : i32
    %c0_i32_1 = arith.constant 0 : i32
    return %c0_i32, %c0_i32_0 : i32, i32
  }
  func.func @transform_8(%arg0: i32, %arg1: i32) -> (i32, i32) {
    %c0_i32 = arith.constant 0 : i32
    %c0_i32_0 = arith.constant 0 : i32
    %c0_i32_1 = arith.constant 0 : i32
    return %c0_i32, %c0_i32_0 : i32, i32
  }
  func.func @transform_9(%arg0: i32, %arg1: i32) -> (i32, i32) {
    %c0_i32 = arith.constant 0 : i32
    %c0_i32_0 = arith.constant 0 : i32
    %c0_i32_1 = arith.constant 0 : i32
    return %c0_i32, %c0_i32_0 : i32, i32
  }
  func.func @transform_10(%arg0: i32, %arg1: i32) -> (i32, i32) {
    %c0_i32 = arith.constant 0 : i32
    %c0_i32_0 = arith.constant 0 : i32
    %c0_i32_1 = arith.constant 0 : i32
    return %c0_i32, %c0_i32_0 : i32, i32
  }
  func.func @transform_11(%arg0: i32, %arg1: i32) -> (i32, i32, i32) {
    %c0_i32 = arith.constant 0 : i32
    %c0_i32_0 = arith.constant 0 : i32
    return %arg0, %arg1, %c0_i32 : i32, i32, i32
  }
}

</mosaic_0001>

<llo_original>
// kernel: tpu_custom_call.1
$region0: #{tpu_custom_call.1}
  #allocation0 [shape = 'u32[]', space=smem, size = 0x4, offset = 0x4, fixed_abs, tag = 'smem constant byte address 0x4 - core index']
  #allocation1 [shape = 'u32[144,128]{1,0:T(1,128)}', space=vmem, size = 0x12000, scoped, tag = 'internal scratch']
  #allocation2 [shape = 'f32[144,128]{1,0:T(8,128)}', space=vmem, size = 0x12000, scoped, tag = 'scratch operand']
  %s0 = inlined_call_operand.hbm [shape: f32[2,256,128], index: 0, kind: input, shape index: {}]
  %s1 = inlined_call_operand.hbm [shape: f32[2,256,128], index: 1, kind: input, shape index: {}]
  %s2 = inlined_call_operand.hbm [shape: f32[2,256,128], index: 2, kind: input, shape index: {}]
  %s3 = inlined_call_operand.hbm [shape: f32[7,128], index: 3, kind: input, shape index: {}]
  %s4 = inlined_call_operand.vmem [shape: f32[1,128], index: 4, kind: input, shape index: {}]
  %s5 = inlined_call_operand.vmem [shape: f32[1,128], index: 5, kind: input, shape index: {}]
  %s6 = inlined_call_operand.vmem [shape: f32[1,128], index: 6, kind: input, shape index: {}]
  %s7 = inlined_call_operand.hbm [shape: bf16[128,512], index: 7, kind: input, shape index: {}]
  %s8 = inlined_call_operand.vmem [shape: f32[1,512], index: 8, kind: input, shape index: {}]
  %s9 = inlined_call_operand.hbm [shape: bf16[512,128], index: 9, kind: input, shape index: {}]
  %s10 = inlined_call_operand.vmem [shape: f32[1,128], index: 10, kind: input, shape index: {}]
  %s11 = inlined_call_operand.hbm [shape: f32[2,256,128], index: 11, kind: output, shape index: {}]
  %s12 = sld [smem:[#allocation0]]
  $region117: #{tpu_custom_call.1} parent=0
    _
  %s14 = ssub.s32 1, %s12
  %s15 = scalar_select 0, %s14, %s12
  $region1: #{tpu_custom_call.1} parent=0
    #allocation3 [shape = 'u8[131072]{0}', space=vmem, size = 0x20000, scoped, tag = 'input window, operand 0']
    #allocation4 [shape = 's32[2]{0}', space=sflag, size = 0x8, scoped, tag = 'scoped memory for tpu_custom_call.1']
    #allocation5 [shape = 's32[2]{0}', space=sflag, size = 0x8, scoped, tag = 'scoped memory for tpu_custom_call.1']
    #allocation6 [shape = 'u8[8192]{0}', space=vmem, size = 0x2000, scoped, tag = 'input window, operand 1']
    #allocation7 [shape = 's32[2]{0}', space=sflag, size = 0x8, scoped, tag = 'scoped memory for tpu_custom_call.1']
    #allocation8 [shape = 'u8[8192]{0}', space=vmem, size = 0x2000, scoped, tag = 'input window, operand 2']
    #allocation9 [shape = 'u8[4096]{0}', space=vmem, size = 0x1000, scoped, tag = 'input window, operand 3, single buffered']
    #allocation10 [shape = 's32[1]{0}', space=sflag, size = 0x4, scoped, tag = 'scoped memory for tpu_custom_call.1']
    #allocation11 [shape = 'u8[131072]{0}', space=vmem, size = 0x20000, scoped, tag = 'input window, operand 7, single buffered']
    #allocation12 [shape = 'u8[131072]{0}', space=vmem, size = 0x20000, scoped, tag = 'input window, operand 9, single buffered']
    #allocation13 [shape = 's32[1]{0}', space=sflag, size = 0x4, scoped, tag = 'scoped memory for tpu_custom_call.1']
    #allocation14 [shape = 'u8[131072]{0}', space=vmem, size = 0x20000, scoped, tag = 'output window, operand 0']
    %16 = vsyncpa [#allocation4], 0
    %s17 = scalar_lea.sflag [#allocation4], 1
    %18 = vsyncpa %s17, 0
    %19 = vsyncpa [#allocation7], 0
    %s20 = scalar_lea.sflag [#allocation7], 1
    %21 = vsyncpa %s20, 0
    %22 = vsyncpa [#allocation10], 0
    %23 = vsyncpa [#allocation13], 0
    %24 = vsyncpa [#allocation5], 0
    %s25 = scalar_lea.sflag [#allocation5], 1
    %26 = vsyncpa %s25, 0
    loop: start=0, step=1, limit=6
    $region2: #{tpu_custom_call.1} parent=1 // loop_pre_header
      _
    $region3: #{tpu_custom_call.1} parent=1 // loop_header
      %s28 = sphi 0, %s32
      %p29 = scmp.ge.s32.totalorder %s28, 6
      %s35 = sphi 0, %s47
      %s36 = sphi 0, %s43
      %s37 = sphi 0, %s35
      %s38 = sphi 0, %s36
      %s39 = sphi 0, %s37
      %s40 = sphi 0, %s38
      %s52 = sphi 0, %s54
      %s55 = sphi 0, %s52
      %s56 = sphi 0, %s55
      %s72 = sphi 0, %s56
      %s88 = sphi 0, %s90
      %s91 = sphi 0, %s88
      %s92 = sphi 0, %s91
      %s108 = sphi 0, %s92
      %s124 = sphi 0, %s126
      %s127 = sphi 0, %s124
      %s128 = sphi 0, %s127
      %s144 = sphi 0, %s128
      %s148 = sphi 0, %s148
      %s150 = sphi 0, %s148
      %s151 = sphi 0, %s150
      %s165 = sphi 0, %s151
      %s169 = sphi 0, %s169
      %s171 = sphi 0, %s169
      %s172 = sphi 0, %s171
      %s186 = sphi 0, %s172
      %s190 = sphi 0, %s190
      %s192 = sphi 0, %s190
      %s193 = sphi 0, %s192
      %s207 = sphi 0, %s193
      %s211 = sphi 0, %s211
      %s213 = sphi 0, %s211
      %s214 = sphi 0, %s213
      %s228 = sphi 0, %s214
      %s232 = sphi 0, %s232
      %s234 = sphi 0, %s232
      %s235 = sphi 0, %s234
      %s249 = sphi 0, %s235
      %s253 = sphi 0, %s253
      %s255 = sphi 0, %s253
      %s256 = sphi 0, %s255
      %s270 = sphi 0, %s256
      %s274 = sphi 0, %s274
      %s276 = sphi 0, %s274
      %s277 = sphi 0, %s276
      %s291 = sphi 0, %s277
      %s295 = sphi 0, %s295
      %s297 = sphi 0, %s295
      %s298 = sphi 0, %s297
      %s312 = sphi 0, %s298
      %s320 = sphi 0, %s322
      %s323 = sphi 0, %s320
      %s324 = sphi 0, %s323
      %s340 = sphi 0, %s324
    $region4: #{tpu_custom_call.1} parent=1 // loop_header_branch
      %31 = sbr.rel (%p29) target = $region8
    $region5: #{tpu_custom_call.1} parent=1 // loop_body
      %s33 = ssub.s32 %s28, 1
      %s34 = ssub.s32 %s28, 2
      %s41 = sadd.s32 1, %s36
      %p42 = scmp.ge.s32.totalorder %s41, 2
      %s43 = scalar_select %p42, 0, %s41
      %s44 = sadd.s32 1, %s35
      %s45 = scalar_select %p42, %s44, %s35
      %p46 = scmp.ge.s32.totalorder %s45, 2
      %s47 = scalar_select %p46, 0, %s45
      %s48 = ssub.s32 %s35, %s47
      %s49 = ssub.s32 %s36, %s43
      %s50 = sor.u32 %s48, %s49
      %p51 = scmp.eq.s32.totalorder %s50, 0
      %s53 = sadd.s32 %s52, 1
      %s54 = scalar_select %p51, %s52, %s53
      %p57 = pneg %p51
      %p58 = scmp.eq.s32.totalorder %s28, 3
      %p59 = por %p57, %p58
      %p60 = scmp.ne.s32.totalorder %s52, %s55
      %p61 = scmp.eq.s32.totalorder %s28, 0
      %p62 = por %p60, %p61
      %p63 = scmp.ne.s32.totalorder %s52, %s55
      %p64 = scmp.eq.s32.totalorder %s33, 3
      %p65 = por %p63, %p64
      %p66 = scmp.ne.s32.totalorder %s55, %s56
      %p67 = scmp.eq.s32.totalorder %s33, 0
      %p68 = por %p66, %p67
      %p69 = scmp.ne.s32.totalorder %s55, %s56
      %p70 = scmp.eq.s32.totalorder %s34, 3
      %p71 = por %p69, %p70
      %p73 = scmp.ne.s32.totalorder %s56, %s72
      %p74 = scmp.eq.s32.totalorder %s34, 0
      %p75 = por %p73, %p74
      %s76 = smul.u32 %s36, 16
      %s77 = ssub.s32 %s76, 1
      %p78 = scmp.gt.s32.totalorder %s77, 0
      %s79 = scalar_select %p78, %s77, 0
      %s80 = smul.u32 %s43, 16
      %s81 = ssub.s32 %s80, 1
      %p82 = scmp.gt.s32.totalorder %s81, 0
      %s83 = scalar_select %p82, %s81, 0
      %s84 = ssub.s32 %s35, %s47
      %s85 = ssub.s32 %s79, %s83
      %s86 = sor.u32 %s84, %s85
      %p87 = scmp.eq.s32.totalorder %s86, 0
      %s89 = sadd.s32 %s88, 1
      %s90 = scalar_select %p87, %s88, %s89
      %p93 = pneg %p87
      %p94 = scmp.eq.s32.totalorder %s28, 3
      %p95 = por %p93, %p94
      %p96 = scmp.ne.s32.totalorder %s88, %s91
      %p97 = scmp.eq.s32.totalorder %s28, 0
      %p98 = por %p96, %p97
      %p99 = scmp.ne.s32.totalorder %s88, %s91
      %p100 = scmp.eq.s32.totalorder %s33, 3
      %p101 = por %p99, %p100
      %p102 = scmp.ne.s32.totalorder %s91, %s92
      %p103 = scmp.eq.s32.totalorder %s33, 0
      %p104 = por %p102, %p103
      %p105 = scmp.ne.s32.totalorder %s91, %s92
      %p106 = scmp.eq.s32.totalorder %s34, 3
      %p107 = por %p105, %p106
      %p109 = scmp.ne.s32.totalorder %s92, %s108
      %p110 = scmp.eq.s32.totalorder %s34, 0
      %p111 = por %p109, %p110
      %s112 = sadd.s32 %s36, 1
      %s113 = smul.u32 %s112, 16
      %p114 = scmp.lt.s32.totalorder %s113, 31
      %s115 = scalar_select %p114, %s113, 31
      %s116 = sadd.s32 %s43, 1
      %s117 = smul.u32 %s116, 16
      %p118 = scmp.lt.s32.totalorder %s117, 31
      %s119 = scalar_select %p118, %s117, 31
      %s120 = ssub.s32 %s35, %s47
      %s121 = ssub.s32 %s115, %s119
      %s122 = sor.u32 %s120, %s121
      %p123 = scmp.eq.s32.totalorder %s122, 0
      %s125 = sadd.s32 %s124, 1
      %s126 = scalar_select %p123, %s124, %s125
      %p129 = pneg %p123
      %p130 = scmp.eq.s32.totalorder %s28, 3
      %p131 = por %p129, %p130
      %p132 = scmp.ne.s32.totalorder %s124, %s127
      %p133 = scmp.eq.s32.totalorder %s28, 0
      %p134 = por %p132, %p133
      %p135 = scmp.ne.s32.totalorder %s124, %s127
      %p136 = scmp.eq.s32.totalorder %s33, 3
      %p137 = por %p135, %p136
      %p138 = scmp.ne.s32.totalorder %s127, %s128
      %p139 = scmp.eq.s32.totalorder %s33, 0
      %p140 = por %p138, %p139
      %p141 = scmp.ne.s32.totalorder %s127, %s128
      %p142 = scmp.eq.s32.totalorder %s34, 3
      %p143 = por %p141, %p142
      %p145 = scmp.ne.s32.totalorder %s128, %s144
      %p146 = scmp.eq.s32.totalorder %s34, 0
      %p147 = por %p145, %p146
      %s149 = sadd.s32 %s148, 1
      %p152 = scmp.eq.s32.totalorder %s28, 3
      %p153 = scmp.ne.s32.totalorder %s148, %s150
      %p154 = scmp.eq.s32.totalorder %s28, 0
      %p155 = por %p153, %p154
      %p156 = scmp.ne.s32.totalorder %s148, %s150
      %p157 = scmp.eq.s32.totalorder %s33, 3
      %p158 = por %p156, %p157
      %p159 = scmp.ne.s32.totalorder %s150, %s151
      %p160 = scmp.eq.s32.totalorder %s33, 0
      %p161 = por %p159, %p160
      %p162 = scmp.ne.s32.totalorder %s150, %s151
      %p163 = scmp.eq.s32.totalorder %s34, 3
      %p164 = por %p162, %p163
      %p166 = scmp.ne.s32.totalorder %s151, %s165
      %p167 = scmp.eq.s32.totalorder %s34, 0
      %p168 = por %p166, %p167
      %s170 = sadd.s32 %s169, 1
      %p173 = scmp.eq.s32.totalorder %s28, 3
      %p174 = scmp.ne.s32.totalorder %s169, %s171
      %p175 = scmp.eq.s32.totalorder %s28, 0
      %p176 = por %p174, %p175
      %p177 = scmp.ne.s32.totalorder %s169, %s171
      %p178 = scmp.eq.s32.totalorder %s33, 3
      %p179 = por %p177, %p178
      %p180 = scmp.ne.s32.totalorder %s171, %s172
      %p181 = scmp.eq.s32.totalorder %s33, 0
      %p182 = por %p180, %p181
      %p183 = scmp.ne.s32.totalorder %s171, %s172
      %p184 = scmp.eq.s32.totalorder %s34, 3
      %p185 = por %p183, %p184
      %p187 = scmp.ne.s32.totalorder %s172, %s186
      %p188 = scmp.eq.s32.totalorder %s34, 0
      %p189 = por %p187, %p188
      %s191 = sadd.s32 %s190, 1
      %p194 = scmp.eq.s32.totalorder %s28, 3
      %p195 = scmp.ne.s32.totalorder %s190, %s192
      %p196 = scmp.eq.s32.totalorder %s28, 0
      %p197 = por %p195, %p196
      %p198 = scmp.ne.s32.totalorder %s190, %s192
      %p199 = scmp.eq.s32.totalorder %s33, 3
      %p200 = por %p198, %p199
      %p201 = scmp.ne.s32.totalorder %s192, %s193
      %p202 = scmp.eq.s32.totalorder %s33, 0
      %p203 = por %p201, %p202
      %p204 = scmp.ne.s32.totalorder %s192, %s193
      %p205 = scmp.eq.s32.totalorder %s34, 3
      %p206 = por %p204, %p205
      %p208 = scmp.ne.s32.totalorder %s193, %s207
      %p209 = scmp.eq.s32.totalorder %s34, 0
      %p210 = por %p208, %p209
      %s212 = sadd.s32 %s211, 1
      %p215 = scmp.eq.s32.totalorder %s28, 3
      %p216 = scmp.ne.s32.totalorder %s211, %s213
      %p217 = scmp.eq.s32.totalorder %s28, 0
      %p218 = por %p216, %p217
      %p219 = scmp.ne.s32.totalorder %s211, %s213
      %p220 = scmp.eq.s32.totalorder %s33, 3
      %p221 = por %p219, %p220
      %p222 = scmp.ne.s32.totalorder %s213, %s214
      %p223 = scmp.eq.s32.totalorder %s33, 0
      %p224 = por %p222, %p223
      %p225 = scmp.ne.s32.totalorder %s213, %s214
      %p226 = scmp.eq.s32.totalorder %s34, 3
      %p227 = por %p225, %p226
      %p229 = scmp.ne.s32.totalorder %s214, %s228
      %p230 = scmp.eq.s32.totalorder %s34, 0
      %p231 = por %p229, %p230
      %s233 = sadd.s32 %s232, 1
      %p236 = scmp.eq.s32.totalorder %s28, 3
      %p237 = scmp.ne.s32.totalorder %s232, %s234
      %p238 = scmp.eq.s32.totalorder %s28, 0
      %p239 = por %p237, %p238
      %p240 = scmp.ne.s32.totalorder %s232, %s234
      %p241 = scmp.eq.s32.totalorder %s33, 3
      %p242 = por %p240, %p241
      %p243 = scmp.ne.s32.totalorder %s234, %s235
      %p244 = scmp.eq.s32.totalorder %s33, 0
      %p245 = por %p243, %p244
      %p246 = scmp.ne.s32.totalorder %s234, %s235
      %p247 = scmp.eq.s32.totalorder %s34, 3
      %p248 = por %p246, %p247
      %p250 = scmp.ne.s32.totalorder %s235, %s249
      %p251 = scmp.eq.s32.totalorder %s34, 0
      %p252 = por %p250, %p251
      %s254 = sadd.s32 %s253, 1
      %p257 = scmp.eq.s32.totalorder %s28, 3
      %p258 = scmp.ne.s32.totalorder %s253, %s255
      %p259 = scmp.eq.s32.totalorder %s28, 0
      %p260 = por %p258, %p259
      %p261 = scmp.ne.s32.totalorder %s253, %s255
      %p262 = scmp.eq.s32.totalorder %s33, 3
      %p263 = por %p261, %p262
      %p264 = scmp.ne.s32.totalorder %s255, %s256
      %p265 = scmp.eq.s32.totalorder %s33, 0
      %p266 = por %p264, %p265
      %p267 = scmp.ne.s32.totalorder %s255, %s256
      %p268 = scmp.eq.s32.totalorder %s34, 3
      %p269 = por %p267, %p268
      %p271 = scmp.ne.s32.totalorder %s256, %s270
      %p272 = scmp.eq.s32.totalorder %s34, 0
      %p273 = por %p271, %p272
      %s275 = sadd.s32 %s274, 1
      %p278 = scmp.eq.s32.totalorder %s28, 3
      %p279 = scmp.ne.s32.totalorder %s274, %s276
      %p280 = scmp.eq.s32.totalorder %s28, 0
      %p281 = por %p279, %p280
      %p282 = scmp.ne.s32.totalorder %s274, %s276
      %p283 = scmp.eq.s32.totalorder %s33, 3
      %p284 = por %p282, %p283
      %p285 = scmp.ne.s32.totalorder %s276, %s277
      %p286 = scmp.eq.s32.totalorder %s33, 0
      %p287 = por %p285, %p286
      %p288 = scmp.ne.s32.totalorder %s276, %s277
      %p289 = scmp.eq.s32.totalorder %s34, 3
      %p290 = por %p288, %p289
      %p292 = scmp.ne.s32.totalorder %s277, %s291
      %p293 = scmp.eq.s32.totalorder %s34, 0
      %p294 = por %p292, %p293
      %s296 = sadd.s32 %s295, 1
      %p299 = scmp.eq.s32.totalorder %s28, 3
      %p300 = scmp.ne.s32.totalorder %s295, %s297
      %p301 = scmp.eq.s32.totalorder %s28, 0
      %p302 = por %p300, %p301
      %p303 = scmp.ne.s32.totalorder %s295, %s297
      %p304 = scmp.eq.s32.totalorder %s33, 3
      %p305 = por %p303, %p304
      %p306 = scmp.ne.s32.totalorder %s297, %s298
      %p307 = scmp.eq.s32.totalorder %s33, 0
      %p308 = por %p306, %p307
      %p309 = scmp.ne.s32.totalorder %s297, %s298
      %p310 = scmp.eq.s32.totalorder %s34, 3
      %p311 = por %p309, %p310
      %p313 = scmp.ne.s32.totalorder %s298, %s312
      %p314 = scmp.eq.s32.totalorder %s34, 0
      %p315 = por %p313, %p314
      %s316 = ssub.s32 %s35, %s47
      %s317 = ssub.s32 %s36, %s43
      %s318 = sor.u32 %s316, %s317
      %p319 = scmp.eq.s32.totalorder %s318, 0
      %s321 = sadd.s32 %s320, 1
      %s322 = scalar_select %p319, %s320, %s321
      %p325 = pneg %p319
      %p326 = scmp.eq.s32.totalorder %s28, 3
      %p327 = por %p325, %p326
      %p328 = scmp.ne.s32.totalorder %s320, %s323
      %p329 = scmp.eq.s32.totalorder %s28, 0
      %p330 = por %p328, %p329
      %p331 = scmp.ne.s32.totalorder %s320, %s323
      %p332 = scmp.eq.s32.totalorder %s33, 3
      %p333 = por %p331, %p332
      %p334 = scmp.ne.s32.totalorder %s323, %s324
      %p335 = scmp.eq.s32.totalorder %s33, 0
      %p336 = por %p334, %p335
      %p337 = scmp.ne.s32.totalorder %s323, %s324
      %p338 = scmp.eq.s32.totalorder %s34, 3
      %p339 = por %p337, %p338
      %p341 = scmp.ne.s32.totalorder %s324, %s340
      %p342 = scmp.eq.s32.totalorder %s34, 0
      %p343 = por %p341, %p342
      %p344 = scmp.le.s32.totalorder 1, %s28
      %p345 = scmp.lt.s32.totalorder %s28, 5
      %p346 = pnand %p344, %p345
      %p347 = pneg %p346
      // Predicated region
      $region9: #{tpu_custom_call.1} parent=5 // pred_check
        _
      $region10: #{tpu_custom_call.1} parent=5 // pred_check_branch
        %349 = sbr.rel (%p346) target = $region12
      $region11: #{tpu_custom_call.1} parent=5 // pred_region
        %s350 = ssub.s32 %s28, 1
        // Predicated region
        $region13: #{tpu_custom_call.1} parent=11 // pred_check
          %p351 = pneg %p161
        $region14: #{tpu_custom_call.1} parent=11 // pred_check_branch
          %353 = sbr.rel (%p351) target = $region16
        $region15: #{tpu_custom_call.1} parent=11 // pred_region
          %s355 = ssub.s32 128, 128
          %356 = vsyncadd [#allocation10], %s355
          %s358 = sshll.u32 [#allocation9], 4
          %s359 = int_to_ptr.vmem [resolvable:$true] %s358
          %361 = dma.hbm_to_vmem [thread:$0]  %s3, 128, %s359, [#allocation10]
        $region16: #{tpu_custom_call.1} parent=11 // pred_fallthru
          _
        // Predicated region
        $region17: #{tpu_custom_call.1} parent=11 // pred_check
          %p362 = pneg %p182
        $region18: #{tpu_custom_call.1} parent=11 // pred_check_branch
          %364 = sbr.rel (%p362) target = $region20
        $region19: #{tpu_custom_call.1} parent=11 // pred_region
          _
        $region20: #{tpu_custom_call.1} parent=11 // pred_fallthru
          _
        // Predicated region
        $region21: #{tpu_custom_call.1} parent=11 // pred_check
          %p365 = pneg %p203
        $region22: #{tpu_custom_call.1} parent=11 // pred_check_branch
          %367 = sbr.rel (%p365) target = $region24
        $region23: #{tpu_custom_call.1} parent=11 // pred_region
          _
        $region24: #{tpu_custom_call.1} parent=11 // pred_fallthru
          _
        // Predicated region
        $region25: #{tpu_custom_call.1} parent=11 // pred_check
          %p368 = pneg %p224
        $region26: #{tpu_custom_call.1} parent=11 // pred_check_branch
          %370 = sbr.rel (%p368) target = $region28
        $region27: #{tpu_custom_call.1} parent=11 // pred_region
          _
        $region28: #{tpu_custom_call.1} parent=11 // pred_fallthru
          _
        // Predicated region
        $region29: #{tpu_custom_call.1} parent=11 // pred_check
          %p371 = pneg %p245
        $region30: #{tpu_custom_call.1} parent=11 // pred_check_branch
          %373 = sbr.rel (%p371) target = $region32
        $region31: #{tpu_custom_call.1} parent=11 // pred_region
          %s375 = ssub.s32 4096, 4096
          %376 = vsyncadd [#allocation10], %s375
          %s377 = sshll.u32 [#allocation11], 4
          %s378 = int_to_ptr.vmem [resolvable:$true] %s377
          %383 = dma.hbm_to_vmem [thread:$0]  %s7, 4096, %s378, [#allocation10], 256, 256, 16
        $region32: #{tpu_custom_call.1} parent=11 // pred_fallthru
          _
        // Predicated region
        $region33: #{tpu_custom_call.1} parent=11 // pred_check
          %p384 = pneg %p266
        $region34: #{tpu_custom_call.1} parent=11 // pred_check_branch
          %386 = sbr.rel (%p384) target = $region36
        $region35: #{tpu_custom_call.1} parent=11 // pred_region
          _
        $region36: #{tpu_custom_call.1} parent=11 // pred_fallthru
          _
        // Predicated region
        $region37: #{tpu_custom_call.1} parent=11 // pred_check
          %p387 = pneg %p287
        $region38: #{tpu_custom_call.1} parent=11 // pred_check_branch
          %389 = sbr.rel (%p387) target = $region40
        $region39: #{tpu_custom_call.1} parent=11 // pred_region
          %s391 = ssub.s32 4096, 4096
          %392 = vsyncadd [#allocation13], %s391
          %s393 = sshll.u32 [#allocation12], 4
          %s394 = int_to_ptr.vmem [resolvable:$true] %s393
          %399 = dma.hbm_to_vmem [thread:$0]  %s9, 4096, %s394, [#allocation13], 64, 64, 4
        $region40: #{tpu_custom_call.1} parent=11 // pred_fallthru
          _
        // Predicated region
        $region41: #{tpu_custom_call.1} parent=11 // pred_check
          %p400 = pneg %p308
        $region42: #{tpu_custom_call.1} parent=11 // pred_check_branch
          %402 = sbr.rel (%p400) target = $region44
        $region43: #{tpu_custom_call.1} parent=11 // pred_region
          _
        $region44: #{tpu_custom_call.1} parent=11 // pred_fallthru
          _
      $region12: #{tpu_custom_call.1} parent=5 // pred_fallthru
        _
      %p403 = scmp.lt.s32.totalorder %s28, 4
      // Predicated region
      $region45: #{tpu_custom_call.1} parent=5 // pred_check
        %p404 = pneg %p403
      $region46: #{tpu_custom_call.1} parent=5 // pred_check_branch
        %406 = sbr.rel (%p404) target = $region48
      $region47: #{tpu_custom_call.1} parent=5 // pred_region
        // Predicated region
        $region49: #{tpu_custom_call.1} parent=47 // pred_check
          %p407 = pneg %p62
        $region50: #{tpu_custom_call.1} parent=47 // pred_check_branch
          %409 = sbr.rel (%p407) target = $region52
        $region51: #{tpu_custom_call.1} parent=47 // pred_region
          %s410 = sand.u32 %s52, 1
          %s411 = scalar_lea.sflag [#allocation4], %s410
          %s412 = sand.u32 %s52, 1
          %s413 = smul.addr %s412, 128
          %s414 = scalar_lea.vmem [#allocation3], %s413
          %s415 = smul.u32 16, %s36
          %s417 = ssub.s32 2048, 2048
          %418 = vsyncadd %s411, %s417
          %s419 = smul.addr %s35, 32
          %s420 = sadd.s32 %s415, %s419
          %s421 = smul.addr %s420, 128
          %s422 = scalar_lea.hbm %s0, %s421
          %s423 = sshll.u32 %s414, 4
          %s424 = int_to_ptr.vmem [resolvable:$true] %s423
          %429 = dma.hbm_to_vmem [thread:$0]  %s422, 2048, %s424, %s411, 128, 128, 8
        $region52: #{tpu_custom_call.1} parent=47 // pred_fallthru
          _
        // Predicated region
        $region53: #{tpu_custom_call.1} parent=47 // pred_check
          %p430 = pneg %p98
        $region54: #{tpu_custom_call.1} parent=47 // pred_check_branch
          %432 = sbr.rel (%p430) target = $region56
        $region55: #{tpu_custom_call.1} parent=47 // pred_region
          %s433 = sand.u32 %s28, 1
          %s434 = scalar_lea.sflag [#allocation7], %s433
          %s435 = sand.u32 %s88, 1
          %s436 = smul.addr %s435, 8
          %s437 = scalar_lea.vmem [#allocation6], %s436
          %s438 = smul.u32 %s36, 16
          %s439 = ssub.s32 %s438, 1
          %p440 = scmp.gt.s32.totalorder %s439, 0
          %s441 = scalar_select %p440, %s439, 0
          %s443 = ssub.s32 128, 128
          %444 = vsyncadd %s434, %s443
          %s445 = smul.addr %s35, 32
          %s446 = sadd.s32 %s441, %s445
          %s447 = smul.addr %s446, 128
          %s448 = scalar_lea.hbm %s1, %s447
          %s450 = sshll.u32 %s437, 4
          %s451 = int_to_ptr.vmem [resolvable:$true] %s450
          %453 = dma.hbm_to_vmem [thread:$0]  %s448, 128, %s451, %s434
        $region56: #{tpu_custom_call.1} parent=47 // pred_fallthru
          _
        // Predicated region
        $region57: #{tpu_custom_call.1} parent=47 // pred_check
          %p454 = pneg %p134
        $region58: #{tpu_custom_call.1} parent=47 // pred_check_branch
          %456 = sbr.rel (%p454) target = $region60
        $region59: #{tpu_custom_call.1} parent=47 // pred_region
          %s457 = sand.u32 %s28, 1
          %s458 = scalar_lea.sflag [#allocation7], %s457
          %s459 = sand.u32 %s124, 1
          %s460 = smul.addr %s459, 8
          %s461 = scalar_lea.vmem [#allocation8], %s460
          %s462 = sadd.s32 %s36, 1
          %s463 = smul.u32 %s462, 16
          %p464 = scmp.lt.s32.totalorder %s463, 31
          %s465 = scalar_select %p464, %s463, 31
          %s467 = ssub.s32 128, 128
          %468 = vsyncadd %s458, %s467
          %s469 = smul.addr %s35, 32
          %s470 = sadd.s32 %s465, %s469
          %s471 = smul.addr %s470, 128
          %s472 = scalar_lea.hbm %s2, %s471
          %s474 = sshll.u32 %s461, 4
          %s475 = int_to_ptr.vmem [resolvable:$true] %s474
          %477 = dma.hbm_to_vmem [thread:$0]  %s472, 128, %s475, %s458
        $region60: #{tpu_custom_call.1} parent=47 // pred_fallthru
          _
      $region48: #{tpu_custom_call.1} parent=5 // pred_fallthru
        _
      %p478 = scmp.le.s32.totalorder 1, %s28
      %p479 = scmp.lt.s32.totalorder %s28, 5
      %p480 = pnand %p478, %p479
      %p481 = pneg %p480
      // Predicated region
      $region61: #{tpu_custom_call.1} parent=5 // pred_check
        _
      $region62: #{tpu_custom_call.1} parent=5 // pred_check_branch
        %483 = sbr.rel (%p480) target = $region64
      $region63: #{tpu_custom_call.1} parent=5 // pred_region
        %s484 = ssub.s32 %s28, 1
        %s485 = sand.u32 %s55, 1
        %s486 = scalar_lea.sflag [#allocation4], %s485
        %s487 = sand.u32 %s55, 1
        %s488 = smul.addr %s487, 128
        %s489 = scalar_lea.vmem [#allocation3], %s488
        // Predicated region
        $region65: #{tpu_custom_call.1} parent=63 // pred_check
          %p490 = pneg %p68
        $region66: #{tpu_custom_call.1} parent=63 // pred_check_branch
          %492 = sbr.rel (%p490) target = $region68
        $region67: #{tpu_custom_call.1} parent=63 // pred_region
          %493 = dma.done %s486, 2048
        $region68: #{tpu_custom_call.1} parent=63 // pred_fallthru
          _
        %s494 = sand.u32 %s33, 1
        %s495 = scalar_lea.sflag [#allocation7], %s494
        %s496 = sand.u32 %s91, 1
        %s497 = smul.addr %s496, 8
        %s498 = scalar_lea.vmem [#allocation6], %s497
        // Predicated region
        $region69: #{tpu_custom_call.1} parent=63 // pred_check
          %p499 = pneg %p104
        $region70: #{tpu_custom_call.1} parent=63 // pred_check_branch
          %501 = sbr.rel (%p499) target = $region72
        $region71: #{tpu_custom_call.1} parent=63 // pred_region
          %502 = dma.done %s495, 128
        $region72: #{tpu_custom_call.1} parent=63 // pred_fallthru
          _
        %s503 = sand.u32 %s33, 1
        %s504 = scalar_lea.sflag [#allocation7], %s503
        %s505 = sand.u32 %s127, 1
        %s506 = smul.addr %s505, 8
        %s507 = scalar_lea.vmem [#allocation8], %s506
        // Predicated region
        $region73: #{tpu_custom_call.1} parent=63 // pred_check
          %p508 = pneg %p140
        $region74: #{tpu_custom_call.1} parent=63 // pred_check_branch
          %510 = sbr.rel (%p508) target = $region76
        $region75: #{tpu_custom_call.1} parent=63 // pred_region
          %511 = dma.done %s504, 128
        $region76: #{tpu_custom_call.1} parent=63 // pred_fallthru
          _
        // Predicated region
        $region77: #{tpu_custom_call.1} parent=63 // pred_check
          %p512 = pneg %p161
        $region78: #{tpu_custom_call.1} parent=63 // pred_check_branch
          %514 = sbr.rel (%p512) target = $region80
        $region79: #{tpu_custom_call.1} parent=63 // pred_region
          %515 = dma.done [#allocation10], 128
        $region80: #{tpu_custom_call.1} parent=63 // pred_fallthru
          _
        // Predicated region
        $region81: #{tpu_custom_call.1} parent=63 // pred_check
          %p516 = pneg %p245
        $region82: #{tpu_custom_call.1} parent=63 // pred_check_branch
          %518 = sbr.rel (%p516) target = $region84
        $region83: #{tpu_custom_call.1} parent=63 // pred_region
          %519 = dma.done [#allocation10], 4096
        $region84: #{tpu_custom_call.1} parent=63 // pred_fallthru
          _
        // Predicated region
        $region85: #{tpu_custom_call.1} parent=63 // pred_check
          %p520 = pneg %p287
        $region86: #{tpu_custom_call.1} parent=63 // pred_check_branch
          %522 = sbr.rel (%p520) target = $region88
        $region87: #{tpu_custom_call.1} parent=63 // pred_region
          %523 = dma.done [#allocation13], 4096
        $region88: #{tpu_custom_call.1} parent=63 // pred_fallthru
          _
        %s524 = sand.u32 %s55, 1
        %s525 = scalar_lea.sflag [#allocation4], %s524
        %s526 = sand.u32 %s55, 1
        %s527 = smul.addr %s526, 128
        %s528 = scalar_lea.vmem [#allocation3], %s527
        %p529 = pneg %p68
        %p530 = pneg %p65
        %s531 = sand.u32 %s33, 1
        %s532 = scalar_lea.sflag [#allocation7], %s531
        %s533 = sand.u32 %s91, 1
        %s534 = smul.addr %s533, 8
        %s535 = scalar_lea.vmem [#allocation6], %s534
        %p536 = pneg %p104
        %p537 = pneg %p101
        %s538 = sand.u32 %s33, 1
        %s539 = scalar_lea.sflag [#allocation7], %s538
        %s540 = sand.u32 %s127, 1
        %s541 = smul.addr %s540, 8
        %s542 = scalar_lea.vmem [#allocation8], %s541
        %p543 = pneg %p140
        %p544 = pneg %p137
        %p545 = pneg %p161
        %p546 = pneg %p158
        %p547 = pneg %p182
        %p548 = pneg %p179
        %p549 = pneg %p203
        %p550 = pneg %p200
        %p551 = pneg %p224
        %p552 = pneg %p221
        %p553 = pneg %p245
        %p554 = pneg %p242
        %p555 = pneg %p266
        %p556 = pneg %p263
        %p557 = pneg %p287
        %p558 = pneg %p284
        %p559 = pneg %p308
        %p560 = pneg %p305
        %p561 = pneg %p336
        %p562 = pneg %p333
        %s563 = sand.u32 %s323, 1
        %s564 = scalar_lea.sflag [#allocation5], %s563
        %s565 = sand.u32 %s323, 1
        %s566 = smul.addr %s565, 128
        %s567 = scalar_lea.vmem [#allocation14], %s566
        %s568 = smul.u32 16, %s38
        %s569 = smul.u32 %s38, 16
        %s570 = ssub.s32 %s569, 1
        %p571 = scmp.gt.s32.totalorder %s570, 0
        %s572 = scalar_select %p571, %s570, 0
        %s573 = sadd.s32 %s38, 1
        %s574 = smul.u32 %s573, 16
        %p575 = scmp.lt.s32.totalorder %s574, 31
        %s576 = scalar_select %p575, %s574, 31
        %s577 = smul.u32 16, %s38
        %v579 = vld [vmem:[%s489] sm:$0xff]
        %v580 = vld [vmem:[%s489 + $0x8] sm:$0xff]
        %v581 = vld [vmem:[%s489 + $0x10] sm:$0xff]
        %v582 = vld [vmem:[%s489 + $0x18] sm:$0xff]
        %v583 = vld [vmem:[%s489 + $0x20] sm:$0xff]
        %v584 = vld [vmem:[%s489 + $0x28] sm:$0xff]
        %v585 = vld [vmem:[%s489 + $0x30] sm:$0xff]
        %v586 = vld [vmem:[%s489 + $0x38] sm:$0xff]
        %v587 = vld [vmem:[%s489 + $0x40] sm:$0xff]
        %v588 = vld [vmem:[%s489 + $0x48] sm:$0xff]
        %v589 = vld [vmem:[%s489 + $0x50] sm:$0xff]
        %v590 = vld [vmem:[%s489 + $0x58] sm:$0xff]
        %v591 = vld [vmem:[%s489 + $0x60] sm:$0xff]
        %v592 = vld [vmem:[%s489 + $0x68] sm:$0xff]
        %v593 = vld [vmem:[%s489 + $0x70] sm:$0xff]
        %v594 = vld [vmem:[%s489 + $0x78] sm:$0xff]
        %595 = vst [vmem:[#allocation2 + $0x8] sm:$0xff] %v579
        %596 = vst [vmem:[#allocation2 + $0x10] sm:$0xff] %v580
        %597 = vst [vmem:[#allocation2 + $0x18] sm:$0xff] %v581
        %598 = vst [vmem:[#allocation2 + $0x20] sm:$0xff] %v582
        %599 = vst [vmem:[#allocation2 + $0x28] sm:$0xff] %v583
        %600 = vst [vmem:[#allocation2 + $0x30] sm:$0xff] %v584
        %601 = vst [vmem:[#allocation2 + $0x38] sm:$0xff] %v585
        %602 = vst [vmem:[#allocation2 + $0x40] sm:$0xff] %v586
        %603 = vst [vmem:[#allocation2 + $0x48] sm:$0xff] %v587
        %604 = vst [vmem:[#allocation2 + $0x50] sm:$0xff] %v588
        %605 = vst [vmem:[#allocation2 + $0x58] sm:$0xff] %v589
        %606 = vst [vmem:[#allocation2 + $0x60] sm:$0xff] %v590
        %607 = vst [vmem:[#allocation2 + $0x68] sm:$0xff] %v591
        %608 = vst [vmem:[#allocation2 + $0x70] sm:$0xff] %v592
        %609 = vst [vmem:[#allocation2 + $0x78] sm:$0xff] %v593
        %610 = vst [vmem:[#allocation2 + $0x80] sm:$0xff] %v594
        %p611 = scmp.gt.s32.totalorder %s38, 0
        // Predicated region
        $region89: #{tpu_custom_call.1} parent=63 // pred_check
          %p612 = pneg %p611
        $region90: #{tpu_custom_call.1} parent=63 // pred_check_branch
          %614 = sbr.rel (%p612) target = $region92
        $region91: #{tpu_custom_call.1} parent=63 // pred_region
          %v615 = vld [vmem:[%s498] sm:$0xff]
          %616 = vst [vmem:[#allocation2] sm:$0xff] %v615
        $region92: #{tpu_custom_call.1} parent=63 // pred_fallthru
          _
        %p617 = scmp.eq.s32.totalorder %s38, 0
        // Predicated region
        $region93: #{tpu_custom_call.1} parent=63 // pred_check
          %p618 = pneg %p617
        $region94: #{tpu_custom_call.1} parent=63 // pred_check_branch
          %620 = sbr.rel (%p618) target = $region96
        $region95: #{tpu_custom_call.1} parent=63 // pred_region
          %621 = vst [vmem:[#allocation2] sm:$0xff] 0.0
        $region96: #{tpu_custom_call.1} parent=63 // pred_fallthru
          _
        %p622 = scmp.lt.s32.totalorder %s38, 1
        // Predicated region
        $region97: #{tpu_custom_call.1} parent=63 // pred_check
          %p623 = pneg %p622
        $region98: #{tpu_custom_call.1} parent=63 // pred_check_branch
          %625 = sbr.rel (%p623) target = $region100
        $region99: #{tpu_custom_call.1} parent=63 // pred_region
          %v626 = vld [vmem:[%s507] sm:$0xff]
          %627 = vst [vmem:[#allocation2 + $0x88] sm:$0xff] %v626
        $region100: #{tpu_custom_call.1} parent=63 // pred_fallthru
          _
        %p628 = scmp.eq.s32.totalorder %s38, 1
        // Predicated region
        $region101: #{tpu_custom_call.1} parent=63 // pred_check
          %p629 = pneg %p628
        $region102: #{tpu_custom_call.1} parent=63 // pred_check_branch
          %631 = sbr.rel (%p629) target = $region104
        $region103: #{tpu_custom_call.1} parent=63 // pred_region
          %632 = vst [vmem:[#allocation2 + $0x88] sm:$0xff] 0.0
        $region104: #{tpu_custom_call.1} parent=63 // pred_fallthru
          _
        %v633 = vld [vmem:[#allocation9] sm:$0x7f]
        %v634 = vld [vmem:[#allocation2 + $0x5] sm:$0xff]
        %v635 = vld [vmem:[#allocation2 + $0xd] sm:$0xff]
        %v636 = vld [vmem:[#allocation2 + $0x15] sm:$0xff]
        %v637 = vld [vmem:[#allocation2 + $0x1d] sm:$0xff]
        %v638 = vld [vmem:[#allocation2 + $0x25] sm:$0xff]
        %v639 = vld [vmem:[#allocation2 + $0x2d] sm:$0xff]
        %v640 = vld [vmem:[#allocation2 + $0x35] sm:$0xff]
        %v641 = vld [vmem:[#allocation2 + $0x3d] sm:$0xff]
        %v642 = vld [vmem:[#allocation2 + $0x45] sm:$0xff]
        %v643 = vld [vmem:[#allocation2 + $0x4d] sm:$0xff]
        %v644 = vld [vmem:[#allocation2 + $0x55] sm:$0xff]
        %v645 = vld [vmem:[#allocation2 + $0x5d] sm:$0xff]
        %v646 = vld [vmem:[#allocation2 + $0x65] sm:$0xff]
        %v647 = vld [vmem:[#allocation2 + $0x6d] sm:$0xff]
        %v648 = vld [vmem:[#allocation2 + $0x75] sm:$0xff]
        %v649 = vld [vmem:[#allocation2 + $0x7d] sm:$0xff]
        %v650 = vlaneseq
        %v651 = vshrl.u32 %v650, 7
        %v652 = vsub.s32 0, %v651
        %v653 = vrot.slane %v633, %v652
        %v654 = vmul.f32 %v634, %v653
        %v655 = vmul.f32 %v635, %v653
        %v656 = vmul.f32 %v636, %v653
        %v657 = vmul.f32 %v637, %v653
        %v658 = vmul.f32 %v638, %v653
        %v659 = vmul.f32 %v639, %v653
        %v660 = vmul.f32 %v640, %v653
        %v661 = vmul.f32 %v641, %v653
        %v662 = vmul.f32 %v642, %v653
        %v663 = vmul.f32 %v643, %v653
        %v664 = vmul.f32 %v644, %v653
        %v665 = vmul.f32 %v645, %v653
        %v666 = vmul.f32 %v646, %v653
        %v667 = vmul.f32 %v647, %v653
        %v668 = vmul.f32 %v648, %v653
        %v669 = vmul.f32 %v649, %v653
        %v670 = vld [vmem:[#allocation2 + $0x6] sm:$0xff]
        %v671 = vld [vmem:[#allocation2 + $0xe] sm:$0xff]
        %v672 = vld [vmem:[#allocation2 + $0x16] sm:$0xff]
        %v673 = vld [vmem:[#allocation2 + $0x1e] sm:$0xff]
        %v674 = vld [vmem:[#allocation2 + $0x26] sm:$0xff]
        %v675 = vld [vmem:[#allocation2 + $0x2e] sm:$0xff]
        %v676 = vld [vmem:[#allocation2 + $0x36] sm:$0xff]
        %v677 = vld [vmem:[#allocation2 + $0x3e] sm:$0xff]
        %v678 = vld [vmem:[#allocation2 + $0x46] sm:$0xff]
        %v679 = vld [vmem:[#allocation2 + $0x4e] sm:$0xff]
        %v680 = vld [vmem:[#allocation2 + $0x56] sm:$0xff]
        %v681 = vld [vmem:[#allocation2 + $0x5e] sm:$0xff]
        %v682 = vld [vmem:[#allocation2 + $0x66] sm:$0xff]
        %v683 = vld [vmem:[#allocation2 + $0x6e] sm:$0xff]
        %v684 = vld [vmem:[#allocation2 + $0x76] sm:$0xff]
        %v685 = vld [vmem:[#allocation2 + $0x7e] sm:$0xff]
        %v686 = vlaneseq
        %v687 = vshrl.u32 %v686, 7
        %v688 = vsub.s32 1, %v687
        %v689 = vrot.slane %v633, %v688
        %v690 = vmul.f32 %v670, %v689
        %v691 = vmul.f32 %v671, %v689
        %v692 = vmul.f32 %v672, %v689
        %v693 = vmul.f32 %v673, %v689
        %v694 = vmul.f32 %v674, %v689
        %v695 = vmul.f32 %v675, %v689
        %v696 = vmul.f32 %v676, %v689
        %v697 = vmul.f32 %v677, %v689
        %v698 = vmul.f32 %v678, %v689
        %v699 = vmul.f32 %v679, %v689
        %v700 = vmul.f32 %v680, %v689
        %v701 = vmul.f32 %v681, %v689
        %v702 = vmul.f32 %v682, %v689
        %v703 = vmul.f32 %v683, %v689
        %v704 = vmul.f32 %v684, %v689
        %v705 = vmul.f32 %v685, %v689
        %v706 = vadd.f32 %v654, %v690
        %v707 = vadd.f32 %v655, %v691
        %v708 = vadd.f32 %v656, %v692
        %v709 = vadd.f32 %v657, %v693
        %v710 = vadd.f32 %v658, %v694
        %v711 = vadd.f32 %v659, %v695
        %v712 = vadd.f32 %v660, %v696
        %v713 = vadd.f32 %v661, %v697
        %v714 = vadd.f32 %v662, %v698
        %v715 = vadd.f32 %v663, %v699
        %v716 = vadd.f32 %v664, %v700
        %v717 = vadd.f32 %v665, %v701
        %v718 = vadd.f32 %v666, %v702
        %v719 = vadd.f32 %v667, %v703
        %v720 = vadd.f32 %v668, %v704
        %v721 = vadd.f32 %v669, %v705
        %v722 = vld [vmem:[#allocation2 + $0x7] sm:$0xff]
        %v723 = vld [vmem:[#allocation2 + $0xf] sm:$0xff]
        %v724 = vld [vmem:[#allocation2 + $0x17] sm:$0xff]
        %v725 = vld [vmem:[#allocation2 + $0x1f] sm:$0xff]
        %v726 = vld [vmem:[#allocation2 + $0x27] sm:$0xff]
        %v727 = vld [vmem:[#allocation2 + $0x2f] sm:$0xff]
        %v728 = vld [vmem:[#allocation2 + $0x37] sm:$0xff]
        %v729 = vld [vmem:[#allocation2 + $0x3f] sm:$0xff]
        %v730 = vld [vmem:[#allocation2 + $0x47] sm:$0xff]
        %v731 = vld [vmem:[#allocation2 + $0x4f] sm:$0xff]
        %v732 = vld [vmem:[#allocation2 + $0x57] sm:$0xff]
        %v733 = vld [vmem:[#allocation2 + $0x5f] sm:$0xff]
        %v734 = vld [vmem:[#allocation2 + $0x67] sm:$0xff]
        %v735 = vld [vmem:[#allocation2 + $0x6f] sm:$0xff]
        %v736 = vld [vmem:[#allocation2 + $0x77] sm:$0xff]
        %v737 = vld [vmem:[#allocation2 + $0x7f] sm:$0xff]
        %v738 = vlaneseq
        %v739 = vshrl.u32 %v738, 7
        %v740 = vsub.s32 2, %v739
        %v741 = vrot.slane %v633, %v740
        %v742 = vmul.f32 %v722, %v741
        %v743 = vmul.f32 %v723, %v741
        %v744 = vmul.f32 %v724, %v741
        %v745 = vmul.f32 %v725, %v741
        %v746 = vmul.f32 %v726, %v741
        %v747 = vmul.f32 %v727, %v741
        %v748 = vmul.f32 %v728, %v741
        %v749 = vmul.f32 %v729, %v741
        %v750 = vmul.f32 %v730, %v741
        %v751 = vmul.f32 %v731, %v741
        %v752 = vmul.f32 %v732, %v741
        %v753 = vmul.f32 %v733, %v741
        %v754 = vmul.f32 %v734, %v741
        %v755 = vmul.f32 %v735, %v741
        %v756 = vmul.f32 %v736, %v741
        %v757 = vmul.f32 %v737, %v741
        %v758 = vadd.f32 %v706, %v742
        %v759 = vadd.f32 %v707, %v743
        %v760 = vadd.f32 %v708, %v744
        %v761 = vadd.f32 %v709, %v745
        %v762 = vadd.f32 %v710, %v746
        %v763 = vadd.f32 %v711, %v747
        %v764 = vadd.f32 %v712, %v748
        %v765 = vadd.f32 %v713, %v749
        %v766 = vadd.f32 %v714, %v750
        %v767 = vadd.f32 %v715, %v751
        %v768 = vadd.f32 %v716, %v752
        %v769 = vadd.f32 %v717, %v753
        %v770 = vadd.f32 %v718, %v754
        %v771 = vadd.f32 %v719, %v755
        %v772 = vadd.f32 %v720, %v756
        %v773 = vadd.f32 %v721, %v757
        %v774 = vld [vmem:[#allocation2 + $0x8] sm:$0xff]
        %v775 = vld [vmem:[#allocation2 + $0x10] sm:$0xff]
        %v776 = vld [vmem:[#allocation2 + $0x18] sm:$0xff]
        %v777 = vld [vmem:[#allocation2 + $0x20] sm:$0xff]
        %v778 = vld [vmem:[#allocation2 + $0x28] sm:$0xff]
        %v779 = vld [vmem:[#allocation2 + $0x30] sm:$0xff]
        %v780 = vld [vmem:[#allocation2 + $0x38] sm:$0xff]
        %v781 = vld [vmem:[#allocation2 + $0x40] sm:$0xff]
        %v782 = vld [vmem:[#allocation2 + $0x48] sm:$0xff]
        %v783 = vld [vmem:[#allocation2 + $0x50] sm:$0xff]
        %v784 = vld [vmem:[#allocation2 + $0x58] sm:$0xff]
        %v785 = vld [vmem:[#allocation2 + $0x60] sm:$0xff]
        %v786 = vld [vmem:[#allocation2 + $0x68] sm:$0xff]
        %v787 = vld [vmem:[#allocation2 + $0x70] sm:$0xff]
        %v788 = vld [vmem:[#allocation2 + $0x78] sm:$0xff]
        %v789 = vld [vmem:[#allocation2 + $0x80] sm:$0xff]
        %v790 = vlaneseq
        %v791 = vshrl.u32 %v790, 7
        %v792 = vsub.s32 3, %v791
        %v793 = vrot.slane %v633, %v792
        %v794 = vmul.f32 %v774, %v793
        %v795 = vmul.f32 %v775, %v793
        %v796 = vmul.f32 %v776, %v793
        %v797 = vmul.f32 %v777, %v793
        %v798 = vmul.f32 %v778, %v793
        %v799 = vmul.f32 %v779, %v793
        %v800 = vmul.f32 %v780, %v793
        %v801 = vmul.f32 %v781, %v793
        %v802 = vmul.f32 %v782, %v793
        %v803 = vmul.f32 %v783, %v793
        %v804 = vmul.f32 %v784, %v793
        %v805 = vmul.f32 %v785, %v793
        %v806 = vmul.f32 %v786, %v793
        %v807 = vmul.f32 %v787, %v793
        %v808 = vmul.f32 %v788, %v793
        %v809 = vmul.f32 %v789, %v793
        %v810 = vadd.f32 %v758, %v794
        %v811 = vadd.f32 %v759, %v795
        %v812 = vadd.f32 %v760, %v796
        %v813 = vadd.f32 %v761, %v797
        %v814 = vadd.f32 %v762, %v798
        %v815 = vadd.f32 %v763, %v799
        %v816 = vadd.f32 %v764, %v800
        %v817 = vadd.f32 %v765, %v801
        %v818 = vadd.f32 %v766, %v802
        %v819 = vadd.f32 %v767, %v803
        %v820 = vadd.f32 %v768, %v804
        %v821 = vadd.f32 %v769, %v805
        %v822 = vadd.f32 %v770, %v806
        %v823 = vadd.f32 %v771, %v807
        %v824 = vadd.f32 %v772, %v808
        %v825 = vadd.f32 %v773, %v809
        %v826 = vld [vmem:[#allocation2 + $0x9] sm:$0xff]
        %v827 = vld [vmem:[#allocation2 + $0x11] sm:$0xff]
        %v828 = vld [vmem:[#allocation2 + $0x19] sm:$0xff]
        %v829 = vld [vmem:[#allocation2 + $0x21] sm:$0xff]
        %v830 = vld [vmem:[#allocation2 + $0x29] sm:$0xff]
        %v831 = vld [vmem:[#allocation2 + $0x31] sm:$0xff]
        %v832 = vld [vmem:[#allocation2 + $0x39] sm:$0xff]
        %v833 = vld [vmem:[#allocation2 + $0x41] sm:$0xff]
        %v834 = vld [vmem:[#allocation2 + $0x49] sm:$0xff]
        %v835 = vld [vmem:[#allocation2 + $0x51] sm:$0xff]
        %v836 = vld [vmem:[#allocation2 + $0x59] sm:$0xff]
        %v837 = vld [vmem:[#allocation2 + $0x61] sm:$0xff]
        %v838 = vld [vmem:[#allocation2 + $0x69] sm:$0xff]
        %v839 = vld [vmem:[#allocation2 + $0x71] sm:$0xff]
        %v840 = vld [vmem:[#allocation2 + $0x79] sm:$0xff]
        %v841 = vld [vmem:[#allocation2 + $0x81] sm:$0xff]
        %v842 = vlaneseq
        %v843 = vshrl.u32 %v842, 7
        %v844 = vsub.s32 4, %v843
        %v845 = vrot.slane %v633, %v844
        %v846 = vmul.f32 %v826, %v845
        %v847 = vmul.f32 %v827, %v845
        %v848 = vmul.f32 %v828, %v845
        %v849 = vmul.f32 %v829, %v845
        %v850 = vmul.f32 %v830, %v845
        %v851 = vmul.f32 %v831, %v845
        %v852 = vmul.f32 %v832, %v845
        %v853 = vmul.f32 %v833, %v845
        %v854 = vmul.f32 %v834, %v845
        %v855 = vmul.f32 %v835, %v845
        %v856 = vmul.f32 %v836, %v845
        %v857 = vmul.f32 %v837, %v845
        %v858 = vmul.f32 %v838, %v845
        %v859 = vmul.f32 %v839, %v845
        %v860 = vmul.f32 %v840, %v845
        %v861 = vmul.f32 %v841, %v845
        %v862 = vadd.f32 %v810, %v846
        %v863 = vadd.f32 %v811, %v847
        %v864 = vadd.f32 %v812, %v848
        %v865 = vadd.f32 %v813, %v849
        %v866 = vadd.f32 %v814, %v850
        %v867 = vadd.f32 %v815, %v851
        %v868 = vadd.f32 %v816, %v852
        %v869 = vadd.f32 %v817, %v853
        %v870 = vadd.f32 %v818, %v854
        %v871 = vadd.f32 %v819, %v855
        %v872 = vadd.f32 %v820, %v856
        %v873 = vadd.f32 %v821, %v857
        %v874 = vadd.f32 %v822, %v858
        %v875 = vadd.f32 %v823, %v859
        %v876 = vadd.f32 %v824, %v860
        %v877 = vadd.f32 %v825, %v861
        %v878 = vld [vmem:[#allocation2 + $0xa] sm:$0xff]
        %v879 = vld [vmem:[#allocation2 + $0x12] sm:$0xff]
        %v880 = vld [vmem:[#allocation2 + $0x1a] sm:$0xff]
        %v881 = vld [vmem:[#allocation2 + $0x22] sm:$0xff]
        %v882 = vld [vmem:[#allocation2 + $0x2a] sm:$0xff]
        %v883 = vld [vmem:[#allocation2 + $0x32] sm:$0xff]
        %v884 = vld [vmem:[#allocation2 + $0x3a] sm:$0xff]
        %v885 = vld [vmem:[#allocation2 + $0x42] sm:$0xff]
        %v886 = vld [vmem:[#allocation2 + $0x4a] sm:$0xff]
        %v887 = vld [vmem:[#allocation2 + $0x52] sm:$0xff]
        %v888 = vld [vmem:[#allocation2 + $0x5a] sm:$0xff]
        %v889 = vld [vmem:[#allocation2 + $0x62] sm:$0xff]
        %v890 = vld [vmem:[#allocation2 + $0x6a] sm:$0xff]
        %v891 = vld [vmem:[#allocation2 + $0x72] sm:$0xff]
        %v892 = vld [vmem:[#allocation2 + $0x7a] sm:$0xff]
        %v893 = vld [vmem:[#allocation2 + $0x82] sm:$0xff]
        %v894 = vlaneseq
        %v895 = vshrl.u32 %v894, 7
        %v896 = vsub.s32 5, %v895
        %v897 = vrot.slane %v633, %v896
        %v898 = vmul.f32 %v878, %v897
        %v899 = vmul.f32 %v879, %v897
        %v900 = vmul.f32 %v880, %v897
        %v901 = vmul.f32 %v881, %v897
        %v902 = vmul.f32 %v882, %v897
        %v903 = vmul.f32 %v883, %v897
        %v904 = vmul.f32 %v884, %v897
        %v905 = vmul.f32 %v885, %v897
        %v906 = vmul.f32 %v886, %v897
        %v907 = vmul.f32 %v887, %v897
        %v908 = vmul.f32 %v888, %v897
        %v909 = vmul.f32 %v889, %v897
        %v910 = vmul.f32 %v890, %v897
        %v911 = vmul.f32 %v891, %v897
        %v912 = vmul.f32 %v892, %v897
        %v913 = vmul.f32 %v893, %v897
        %v914 = vadd.f32 %v862, %v898
        %v915 = vadd.f32 %v863, %v899
        %v916 = vadd.f32 %v864, %v900
        %v917 = vadd.f32 %v865, %v901
        %v918 = vadd.f32 %v866, %v902
        %v919 = vadd.f32 %v867, %v903
        %v920 = vadd.f32 %v868, %v904
        %v921 = vadd.f32 %v869, %v905
        %v922 = vadd.f32 %v870, %v906
        %v923 = vadd.f32 %v871, %v907
        %v924 = vadd.f32 %v872, %v908
        %v925 = vadd.f32 %v873, %v909
        %v926 = vadd.f32 %v874, %v910
        %v927 = vadd.f32 %v875, %v911
        %v928 = vadd.f32 %v876, %v912
        %v929 = vadd.f32 %v877, %v913
        %v930 = vld [vmem:[#allocation2 + $0xb] sm:$0xff]
        %v931 = vld [vmem:[#allocation2 + $0x13] sm:$0xff]
        %v932 = vld [vmem:[#allocation2 + $0x1b] sm:$0xff]
        %v933 = vld [vmem:[#allocation2 + $0x23] sm:$0xff]
        %v934 = vld [vmem:[#allocation2 + $0x2b] sm:$0xff]
        %v935 = vld [vmem:[#allocation2 + $0x33] sm:$0xff]
        %v936 = vld [vmem:[#allocation2 + $0x3b] sm:$0xff]
        %v937 = vld [vmem:[#allocation2 + $0x43] sm:$0xff]
        %v938 = vld [vmem:[#allocation2 + $0x4b] sm:$0xff]
        %v939 = vld [vmem:[#allocation2 + $0x53] sm:$0xff]
        %v940 = vld [vmem:[#allocation2 + $0x5b] sm:$0xff]
        %v941 = vld [vmem:[#allocation2 + $0x63] sm:$0xff]
        %v942 = vld [vmem:[#allocation2 + $0x6b] sm:$0xff]
        %v943 = vld [vmem:[#allocation2 + $0x73] sm:$0xff]
        %v944 = vld [vmem:[#allocation2 + $0x7b] sm:$0xff]
        %v945 = vld [vmem:[#allocation2 + $0x83] sm:$0xff]
        %v946 = vlaneseq
        %v947 = vshrl.u32 %v946, 7
        %v948 = vsub.s32 6, %v947
        %v949 = vrot.slane %v633, %v948
        %v950 = vmul.f32 %v930, %v949
        %v951 = vmul.f32 %v931, %v949
        %v952 = vmul.f32 %v932, %v949
        %v953 = vmul.f32 %v933, %v949
        %v954 = vmul.f32 %v934, %v949
        %v955 = vmul.f32 %v935, %v949
        %v956 = vmul.f32 %v936, %v949
        %v957 = vmul.f32 %v937, %v949
        %v958 = vmul.f32 %v938, %v949
        %v959 = vmul.f32 %v939, %v949
        %v960 = vmul.f32 %v940, %v949
        %v961 = vmul.f32 %v941, %v949
        %v962 = vmul.f32 %v942, %v949
        %v963 = vmul.f32 %v943, %v949
        %v964 = vmul.f32 %v944, %v949
        %v965 = vmul.f32 %v945, %v949
        %v966 = vadd.f32 %v914, %v950
        %v967 = vadd.f32 %v915, %v951
        %v968 = vadd.f32 %v916, %v952
        %v969 = vadd.f32 %v917, %v953
        %v970 = vadd.f32 %v918, %v954
        %v971 = vadd.f32 %v919, %v955
        %v972 = vadd.f32 %v920, %v956
        %v973 = vadd.f32 %v921, %v957
        %v974 = vadd.f32 %v922, %v958
        %v975 = vadd.f32 %v923, %v959
        %v976 = vadd.f32 %v924, %v960
        %v977 = vadd.f32 %v925, %v961
        %v978 = vadd.f32 %v926, %v962
        %v979 = vadd.f32 %v927, %v963
        %v980 = vadd.f32 %v928, %v964
        %v981 = vadd.f32 %v929, %v965
        %v982 = vld [vmem:[%s4] sm:$0x1]
        %v984 = vlaneseq
        %v985 = vshrl.u32 %v984, 7
        %v986 = vsub.s32 0, %v985
        %v987 = vrot.slane %v982, %v986
        %v989 = vadd.f32 %v966, %v987
        %v990 = vadd.f32 %v967, %v987
        %v991 = vadd.f32 %v968, %v987
        %v992 = vadd.f32 %v969, %v987
        %v993 = vadd.f32 %v970, %v987
        %v994 = vadd.f32 %v971, %v987
        %v995 = vadd.f32 %v972, %v987
        %v996 = vadd.f32 %v973, %v987
        %v997 = vadd.f32 %v974, %v987
        %v998 = vadd.f32 %v975, %v987
        %v999 = vadd.f32 %v976, %v987
        %v1000 = vadd.f32 %v977, %v987
        %v1001 = vadd.f32 %v978, %v987
        %v1002 = vadd.f32 %v979, %v987
        %v1003 = vadd.f32 %v980, %v987
        %v1004 = vadd.f32 %v981, %v987
        %v1005 = vld [vmem:[%s5] sm:$0x1]
        %v1006 = vld [vmem:[%s6] sm:$0x1]
        %1007 = vadd.xlane.f32.xlu0 %v989
        %v1008 = vpop.xlane.xlu0 %1007
        %1009 = vadd.xlane.f32.xlu0 %v990
        %v1010 = vpop.xlane.xlu0 %1009
        %1011 = vadd.xlane.f32.xlu0 %v991
        %v1012 = vpop.xlane.xlu0 %1011
        %1013 = vadd.xlane.f32.xlu0 %v992
        %v1014 = vpop.xlane.xlu0 %1013
        %1015 = vadd.xlane.f32.xlu0 %v993
        %v1016 = vpop.xlane.xlu0 %1015
        %1017 = vadd.xlane.f32.xlu0 %v994
        %v1018 = vpop.xlane.xlu0 %1017
        %1019 = vadd.xlane.f32.xlu0 %v995
        %v1020 = vpop.xlane.xlu0 %1019
        %1021 = vadd.xlane.f32.xlu0 %v996
        %v1022 = vpop.xlane.xlu0 %1021
        %1023 = vadd.xlane.f32.xlu0 %v997
        %v1024 = vpop.xlane.xlu0 %1023
        %1025 = vadd.xlane.f32.xlu0 %v998
        %v1026 = vpop.xlane.xlu0 %1025
        %1027 = vadd.xlane.f32.xlu0 %v999
        %v1028 = vpop.xlane.xlu0 %1027
        %1029 = vadd.xlane.f32.xlu0 %v1000
        %v1030 = vpop.xlane.xlu0 %1029
        %1031 = vadd.xlane.f32.xlu0 %v1001
        %v1032 = vpop.xlane.xlu0 %1031
        %1033 = vadd.xlane.f32.xlu0 %v1002
        %v1034 = vpop.xlane.xlu0 %1033
        %1035 = vadd.xlane.f32.xlu0 %v1003
        %v1036 = vpop.xlane.xlu0 %1035
        %1037 = vadd.xlane.f32.xlu0 %v1004
        %v1038 = vpop.xlane.xlu0 %1037
        %v1039 = vrcp.pop 128.0
        %v1040 = vmul.f32 %v1008, %v1039
        %v1041 = vmul.f32 %v1010, %v1039
        %v1042 = vmul.f32 %v1012, %v1039
        %v1043 = vmul.f32 %v1014, %v1039
        %v1044 = vmul.f32 %v1016, %v1039
        %v1045 = vmul.f32 %v1018, %v1039
        %v1046 = vmul.f32 %v1020, %v1039
        %v1047 = vmul.f32 %v1022, %v1039
        %v1048 = vmul.f32 %v1024, %v1039
        %v1049 = vmul.f32 %v1026, %v1039
        %v1050 = vmul.f32 %v1028, %v1039
        %v1051 = vmul.f32 %v1030, %v1039
        %v1052 = vmul.f32 %v1032, %v1039
        %v1053 = vmul.f32 %v1034, %v1039
        %v1054 = vmul.f32 %v1036, %v1039
        %v1055 = vmul.f32 %v1038, %v1039
        %v1056 = vmul.f32 %v989, %v989
        %v1057 = vmul.f32 %v990, %v990
        %v1058 = vmul.f32 %v991, %v991
        %v1059 = vmul.f32 %v992, %v992
        %v1060 = vmul.f32 %v993, %v993
        %v1061 = vmul.f32 %v994, %v994
        %v1062 = vmul.f32 %v995, %v995
        %v1063 = vmul.f32 %v996, %v996
        %v1064 = vmul.f32 %v997, %v997
        %v1065 = vmul.f32 %v998, %v998
        %v1066 = vmul.f32 %v999, %v999
        %v1067 = vmul.f32 %v1000, %v1000
        %v1068 = vmul.f32 %v1001, %v1001
        %v1069 = vmul.f32 %v1002, %v1002
        %v1070 = vmul.f32 %v1003, %v1003
        %v1071 = vmul.f32 %v1004, %v1004
        %1072 = vadd.xlane.f32.xlu0 %v1056
        %v1073 = vpop.xlane.xlu0 %1072
        %1074 = vadd.xlane.f32.xlu0 %v1057
        %v1075 = vpop.xlane.xlu0 %1074
        %1076 = vadd.xlane.f32.xlu0 %v1058
        %v1077 = vpop.xlane.xlu0 %1076
        %1078 = vadd.xlane.f32.xlu0 %v1059
        %v1079 = vpop.xlane.xlu0 %1078
        %1080 = vadd.xlane.f32.xlu0 %v1060
        %v1081 = vpop.xlane.xlu0 %1080
        %1082 = vadd.xlane.f32.xlu0 %v1061
        %v1083 = vpop.xlane.xlu0 %1082
        %1084 = vadd.xlane.f32.xlu0 %v1062
        %v1085 = vpop.xlane.xlu0 %1084
        %1086 = vadd.xlane.f32.xlu0 %v1063
        %v1087 = vpop.xlane.xlu0 %1086
        %1088 = vadd.xlane.f32.xlu0 %v1064
        %v1089 = vpop.xlane.xlu0 %1088
        %1090 = vadd.xlane.f32.xlu0 %v1065
        %v1091 = vpop.xlane.xlu0 %1090
        %1092 = vadd.xlane.f32.xlu0 %v1066
        %v1093 = vpop.xlane.xlu0 %1092
        %1094 = vadd.xlane.f32.xlu0 %v1067
        %v1095 = vpop.xlane.xlu0 %1094
        %1096 = vadd.xlane.f32.xlu0 %v1068
        %v1097 = vpop.xlane.xlu0 %1096
        %1098 = vadd.xlane.f32.xlu0 %v1069
        %v1099 = vpop.xlane.xlu0 %1098
        %1100 = vadd.xlane.f32.xlu0 %v1070
        %v1101 = vpop.xlane.xlu0 %1100
        %1102 = vadd.xlane.f32.xlu0 %v1071
        %v1103 = vpop.xlane.xlu0 %1102
        %v1104 = vmul.f32 %v1073, %v1039
        %v1105 = vmul.f32 %v1075, %v1039
        %v1106 = vmul.f32 %v1077, %v1039
        %v1107 = vmul.f32 %v1079, %v1039
        %v1108 = vmul.f32 %v1081, %v1039
        %v1109 = vmul.f32 %v1083, %v1039
        %v1110 = vmul.f32 %v1085, %v1039
        %v1111 = vmul.f32 %v1087, %v1039
        %v1112 = vmul.f32 %v1089, %v1039
        %v1113 = vmul.f32 %v1091, %v1039
        %v1114 = vmul.f32 %v1093, %v1039
        %v1115 = vmul.f32 %v1095, %v1039
        %v1116 = vmul.f32 %v1097, %v1039
        %v1117 = vmul.f32 %v1099, %v1039
        %v1118 = vmul.f32 %v1101, %v1039
        %v1119 = vmul.f32 %v1103, %v1039
        %v1120 = vmul.f32 %v1040, %v1040
        %v1121 = vmul.f32 %v1041, %v1041
        %v1122 = vmul.f32 %v1042, %v1042
        %v1123 = vmul.f32 %v1043, %v1043
        %v1124 = vmul.f32 %v1044, %v1044
        %v1125 = vmul.f32 %v1045, %v1045
        %v1126 = vmul.f32 %v1046, %v1046
        %v1127 = vmul.f32 %v1047, %v1047
        %v1128 = vmul.f32 %v1048, %v1048
        %v1129 = vmul.f32 %v1049, %v1049
        %v1130 = vmul.f32 %v1050, %v1050
        %v1131 = vmul.f32 %v1051, %v1051
        %v1132 = vmul.f32 %v1052, %v1052
        %v1133 = vmul.f32 %v1053, %v1053
        %v1134 = vmul.f32 %v1054, %v1054
        %v1135 = vmul.f32 %v1055, %v1055
        %v1136 = vsub.f32 %v1104, %v1120
        %v1137 = vsub.f32 %v1105, %v1121
        %v1138 = vsub.f32 %v1106, %v1122
        %v1139 = vsub.f32 %v1107, %v1123
        %v1140 = vsub.f32 %v1108, %v1124
        %v1141 = vsub.f32 %v1109, %v1125
        %v1142 = vsub.f32 %v1110, %v1126
        %v1143 = vsub.f32 %v1111, %v1127
        %v1144 = vsub.f32 %v1112, %v1128
        %v1145 = vsub.f32 %v1113, %v1129
        %v1146 = vsub.f32 %v1114, %v1130
        %v1147 = vsub.f32 %v1115, %v1131
        %v1148 = vsub.f32 %v1116, %v1132
        %v1149 = vsub.f32 %v1117, %v1133
        %v1150 = vsub.f32 %v1118, %v1134
        %v1151 = vsub.f32 %v1119, %v1135
        %v1152 = vmax.f32 %v1136, 0.0
        %v1153 = vmax.f32 %v1137, 0.0
        %v1154 = vmax.f32 %v1138, 0.0
        %v1155 = vmax.f32 %v1139, 0.0
        %v1156 = vmax.f32 %v1140, 0.0
        %v1157 = vmax.f32 %v1141, 0.0
        %v1158 = vmax.f32 %v1142, 0.0
        %v1159 = vmax.f32 %v1143, 0.0
        %v1160 = vmax.f32 %v1144, 0.0
        %v1161 = vmax.f32 %v1145, 0.0
        %v1162 = vmax.f32 %v1146, 0.0
        %v1163 = vmax.f32 %v1147, 0.0
        %v1164 = vmax.f32 %v1148, 0.0
        %v1165 = vmax.f32 %v1149, 0.0
        %v1166 = vmax.f32 %v1150, 0.0
        %v1167 = vmax.f32 %v1151, 0.0
        %v1168 = vsub.f32 %v989, %v1040
        %v1169 = vsub.f32 %v990, %v1041
        %v1170 = vsub.f32 %v991, %v1042
        %v1171 = vsub.f32 %v992, %v1043
        %v1172 = vsub.f32 %v993, %v1044
        %v1173 = vsub.f32 %v994, %v1045
        %v1174 = vsub.f32 %v995, %v1046
        %v1175 = vsub.f32 %v996, %v1047
        %v1176 = vsub.f32 %v997, %v1048
        %v1177 = vsub.f32 %v998, %v1049
        %v1178 = vsub.f32 %v999, %v1050
        %v1179 = vsub.f32 %v1000, %v1051
        %v1180 = vsub.f32 %v1001, %v1052
        %v1181 = vsub.f32 %v1002, %v1053
        %v1182 = vsub.f32 %v1003, %v1054
        %v1183 = vsub.f32 %v1004, %v1055
        %v1184 = vadd.f32 %v1152, 1e-05
        %v1185 = vadd.f32 %v1153, 1e-05
        %v1186 = vadd.f32 %v1154, 1e-05
        %v1187 = vadd.f32 %v1155, 1e-05
        %v1188 = vadd.f32 %v1156, 1e-05
        %v1189 = vadd.f32 %v1157, 1e-05
        %v1190 = vadd.f32 %v1158, 1e-05
        %v1191 = vadd.f32 %v1159, 1e-05
        %v1192 = vadd.f32 %v1160, 1e-05
        %v1193 = vadd.f32 %v1161, 1e-05
        %v1194 = vadd.f32 %v1162, 1e-05
        %v1195 = vadd.f32 %v1163, 1e-05
        %v1196 = vadd.f32 %v1164, 1e-05
        %v1197 = vadd.f32 %v1165, 1e-05
        %v1198 = vadd.f32 %v1166, 1e-05
        %v1199 = vadd.f32 %v1167, 1e-05
        %v1200 = vrsqrt.pop %v1184
        %v1201 = vrsqrt.pop %v1185
        %v1202 = vrsqrt.pop %v1186
        %v1203 = vrsqrt.pop %v1187
        %v1204 = vrsqrt.pop %v1188
        %v1205 = vrsqrt.pop %v1189
        %v1206 = vrsqrt.pop %v1190
        %v1207 = vrsqrt.pop %v1191
        %v1208 = vrsqrt.pop %v1192
        %v1209 = vrsqrt.pop %v1193
        %v1210 = vrsqrt.pop %v1194
        %v1211 = vrsqrt.pop %v1195
        %v1212 = vrsqrt.pop %v1196
        %v1213 = vrsqrt.pop %v1197
        %v1214 = vrsqrt.pop %v1198
        %v1215 = vrsqrt.pop %v1199
        %v1216 = vmul.f32 %v1168, %v1200
        %v1217 = vmul.f32 %v1169, %v1201
        %v1218 = vmul.f32 %v1170, %v1202
        %v1219 = vmul.f32 %v1171, %v1203
        %v1220 = vmul.f32 %v1172, %v1204
        %v1221 = vmul.f32 %v1173, %v1205
        %v1222 = vmul.f32 %v1174, %v1206
        %v1223 = vmul.f32 %v1175, %v1207
        %v1224 = vmul.f32 %v1176, %v1208
        %v1225 = vmul.f32 %v1177, %v1209
        %v1226 = vmul.f32 %v1178, %v1210
        %v1227 = vmul.f32 %v1179, %v1211
        %v1228 = vmul.f32 %v1180, %v1212
        %v1229 = vmul.f32 %v1181, %v1213
        %v1230 = vmul.f32 %v1182, %v1214
        %v1231 = vmul.f32 %v1183, %v1215
        %v1233 = vlaneseq
        %v1234 = vshrl.u32 %v1233, 7
        %v1235 = vsub.s32 0, %v1234
        %v1236 = vrot.slane %v1005, %v1235
        %v1238 = vmul.f32 %v1216, %v1236
        %v1239 = vmul.f32 %v1217, %v1236
        %v1240 = vmul.f32 %v1218, %v1236
        %v1241 = vmul.f32 %v1219, %v1236
        %v1242 = vmul.f32 %v1220, %v1236
        %v1243 = vmul.f32 %v1221, %v1236
        %v1244 = vmul.f32 %v1222, %v1236
        %v1245 = vmul.f32 %v1223, %v1236
        %v1246 = vmul.f32 %v1224, %v1236
        %v1247 = vmul.f32 %v1225, %v1236
        %v1248 = vmul.f32 %v1226, %v1236
        %v1249 = vmul.f32 %v1227, %v1236
        %v1250 = vmul.f32 %v1228, %v1236
        %v1251 = vmul.f32 %v1229, %v1236
        %v1252 = vmul.f32 %v1230, %v1236
        %v1253 = vmul.f32 %v1231, %v1236
        %v1255 = vlaneseq
        %v1256 = vshrl.u32 %v1255, 7
        %v1257 = vsub.s32 0, %v1256
        %v1258 = vrot.slane %v1006, %v1257
        %v1260 = vadd.f32 %v1238, %v1258
        %v1261 = vadd.f32 %v1239, %v1258
        %v1262 = vadd.f32 %v1240, %v1258
        %v1263 = vadd.f32 %v1241, %v1258
        %v1264 = vadd.f32 %v1242, %v1258
        %v1265 = vadd.f32 %v1243, %v1258
        %v1266 = vadd.f32 %v1244, %v1258
        %v1267 = vadd.f32 %v1245, %v1258
        %v1268 = vadd.f32 %v1246, %v1258
        %v1269 = vadd.f32 %v1247, %v1258
        %v1270 = vadd.f32 %v1248, %v1258
        %v1271 = vadd.f32 %v1249, %v1258
        %v1272 = vadd.f32 %v1250, %v1258
        %v1273 = vadd.f32 %v1251, %v1258
        %v1274 = vadd.f32 %v1252, %v1258
        %v1275 = vadd.f32 %v1253, %v1258
        %v1276 = vpack.c.bf16 %v1261, %v1260
        %v1277 = vpack.c.bf16 %v1263, %v1262
        %v1278 = vpack.c.bf16 %v1265, %v1264
        %v1279 = vpack.c.bf16 %v1267, %v1266
        %v1280 = vpack.c.bf16 %v1269, %v1268
        %v1281 = vpack.c.bf16 %v1271, %v1270
        %v1282 = vpack.c.bf16 %v1273, %v1272
        %v1283 = vpack.c.bf16 %v1275, %v1274
        %v1284 = vld [vmem:[#allocation11] sm:$0xff]
        %v1285 = vld [vmem:[#allocation11 + $0x8] sm:$0xff]
        %v1286 = vld [vmem:[#allocation11 + $0x10] sm:$0xff]
        %v1287 = vld [vmem:[#allocation11 + $0x18] sm:$0xff]
        %v1288 = vld [vmem:[#allocation11 + $0x20] sm:$0xff]
        %v1289 = vld [vmem:[#allocation11 + $0x28] sm:$0xff]
        %v1290 = vld [vmem:[#allocation11 + $0x30] sm:$0xff]
        %v1291 = vld [vmem:[#allocation11 + $0x38] sm:$0xff]
        %v1292 = vld [vmem:[#allocation11 + $0x40] sm:$0xff]
        %v1293 = vld [vmem:[#allocation11 + $0x48] sm:$0xff]
        %v1294 = vld [vmem:[#allocation11 + $0x50] sm:$0xff]
        %v1295 = vld [vmem:[#allocation11 + $0x58] sm:$0xff]
        %v1296 = vld [vmem:[#allocation11 + $0x60] sm:$0xff]
        %v1297 = vld [vmem:[#allocation11 + $0x68] sm:$0xff]
        %v1298 = vld [vmem:[#allocation11 + $0x70] sm:$0xff]
        %v1299 = vld [vmem:[#allocation11 + $0x78] sm:$0xff]
        %v1300 = vld [vmem:[#allocation11 + $0x80] sm:$0xff]
        %v1301 = vld [vmem:[#allocation11 + $0x88] sm:$0xff]
        %v1302 = vld [vmem:[#allocation11 + $0x90] sm:$0xff]
        %v1303 = vld [vmem:[#allocation11 + $0x98] sm:$0xff]
        %v1304 = vld [vmem:[#allocation11 + $0xa0] sm:$0xff]
        %v1305 = vld [vmem:[#allocation11 + $0xa8] sm:$0xff]
        %v1306 = vld [vmem:[#allocation11 + $0xb0] sm:$0xff]
        %v1307 = vld [vmem:[#allocation11 + $0xb8] sm:$0xff]
        %v1308 = vld [vmem:[#allocation11 + $0xc0] sm:$0xff]
        %v1309 = vld [vmem:[#allocation11 + $0xc8] sm:$0xff]
        %v1310 = vld [vmem:[#allocation11 + $0xd0] sm:$0xff]
        %v1311 = vld [vmem:[#allocation11 + $0xd8] sm:$0xff]
        %v1312 = vld [vmem:[#allocation11 + $0xe0] sm:$0xff]
        %v1313 = vld [vmem:[#allocation11 + $0xe8] sm:$0xff]
        %v1314 = vld [vmem:[#allocation11 + $0xf0] sm:$0xff]
        %v1315 = vld [vmem:[#allocation11 + $0xf8] sm:$0xff]
        %v1316 = vld [vmem:[%s8] sm:$0xf]
        %v1318 = vlaneseq
        %v1319 = vshrl.u32 %v1318, 7
        %v1320 = vsub.s32 0, %v1319
        %v1321 = vrot.slane %v1316, %v1320
        %v1322 = vlaneseq
        %v1323 = vshrl.u32 %v1322, 7
        %v1324 = vsub.s32 1, %v1323
        %v1325 = vrot.slane %v1316, %v1324
        %v1326 = vlaneseq
        %v1327 = vshrl.u32 %v1326, 7
        %v1328 = vsub.s32 2, %v1327
        %v1329 = vrot.slane %v1316, %v1328
        %v1330 = vlaneseq
        %v1331 = vshrl.u32 %v1330, 7
        %v1332 = vsub.s32 3, %v1331
        %v1333 = vrot.slane %v1316, %v1332
        %v1370 = vunpack.c.l.b16 %v1284
        %v1371 = vunpack.c.h.b16 %v1284
        %v1372 = vunpack.c.l.b16 %v1285
        %v1373 = vunpack.c.h.b16 %v1285
        %v1374 = vunpack.c.l.b16 %v1286
        %v1375 = vunpack.c.h.b16 %v1286
        %v1376 = vunpack.c.l.b16 %v1287
        %v1377 = vunpack.c.h.b16 %v1287
        %v1378 = vunpack.c.l.b16 %v1288
        %v1379 = vunpack.c.h.b16 %v1288
        %v1380 = vunpack.c.l.b16 %v1289
        %v1381 = vunpack.c.h.b16 %v1289
        %v1382 = vunpack.c.l.b16 %v1290
        %v1383 = vunpack.c.h.b16 %v1290
        %v1384 = vunpack.c.l.b16 %v1291
        %v1385 = vunpack.c.h.b16 %v1291
        %v1386 = vunpack.c.l.b16 %v1292
        %v1387 = vunpack.c.h.b16 %v1292
        %v1388 = vunpack.c.l.b16 %v1293
        %v1389 = vunpack.c.h.b16 %v1293
        %v1390 = vunpack.c.l.b16 %v1294
        %v1391 = vunpack.c.h.b16 %v1294
        %v1392 = vunpack.c.l.b16 %v1295
        %v1393 = vunpack.c.h.b16 %v1295
        %v1394 = vunpack.c.l.b16 %v1296
        %v1395 = vunpack.c.h.b16 %v1296
        %v1396 = vunpack.c.l.b16 %v1297
        %v1397 = vunpack.c.h.b16 %v1297
        %v1398 = vunpack.c.l.b16 %v1298
        %v1399 = vunpack.c.h.b16 %v1298
        %v1400 = vunpack.c.l.b16 %v1299
        %v1401 = vunpack.c.h.b16 %v1299
        %v1402 = vunpack.c.l.b16 %v1300
        %v1403 = vunpack.c.h.b16 %v1300
        %v1404 = vunpack.c.l.b16 %v1301
        %v1405 = vunpack.c.h.b16 %v1301
        %v1406 = vunpack.c.l.b16 %v1302
        %v1407 = vunpack.c.h.b16 %v1302
        %v1408 = vunpack.c.l.b16 %v1303
        %v1409 = vunpack.c.h.b16 %v1303
        %v1410 = vunpack.c.l.b16 %v1304
        %v1411 = vunpack.c.h.b16 %v1304
        %v1412 = vunpack.c.l.b16 %v1305
        %v1413 = vunpack.c.h.b16 %v1305
        %v1414 = vunpack.c.l.b16 %v1306
        %v1415 = vunpack.c.h.b16 %v1306
        %v1416 = vunpack.c.l.b16 %v1307
        %v1417 = vunpack.c.h.b16 %v1307
        %v1418 = vunpack.c.l.b16 %v1308
        %v1419 = vunpack.c.h.b16 %v1308
        %v1420 = vunpack.c.l.b16 %v1309
        %v1421 = vunpack.c.h.b16 %v1309
        %v1422 = vunpack.c.l.b16 %v1310
        %v1423 = vunpack.c.h.b16 %v1310
        %v1424 = vunpack.c.l.b16 %v1311
        %v1425 = vunpack.c.h.b16 %v1311
        %v1426 = vunpack.c.l.b16 %v1312
        %v1427 = vunpack.c.h.b16 %v1312
        %v1428 = vunpack.c.l.b16 %v1313
        %v1429 = vunpack.c.h.b16 %v1313
        %v1430 = vunpack.c.l.b16 %v1314
        %v1431 = vunpack.c.h.b16 %v1314
        %v1432 = vunpack.c.l.b16 %v1315
        %v1433 = vunpack.c.h.b16 %v1315
        %v1434 = vpack.c.b16 %v1374, %v1370
        %v1435 = vpack.c.b16 %v1375, %v1371
        %v1436 = vpack.c.b16 %v1376, %v1372
        %v1437 = vpack.c.b16 %v1377, %v1373
        %v1438 = vpack.c.b16 %v1382, %v1378
        %v1439 = vpack.c.b16 %v1383, %v1379
        %v1440 = vpack.c.b16 %v1384, %v1380
        %v1441 = vpack.c.b16 %v1385, %v1381
        %v1442 = vpack.c.b16 %v1390, %v1386
        %v1443 = vpack.c.b16 %v1391, %v1387
        %v1444 = vpack.c.b16 %v1392, %v1388
        %v1445 = vpack.c.b16 %v1393, %v1389
        %v1446 = vpack.c.b16 %v1398, %v1394
        %v1447 = vpack.c.b16 %v1399, %v1395
        %v1448 = vpack.c.b16 %v1400, %v1396
        %v1449 = vpack.c.b16 %v1401, %v1397
        %v1450 = vpack.c.b16 %v1406, %v1402
        %v1451 = vpack.c.b16 %v1407, %v1403
        %v1452 = vpack.c.b16 %v1408, %v1404
        %v1453 = vpack.c.b16 %v1409, %v1405
        %v1454 = vpack.c.b16 %v1414, %v1410
        %v1455 = vpack.c.b16 %v1415, %v1411
        %v1456 = vpack.c.b16 %v1416, %v1412
        %v1457 = vpack.c.b16 %v1417, %v1413
        %v1458 = vpack.c.b16 %v1422, %v1418
        %v1459 = vpack.c.b16 %v1423, %v1419
        %v1460 = vpack.c.b16 %v1424, %v1420
        %v1461 = vpack.c.b16 %v1425, %v1421
        %v1462 = vpack.c.b16 %v1430, %v1426
        %v1463 = vpack.c.b16 %v1431, %v1427
        %v1464 = vpack.c.b16 %v1432, %v1428
        %v1465 = vpack.c.b16 %v1433, %v1429
        %1498 = vmatprep.subr.bf16.mxu0 %v1463
        %1499 = vmatpush1.bf16.msra.mxu0 %v1462
        %1500 = vmatprep.subr.bf16.mxu0 %v1459
        %1501 = vmatpush1.bf16.msra.mxu0 %v1458
        %1502 = vmatprep.subr.bf16.mxu0 %v1455
        %1503 = vmatpush1.bf16.msra.mxu0 %v1454
        %1504 = vmatprep.subr.bf16.mxu0 %v1451
        %1505 = vmatpush1.bf16.msra.mxu0 %v1450
        %1506 = vmatprep.subr.bf16.mxu0 %v1447
        %1507 = vmatpush1.bf16.msra.mxu0 %v1446
        %1508 = vmatprep.subr.bf16.mxu0 %v1443
        %1509 = vmatpush1.bf16.msra.mxu0 %v1442
        %1510 = vmatprep.subr.bf16.mxu0 %v1439
        %1511 = vmatpush1.bf16.msra.mxu0 %v1438
        %1512 = vmatprep.subr.bf16.mxu0 %v1435
        %1513 = vmatpush1.bf16.msra.mxu0 %v1434
        %1514 = vmatprep.subr.bf16.mxu0 0
        %1515 = vmatpush2.bf16.msra.mxu0 0
        %1516 = vmatprep.subr.bf16.mxu0 0
        %1517 = vmatpush2.bf16.msra.mxu0 0
        %1518 = vmatprep.subr.bf16.mxu0 0
        %1519 = vmatpush2.bf16.msra.mxu0 0
        %1520 = vmatprep.subr.bf16.mxu0 0
        %1521 = vmatpush2.bf16.msra.mxu0 0
        %1522 = vmatprep.subr.bf16.mxu0 0
        %1523 = vmatpush2.bf16.msra.mxu0 0
        %1524 = vmatprep.subr.bf16.mxu0 0
        %1525 = vmatpush2.bf16.msra.mxu0 0
        %1526 = vmatprep.subr.bf16.mxu0 0
        %1527 = vmatpush2.bf16.msra.mxu0 0
        %1528 = vmatprep.subr.bf16.mxu0 0
        %1529 = vmatpush2.bf16.msra.mxu0 0
        %1530 = vmatprep.mubr.bf16.mxu0 0
        %1531 = vmatmul.mubr.bf16.gmra.mxu0 %v1276
        %v1532 = vpop.f32.mrf.mxu0
        %v1533 = vadd.f32 %v1321, %v1532
        %v1534 = vpop.f32.mrf.mxu0
        %v1535 = vadd.f32 %v1325, %v1534
        %v1536 = vpop.f32.mrf.mxu0
        %v1537 = vadd.f32 %v1321, %v1536
        %v1538 = vpop.f32.mrf.mxu0
        %v1539 = vadd.f32 %v1325, %v1538
        %1540 = vmatprep.mubr.bf16.mxu0 0
        %1541 = vmatmul.mubr.bf16.gmra.mxu0 %v1277
        %v1542 = vpop.f32.mrf.mxu0
        %v1543 = vadd.f32 %v1321, %v1542
        %v1544 = vpop.f32.mrf.mxu0
        %v1545 = vadd.f32 %v1325, %v1544
        %v1546 = vpop.f32.mrf.mxu0
        %v1547 = vadd.f32 %v1321, %v1546
        %v1548 = vpop.f32.mrf.mxu0
        %v1549 = vadd.f32 %v1325, %v1548
        %1550 = vmatprep.mubr.bf16.mxu0 0
        %1551 = vmatmul.mubr.bf16.gmra.mxu0 %v1278
        %v1552 = vpop.f32.mrf.mxu0
        %v1553 = vadd.f32 %v1321, %v1552
        %v1554 = vpop.f32.mrf.mxu0
        %v1555 = vadd.f32 %v1325, %v1554
        %v1556 = vpop.f32.mrf.mxu0
        %v1557 = vadd.f32 %v1321, %v1556
        %v1558 = vpop.f32.mrf.mxu0
        %v1559 = vadd.f32 %v1325, %v1558
        %1560 = vmatprep.mubr.bf16.mxu0 0
        %1561 = vmatmul.mubr.bf16.gmra.mxu0 %v1279
        %v1562 = vpop.f32.mrf.mxu0
        %v1563 = vadd.f32 %v1321, %v1562
        %v1564 = vpop.f32.mrf.mxu0
        %v1565 = vadd.f32 %v1325, %v1564
        %v1566 = vpop.f32.mrf.mxu0
        %v1567 = vadd.f32 %v1321, %v1566
        %v1568 = vpop.f32.mrf.mxu0
        %v1569 = vadd.f32 %v1325, %v1568
        %1570 = vmatprep.mubr.bf16.mxu0 0
        %1571 = vmatmul.mubr.bf16.gmra.mxu0 %v1280
        %v1572 = vpop.f32.mrf.mxu0
        %v1573 = vadd.f32 %v1321, %v1572
        %v1574 = vpop.f32.mrf.mxu0
        %v1575 = vadd.f32 %v1325, %v1574
        %v1576 = vpop.f32.mrf.mxu0
        %v1577 = vadd.f32 %v1321, %v1576
        %v1578 = vpop.f32.mrf.mxu0
        %v1579 = vadd.f32 %v1325, %v1578
        %1580 = vmatprep.mubr.bf16.mxu0 0
        %1581 = vmatmul.mubr.bf16.gmra.mxu0 %v1281
        %v1582 = vpop.f32.mrf.mxu0
        %v1583 = vadd.f32 %v1321, %v1582
        %v1584 = vpop.f32.mrf.mxu0
        %v1585 = vadd.f32 %v1325, %v1584
        %v1586 = vpop.f32.mrf.mxu0
        %v1587 = vadd.f32 %v1321, %v1586
        %v1588 = vpop.f32.mrf.mxu0
        %v1589 = vadd.f32 %v1325, %v1588
        %1590 = vmatprep.mubr.bf16.mxu0 0
        %1591 = vmatmul.mubr.bf16.gmra.mxu0 %v1282
        %v1592 = vpop.f32.mrf.mxu0
        %v1593 = vadd.f32 %v1321, %v1592
        %v1594 = vpop.f32.mrf.mxu0
        %v1595 = vadd.f32 %v1325, %v1594
        %v1596 = vpop.f32.mrf.mxu0
        %v1597 = vadd.f32 %v1321, %v1596
        %v1598 = vpop.f32.mrf.mxu0
        %v1599 = vadd.f32 %v1325, %v1598
        %1600 = vmatprep.mubr.bf16.mxu0 0
        %1601 = vmatmul.mubr.bf16.gmra.mxu0 %v1283
        %v1602 = vpop.f32.mrf.mxu0
        %v1603 = vadd.f32 %v1321, %v1602
        %v1604 = vpop.f32.mrf.mxu0
        %v1605 = vadd.f32 %v1325, %v1604
        %v1606 = vpop.f32.mrf.mxu0
        %v1607 = vadd.f32 %v1321, %v1606
        %v1608 = vpop.f32.mrf.mxu0
        %v1609 = vadd.f32 %v1325, %v1608
        %1610 = vdwg.mxu0
        %1611 = vmatprep.subr.bf16.mxu0 %v1465
        %1612 = vmatpush1.bf16.msra.mxu0 %v1464
        %1613 = vmatprep.subr.bf16.mxu0 %v1461
        %1614 = vmatpush1.bf16.msra.mxu0 %v1460
        %1615 = vmatprep.subr.bf16.mxu0 %v1457
        %1616 = vmatpush1.bf16.msra.mxu0 %v1456
        %1617 = vmatprep.subr.bf16.mxu0 %v1453
        %1618 = vmatpush1.bf16.msra.mxu0 %v1452
        %1619 = vmatprep.subr.bf16.mxu0 %v1449
        %1620 = vmatpush1.bf16.msra.mxu0 %v1448
        %1621 = vmatprep.subr.bf16.mxu0 %v1445
        %1622 = vmatpush1.bf16.msra.mxu0 %v1444
        %1623 = vmatprep.subr.bf16.mxu0 %v1441
        %1624 = vmatpush1.bf16.msra.mxu0 %v1440
        %1625 = vmatprep.subr.bf16.mxu0 %v1437
        %1626 = vmatpush1.bf16.msra.mxu0 %v1436
        %1627 = vmatprep.subr.bf16.mxu0 0
        %1628 = vmatpush2.bf16.msra.mxu0 0
        %1629 = vmatprep.subr.bf16.mxu0 0
        %1630 = vmatpush2.bf16.msra.mxu0 0
        %1631 = vmatprep.subr.bf16.mxu0 0
        %1632 = vmatpush2.bf16.msra.mxu0 0
        %1633 = vmatprep.subr.bf16.mxu0 0
        %1634 = vmatpush2.bf16.msra.mxu0 0
        %1635 = vmatprep.subr.bf16.mxu0 0
        %1636 = vmatpush2.bf16.msra.mxu0 0
        %1637 = vmatprep.subr.bf16.mxu0 0
        %1638 = vmatpush2.bf16.msra.mxu0 0
        %1639 = vmatprep.subr.bf16.mxu0 0
        %1640 = vmatpush2.bf16.msra.mxu0 0
        %1641 = vmatprep.subr.bf16.mxu0 0
        %1642 = vmatpush2.bf16.msra.mxu0 0
        %1643 = vmatprep.mubr.bf16.mxu0 0
        %1644 = vmatmul.mubr.bf16.gmra.mxu0 %v1276
        %v1645 = vpop.f32.mrf.mxu0
        %v1646 = vadd.f32 %v1329, %v1645
        %v1647 = vpop.f32.mrf.mxu0
        %v1648 = vadd.f32 %v1333, %v1647
        %v1649 = vpop.f32.mrf.mxu0
        %v1650 = vadd.f32 %v1329, %v1649
        %v1651 = vpop.f32.mrf.mxu0
        %v1652 = vadd.f32 %v1333, %v1651
        %1653 = vmatprep.mubr.bf16.mxu0 0
        %1654 = vmatmul.mubr.bf16.gmra.mxu0 %v1277
        %v1655 = vpop.f32.mrf.mxu0
        %v1656 = vadd.f32 %v1329, %v1655
        %v1657 = vpop.f32.mrf.mxu0
        %v1658 = vadd.f32 %v1333, %v1657
        %v1659 = vpop.f32.mrf.mxu0
        %v1660 = vadd.f32 %v1329, %v1659
        %v1661 = vpop.f32.mrf.mxu0
        %v1662 = vadd.f32 %v1333, %v1661
        %1663 = vmatprep.mubr.bf16.mxu0 0
        %1664 = vmatmul.mubr.bf16.gmra.mxu0 %v1278
        %v1665 = vpop.f32.mrf.mxu0
        %v1666 = vadd.f32 %v1329, %v1665
        %v1667 = vpop.f32.mrf.mxu0
        %v1668 = vadd.f32 %v1333, %v1667
        %v1669 = vpop.f32.mrf.mxu0
        %v1670 = vadd.f32 %v1329, %v1669
        %v1671 = vpop.f32.mrf.mxu0
        %v1672 = vadd.f32 %v1333, %v1671
        %1673 = vmatprep.mubr.bf16.mxu0 0
        %1674 = vmatmul.mubr.bf16.gmra.mxu0 %v1279
        %v1675 = vpop.f32.mrf.mxu0
        %v1676 = vadd.f32 %v1329, %v1675
        %v1677 = vpop.f32.mrf.mxu0
        %v1678 = vadd.f32 %v1333, %v1677
        %v1679 = vpop.f32.mrf.mxu0
        %v1680 = vadd.f32 %v1329, %v1679
        %v1681 = vpop.f32.mrf.mxu0
        %v1682 = vadd.f32 %v1333, %v1681
        %1683 = vmatprep.mubr.bf16.mxu0 0
        %1684 = vmatmul.mubr.bf16.gmra.mxu0 %v1280
        %v1685 = vpop.f32.mrf.mxu0
        %v1686 = vadd.f32 %v1329, %v1685
        %v1687 = vpop.f32.mrf.mxu0
        %v1688 = vadd.f32 %v1333, %v1687
        %v1689 = vpop.f32.mrf.mxu0
        %v1690 = vadd.f32 %v1329, %v1689
        %v1691 = vpop.f32.mrf.mxu0
        %v1692 = vadd.f32 %v1333, %v1691
        %1693 = vmatprep.mubr.bf16.mxu0 0
        %1694 = vmatmul.mubr.bf16.gmra.mxu0 %v1281
        %v1695 = vpop.f32.mrf.mxu0
        %v1696 = vadd.f32 %v1329, %v1695
        %v1697 = vpop.f32.mrf.mxu0
        %v1698 = vadd.f32 %v1333, %v1697
        %v1699 = vpop.f32.mrf.mxu0
        %v1700 = vadd.f32 %v1329, %v1699
        %v1701 = vpop.f32.mrf.mxu0
        %v1702 = vadd.f32 %v1333, %v1701
        %1703 = vmatprep.mubr.bf16.mxu0 0
        %1704 = vmatmul.mubr.bf16.gmra.mxu0 %v1282
        %v1705 = vpop.f32.mrf.mxu0
        %v1706 = vadd.f32 %v1329, %v1705
        %v1707 = vpop.f32.mrf.mxu0
        %v1708 = vadd.f32 %v1333, %v1707
        %v1709 = vpop.f32.mrf.mxu0
        %v1710 = vadd.f32 %v1329, %v1709
        %v1711 = vpop.f32.mrf.mxu0
        %v1712 = vadd.f32 %v1333, %v1711
        %1713 = vmatprep.mubr.bf16.mxu0 0
        %1714 = vmatmul.mubr.bf16.gmra.mxu0 %v1283
        %v1715 = vpop.f32.mrf.mxu0
        %v1716 = vadd.f32 %v1329, %v1715
        %v1717 = vpop.f32.mrf.mxu0
        %v1718 = vadd.f32 %v1333, %v1717
        %v1719 = vpop.f32.mrf.mxu0
        %v1720 = vadd.f32 %v1329, %v1719
        %v1721 = vpop.f32.mrf.mxu0
        %v1722 = vadd.f32 %v1333, %v1721
        %1723 = vdwg.mxu0
        %v1724 = vmul.f32 %v1533, %v1533
        %v1725 = vmul.f32 %v1535, %v1535
        %v1726 = vmul.f32 %v1646, %v1646
        %v1727 = vmul.f32 %v1648, %v1648
        %v1728 = vmul.f32 %v1537, %v1537
        %v1729 = vmul.f32 %v1539, %v1539
        %v1730 = vmul.f32 %v1650, %v1650
        %v1731 = vmul.f32 %v1652, %v1652
        %v1732 = vmul.f32 %v1543, %v1543
        %v1733 = vmul.f32 %v1545, %v1545
        %v1734 = vmul.f32 %v1656, %v1656
        %v1735 = vmul.f32 %v1658, %v1658
        %v1736 = vmul.f32 %v1547, %v1547
        %v1737 = vmul.f32 %v1549, %v1549
        %v1738 = vmul.f32 %v1660, %v1660
        %v1739 = vmul.f32 %v1662, %v1662
        %v1740 = vmul.f32 %v1553, %v1553
        %v1741 = vmul.f32 %v1555, %v1555
        %v1742 = vmul.f32 %v1666, %v1666
        %v1743 = vmul.f32 %v1668, %v1668
        %v1744 = vmul.f32 %v1557, %v1557
        %v1745 = vmul.f32 %v1559, %v1559
        %v1746 = vmul.f32 %v1670, %v1670
        %v1747 = vmul.f32 %v1672, %v1672
        %v1748 = vmul.f32 %v1563, %v1563
        %v1749 = vmul.f32 %v1565, %v1565
        %v1750 = vmul.f32 %v1676, %v1676
        %v1751 = vmul.f32 %v1678, %v1678
        %v1752 = vmul.f32 %v1567, %v1567
        %v1753 = vmul.f32 %v1569, %v1569
        %v1754 = vmul.f32 %v1680, %v1680
        %v1755 = vmul.f32 %v1682, %v1682
        %v1756 = vmul.f32 %v1573, %v1573
        %v1757 = vmul.f32 %v1575, %v1575
        %v1758 = vmul.f32 %v1686, %v1686
        %v1759 = vmul.f32 %v1688, %v1688
        %v1760 = vmul.f32 %v1577, %v1577
        %v1761 = vmul.f32 %v1579, %v1579
        %v1762 = vmul.f32 %v1690, %v1690
        %v1763 = vmul.f32 %v1692, %v1692
        %v1764 = vmul.f32 %v1583, %v1583
        %v1765 = vmul.f32 %v1585, %v1585
        %v1766 = vmul.f32 %v1696, %v1696
        %v1767 = vmul.f32 %v1698, %v1698
        %v1768 = vmul.f32 %v1587, %v1587
        %v1769 = vmul.f32 %v1589, %v1589
        %v1770 = vmul.f32 %v1700, %v1700
        %v1771 = vmul.f32 %v1702, %v1702
        %v1772 = vmul.f32 %v1593, %v1593
        %v1773 = vmul.f32 %v1595, %v1595
        %v1774 = vmul.f32 %v1706, %v1706
        %v1775 = vmul.f32 %v1708, %v1708
        %v1776 = vmul.f32 %v1597, %v1597
        %v1777 = vmul.f32 %v1599, %v1599
        %v1778 = vmul.f32 %v1710, %v1710
        %v1779 = vmul.f32 %v1712, %v1712
        %v1780 = vmul.f32 %v1603, %v1603
        %v1781 = vmul.f32 %v1605, %v1605
        %v1782 = vmul.f32 %v1716, %v1716
        %v1783 = vmul.f32 %v1718, %v1718
        %v1784 = vmul.f32 %v1607, %v1607
        %v1785 = vmul.f32 %v1609, %v1609
        %v1786 = vmul.f32 %v1720, %v1720
        %v1787 = vmul.f32 %v1722, %v1722
        %v1788 = vmul.f32 %v1533, %v1724
        %v1789 = vmul.f32 %v1535, %v1725
        %v1790 = vmul.f32 %v1646, %v1726
        %v1791 = vmul.f32 %v1648, %v1727
        %v1792 = vmul.f32 %v1537, %v1728
        %v1793 = vmul.f32 %v1539, %v1729
        %v1794 = vmul.f32 %v1650, %v1730
        %v1795 = vmul.f32 %v1652, %v1731
        %v1796 = vmul.f32 %v1543, %v1732
        %v1797 = vmul.f32 %v1545, %v1733
        %v1798 = vmul.f32 %v1656, %v1734
        %v1799 = vmul.f32 %v1658, %v1735
        %v1800 = vmul.f32 %v1547, %v1736
        %v1801 = vmul.f32 %v1549, %v1737
        %v1802 = vmul.f32 %v1660, %v1738
        %v1803 = vmul.f32 %v1662, %v1739
        %v1804 = vmul.f32 %v1553, %v1740
        %v1805 = vmul.f32 %v1555, %v1741
        %v1806 = vmul.f32 %v1666, %v1742
        %v1807 = vmul.f32 %v1668, %v1743
        %v1808 = vmul.f32 %v1557, %v1744
        %v1809 = vmul.f32 %v1559, %v1745
        %v1810 = vmul.f32 %v1670, %v1746
        %v1811 = vmul.f32 %v1672, %v1747
        %v1812 = vmul.f32 %v1563, %v1748
        %v1813 = vmul.f32 %v1565, %v1749
        %v1814 = vmul.f32 %v1676, %v1750
        %v1815 = vmul.f32 %v1678, %v1751
        %v1816 = vmul.f32 %v1567, %v1752
        %v1817 = vmul.f32 %v1569, %v1753
        %v1818 = vmul.f32 %v1680, %v1754
        %v1819 = vmul.f32 %v1682, %v1755
        %v1820 = vmul.f32 %v1573, %v1756
        %v1821 = vmul.f32 %v1575, %v1757
        %v1822 = vmul.f32 %v1686, %v1758
        %v1823 = vmul.f32 %v1688, %v1759
        %v1824 = vmul.f32 %v1577, %v1760
        %v1825 = vmul.f32 %v1579, %v1761
        %v1826 = vmul.f32 %v1690, %v1762
        %v1827 = vmul.f32 %v1692, %v1763
        %v1828 = vmul.f32 %v1583, %v1764
        %v1829 = vmul.f32 %v1585, %v1765
        %v1830 = vmul.f32 %v1696, %v1766
        %v1831 = vmul.f32 %v1698, %v1767
        %v1832 = vmul.f32 %v1587, %v1768
        %v1833 = vmul.f32 %v1589, %v1769
        %v1834 = vmul.f32 %v1700, %v1770
        %v1835 = vmul.f32 %v1702, %v1771
        %v1836 = vmul.f32 %v1593, %v1772
        %v1837 = vmul.f32 %v1595, %v1773
        %v1838 = vmul.f32 %v1706, %v1774
        %v1839 = vmul.f32 %v1708, %v1775
        %v1840 = vmul.f32 %v1597, %v1776
        %v1841 = vmul.f32 %v1599, %v1777
        %v1842 = vmul.f32 %v1710, %v1778
        %v1843 = vmul.f32 %v1712, %v1779
        %v1844 = vmul.f32 %v1603, %v1780
        %v1845 = vmul.f32 %v1605, %v1781
        %v1846 = vmul.f32 %v1716, %v1782
        %v1847 = vmul.f32 %v1718, %v1783
        %v1848 = vmul.f32 %v1607, %v1784
        %v1849 = vmul.f32 %v1609, %v1785
        %v1850 = vmul.f32 %v1720, %v1786
        %v1851 = vmul.f32 %v1722, %v1787
        %v1852 = vmul.f32 %v1788, 0.044715
        %v1853 = vmul.f32 %v1789, 0.044715
        %v1854 = vmul.f32 %v1790, 0.044715
        %v1855 = vmul.f32 %v1791, 0.044715
        %v1856 = vmul.f32 %v1792, 0.044715
        %v1857 = vmul.f32 %v1793, 0.044715
        %v1858 = vmul.f32 %v1794, 0.044715
        %v1859 = vmul.f32 %v1795, 0.044715
        %v1860 = vmul.f32 %v1796, 0.044715
        %v1861 = vmul.f32 %v1797, 0.044715
        %v1862 = vmul.f32 %v1798, 0.044715
        %v1863 = vmul.f32 %v1799, 0.044715
        %v1864 = vmul.f32 %v1800, 0.044715
        %v1865 = vmul.f32 %v1801, 0.044715
        %v1866 = vmul.f32 %v1802, 0.044715
        %v1867 = vmul.f32 %v1803, 0.044715
        %v1868 = vmul.f32 %v1804, 0.044715
        %v1869 = vmul.f32 %v1805, 0.044715
        %v1870 = vmul.f32 %v1806, 0.044715
        %v1871 = vmul.f32 %v1807, 0.044715
        %v1872 = vmul.f32 %v1808, 0.044715
        %v1873 = vmul.f32 %v1809, 0.044715
        %v1874 = vmul.f32 %v1810, 0.044715
        %v1875 = vmul.f32 %v1811, 0.044715
        %v1876 = vmul.f32 %v1812, 0.044715
        %v1877 = vmul.f32 %v1813, 0.044715
        %v1878 = vmul.f32 %v1814, 0.044715
        %v1879 = vmul.f32 %v1815, 0.044715
        %v1880 = vmul.f32 %v1816, 0.044715
        %v1881 = vmul.f32 %v1817, 0.044715
        %v1882 = vmul.f32 %v1818, 0.044715
        %v1883 = vmul.f32 %v1819, 0.044715
        %v1884 = vmul.f32 %v1820, 0.044715
        %v1885 = vmul.f32 %v1821, 0.044715
        %v1886 = vmul.f32 %v1822, 0.044715
        %v1887 = vmul.f32 %v1823, 0.044715
        %v1888 = vmul.f32 %v1824, 0.044715
        %v1889 = vmul.f32 %v1825, 0.044715
        %v1890 = vmul.f32 %v1826, 0.044715
        %v1891 = vmul.f32 %v1827, 0.044715
        %v1892 = vmul.f32 %v1828, 0.044715
        %v1893 = vmul.f32 %v1829, 0.044715
        %v1894 = vmul.f32 %v1830, 0.044715
        %v1895 = vmul.f32 %v1831, 0.044715
        %v1896 = vmul.f32 %v1832, 0.044715
        %v1897 = vmul.f32 %v1833, 0.044715
        %v1898 = vmul.f32 %v1834, 0.044715
        %v1899 = vmul.f32 %v1835, 0.044715
        %v1900 = vmul.f32 %v1836, 0.044715
        %v1901 = vmul.f32 %v1837, 0.044715
        %v1902 = vmul.f32 %v1838, 0.044715
        %v1903 = vmul.f32 %v1839, 0.044715
        %v1904 = vmul.f32 %v1840, 0.044715
        %v1905 = vmul.f32 %v1841, 0.044715
        %v1906 = vmul.f32 %v1842, 0.044715
        %v1907 = vmul.f32 %v1843, 0.044715
        %v1908 = vmul.f32 %v1844, 0.044715
        %v1909 = vmul.f32 %v1845, 0.044715
        %v1910 = vmul.f32 %v1846, 0.044715
        %v1911 = vmul.f32 %v1847, 0.044715
        %v1912 = vmul.f32 %v1848, 0.044715
        %v1913 = vmul.f32 %v1849, 0.044715
        %v1914 = vmul.f32 %v1850, 0.044715
        %v1915 = vmul.f32 %v1851, 0.044715
        %v1916 = vadd.f32 %v1533, %v1852
        %v1917 = vadd.f32 %v1535, %v1853
        %v1918 = vadd.f32 %v1646, %v1854
        %v1919 = vadd.f32 %v1648, %v1855
        %v1920 = vadd.f32 %v1537, %v1856
        %v1921 = vadd.f32 %v1539, %v1857
        %v1922 = vadd.f32 %v1650, %v1858
        %v1923 = vadd.f32 %v1652, %v1859
        %v1924 = vadd.f32 %v1543, %v1860
        %v1925 = vadd.f32 %v1545, %v1861
        %v1926 = vadd.f32 %v1656, %v1862
        %v1927 = vadd.f32 %v1658, %v1863
        %v1928 = vadd.f32 %v1547, %v1864
        %v1929 = vadd.f32 %v1549, %v1865
        %v1930 = vadd.f32 %v1660, %v1866
        %v1931 = vadd.f32 %v1662, %v1867
        %v1932 = vadd.f32 %v1553, %v1868
        %v1933 = vadd.f32 %v1555, %v1869
        %v1934 = vadd.f32 %v1666, %v1870
        %v1935 = vadd.f32 %v1668, %v1871
        %v1936 = vadd.f32 %v1557, %v1872
        %v1937 = vadd.f32 %v1559, %v1873
        %v1938 = vadd.f32 %v1670, %v1874
        %v1939 = vadd.f32 %v1672, %v1875
        %v1940 = vadd.f32 %v1563, %v1876
        %v1941 = vadd.f32 %v1565, %v1877
        %v1942 = vadd.f32 %v1676, %v1878
        %v1943 = vadd.f32 %v1678, %v1879
        %v1944 = vadd.f32 %v1567, %v1880
        %v1945 = vadd.f32 %v1569, %v1881
        %v1946 = vadd.f32 %v1680, %v1882
        %v1947 = vadd.f32 %v1682, %v1883
        %v1948 = vadd.f32 %v1573, %v1884
        %v1949 = vadd.f32 %v1575, %v1885
        %v1950 = vadd.f32 %v1686, %v1886
        %v1951 = vadd.f32 %v1688, %v1887
        %v1952 = vadd.f32 %v1577, %v1888
        %v1953 = vadd.f32 %v1579, %v1889
        %v1954 = vadd.f32 %v1690, %v1890
        %v1955 = vadd.f32 %v1692, %v1891
        %v1956 = vadd.f32 %v1583, %v1892
        %v1957 = vadd.f32 %v1585, %v1893
        %v1958 = vadd.f32 %v1696, %v1894
        %v1959 = vadd.f32 %v1698, %v1895
        %v1960 = vadd.f32 %v1587, %v1896
        %v1961 = vadd.f32 %v1589, %v1897
        %v1962 = vadd.f32 %v1700, %v1898
        %v1963 = vadd.f32 %v1702, %v1899
        %v1964 = vadd.f32 %v1593, %v1900
        %v1965 = vadd.f32 %v1595, %v1901
        %v1966 = vadd.f32 %v1706, %v1902
        %v1967 = vadd.f32 %v1708, %v1903
        %v1968 = vadd.f32 %v1597, %v1904
        %v1969 = vadd.f32 %v1599, %v1905
        %v1970 = vadd.f32 %v1710, %v1906
        %v1971 = vadd.f32 %v1712, %v1907
        %v1972 = vadd.f32 %v1603, %v1908
        %v1973 = vadd.f32 %v1605, %v1909
        %v1974 = vadd.f32 %v1716, %v1910
        %v1975 = vadd.f32 %v1718, %v1911
        %v1976 = vadd.f32 %v1607, %v1912
        %v1977 = vadd.f32 %v1609, %v1913
        %v1978 = vadd.f32 %v1720, %v1914
        %v1979 = vadd.f32 %v1722, %v1915
        %v1980 = vmul.f32 %v1916, 0.7978846
        %v1981 = vmul.f32 %v1917, 0.7978846
        %v1982 = vmul.f32 %v1918, 0.7978846
        %v1983 = vmul.f32 %v1919, 0.7978846
        %v1984 = vmul.f32 %v1920, 0.7978846
        %v1985 = vmul.f32 %v1921, 0.7978846
        %v1986 = vmul.f32 %v1922, 0.7978846
        %v1987 = vmul.f32 %v1923, 0.7978846
        %v1988 = vmul.f32 %v1924, 0.7978846
        %v1989 = vmul.f32 %v1925, 0.7978846
        %v1990 = vmul.f32 %v1926, 0.7978846
        %v1991 = vmul.f32 %v1927, 0.7978846
        %v1992 = vmul.f32 %v1928, 0.7978846
        %v1993 = vmul.f32 %v1929, 0.7978846
        %v1994 = vmul.f32 %v1930, 0.7978846
        %v1995 = vmul.f32 %v1931, 0.7978846
        %v1996 = vmul.f32 %v1932, 0.7978846
        %v1997 = vmul.f32 %v1933, 0.7978846
        %v1998 = vmul.f32 %v1934, 0.7978846
        %v1999 = vmul.f32 %v1935, 0.7978846
        %v2000 = vmul.f32 %v1936, 0.7978846
        %v2001 = vmul.f32 %v1937, 0.7978846
        %v2002 = vmul.f32 %v1938, 0.7978846
        %v2003 = vmul.f32 %v1939, 0.7978846
        %v2004 = vmul.f32 %v1940, 0.7978846
        %v2005 = vmul.f32 %v1941, 0.7978846
        %v2006 = vmul.f32 %v1942, 0.7978846
        %v2007 = vmul.f32 %v1943, 0.7978846
        %v2008 = vmul.f32 %v1944, 0.7978846
        %v2009 = vmul.f32 %v1945, 0.7978846
        %v2010 = vmul.f32 %v1946, 0.7978846
        %v2011 = vmul.f32 %v1947, 0.7978846
        %v2012 = vmul.f32 %v1948, 0.7978846
        %v2013 = vmul.f32 %v1949, 0.7978846
        %v2014 = vmul.f32 %v1950, 0.7978846
        %v2015 = vmul.f32 %v1951, 0.7978846
        %v2016 = vmul.f32 %v1952, 0.7978846
        %v2017 = vmul.f32 %v1953, 0.7978846
        %v2018 = vmul.f32 %v1954, 0.7978846
        %v2019 = vmul.f32 %v1955, 0.7978846
        %v2020 = vmul.f32 %v1956, 0.7978846
        %v2021 = vmul.f32 %v1957, 0.7978846
        %v2022 = vmul.f32 %v1958, 0.7978846
        %v2023 = vmul.f32 %v1959, 0.7978846
        %v2024 = vmul.f32 %v1960, 0.7978846
        %v2025 = vmul.f32 %v1961, 0.7978846
        %v2026 = vmul.f32 %v1962, 0.7978846
        %v2027 = vmul.f32 %v1963, 0.7978846
        %v2028 = vmul.f32 %v1964, 0.7978846
        %v2029 = vmul.f32 %v1965, 0.7978846
        %v2030 = vmul.f32 %v1966, 0.7978846
        %v2031 = vmul.f32 %v1967, 0.7978846
        %v2032 = vmul.f32 %v1968, 0.7978846
        %v2033 = vmul.f32 %v1969, 0.7978846
        %v2034 = vmul.f32 %v1970, 0.7978846
        %v2035 = vmul.f32 %v1971, 0.7978846
        %v2036 = vmul.f32 %v1972, 0.7978846
        %v2037 = vmul.f32 %v1973, 0.7978846
        %v2038 = vmul.f32 %v1974, 0.7978846
        %v2039 = vmul.f32 %v1975, 0.7978846
        %v2040 = vmul.f32 %v1976, 0.7978846
        %v2041 = vmul.f32 %v1977, 0.7978846
        %v2042 = vmul.f32 %v1978, 0.7978846
        %v2043 = vmul.f32 %v1979, 0.7978846
        %v2044 = vtanh.pop %v1980
        %v2045 = vtanh.pop %v1981
        %v2046 = vtanh.pop %v1982
        %v2047 = vtanh.pop %v1983
        %v2048 = vtanh.pop %v1984
        %v2049 = vtanh.pop %v1985
        %v2050 = vtanh.pop %v1986
        %v2051 = vtanh.pop %v1987
        %v2052 = vtanh.pop %v1988
        %v2053 = vtanh.pop %v1989
        %v2054 = vtanh.pop %v1990
        %v2055 = vtanh.pop %v1991
        %v2056 = vtanh.pop %v1992
        %v2057 = vtanh.pop %v1993
        %v2058 = vtanh.pop %v1994
        %v2059 = vtanh.pop %v1995
        %v2060 = vtanh.pop %v1996
        %v2061 = vtanh.pop %v1997
        %v2062 = vtanh.pop %v1998
        %v2063 = vtanh.pop %v1999
        %v2064 = vtanh.pop %v2000
        %v2065 = vtanh.pop %v2001
        %v2066 = vtanh.pop %v2002
        %v2067 = vtanh.pop %v2003
        %v2068 = vtanh.pop %v2004
        %v2069 = vtanh.pop %v2005
        %v2070 = vtanh.pop %v2006
        %v2071 = vtanh.pop %v2007
        %v2072 = vtanh.pop %v2008
        %v2073 = vtanh.pop %v2009
        %v2074 = vtanh.pop %v2010
        %v2075 = vtanh.pop %v2011
        %v2076 = vtanh.pop %v2012
        %v2077 = vtanh.pop %v2013
        %v2078 = vtanh.pop %v2014
        %v2079 = vtanh.pop %v2015
        %v2080 = vtanh.pop %v2016
        %v2081 = vtanh.pop %v2017
        %v2082 = vtanh.pop %v2018
        %v2083 = vtanh.pop %v2019
        %v2084 = vtanh.pop %v2020
        %v2085 = vtanh.pop %v2021
        %v2086 = vtanh.pop %v2022
        %v2087 = vtanh.pop %v2023
        %v2088 = vtanh.pop %v2024
        %v2089 = vtanh.pop %v2025
        %v2090 = vtanh.pop %v2026
        %v2091 = vtanh.pop %v2027
        %v2092 = vtanh.pop %v2028
        %v2093 = vtanh.pop %v2029
        %v2094 = vtanh.pop %v2030
        %v2095 = vtanh.pop %v2031
        %v2096 = vtanh.pop %v2032
        %v2097 = vtanh.pop %v2033
        %v2098 = vtanh.pop %v2034
        %v2099 = vtanh.pop %v2035
        %v2100 = vtanh.pop %v2036
        %v2101 = vtanh.pop %v2037
        %v2102 = vtanh.pop %v2038
        %v2103 = vtanh.pop %v2039
        %v2104 = vtanh.pop %v2040
        %v2105 = vtanh.pop %v2041
        %v2106 = vtanh.pop %v2042
        %v2107 = vtanh.pop %v2043
        %v2108 = vadd.f32 %v2044, 1.0
        %v2109 = vadd.f32 %v2045, 1.0
        %v2110 = vadd.f32 %v2046, 1.0
        %v2111 = vadd.f32 %v2047, 1.0
        %v2112 = vadd.f32 %v2048, 1.0
        %v2113 = vadd.f32 %v2049, 1.0
        %v2114 = vadd.f32 %v2050, 1.0
        %v2115 = vadd.f32 %v2051, 1.0
        %v2116 = vadd.f32 %v2052, 1.0
        %v2117 = vadd.f32 %v2053, 1.0
        %v2118 = vadd.f32 %v2054, 1.0
        %v2119 = vadd.f32 %v2055, 1.0
        %v2120 = vadd.f32 %v2056, 1.0
        %v2121 = vadd.f32 %v2057, 1.0
        %v2122 = vadd.f32 %v2058, 1.0
        %v2123 = vadd.f32 %v2059, 1.0
        %v2124 = vadd.f32 %v2060, 1.0
        %v2125 = vadd.f32 %v2061, 1.0
        %v2126 = vadd.f32 %v2062, 1.0
        %v2127 = vadd.f32 %v2063, 1.0
        %v2128 = vadd.f32 %v2064, 1.0
        %v2129 = vadd.f32 %v2065, 1.0
        %v2130 = vadd.f32 %v2066, 1.0
        %v2131 = vadd.f32 %v2067, 1.0
        %v2132 = vadd.f32 %v2068, 1.0
        %v2133 = vadd.f32 %v2069, 1.0
        %v2134 = vadd.f32 %v2070, 1.0
        %v2135 = vadd.f32 %v2071, 1.0
        %v2136 = vadd.f32 %v2072, 1.0
        %v2137 = vadd.f32 %v2073, 1.0
        %v2138 = vadd.f32 %v2074, 1.0
        %v2139 = vadd.f32 %v2075, 1.0
        %v2140 = vadd.f32 %v2076, 1.0
        %v2141 = vadd.f32 %v2077, 1.0
        %v2142 = vadd.f32 %v2078, 1.0
        %v2143 = vadd.f32 %v2079, 1.0
        %v2144 = vadd.f32 %v2080, 1.0
        %v2145 = vadd.f32 %v2081, 1.0
        %v2146 = vadd.f32 %v2082, 1.0
        %v2147 = vadd.f32 %v2083, 1.0
        %v2148 = vadd.f32 %v2084, 1.0
        %v2149 = vadd.f32 %v2085, 1.0
        %v2150 = vadd.f32 %v2086, 1.0
        %v2151 = vadd.f32 %v2087, 1.0
        %v2152 = vadd.f32 %v2088, 1.0
        %v2153 = vadd.f32 %v2089, 1.0
        %v2154 = vadd.f32 %v2090, 1.0
        %v2155 = vadd.f32 %v2091, 1.0
        %v2156 = vadd.f32 %v2092, 1.0
        %v2157 = vadd.f32 %v2093, 1.0
        %v2158 = vadd.f32 %v2094, 1.0
        %v2159 = vadd.f32 %v2095, 1.0
        %v2160 = vadd.f32 %v2096, 1.0
        %v2161 = vadd.f32 %v2097, 1.0
        %v2162 = vadd.f32 %v2098, 1.0
        %v2163 = vadd.f32 %v2099, 1.0
        %v2164 = vadd.f32 %v2100, 1.0
        %v2165 = vadd.f32 %v2101, 1.0
        %v2166 = vadd.f32 %v2102, 1.0
        %v2167 = vadd.f32 %v2103, 1.0
        %v2168 = vadd.f32 %v2104, 1.0
        %v2169 = vadd.f32 %v2105, 1.0
        %v2170 = vadd.f32 %v2106, 1.0
        %v2171 = vadd.f32 %v2107, 1.0
        %v2172 = vmul.f32 %v2108, 0.5
        %v2173 = vmul.f32 %v2109, 0.5
        %v2174 = vmul.f32 %v2110, 0.5
        %v2175 = vmul.f32 %v2111, 0.5
        %v2176 = vmul.f32 %v2112, 0.5
        %v2177 = vmul.f32 %v2113, 0.5
        %v2178 = vmul.f32 %v2114, 0.5
        %v2179 = vmul.f32 %v2115, 0.5
        %v2180 = vmul.f32 %v2116, 0.5
        %v2181 = vmul.f32 %v2117, 0.5
        %v2182 = vmul.f32 %v2118, 0.5
        %v2183 = vmul.f32 %v2119, 0.5
        %v2184 = vmul.f32 %v2120, 0.5
        %v2185 = vmul.f32 %v2121, 0.5
        %v2186 = vmul.f32 %v2122, 0.5
        %v2187 = vmul.f32 %v2123, 0.5
        %v2188 = vmul.f32 %v2124, 0.5
        %v2189 = vmul.f32 %v2125, 0.5
        %v2190 = vmul.f32 %v2126, 0.5
        %v2191 = vmul.f32 %v2127, 0.5
        %v2192 = vmul.f32 %v2128, 0.5
        %v2193 = vmul.f32 %v2129, 0.5
        %v2194 = vmul.f32 %v2130, 0.5
        %v2195 = vmul.f32 %v2131, 0.5
        %v2196 = vmul.f32 %v2132, 0.5
        %v2197 = vmul.f32 %v2133, 0.5
        %v2198 = vmul.f32 %v2134, 0.5
        %v2199 = vmul.f32 %v2135, 0.5
        %v2200 = vmul.f32 %v2136, 0.5
        %v2201 = vmul.f32 %v2137, 0.5
        %v2202 = vmul.f32 %v2138, 0.5
        %v2203 = vmul.f32 %v2139, 0.5
        %v2204 = vmul.f32 %v2140, 0.5
        %v2205 = vmul.f32 %v2141, 0.5
        %v2206 = vmul.f32 %v2142, 0.5
        %v2207 = vmul.f32 %v2143, 0.5
        %v2208 = vmul.f32 %v2144, 0.5
        %v2209 = vmul.f32 %v2145, 0.5
        %v2210 = vmul.f32 %v2146, 0.5
        %v2211 = vmul.f32 %v2147, 0.5
        %v2212 = vmul.f32 %v2148, 0.5
        %v2213 = vmul.f32 %v2149, 0.5
        %v2214 = vmul.f32 %v2150, 0.5
        %v2215 = vmul.f32 %v2151, 0.5
        %v2216 = vmul.f32 %v2152, 0.5
        %v2217 = vmul.f32 %v2153, 0.5
        %v2218 = vmul.f32 %v2154, 0.5
        %v2219 = vmul.f32 %v2155, 0.5
        %v2220 = vmul.f32 %v2156, 0.5
        %v2221 = vmul.f32 %v2157, 0.5
        %v2222 = vmul.f32 %v2158, 0.5
        %v2223 = vmul.f32 %v2159, 0.5
        %v2224 = vmul.f32 %v2160, 0.5
        %v2225 = vmul.f32 %v2161, 0.5
        %v2226 = vmul.f32 %v2162, 0.5
        %v2227 = vmul.f32 %v2163, 0.5
        %v2228 = vmul.f32 %v2164, 0.5
        %v2229 = vmul.f32 %v2165, 0.5
        %v2230 = vmul.f32 %v2166, 0.5
        %v2231 = vmul.f32 %v2167, 0.5
        %v2232 = vmul.f32 %v2168, 0.5
        %v2233 = vmul.f32 %v2169, 0.5
        %v2234 = vmul.f32 %v2170, 0.5
        %v2235 = vmul.f32 %v2171, 0.5
        %v2236 = vmul.f32 %v1533, %v2172
        %v2237 = vmul.f32 %v1535, %v2173
        %v2238 = vmul.f32 %v1646, %v2174
        %v2239 = vmul.f32 %v1648, %v2175
        %v2240 = vmul.f32 %v1537, %v2176
        %v2241 = vmul.f32 %v1539, %v2177
        %v2242 = vmul.f32 %v1650, %v2178
        %v2243 = vmul.f32 %v1652, %v2179
        %v2244 = vmul.f32 %v1543, %v2180
        %v2245 = vmul.f32 %v1545, %v2181
        %v2246 = vmul.f32 %v1656, %v2182
        %v2247 = vmul.f32 %v1658, %v2183
        %v2248 = vmul.f32 %v1547, %v2184
        %v2249 = vmul.f32 %v1549, %v2185
        %v2250 = vmul.f32 %v1660, %v2186
        %v2251 = vmul.f32 %v1662, %v2187
        %v2252 = vmul.f32 %v1553, %v2188
        %v2253 = vmul.f32 %v1555, %v2189
        %v2254 = vmul.f32 %v1666, %v2190
        %v2255 = vmul.f32 %v1668, %v2191
        %v2256 = vmul.f32 %v1557, %v2192
        %v2257 = vmul.f32 %v1559, %v2193
        %v2258 = vmul.f32 %v1670, %v2194
        %v2259 = vmul.f32 %v1672, %v2195
        %v2260 = vmul.f32 %v1563, %v2196
        %v2261 = vmul.f32 %v1565, %v2197
        %v2262 = vmul.f32 %v1676, %v2198
        %v2263 = vmul.f32 %v1678, %v2199
        %v2264 = vmul.f32 %v1567, %v2200
        %v2265 = vmul.f32 %v1569, %v2201
        %v2266 = vmul.f32 %v1680, %v2202
        %v2267 = vmul.f32 %v1682, %v2203
        %v2268 = vmul.f32 %v1573, %v2204
        %v2269 = vmul.f32 %v1575, %v2205
        %v2270 = vmul.f32 %v1686, %v2206
        %v2271 = vmul.f32 %v1688, %v2207
        %v2272 = vmul.f32 %v1577, %v2208
        %v2273 = vmul.f32 %v1579, %v2209
        %v2274 = vmul.f32 %v1690, %v2210
        %v2275 = vmul.f32 %v1692, %v2211
        %v2276 = vmul.f32 %v1583, %v2212
        %v2277 = vmul.f32 %v1585, %v2213
        %v2278 = vmul.f32 %v1696, %v2214
        %v2279 = vmul.f32 %v1698, %v2215
        %v2280 = vmul.f32 %v1587, %v2216
        %v2281 = vmul.f32 %v1589, %v2217
        %v2282 = vmul.f32 %v1700, %v2218
        %v2283 = vmul.f32 %v1702, %v2219
        %v2284 = vmul.f32 %v1593, %v2220
        %v2285 = vmul.f32 %v1595, %v2221
        %v2286 = vmul.f32 %v1706, %v2222
        %v2287 = vmul.f32 %v1708, %v2223
        %v2288 = vmul.f32 %v1597, %v2224
        %v2289 = vmul.f32 %v1599, %v2225
        %v2290 = vmul.f32 %v1710, %v2226
        %v2291 = vmul.f32 %v1712, %v2227
        %v2292 = vmul.f32 %v1603, %v2228
        %v2293 = vmul.f32 %v1605, %v2229
        %v2294 = vmul.f32 %v1716, %v2230
        %v2295 = vmul.f32 %v1718, %v2231
        %v2296 = vmul.f32 %v1607, %v2232
        %v2297 = vmul.f32 %v1609, %v2233
        %v2298 = vmul.f32 %v1720, %v2234
        %v2299 = vmul.f32 %v1722, %v2235
        %v2300 = vpack.c.bf16 %v2240, %v2236
        %v2301 = vpack.c.bf16 %v2241, %v2237
        %v2302 = vpack.c.bf16 %v2242, %v2238
        %v2303 = vpack.c.bf16 %v2243, %v2239
        %v2304 = vpack.c.bf16 %v2248, %v2244
        %v2305 = vpack.c.bf16 %v2249, %v2245
        %v2306 = vpack.c.bf16 %v2250, %v2246
        %v2307 = vpack.c.bf16 %v2251, %v2247
        %v2308 = vpack.c.bf16 %v2256, %v2252
        %v2309 = vpack.c.bf16 %v2257, %v2253
        %v2310 = vpack.c.bf16 %v2258, %v2254
        %v2311 = vpack.c.bf16 %v2259, %v2255
        %v2312 = vpack.c.bf16 %v2264, %v2260
        %v2313 = vpack.c.bf16 %v2265, %v2261
        %v2314 = vpack.c.bf16 %v2266, %v2262
        %v2315 = vpack.c.bf16 %v2267, %v2263
        %v2316 = vpack.c.bf16 %v2272, %v2268
        %v2317 = vpack.c.bf16 %v2273, %v2269
        %v2318 = vpack.c.bf16 %v2274, %v2270
        %v2319 = vpack.c.bf16 %v2275, %v2271
        %v2320 = vpack.c.bf16 %v2280, %v2276
        %v2321 = vpack.c.bf16 %v2281, %v2277
        %v2322 = vpack.c.bf16 %v2282, %v2278
        %v2323 = vpack.c.bf16 %v2283, %v2279
        %v2324 = vpack.c.bf16 %v2288, %v2284
        %v2325 = vpack.c.bf16 %v2289, %v2285
        %v2326 = vpack.c.bf16 %v2290, %v2286
        %v2327 = vpack.c.bf16 %v2291, %v2287
        %v2328 = vpack.c.bf16 %v2296, %v2292
        %v2329 = vpack.c.bf16 %v2297, %v2293
        %v2330 = vpack.c.bf16 %v2298, %v2294
        %v2331 = vpack.c.bf16 %v2299, %v2295
        %v2332 = vld [vmem:[#allocation12] sm:$0xf]
        %v2333 = vld [vmem:[#allocation12 + $0x4] sm:$0xf]
        %v2334 = vld [vmem:[#allocation12 + $0x8] sm:$0xf]
        %v2335 = vld [vmem:[#allocation12 + $0xc] sm:$0xf]
        %v2336 = vld [vmem:[#allocation12 + $0x10] sm:$0xf]
        %v2337 = vld [vmem:[#allocation12 + $0x14] sm:$0xf]
        %v2338 = vld [vmem:[#allocation12 + $0x18] sm:$0xf]
        %v2339 = vld [vmem:[#allocation12 + $0x1c] sm:$0xf]
        %v2340 = vld [vmem:[#allocation12 + $0x20] sm:$0xf]
        %v2341 = vld [vmem:[#allocation12 + $0x24] sm:$0xf]
        %v2342 = vld [vmem:[#allocation12 + $0x28] sm:$0xf]
        %v2343 = vld [vmem:[#allocation12 + $0x2c] sm:$0xf]
        %v2344 = vld [vmem:[#allocation12 + $0x30] sm:$0xf]
        %v2345 = vld [vmem:[#allocation12 + $0x34] sm:$0xf]
        %v2346 = vld [vmem:[#allocation12 + $0x38] sm:$0xf]
        %v2347 = vld [vmem:[#allocation12 + $0x3c] sm:$0xf]
        %v2348 = vld [vmem:[#allocation12 + $0x40] sm:$0xf]
        %v2349 = vld [vmem:[#allocation12 + $0x44] sm:$0xf]
        %v2350 = vld [vmem:[#allocation12 + $0x48] sm:$0xf]
        %v2351 = vld [vmem:[#allocation12 + $0x4c] sm:$0xf]
        %v2352 = vld [vmem:[#allocation12 + $0x50] sm:$0xf]
        %v2353 = vld [vmem:[#allocation12 + $0x54] sm:$0xf]
        %v2354 = vld [vmem:[#allocation12 + $0x58] sm:$0xf]
        %v2355 = vld [vmem:[#allocation12 + $0x5c] sm:$0xf]
        %v2356 = vld [vmem:[#allocation12 + $0x60] sm:$0xf]
        %v2357 = vld [vmem:[#allocation12 + $0x64] sm:$0xf]
        %v2358 = vld [vmem:[#allocation12 + $0x68] sm:$0xf]
        %v2359 = vld [vmem:[#allocation12 + $0x6c] sm:$0xf]
        %v2360 = vld [vmem:[#allocation12 + $0x70] sm:$0xf]
        %v2361 = vld [vmem:[#allocation12 + $0x74] sm:$0xf]
        %v2362 = vld [vmem:[#allocation12 + $0x78] sm:$0xf]
        %v2363 = vld [vmem:[#allocation12 + $0x7c] sm:$0xf]
        %v2364 = vld [vmem:[#allocation12 + $0x80] sm:$0xf]
        %v2365 = vld [vmem:[#allocation12 + $0x84] sm:$0xf]
        %v2366 = vld [vmem:[#allocation12 + $0x88] sm:$0xf]
        %v2367 = vld [vmem:[#allocation12 + $0x8c] sm:$0xf]
        %v2368 = vld [vmem:[#allocation12 + $0x90] sm:$0xf]
        %v2369 = vld [vmem:[#allocation12 + $0x94] sm:$0xf]
        %v2370 = vld [vmem:[#allocation12 + $0x98] sm:$0xf]
        %v2371 = vld [vmem:[#allocation12 + $0x9c] sm:$0xf]
        %v2372 = vld [vmem:[#allocation12 + $0xa0] sm:$0xf]
        %v2373 = vld [vmem:[#allocation12 + $0xa4] sm:$0xf]
        %v2374 = vld [vmem:[#allocation12 + $0xa8] sm:$0xf]
        %v2375 = vld [vmem:[#allocation12 + $0xac] sm:$0xf]
        %v2376 = vld [vmem:[#allocation12 + $0xb0] sm:$0xf]
        %v2377 = vld [vmem:[#allocation12 + $0xb4] sm:$0xf]
        %v2378 = vld [vmem:[#allocation12 + $0xb8] sm:$0xf]
        %v2379 = vld [vmem:[#allocation12 + $0xbc] sm:$0xf]
        %v2380 = vld [vmem:[#allocation12 + $0xc0] sm:$0xf]
        %v2381 = vld [vmem:[#allocation12 + $0xc4] sm:$0xf]
        %v2382 = vld [vmem:[#allocation12 + $0xc8] sm:$0xf]
        %v2383 = vld [vmem:[#allocation12 + $0xcc] sm:$0xf]
        %v2384 = vld [vmem:[#allocation12 + $0xd0] sm:$0xf]
        %v2385 = vld [vmem:[#allocation12 + $0xd4] sm:$0xf]
        %v2386 = vld [vmem:[#allocation12 + $0xd8] sm:$0xf]
        %v2387 = vld [vmem:[#allocation12 + $0xdc] sm:$0xf]
        %v2388 = vld [vmem:[#allocation12 + $0xe0] sm:$0xf]
        %v2389 = vld [vmem:[#allocation12 + $0xe4] sm:$0xf]
        %v2390 = vld [vmem:[#allocation12 + $0xe8] sm:$0xf]
        %v2391 = vld [vmem:[#allocation12 + $0xec] sm:$0xf]
        %v2392 = vld [vmem:[#allocation12 + $0xf0] sm:$0xf]
        %v2393 = vld [vmem:[#allocation12 + $0xf4] sm:$0xf]
        %v2394 = vld [vmem:[#allocation12 + $0xf8] sm:$0xf]
        %v2395 = vld [vmem:[#allocation12 + $0xfc] sm:$0xf]
        %v2396 = vld [vmem:[%s10] sm:$0x1]
        %v2398 = vlaneseq
        %v2399 = vshrl.u32 %v2398, 7
        %v2400 = vsub.s32 0, %v2399
        %v2401 = vrot.slane %v2396, %v2400
        %v2467 = vunpack.c.l.b16 %v2332
        %v2468 = vunpack.c.l.b16 %v2333
        %v2469 = vunpack.c.l.b16 %v2334
        %v2470 = vunpack.c.l.b16 %v2335
        %v2471 = vunpack.c.l.b16 %v2336
        %v2472 = vunpack.c.l.b16 %v2337
        %v2473 = vunpack.c.l.b16 %v2338
        %v2474 = vunpack.c.l.b16 %v2339
        %v2475 = vunpack.c.l.b16 %v2340
        %v2476 = vunpack.c.l.b16 %v2341
        %v2477 = vunpack.c.l.b16 %v2342
        %v2478 = vunpack.c.l.b16 %v2343
        %v2479 = vunpack.c.l.b16 %v2344
        %v2480 = vunpack.c.l.b16 %v2345
        %v2481 = vunpack.c.l.b16 %v2346
        %v2482 = vunpack.c.l.b16 %v2347
        %v2483 = vunpack.c.l.b16 %v2348
        %v2484 = vunpack.c.l.b16 %v2349
        %v2485 = vunpack.c.l.b16 %v2350
        %v2486 = vunpack.c.l.b16 %v2351
        %v2487 = vunpack.c.l.b16 %v2352
        %v2488 = vunpack.c.l.b16 %v2353
        %v2489 = vunpack.c.l.b16 %v2354
        %v2490 = vunpack.c.l.b16 %v2355
        %v2491 = vunpack.c.l.b16 %v2356
        %v2492 = vunpack.c.l.b16 %v2357
        %v2493 = vunpack.c.l.b16 %v2358
        %v2494 = vunpack.c.l.b16 %v2359
        %v2495 = vunpack.c.l.b16 %v2360
        %v2496 = vunpack.c.l.b16 %v2361
        %v2497 = vunpack.c.l.b16 %v2362
        %v2498 = vunpack.c.l.b16 %v2363
        %v2499 = vunpack.c.l.b16 %v2364
        %v2500 = vunpack.c.l.b16 %v2365
        %v2501 = vunpack.c.l.b16 %v2366
        %v2502 = vunpack.c.l.b16 %v2367
        %v2503 = vunpack.c.l.b16 %v2368
        %v2504 = vunpack.c.l.b16 %v2369
        %v2505 = vunpack.c.l.b16 %v2370
        %v2506 = vunpack.c.l.b16 %v2371
        %v2507 = vunpack.c.l.b16 %v2372
        %v2508 = vunpack.c.l.b16 %v2373
        %v2509 = vunpack.c.l.b16 %v2374
        %v2510 = vunpack.c.l.b16 %v2375
        %v2511 = vunpack.c.l.b16 %v2376
        %v2512 = vunpack.c.l.b16 %v2377
        %v2513 = vunpack.c.l.b16 %v2378
        %v2514 = vunpack.c.l.b16 %v2379
        %v2515 = vunpack.c.l.b16 %v2380
        %v2516 = vunpack.c.l.b16 %v2381
        %v2517 = vunpack.c.l.b16 %v2382
        %v2518 = vunpack.c.l.b16 %v2383
        %v2519 = vunpack.c.l.b16 %v2384
        %v2520 = vunpack.c.l.b16 %v2385
        %v2521 = vunpack.c.l.b16 %v2386
        %v2522 = vunpack.c.l.b16 %v2387
        %v2523 = vunpack.c.l.b16 %v2388
        %v2524 = vunpack.c.l.b16 %v2389
        %v2525 = vunpack.c.l.b16 %v2390
        %v2526 = vunpack.c.l.b16 %v2391
        %v2527 = vunpack.c.l.b16 %v2392
        %v2528 = vunpack.c.l.b16 %v2393
        %v2529 = vunpack.c.l.b16 %v2394
        %v2530 = vunpack.c.l.b16 %v2395
        %v2531 = vpack.c.b16 %v2468, %v2467
        %v2532 = vpack.c.b16 %v2470, %v2469
        %v2533 = vpack.c.b16 %v2472, %v2471
        %v2534 = vpack.c.b16 %v2474, %v2473
        %v2535 = vpack.c.b16 %v2476, %v2475
        %v2536 = vpack.c.b16 %v2478, %v2477
        %v2537 = vpack.c.b16 %v2480, %v2479
        %v2538 = vpack.c.b16 %v2482, %v2481
        %v2539 = vpack.c.b16 %v2484, %v2483
        %v2540 = vpack.c.b16 %v2486, %v2485
        %v2541 = vpack.c.b16 %v2488, %v2487
        %v2542 = vpack.c.b16 %v2490, %v2489
        %v2543 = vpack.c.b16 %v2492, %v2491
        %v2544 = vpack.c.b16 %v2494, %v2493
        %v2545 = vpack.c.b16 %v2496, %v2495
        %v2546 = vpack.c.b16 %v2498, %v2497
        %v2547 = vpack.c.b16 %v2500, %v2499
        %v2548 = vpack.c.b16 %v2502, %v2501
        %v2549 = vpack.c.b16 %v2504, %v2503
        %v2550 = vpack.c.b16 %v2506, %v2505
        %v2551 = vpack.c.b16 %v2508, %v2507
        %v2552 = vpack.c.b16 %v2510, %v2509
        %v2553 = vpack.c.b16 %v2512, %v2511
        %v2554 = vpack.c.b16 %v2514, %v2513
        %v2555 = vpack.c.b16 %v2516, %v2515
        %v2556 = vpack.c.b16 %v2518, %v2517
        %v2557 = vpack.c.b16 %v2520, %v2519
        %v2558 = vpack.c.b16 %v2522, %v2521
        %v2559 = vpack.c.b16 %v2524, %v2523
        %v2560 = vpack.c.b16 %v2526, %v2525
        %v2561 = vpack.c.b16 %v2528, %v2527
        %v2562 = vpack.c.b16 %v2530, %v2529
        %2595 = vmatprep.subr.bf16.mxu0 0
        %2596 = vmatpush1.bf16.msra.mxu0 %v2538
        %2597 = vmatprep.subr.bf16.mxu0 0
        %2598 = vmatpush1.bf16.msra.mxu0 %v2537
        %2599 = vmatprep.subr.bf16.mxu0 0
        %2600 = vmatpush1.bf16.msra.mxu0 %v2536
        %2601 = vmatprep.subr.bf16.mxu0 0
        %2602 = vmatpush1.bf16.msra.mxu0 %v2535
        %2603 = vmatprep.subr.bf16.mxu0 0
        %2604 = vmatpush1.bf16.msra.mxu0 %v2534
        %2605 = vmatprep.subr.bf16.mxu0 0
        %2606 = vmatpush1.bf16.msra.mxu0 %v2533
        %2607 = vmatprep.subr.bf16.mxu0 0
        %2608 = vmatpush1.bf16.msra.mxu0 %v2532
        %2609 = vmatprep.subr.bf16.mxu0 0
        %2610 = vmatpush1.bf16.msra.mxu0 %v2531
        %2611 = vmatprep.subr.bf16.mxu0 0
        %2612 = vmatpush2.bf16.msra.mxu0 %v2546
        %2613 = vmatprep.subr.bf16.mxu0 0
        %2614 = vmatpush2.bf16.msra.mxu0 %v2545
        %2615 = vmatprep.subr.bf16.mxu0 0
        %2616 = vmatpush2.bf16.msra.mxu0 %v2544
        %2617 = vmatprep.subr.bf16.mxu0 0
        %2618 = vmatpush2.bf16.msra.mxu0 %v2543
        %2619 = vmatprep.subr.bf16.mxu0 0
        %2620 = vmatpush2.bf16.msra.mxu0 %v2542
        %2621 = vmatprep.subr.bf16.mxu0 0
        %2622 = vmatpush2.bf16.msra.mxu0 %v2541
        %2623 = vmatprep.subr.bf16.mxu0 0
        %2624 = vmatpush2.bf16.msra.mxu0 %v2540
        %2625 = vmatprep.subr.bf16.mxu0 0
        %2626 = vmatpush2.bf16.msra.mxu0 %v2539
        %2627 = vmatprep.mubr.bf16.mxu0 %v2301
        %2628 = vmatmul.mubr.bf16.gmra.mxu0 %v2300
        %v2629 = vpop.f32.mrf.mxu0
        %v2630 = vadd.f32 %v2401, %v2629
        %v2631 = vpop.f32.mrf.mxu0
        %v2632 = vpop.f32.mrf.mxu0
        %v2633 = vadd.f32 %v2401, %v2632
        %v2634 = vpop.f32.mrf.mxu0
        %2635 = vmatprep.mubr.bf16.mxu0 %v2305
        %2636 = vmatmul.mubr.bf16.gmra.mxu0 %v2304
        %v2637 = vpop.f32.mrf.mxu0
        %v2638 = vadd.f32 %v2401, %v2637
        %v2639 = vpop.f32.mrf.mxu0
        %v2640 = vpop.f32.mrf.mxu0
        %v2641 = vadd.f32 %v2401, %v2640
        %v2642 = vpop.f32.mrf.mxu0
        %2643 = vmatprep.mubr.bf16.mxu0 %v2309
        %2644 = vmatmul.mubr.bf16.gmra.mxu0 %v2308
        %v2645 = vpop.f32.mrf.mxu0
        %v2646 = vadd.f32 %v2401, %v2645
        %v2647 = vpop.f32.mrf.mxu0
        %v2648 = vpop.f32.mrf.mxu0
        %v2649 = vadd.f32 %v2401, %v2648
        %v2650 = vpop.f32.mrf.mxu0
        %2651 = vmatprep.mubr.bf16.mxu0 %v2313
        %2652 = vmatmul.mubr.bf16.gmra.mxu0 %v2312
        %v2653 = vpop.f32.mrf.mxu0
        %v2654 = vadd.f32 %v2401, %v2653
        %v2655 = vpop.f32.mrf.mxu0
        %v2656 = vpop.f32.mrf.mxu0
        %v2657 = vadd.f32 %v2401, %v2656
        %v2658 = vpop.f32.mrf.mxu0
        %2659 = vmatprep.mubr.bf16.mxu0 %v2317
        %2660 = vmatmul.mubr.bf16.gmra.mxu0 %v2316
        %v2661 = vpop.f32.mrf.mxu0
        %v2662 = vadd.f32 %v2401, %v2661
        %v2663 = vpop.f32.mrf.mxu0
        %v2664 = vpop.f32.mrf.mxu0
        %v2665 = vadd.f32 %v2401, %v2664
        %v2666 = vpop.f32.mrf.mxu0
        %2667 = vmatprep.mubr.bf16.mxu0 %v2321
        %2668 = vmatmul.mubr.bf16.gmra.mxu0 %v2320
        %v2669 = vpop.f32.mrf.mxu0
        %v2670 = vadd.f32 %v2401, %v2669
        %v2671 = vpop.f32.mrf.mxu0
        %v2672 = vpop.f32.mrf.mxu0
        %v2673 = vadd.f32 %v2401, %v2672
        %v2674 = vpop.f32.mrf.mxu0
        %2675 = vmatprep.mubr.bf16.mxu0 %v2325
        %2676 = vmatmul.mubr.bf16.gmra.mxu0 %v2324
        %v2677 = vpop.f32.mrf.mxu0
        %v2678 = vadd.f32 %v2401, %v2677
        %v2679 = vpop.f32.mrf.mxu0
        %v2680 = vpop.f32.mrf.mxu0
        %v2681 = vadd.f32 %v2401, %v2680
        %v2682 = vpop.f32.mrf.mxu0
        %2683 = vmatprep.mubr.bf16.mxu0 %v2329
        %2684 = vmatmul.mubr.bf16.gmra.mxu0 %v2328
        %v2685 = vpop.f32.mrf.mxu0
        %v2686 = vadd.f32 %v2401, %v2685
        %v2687 = vpop.f32.mrf.mxu0
        %v2688 = vpop.f32.mrf.mxu0
        %v2689 = vadd.f32 %v2401, %v2688
        %v2690 = vpop.f32.mrf.mxu0
        %2691 = vdwg.mxu0
        %2692 = vmatprep.subr.bf16.mxu0 0
        %2693 = vmatpush1.bf16.msra.mxu0 %v2554
        %2694 = vmatprep.subr.bf16.mxu0 0
        %2695 = vmatpush1.bf16.msra.mxu0 %v2553
        %2696 = vmatprep.subr.bf16.mxu0 0
        %2697 = vmatpush1.bf16.msra.mxu0 %v2552
        %2698 = vmatprep.subr.bf16.mxu0 0
        %2699 = vmatpush1.bf16.msra.mxu0 %v2551
        %2700 = vmatprep.subr.bf16.mxu0 0
        %2701 = vmatpush1.bf16.msra.mxu0 %v2550
        %2702 = vmatprep.subr.bf16.mxu0 0
        %2703 = vmatpush1.bf16.msra.mxu0 %v2549
        %2704 = vmatprep.subr.bf16.mxu0 0
        %2705 = vmatpush1.bf16.msra.mxu0 %v2548
        %2706 = vmatprep.subr.bf16.mxu0 0
        %2707 = vmatpush1.bf16.msra.mxu0 %v2547
        %2708 = vmatprep.subr.bf16.mxu0 0
        %2709 = vmatpush2.bf16.msra.mxu0 %v2562
        %2710 = vmatprep.subr.bf16.mxu0 0
        %2711 = vmatpush2.bf16.msra.mxu0 %v2561
        %2712 = vmatprep.subr.bf16.mxu0 0
        %2713 = vmatpush2.bf16.msra.mxu0 %v2560
        %2714 = vmatprep.subr.bf16.mxu0 0
        %2715 = vmatpush2.bf16.msra.mxu0 %v2559
        %2716 = vmatprep.subr.bf16.mxu0 0
        %2717 = vmatpush2.bf16.msra.mxu0 %v2558
        %2718 = vmatprep.subr.bf16.mxu0 0
        %2719 = vmatpush2.bf16.msra.mxu0 %v2557
        %2720 = vmatprep.subr.bf16.mxu0 0
        %2721 = vmatpush2.bf16.msra.mxu0 %v2556
        %2722 = vmatprep.subr.bf16.mxu0 0
        %2723 = vmatpush2.bf16.msra.mxu0 %v2555
        %2724 = vmatprep.mubr.bf16.mxu0 %v2303
        %2725 = vmatmul.mubr.bf16.gmra.mxu0 %v2302
        %v2726 = vpop.f32.mrf.mxu0
        %v2727 = vadd.f32 %v2630, %v2726
        %v2728 = vpop.f32.mrf.mxu0
        %v2729 = vpop.f32.mrf.mxu0
        %v2730 = vadd.f32 %v2633, %v2729
        %v2731 = vpop.f32.mrf.mxu0
        %2732 = vmatprep.mubr.bf16.mxu0 %v2307
        %2733 = vmatmul.mubr.bf16.gmra.mxu0 %v2306
        %v2734 = vpop.f32.mrf.mxu0
        %v2735 = vadd.f32 %v2638, %v2734
        %v2736 = vpop.f32.mrf.mxu0
        %v2737 = vpop.f32.mrf.mxu0
        %v2738 = vadd.f32 %v2641, %v2737
        %v2739 = vpop.f32.mrf.mxu0
        %2740 = vmatprep.mubr.bf16.mxu0 %v2311
        %2741 = vmatmul.mubr.bf16.gmra.mxu0 %v2310
        %v2742 = vpop.f32.mrf.mxu0
        %v2743 = vadd.f32 %v2646, %v2742
        %v2744 = vpop.f32.mrf.mxu0
        %v2745 = vpop.f32.mrf.mxu0
        %v2746 = vadd.f32 %v2649, %v2745
        %v2747 = vpop.f32.mrf.mxu0
        %2748 = vmatprep.mubr.bf16.mxu0 %v2315
        %2749 = vmatmul.mubr.bf16.gmra.mxu0 %v2314
        %v2750 = vpop.f32.mrf.mxu0
        %v2751 = vadd.f32 %v2654, %v2750
        %v2752 = vpop.f32.mrf.mxu0
        %v2753 = vpop.f32.mrf.mxu0
        %v2754 = vadd.f32 %v2657, %v2753
        %v2755 = vpop.f32.mrf.mxu0
        %2756 = vmatprep.mubr.bf16.mxu0 %v2319
        %2757 = vmatmul.mubr.bf16.gmra.mxu0 %v2318
        %v2758 = vpop.f32.mrf.mxu0
        %v2759 = vadd.f32 %v2662, %v2758
        %v2760 = vpop.f32.mrf.mxu0
        %v2761 = vpop.f32.mrf.mxu0
        %v2762 = vadd.f32 %v2665, %v2761
        %v2763 = vpop.f32.mrf.mxu0
        %2764 = vmatprep.mubr.bf16.mxu0 %v2323
        %2765 = vmatmul.mubr.bf16.gmra.mxu0 %v2322
        %v2766 = vpop.f32.mrf.mxu0
        %v2767 = vadd.f32 %v2670, %v2766
        %v2768 = vpop.f32.mrf.mxu0
        %v2769 = vpop.f32.mrf.mxu0
        %v2770 = vadd.f32 %v2673, %v2769
        %v2771 = vpop.f32.mrf.mxu0
        %2772 = vmatprep.mubr.bf16.mxu0 %v2327
        %2773 = vmatmul.mubr.bf16.gmra.mxu0 %v2326
        %v2774 = vpop.f32.mrf.mxu0
        %v2775 = vadd.f32 %v2678, %v2774
        %v2776 = vpop.f32.mrf.mxu0
        %v2777 = vpop.f32.mrf.mxu0
        %v2778 = vadd.f32 %v2681, %v2777
        %v2779 = vpop.f32.mrf.mxu0
        %2780 = vmatprep.mubr.bf16.mxu0 %v2331
        %2781 = vmatmul.mubr.bf16.gmra.mxu0 %v2330
        %v2782 = vpop.f32.mrf.mxu0
        %v2783 = vadd.f32 %v2686, %v2782
        %v2784 = vpop.f32.mrf.mxu0
        %v2785 = vpop.f32.mrf.mxu0
        %v2786 = vadd.f32 %v2689, %v2785
        %v2787 = vpop.f32.mrf.mxu0
        %2788 = vdwg.mxu0
        %v2789 = vadd.f32 %v579, %v2727
        %v2790 = vadd.f32 %v580, %v2730
        %v2791 = vadd.f32 %v581, %v2735
        %v2792 = vadd.f32 %v582, %v2738
        %v2793 = vadd.f32 %v583, %v2743
        %v2794 = vadd.f32 %v584, %v2746
        %v2795 = vadd.f32 %v585, %v2751
        %v2796 = vadd.f32 %v586, %v2754
        %v2797 = vadd.f32 %v587, %v2759
        %v2798 = vadd.f32 %v588, %v2762
        %v2799 = vadd.f32 %v589, %v2767
        %v2800 = vadd.f32 %v590, %v2770
        %v2801 = vadd.f32 %v591, %v2775
        %v2802 = vadd.f32 %v592, %v2778
        %v2803 = vadd.f32 %v593, %v2783
        %v2804 = vadd.f32 %v594, %v2786
        %2805 = vst [vmem:[%s567] sm:$0xff] %v2789
        %2806 = vst [vmem:[%s567 + $0x8] sm:$0xff] %v2790
        %2807 = vst [vmem:[%s567 + $0x10] sm:$0xff] %v2791
        %2808 = vst [vmem:[%s567 + $0x18] sm:$0xff] %v2792
        %2809 = vst [vmem:[%s567 + $0x20] sm:$0xff] %v2793
        %2810 = vst [vmem:[%s567 + $0x28] sm:$0xff] %v2794
        %2811 = vst [vmem:[%s567 + $0x30] sm:$0xff] %v2795
        %2812 = vst [vmem:[%s567 + $0x38] sm:$0xff] %v2796
        %2813 = vst [vmem:[%s567 + $0x40] sm:$0xff] %v2797
        %2814 = vst [vmem:[%s567 + $0x48] sm:$0xff] %v2798
        %2815 = vst [vmem:[%s567 + $0x50] sm:$0xff] %v2799
        %2816 = vst [vmem:[%s567 + $0x58] sm:$0xff] %v2800
        %2817 = vst [vmem:[%s567 + $0x60] sm:$0xff] %v2801
        %2818 = vst [vmem:[%s567 + $0x68] sm:$0xff] %v2802
        %2819 = vst [vmem:[%s567 + $0x70] sm:$0xff] %v2803
        %2820 = vst [vmem:[%s567 + $0x78] sm:$0xff] %v2804
        %s2821 = sand.u32 %s323, 1
        %s2822 = scalar_lea.sflag [#allocation5], %s2821
        %s2823 = sand.u32 %s323, 1
        %s2824 = smul.addr %s2823, 128
        %s2825 = scalar_lea.vmem [#allocation14], %s2824
        // Predicated region
        $region105: #{tpu_custom_call.1} parent=63 // pred_check
          %p2826 = pneg %p333
        $region106: #{tpu_custom_call.1} parent=63 // pred_check_branch
          %2828 = sbr.rel (%p2826) target = $region108
        $region107: #{tpu_custom_call.1} parent=63 // pred_region
          %s2829 = smul.u32 16, %s38
          %s2831 = ssub.s32 2048, 2048
          %2832 = vsyncadd %s2822, %s2831
          %s2833 = smul.addr %s37, 32
          %s2834 = sadd.s32 %s2829, %s2833
          %s2835 = smul.addr %s2834, 128
          %s2836 = scalar_lea.hbm %s11, %s2835
          %s2837 = sshll.u32 %s2825, 4
          %s2838 = int_to_ptr.vmem [resolvable:$true] %s2837
          %2843 = dma.vmem_to_hbm [thread:$0]  %s2838, 2048, %s2836, %s2822, 128, 128, 8
        $region108: #{tpu_custom_call.1} parent=63 // pred_fallthru
          _
      $region64: #{tpu_custom_call.1} parent=5 // pred_fallthru
        _
      %p2844 = scmp.le.s32.totalorder 2, %s28
      // Predicated region
      $region109: #{tpu_custom_call.1} parent=5 // pred_check
        %p2845 = pneg %p2844
      $region110: #{tpu_custom_call.1} parent=5 // pred_check_branch
        %2847 = sbr.rel (%p2845) target = $region112
      $region111: #{tpu_custom_call.1} parent=5 // pred_region
        %s2848 = ssub.s32 %s28, 2
        // Predicated region
        $region113: #{tpu_custom_call.1} parent=111 // pred_check
          %p2849 = pneg %p339
        $region114: #{tpu_custom_call.1} parent=111 // pred_check_branch
          %2851 = sbr.rel (%p2849) target = $region116
        $region115: #{tpu_custom_call.1} parent=111 // pred_region
          %s2852 = sand.u32 %s324, 1
          %s2853 = scalar_lea.sflag [#allocation5], %s2852
          %s2854 = sand.u32 %s324, 1
          %s2855 = smul.addr %s2854, 128
          %s2856 = scalar_lea.vmem [#allocation14], %s2855
          %2857 = dma.done %s2853, 2048
        $region116: #{tpu_custom_call.1} parent=111 // pred_fallthru
          _
      $region112: #{tpu_custom_call.1} parent=5 // pred_fallthru
        _
    $region6: #{tpu_custom_call.1} parent=1 // loop_footer
      %s32 = sadd.s32 1, %s28
    $region7: #{tpu_custom_call.1} parent=1 // loop_footer_branch
      %27 = sbr.rel target = $region3
    $region8: #{tpu_custom_call.1} parent=1 // loop_exit
      _
    %2858 = vsyncpa [#allocation4], 1
    %s2859 = scalar_lea.sflag [#allocation4], 1
    %2860 = vsyncpa %s2859, 1
    %2861 = vsyncpa [#allocation7], 1
    %s2862 = scalar_lea.sflag [#allocation7], 1
    %2863 = vsyncpa %s2862, 1
    %2864 = vsyncpa [#allocation10], 1
    %2865 = vsyncpa [#allocation13], 1
    %2866 = vsyncpa [#allocation5], 1
    %s2867 = scalar_lea.sflag [#allocation5], 1
    %2868 = vsyncpa %s2867, 1

// kernel: tpu_custom_call.1
$region0: #{tpu_custom_call.1}
  #allocation0 [shape = 'u32[]', space=smem, size = 0x4, offset = 0x4, fixed_abs, tag = 'smem constant byte address 0x4 - core index']
  #allocation1 [shape = 'u32[144,128]{1,0:T(1,128)}', space=vmem, size = 0x12000, scoped, tag = 'internal scratch']
  #allocation2 [shape = 'f32[144,128]{1,0:T(8,128)}', space=vmem, size = 0x12000, scoped, tag = 'scratch operand']
  %s0 = inlined_call_operand.hbm [shape: f32[2,256,128], index: 0, kind: input, shape index: {}]
  %s1 = inlined_call_operand.hbm [shape: f32[2,256,128], index: 1, kind: input, shape index: {}]
  %s2 = inlined_call_operand.hbm [shape: f32[2,256,128], index: 2, kind: input, shape index: {}]
  %s3 = inlined_call_operand.hbm [shape: f32[7,128], index: 3, kind: input, shape index: {}]
  %s4 = inlined_call_operand.vmem [shape: f32[1,128], index: 4, kind: input, shape index: {}]
  %s5 = inlined_call_operand.vmem [shape: f32[1,128], index: 5, kind: input, shape index: {}]
  %s6 = inlined_call_operand.vmem [shape: f32[1,128], index: 6, kind: input, shape index: {}]
  %s7 = inlined_call_operand.hbm [shape: bf16[128,512], index: 7, kind: input, shape index: {}]
  %s8 = inlined_call_operand.vmem [shape: f32[1,512], index: 8, kind: input, shape index: {}]
  %s9 = inlined_call_operand.hbm [shape: bf16[512,128], index: 9, kind: input, shape index: {}]
  %s10 = inlined_call_operand.vmem [shape: f32[1,128], index: 10, kind: input, shape index: {}]
  %s11 = inlined_call_operand.hbm [shape: f32[2,256,128], index: 11, kind: output, shape index: {}]
  %s12 = sld [smem:[#allocation0]]
  $region117: #{tpu_custom_call.1} parent=0
    _
  %s14 = ssub.s32 1, %s12
  %s15 = scalar_select 0, %s14, %s12
  $region1: #{tpu_custom_call.1} parent=0
    #allocation3 [shape = 'u8[131072]{0}', space=vmem, size = 0x20000, scoped, tag = 'input window, operand 0']
    #allocation4 [shape = 's32[2]{0}', space=sflag, size = 0x8, scoped, tag = 'scoped memory for tpu_custom_call.1']
    #allocation5 [shape = 's32[2]{0}', space=sflag, size = 0x8, scoped, tag = 'scoped memory for tpu_custom_call.1']
    #allocation6 [shape = 'u8[8192]{0}', space=vmem, size = 0x2000, scoped, tag = 'input window, operand 1']
    #allocation7 [shape = 's32[2]{0}', space=sflag, size = 0x8, scoped, tag = 'scoped memory for tpu_custom_call.1']
    #allocation8 [shape = 'u8[8192]{0}', space=vmem, size = 0x2000, scoped, tag = 'input window, operand 2']
    #allocation9 [shape = 'u8[4096]{0}', space=vmem, size = 0x1000, scoped, tag = 'input window, operand 3, single buffered']
    #allocation10 [shape = 's32[1]{0}', space=sflag, size = 0x4, scoped, tag = 'scoped memory for tpu_custom_call.1']
    #allocation11 [shape = 'u8[131072]{0}', space=vmem, size = 0x20000, scoped, tag = 'input window, operand 7, single buffered']
    #allocation12 [shape = 'u8[131072]{0}', space=vmem, size = 0x20000, scoped, tag = 'input window, operand 9, single buffered']
    #allocation13 [shape = 's32[1]{0}', space=sflag, size = 0x4, scoped, tag = 'scoped memory for tpu_custom_call.1']
    #allocation14 [shape = 'u8[131072]{0}', space=vmem, size = 0x20000, scoped, tag = 'output window, operand 0']
    %16 = vsyncpa [#allocation4], 0
    %s17 = scalar_lea.sflag [#allocation4], 1
    %18 = vsyncpa %s17, 0
    %19 = vsyncpa [#allocation7], 0
    %s20 = scalar_lea.sflag [#allocation7], 1
    %21 = vsyncpa %s20, 0
    %22 = vsyncpa [#allocation10], 0
    %23 = vsyncpa [#allocation13], 0
    %24 = vsyncpa [#allocation5], 0
    %s25 = scalar_lea.sflag [#allocation5], 1
    %26 = vsyncpa %s25, 0
    loop: start=0, step=1, limit=6
    $region2: #{tpu_custom_call.1} parent=1 // loop_pre_header
      _
    $region3: #{tpu_custom_call.1} parent=1 // loop_header
      %s28 = sphi 0, %s32
      %p29 = scmp.ge.s32.totalorder %s28, 6
      %s35 = sphi 0, %s47
      %s36 = sphi 0, %s43
      %s37 = sphi 0, %s35
      %s38 = sphi 0, %s36
      %s39 = sphi 0, %s37
      %s40 = sphi 0, %s38
      %s52 = sphi 0, %s54
      %s55 = sphi 0, %s52
      %s56 = sphi 0, %s55
      %s72 = sphi 0, %s56
      %s88 = sphi 0, %s90
      %s91 = sphi 0, %s88
      %s92 = sphi 0, %s91
      %s108 = sphi 0, %s92
      %s124 = sphi 0, %s126
      %s127 = sphi 0, %s124
      %s128 = sphi 0, %s127
      %s144 = sphi 0, %s128
      %s148 = sphi 0, %s148
      %s150 = sphi 0, %s148
      %s151 = sphi 0, %s150
      %s165 = sphi 0, %s151
      %s169 = sphi 0, %s169
      %s171 = sphi 0, %s169
      %s172 = sphi 0, %s171
      %s186 = sphi 0, %s172
      %s190 = sphi 0, %s190
      %s192 = sphi 0, %s190
      %s193 = sphi 0, %s192
      %s207 = sphi 0, %s193
      %s211 = sphi 0, %s211
      %s213 = sphi 0, %s211
      %s214 = sphi 0, %s213
      %s228 = sphi 0, %s214
      %s232 = sphi 0, %s232
      %s234 = sphi 0, %s232
      %s235 = sphi 0, %s234
      %s249 = sphi 0, %s235
      %s253 = sphi 0, %s253
      %s255 = sphi 0, %s253
      %s256 = sphi 0, %s255
      %s270 = sphi 0, %s256
      %s274 = sphi 0, %s274
      %s276 = sphi 0, %s274
      %s277 = sphi 0, %s276
      %s291 = sphi 0, %s277
      %s295 = sphi 0, %s295
      %s297 = sphi 0, %s295
      %s298 = sphi 0, %s297
      %s312 = sphi 0, %s298
      %s320 = sphi 0, %s322
      %s323 = sphi 0, %s320
      %s324 = sphi 0, %s323
      %s340 = sphi 0, %s324
    $region4: #{tpu_custom_call.1} parent=1 // loop_header_branch
      %31 = sbr.rel (%p29) target = $region8
    $region5: #{tpu_custom_call.1} parent=1 // loop_body
      %s33 = ssub.s32 %s28, 1
      %s34 = ssub.s32 %s28, 2
      %s41 = sadd.s32 1, %s36
      %p42 = scmp.ge.s32.totalorder %s41, 2
      %s43 = scalar_select %p42, 0, %s41
      %s44 = sadd.s32 1, %s35
      %s45 = scalar_select %p42, %s44, %s35
      %p46 = scmp.ge.s32.totalorder %s45, 2
      %s47 = scalar_select %p46, 0, %s45
      %s48 = ssub.s32 %s35, %s47
      %s49 = ssub.s32 %s36, %s43
      %s50 = sor.u32 %s48, %s49
      %p51 = scmp.eq.s32.totalorder %s50, 0
      %s53 = sadd.s32 %s52, 1
      %s54 = scalar_select %p51, %s52, %s53
      %p57 = pneg %p51
      %p58 = scmp.eq.s32.totalorder %s28, 3
      %p59 = por %p57, %p58
      %p60 = scmp.ne.s32.totalorder %s52, %s55
      %p61 = scmp.eq.s32.totalorder %s28, 0
      %p62 = por %p60, %p61
      %p63 = scmp.ne.s32.totalorder %s52, %s55
      %p64 = scmp.eq.s32.totalorder %s33, 3
      %p65 = por %p63, %p64
      %p66 = scmp.ne.s32.totalorder %s55, %s56
      %p67 = scmp.eq.s32.totalorder %s33, 0
      %p68 = por %p66, %p67
      %p69 = scmp.ne.s32.totalorder %s55, %s56
      %p70 = scmp.eq.s32.totalorder %s34, 3
      %p71 = por %p69, %p70
      %p73 = scmp.ne.s32.totalorder %s56, %s72
      %p74 = scmp.eq.s32.totalorder %s34, 0
      %p75 = por %p73, %p74
      %s76 = smul.u32 %s36, 16
      %s77 = ssub.s32 %s76, 1
      %p78 = scmp.gt.s32.totalorder %s77, 0
      %s79 = scalar_select %p78, %s77, 0
      %s80 = smul.u32 %s43, 16
      %s81 = ssub.s32 %s80, 1
      %p82 = scmp.gt.s32.totalorder %s81, 0
      %s83 = scalar_select %p82, %s81, 0
      %s84 = ssub.s32 %s35, %s47
      %s85 = ssub.s32 %s79, %s83
      %s86 = sor.u32 %s84, %s85
      %p87 = scmp.eq.s32.totalorder %s86, 0
      %s89 = sadd.s32 %s88, 1
      %s90 = scalar_select %p87, %s88, %s89
      %p93 = pneg %p87
      %p94 = scmp.eq.s32.totalorder %s28, 3
      %p95 = por %p93, %p94
      %p96 = scmp.ne.s32.totalorder %s88, %s91
      %p97 = scmp.eq.s32.totalorder %s28, 0
      %p98 = por %p96, %p97
      %p99 = scmp.ne.s32.totalorder %s88, %s91
      %p100 = scmp.eq.s32.totalorder %s33, 3
      %p101 = por %p99, %p100
      %p102 = scmp.ne.s32.totalorder %s91, %s92
      %p103 = scmp.eq.s32.totalorder %s33, 0
      %p104 = por %p102, %p103
      %p105 = scmp.ne.s32.totalorder %s91, %s92
      %p106 = scmp.eq.s32.totalorder %s34, 3
      %p107 = por %p105, %p106
      %p109 = scmp.ne.s32.totalorder %s92, %s108
      %p110 = scmp.eq.s32.totalorder %s34, 0
      %p111 = por %p109, %p110
      %s112 = sadd.s32 %s36, 1
      %s113 = smul.u32 %s112, 16
      %p114 = scmp.lt.s32.totalorder %s113, 31
      %s115 = scalar_select %p114, %s113, 31
      %s116 = sadd.s32 %s43, 1
      %s117 = smul.u32 %s116, 16
      %p118 = scmp.lt.s32.totalorder %s117, 31
      %s119 = scalar_select %p118, %s117, 31
      %s120 = ssub.s32 %s35, %s47
      %s121 = ssub.s32 %s115, %s119
      %s122 = sor.u32 %s120, %s121
      %p123 = scmp.eq.s32.totalorder %s122, 0
      %s125 = sadd.s32 %s124, 1
      %s126 = scalar_select %p123, %s124, %s125
      %p129 = pneg %p123
      %p130 = scmp.eq.s32.totalorder %s28, 3
      %p131 = por %p129, %p130
      %p132 = scmp.ne.s32.totalorder %s124, %s127
      %p133 = scmp.eq.s32.totalorder %s28, 0
      %p134 = por %p132, %p133
      %p135 = scmp.ne.s32.totalorder %s124, %s127
      %p136 = scmp.eq.s32.totalorder %s33, 3
      %p137 = por %p135, %p136
      %p138 = scmp.ne.s32.totalorder %s127, %s128
      %p139 = scmp.eq.s32.totalorder %s33, 0
      %p140 = por %p138, %p139
      %p141 = scmp.ne.s32.totalorder %s127, %s128
      %p142 = scmp.eq.s32.totalorder %s34, 3
      %p143 = por %p141, %p142
      %p145 = scmp.ne.s32.totalorder %s128, %s144
      %p146 = scmp.eq.s32.totalorder %s34, 0
      %p147 = por %p145, %p146
      %s149 = sadd.s32 %s148, 1
      %p152 = scmp.eq.s32.totalorder %s28, 3
      %p153 = scmp.ne.s32.totalorder %s148, %s150
      %p154 = scmp.eq.s32.totalorder %s28, 0
      %p155 = por %p153, %p154
      %p156 = scmp.ne.s32.totalorder %s148, %s150
      %p157 = scmp.eq.s32.totalorder %s33, 3
      %p158 = por %p156, %p157
      %p159 = scmp.ne.s32.totalorder %s150, %s151
      %p160 = scmp.eq.s32.totalorder %s33, 0
      %p161 = por %p159, %p160
      %p162 = scmp.ne.s32.totalorder %s150, %s151
      %p163 = scmp.eq.s32.totalorder %s34, 3
      %p164 = por %p162, %p163
      %p166 = scmp.ne.s32.totalorder %s151, %s165
      %p167 = scmp.eq.s32.totalorder %s34, 0
      %p168 = por %p166, %p167
      %s170 = sadd.s32 %s169, 1
      %p173 = scmp.eq.s32.totalorder %s28, 3
      %p174 = scmp.ne.s32.totalorder %s169, %s171
      %p175 = scmp.eq.s32.totalorder %s28, 0
      %p176 = por %p174, %p175
      %p177 = scmp.ne.s32.totalorder %s169, %s171
      %p178 = scmp.eq.s32.totalorder %s33, 3
      %p179 = por %p177, %p178
      %p180 = scmp.ne.s32.totalorder %s171, %s172
      %p181 = scmp.eq.s32.totalorder %s33, 0
      %p182 = por %p180, %p181
      %p183 = scmp.ne.s32.totalorder %s171, %s172
      %p184 = scmp.eq.s32.totalorder %s34, 3
      %p185 = por %p183, %p184
      %p187 = scmp.ne.s32.totalorder %s172, %s186
      %p188 = scmp.eq.s32.totalorder %s34, 0
      %p189 = por %p187, %p188
      %s191 = sadd.s32 %s190, 1
      %p194 = scmp.eq.s32.totalorder %s28, 3
      %p195 = scmp.ne.s32.totalorder %s190, %s192
      %p196 = scmp.eq.s32.totalorder %s28, 0
      %p197 = por %p195, %p196
      %p198 = scmp.ne.s32.totalorder %s190, %s192
      %p199 = scmp.eq.s32.totalorder %s33, 3
      %p200 = por %p198, %p199
      %p201 = scmp.ne.s32.totalorder %s192, %s193
      %p202 = scmp.eq.s32.totalorder %s33, 0
      %p203 = por %p201, %p202
      %p204 = scmp.ne.s32.totalorder %s192, %s193
      %p205 = scmp.eq.s32.totalorder %s34, 3
      %p206 = por %p204, %p205
      %p208 = scmp.ne.s32.totalorder %s193, %s207
      %p209 = scmp.eq.s32.totalorder %s34, 0
      %p210 = por %p208, %p209
      %s212 = sadd.s32 %s211, 1
      %p215 = scmp.eq.s32.totalorder %s28, 3
      %p216 = scmp.ne.s32.totalorder %s211, %s213
      %p217 = scmp.eq.s32.totalorder %s28, 0
      %p218 = por %p216, %p217
      %p219 = scmp.ne.s32.totalorder %s211, %s213
      %p220 = scmp.eq.s32.totalorder %s33, 3
      %p221 = por %p219, %p220
      %p222 = scmp.ne.s32.totalorder %s213, %s214
      %p223 = scmp.eq.s32.totalorder %s33, 0
      %p224 = por %p222, %p223
      %p225 = scmp.ne.s32.totalorder %s213, %s214
      %p226 = scmp.eq.s32.totalorder %s34, 3
      %p227 = por %p225, %p226
      %p229 = scmp.ne.s32.totalorder %s214, %s228
      %p230 = scmp.eq.s32.totalorder %s34, 0
      %p231 = por %p229, %p230
      %s233 = sadd.s32 %s232, 1
      %p236 = scmp.eq.s32.totalorder %s28, 3
      %p237 = scmp.ne.s32.totalorder %s232, %s234
      %p238 = scmp.eq.s32.totalorder %s28, 0
      %p239 = por %p237, %p238
      %p240 = scmp.ne.s32.totalorder %s232, %s234
      %p241 = scmp.eq.s32.totalorder %s33, 3
      %p242 = por %p240, %p241
      %p243 = scmp.ne.s32.totalorder %s234, %s235
      %p244 = scmp.eq.s32.totalorder %s33, 0
      %p245 = por %p243, %p244
      %p246 = scmp.ne.s32.totalorder %s234, %s235
      %p247 = scmp.eq.s32.totalorder %s34, 3
      %p248 = por %p246, %p247
      %p250 = scmp.ne.s32.totalorder %s235, %s249
      %p251 = scmp.eq.s32.totalorder %s34, 0
      %p252 = por %p250, %p251
      %s254 = sadd.s32 %s253, 1
      %p257 = scmp.eq.s32.totalorder %s28, 3
      %p258 = scmp.ne.s32.totalorder %s253, %s255
      %p259 = scmp.eq.s32.totalorder %s28, 0
      %p260 = por %p258, %p259
      %p261 = scmp.ne.s32.totalorder %s253, %s255
      %p262 = scmp.eq.s32.totalorder %s33, 3
      %p263 = por %p261, %p262
      %p264 = scmp.ne.s32.totalorder %s255, %s256
      %p265 = scmp.eq.s32.totalorder %s33, 0
      %p266 = por %p264, %p265
      %p267 = scmp.ne.s32.totalorder %s255, %s256
      %p268 = scmp.eq.s32.totalorder %s34, 3
      %p269 = por %p267, %p268
      %p271 = scmp.ne.s32.totalorder %s256, %s270
      %p272 = scmp.eq.s32.totalorder %s34, 0
      %p273 = por %p271, %p272
      %s275 = sadd.s32 %s274, 1
      %p278 = scmp.eq.s32.totalorder %s28, 3
      %p279 = scmp.ne.s32.totalorder %s274, %s276
      %p280 = scmp.eq.s32.totalorder %s28, 0
      %p281 = por %p279, %p280
      %p282 = scmp.ne.s32.totalorder %s274, %s276
      %p283 = scmp.eq.s32.totalorder %s33, 3
      %p284 = por %p282, %p283
      %p285 = scmp.ne.s32.totalorder %s276, %s277
      %p286 = scmp.eq.s32.totalorder %s33, 0
      %p287 = por %p285, %p286
      %p288 = scmp.ne.s32.totalorder %s276, %s277
      %p289 = scmp.eq.s32.totalorder %s34, 3
      %p290 = por %p288, %p289
      %p292 = scmp.ne.s32.totalorder %s277, %s291
      %p293 = scmp.eq.s32.totalorder %s34, 0
      %p294 = por %p292, %p293
      %s296 = sadd.s32 %s295, 1
      %p299 = scmp.eq.s32.totalorder %s28, 3
      %p300 = scmp.ne.s32.totalorder %s295, %s297
      %p301 = scmp.eq.s32.totalorder %s28, 0
      %p302 = por %p300, %p301
      %p303 = scmp.ne.s32.totalorder %s295, %s297
      %p304 = scmp.eq.s32.totalorder %s33, 3
      %p305 = por %p303, %p304
      %p306 = scmp.ne.s32.totalorder %s297, %s298
      %p307 = scmp.eq.s32.totalorder %s33, 0
      %p308 = por %p306, %p307
      %p309 = scmp.ne.s32.totalorder %s297, %s298
      %p310 = scmp.eq.s32.totalorder %s34, 3
      %p311 = por %p309, %p310
      %p313 = scmp.ne.s32.totalorder %s298, %s312
      %p314 = scmp.eq.s32.totalorder %s34, 0
      %p315 = por %p313, %p314
      %s316 = ssub.s32 %s35, %s47
      %s317 = ssub.s32 %s36, %s43
      %s318 = sor.u32 %s316, %s317
      %p319 = scmp.eq.s32.totalorder %s318, 0
      %s321 = sadd.s32 %s320, 1
      %s322 = scalar_select %p319, %s320, %s321
      %p325 = pneg %p319
      %p326 = scmp.eq.s32.totalorder %s28, 3
      %p327 = por %p325, %p326
      %p328 = scmp.ne.s32.totalorder %s320, %s323
      %p329 = scmp.eq.s32.totalorder %s28, 0
      %p330 = por %p328, %p329
      %p331 = scmp.ne.s32.totalorder %s320, %s323
      %p332 = scmp.eq.s32.totalorder %s33, 3
      %p333 = por %p331, %p332
      %p334 = scmp.ne.s32.totalorder %s323, %s324
      %p335 = scmp.eq.s32.totalorder %s33, 0
      %p336 = por %p334, %p335
      %p337 = scmp.ne.s32.totalorder %s323, %s324
      %p338 = scmp.eq.s32.totalorder %s34, 3
      %p339 = por %p337, %p338
      %p341 = scmp.ne.s32.totalorder %s324, %s340
      %p342 = scmp.eq.s32.totalorder %s34, 0
      %p343 = por %p341, %p342
      %p344 = scmp.le.s32.totalorder 1, %s28
      %p345 = scmp.lt.s32.totalorder %s28, 5
      %p346 = pnand %p344, %p345
      %p347 = pneg %p346
      // Predicated region
      $region9: #{tpu_custom_call.1} parent=5 // pred_check
        _
      $region10: #{tpu_custom_call.1} parent=5 // pred_check_branch
        %349 = sbr.rel (%p346) target = $region12
      $region11: #{tpu_custom_call.1} parent=5 // pred_region
        %s350 = ssub.s32 %s28, 1
        // Predicated region
        $region13: #{tpu_custom_call.1} parent=11 // pred_check
          %p351 = pneg %p161
        $region14: #{tpu_custom_call.1} parent=11 // pred_check_branch
          %353 = sbr.rel (%p351) target = $region16
        $region15: #{tpu_custom_call.1} parent=11 // pred_region
          %s355 = ssub.s32 128, 128
          %356 = vsyncadd [#allocation10], %s355
          %s358 = sshll.u32 [#allocation9], 4
          %s359 = int_to_ptr.vmem [resolvable:$true] %s358
          %361 = dma.hbm_to_vmem [thread:$0]  %s3, 128, %s359, [#allocation10]
        $region16: #{tpu_custom_call.1} parent=11 // pred_fallthru
          _
        // Predicated region
        $region17: #{tpu_custom_call.1} parent=11 // pred_check
          %p362 = pneg %p182
        $region18: #{tpu_custom_call.1} parent=11 // pred_check_branch
          %364 = sbr.rel (%p362) target = $region20
        $region19: #{tpu_custom_call.1} parent=11 // pred_region
          _
        $region20: #{tpu_custom_call.1} parent=11 // pred_fallthru
          _
        // Predicated region
        $region21: #{tpu_custom_call.1} parent=11 // pred_check
          %p365 = pneg %p203
        $region22: #{tpu_custom_call.1} parent=11 // pred_check_branch
          %367 = sbr.rel (%p365) target = $region24
        $region23: #{tpu_custom_call.1} parent=11 // pred_region
          _
        $region24: #{tpu_custom_call.1} parent=11 // pred_fallthru
          _
        // Predicated region
        $region25: #{tpu_custom_call.1} parent=11 // pred_check
          %p368 = pneg %p224
        $region26: #{tpu_custom_call.1} parent=11 // pred_check_branch
          %370 = sbr.rel (%p368) target = $region28
        $region27: #{tpu_custom_call.1} parent=11 // pred_region
          _
        $region28: #{tpu_custom_call.1} parent=11 // pred_fallthru
          _
        // Predicated region
        $region29: #{tpu_custom_call.1} parent=11 // pred_check
          %p371 = pneg %p245
        $region30: #{tpu_custom_call.1} parent=11 // pred_check_branch
          %373 = sbr.rel (%p371) target = $region32
        $region31: #{tpu_custom_call.1} parent=11 // pred_region
          %s375 = ssub.s32 4096, 4096
          %376 = vsyncadd [#allocation10], %s375
          %s377 = sshll.u32 [#allocation11], 4
          %s378 = int_to_ptr.vmem [resolvable:$true] %s377
          %383 = dma.hbm_to_vmem [thread:$0]  %s7, 4096, %s378, [#allocation10], 256, 256, 16
        $region32: #{tpu_custom_call.1} parent=11 // pred_fallthru
          _
        // Predicated region
        $region33: #{tpu_custom_call.1} parent=11 // pred_check
          %p384 = pneg %p266
        $region34: #{tpu_custom_call.1} parent=11 // pred_check_branch
          %386 = sbr.rel (%p384) target = $region36
        $region35: #{tpu_custom_call.1} parent=11 // pred_region
          _
        $region36: #{tpu_custom_call.1} parent=11 // pred_fallthru
          _
        // Predicated region
        $region37: #{tpu_custom_call.1} parent=11 // pred_check
          %p387 = pneg %p287
        $region38: #{tpu_custom_call.1} parent=11 // pred_check_branch
          %389 = sbr.rel (%p387) target = $region40
        $region39: #{tpu_custom_call.1} parent=11 // pred_region
          %s391 = ssub.s32 4096, 4096
          %392 = vsyncadd [#allocation13], %s391
          %s393 = sshll.u32 [#allocation12], 4
          %s394 = int_to_ptr.vmem [resolvable:$true] %s393
          %399 = dma.hbm_to_vmem [thread:$0]  %s9, 4096, %s394, [#allocation13], 64, 64, 4
        $region40: #{tpu_custom_call.1} parent=11 // pred_fallthru
          _
        // Predicated region
        $region41: #{tpu_custom_call.1} parent=11 // pred_check
          %p400 = pneg %p308
        $region42: #{tpu_custom_call.1} parent=11 // pred_check_branch
          %402 = sbr.rel (%p400) target = $region44
        $region43: #{tpu_custom_call.1} parent=11 // pred_region
          _
        $region44: #{tpu_custom_call.1} parent=11 // pred_fallthru
          _
      $region12: #{tpu_custom_call.1} parent=5 // pred_fallthru
        _
      %p403 = scmp.lt.s32.totalorder %s28, 4
      // Predicated region
      $region45: #{tpu_custom_call.1} parent=5 // pred_check
        %p404 = pneg %p403
      $region46: #{tpu_custom_call.1} parent=5 // pred_check_branch
        %406 = sbr.rel (%p404) target = $region48
      $region47: #{tpu_custom_call.1} parent=5 // pred_region
        // Predicated region
        $region49: #{tpu_custom_call.1} parent=47 // pred_check
          %p407 = pneg %p62
        $region50: #{tpu_custom_call.1} parent=47 // pred_check_branch
          %409 = sbr.rel (%p407) target = $region52
        $region51: #{tpu_custom_call.1} parent=47 // pred_region
          %s410 = sand.u32 %s52, 1
          %s411 = scalar_lea.sflag [#allocation4], %s410
          %s412 = sand.u32 %s52, 1
          %s413 = smul.addr %s412, 128
          %s414 = scalar_lea.vmem [#allocation3], %s413
          %s415 = smul.u32 16, %s36
          %s417 = ssub.s32 2048, 2048
          %418 = vsyncadd %s411, %s417
          %s419 = smul.addr %s35, 32
          %s420 = sadd.s32 %s415, %s419
          %s421 = smul.addr %s420, 128
          %s422 = scalar_lea.hbm %s0, %s421
          %s423 = sshll.u32 %s414, 4
          %s424 = int_to_ptr.vmem [resolvable:$true] %s423
          %429 = dma.hbm_to_vmem [thread:$0]  %s422, 2048, %s424, %s411, 128, 128, 8
        $region52: #{tpu_custom_call.1} parent=47 // pred_fallthru
          _
        // Predicated region
        $region53: #{tpu_custom_call.1} parent=47 // pred_check
          %p430 = pneg %p98
        $region54: #{tpu_custom_call.1} parent=47 // pred_check_branch
          %432 = sbr.rel (%p430) target = $region56
        $region55: #{tpu_custom_call.1} parent=47 // pred_region
          %s433 = sand.u32 %s28, 1
          %s434 = scalar_lea.sflag [#allocation7], %s433
          %s435 = sand.u32 %s88, 1
          %s436 = smul.addr %s435, 8
          %s437 = scalar_lea.vmem [#allocation6], %s436
          %s438 = smul.u32 %s36, 16
          %s439 = ssub.s32 %s438, 1
          %p440 = scmp.gt.s32.totalorder %s439, 0
          %s441 = scalar_select %p440, %s439, 0
          %s443 = ssub.s32 128, 128
          %444 = vsyncadd %s434, %s443
          %s445 = smul.addr %s35, 32
          %s446 = sadd.s32 %s441, %s445
          %s447 = smul.addr %s446, 128
          %s448 = scalar_lea.hbm %s1, %s447
          %s450 = sshll.u32 %s437, 4
          %s451 = int_to_ptr.vmem [resolvable:$true] %s450
          %453 = dma.hbm_to_vmem [thread:$0]  %s448, 128, %s451, %s434
        $region56: #{tpu_custom_call.1} parent=47 // pred_fallthru
          _
        // Predicated region
        $region57: #{tpu_custom_call.1} parent=47 // pred_check
          %p454 = pneg %p134
        $region58: #{tpu_custom_call.1} parent=47 // pred_check_branch
          %456 = sbr.rel (%p454) target = $region60
        $region59: #{tpu_custom_call.1} parent=47 // pred_region
          %s457 = sand.u32 %s28, 1
          %s458 = scalar_lea.sflag [#allocation7], %s457
          %s459 = sand.u32 %s124, 1
          %s460 = smul.addr %s459, 8
          %s461 = scalar_lea.vmem [#allocation8], %s460
          %s462 = sadd.s32 %s36, 1
          %s463 = smul.u32 %s462, 16
          %p464 = scmp.lt.s32.totalorder %s463, 31
          %s465 = scalar_select %p464, %s463, 31
          %s467 = ssub.s32 128, 128
          %468 = vsyncadd %s458, %s467
          %s469 = smul.addr %s35, 32
          %s470 = sadd.s32 %s465, %s469
          %s471 = smul.addr %s470, 128
          %s472 = scalar_lea.hbm %s2, %s471
          %s474 = sshll.u32 %s461, 4
          %s475 = int_to_ptr.vmem [resolvable:$true] %s474
          %477 = dma.hbm_to_vmem [thread:$0]  %s472, 128, %s475, %s458
        $region60: #{tpu_custom_call.1} parent=47 // pred_fallthru
          _
      $region48: #{tpu_custom_call.1} parent=5 // pred_fallthru
        _
      %p478 = scmp.le.s32.totalorder 1, %s28
      %p479 = scmp.lt.s32.totalorder %s28, 5
      %p480 = pnand %p478, %p479
      %p481 = pneg %p480
      // Predicated region
      $region61: #{tpu_custom_call.1} parent=5 // pred_check
        _
      $region62: #{tpu_custom_call.1} parent=5 // pred_check_branch
        %483 = sbr.rel (%p480) target = $region64
      $region63: #{tpu_custom_call.1} parent=5 // pred_region
        %s484 = ssub.s32 %s28, 1
        %s485 = sand.u32 %s55, 1
        %s486 = scalar_lea.sflag [#allocation4], %s485
        %s487 = sand.u32 %s55, 1
        %s488 = smul.addr %s487, 128
        %s489 = scalar_lea.vmem [#allocation3], %s488
        // Predicated region
        $region65: #{tpu_custom_call.1} parent=63 // pred_check
          %p490 = pneg %p68
        $region66: #{tpu_custom_call.1} parent=63 // pred_check_branch
          %492 = sbr.rel (%p490) target = $region68
        $region67: #{tpu_custom_call.1} parent=63 // pred_region
          %493 = dma.done %s486, 2048
        $region68: #{tpu_custom_call.1} parent=63 // pred_fallthru
          _
        %s494 = sand.u32 %s33, 1
        %s495 = scalar_lea.sflag [#allocation7], %s494
        %s496 = sand.u32 %s91, 1
        %s497 = smul.addr %s496, 8
        %s498 = scalar_lea.vmem [#allocation6], %s497
        // Predicated region
        $region69: #{tpu_custom_call.1} parent=63 // pred_check
          %p499 = pneg %p104
        $region70: #{tpu_custom_call.1} parent=63 // pred_check_branch
          %501 = sbr.rel (%p499) target = $region72
        $region71: #{tpu_custom_call.1} parent=63 // pred_region
          %502 = dma.done %s495, 128
        $region72: #{tpu_custom_call.1} parent=63 // pred_fallthru
          _
        %s503 = sand.u32 %s33, 1
        %s504 = scalar_lea.sflag [#allocation7], %s503
        %s505 = sand.u32 %s127, 1
        %s506 = smul.addr %s505, 8
        %s507 = scalar_lea.vmem [#allocation8], %s506
        // Predicated region
        $region73: #{tpu_custom_call.1} parent=63 // pred_check
          %p508 = pneg %p140
        $region74: #{tpu_custom_call.1} parent=63 // pred_check_branch
          %510 = sbr.rel (%p508) target = $region76
        $region75: #{tpu_custom_call.1} parent=63 // pred_region
          %511 = dma.done %s504, 128
        $region76: #{tpu_custom_call.1} parent=63 // pred_fallthru
          _
        // Predicated region
        $region77: #{tpu_custom_call.1} parent=63 // pred_check
          %p512 = pneg %p161
        $region78: #{tpu_custom_call.1} parent=63 // pred_check_branch
          %514 = sbr.rel (%p512) target = $region80
        $region79: #{tpu_custom_call.1} parent=63 // pred_region
          %515 = dma.done [#allocation10], 128
        $region80: #{tpu_custom_call.1} parent=63 // pred_fallthru
          _
        // Predicated region
        $region81: #{tpu_custom_call.1} parent=63 // pred_check
          %p516 = pneg %p245
        $region82: #{tpu_custom_call.1} parent=63 // pred_check_branch
          %518 = sbr.rel (%p516) target = $region84
        $region83: #{tpu_custom_call.1} parent=63 // pred_region
          %519 = dma.done [#allocation10], 4096
        $region84: #{tpu_custom_call.1} parent=63 // pred_fallthru
          _
        // Predicated region
        $region85: #{tpu_custom_call.1} parent=63 // pred_check
          %p520 = pneg %p287
        $region86: #{tpu_custom_call.1} parent=63 // pred_check_branch
          %522 = sbr.rel (%p520) target = $region88
        $region87: #{tpu_custom_call.1} parent=63 // pred_region
          %523 = dma.done [#allocation13], 4096
        $region88: #{tpu_custom_call.1} parent=63 // pred_fallthru
          _
        %s524 = sand.u32 %s55, 1
        %s525 = scalar_lea.sflag [#allocation4], %s524
        %s526 = sand.u32 %s55, 1
        %s527 = smul.addr %s526, 128
        %s528 = scalar_lea.vmem [#allocation3], %s527
        %p529 = pneg %p68
        %p530 = pneg %p65
        %s531 = sand.u32 %s33, 1
        %s532 = scalar_lea.sflag [#allocation7], %s531
        %s533 = sand.u32 %s91, 1
        %s534 = smul.addr %s533, 8
        %s535 = scalar_lea.vmem [#allocation6], %s534
        %p536 = pneg %p104
        %p537 = pneg %p101
        %s538 = sand.u32 %s33, 1
        %s539 = scalar_lea.sflag [#allocation7], %s538
        %s540 = sand.u32 %s127, 1
        %s541 = smul.addr %s540, 8
        %s542 = scalar_lea.vmem [#allocation8], %s541
        %p543 = pneg %p140
        %p544 = pneg %p137
        %p545 = pneg %p161
        %p546 = pneg %p158
        %p547 = pneg %p182
        %p548 = pneg %p179
        %p549 = pneg %p203
        %p550 = pneg %p200
        %p551 = pneg %p224
        %p552 = pneg %p221
        %p553 = pneg %p245
        %p554 = pneg %p242
        %p555 = pneg %p266
        %p556 = pneg %p263
        %p557 = pneg %p287
        %p558 = pneg %p284
        %p559 = pneg %p308
        %p560 = pneg %p305
        %p561 = pneg %p336
        %p562 = pneg %p333
        %s563 = sand.u32 %s323, 1
        %s564 = scalar_lea.sflag [#allocation5], %s563
        %s565 = sand.u32 %s323, 1
        %s566 = smul.addr %s565, 128
        %s567 = scalar_lea.vmem [#allocation14], %s566
        %s568 = smul.u32 16, %s38
        %s569 = smul.u32 %s38, 16
        %s570 = ssub.s32 %s569, 1
        %p571 = scmp.gt.s32.totalorder %s570, 0
        %s572 = scalar_select %p571, %s570, 0
        %s573 = sadd.s32 %s38, 1
        %s574 = smul.u32 %s573, 16
        %p575 = scmp.lt.s32.totalorder %s574, 31
        %s576 = scalar_select %p575, %s574, 31
        %s577 = smul.u32 16, %s38
        %v579 = vld [vmem:[%s489] sm:$0xff]
        %v580 = vld [vmem:[%s489 + $0x8] sm:$0xff]
        %v581 = vld [vmem:[%s489 + $0x10] sm:$0xff]
        %v582 = vld [vmem:[%s489 + $0x18] sm:$0xff]
        %v583 = vld [vmem:[%s489 + $0x20] sm:$0xff]
        %v584 = vld [vmem:[%s489 + $0x28] sm:$0xff]
        %v585 = vld [vmem:[%s489 + $0x30] sm:$0xff]
        %v586 = vld [vmem:[%s489 + $0x38] sm:$0xff]
        %v587 = vld [vmem:[%s489 + $0x40] sm:$0xff]
        %v588 = vld [vmem:[%s489 + $0x48] sm:$0xff]
        %v589 = vld [vmem:[%s489 + $0x50] sm:$0xff]
        %v590 = vld [vmem:[%s489 + $0x58] sm:$0xff]
        %v591 = vld [vmem:[%s489 + $0x60] sm:$0xff]
        %v592 = vld [vmem:[%s489 + $0x68] sm:$0xff]
        %v593 = vld [vmem:[%s489 + $0x70] sm:$0xff]
        %v594 = vld [vmem:[%s489 + $0x78] sm:$0xff]
        %595 = vst [vmem:[#allocation2 + $0x8] sm:$0xff] %v579
        %596 = vst [vmem:[#allocation2 + $0x10] sm:$0xff] %v580
        %597 = vst [vmem:[#allocation2 + $0x18] sm:$0xff] %v581
        %598 = vst [vmem:[#allocation2 + $0x20] sm:$0xff] %v582
        %599 = vst [vmem:[#allocation2 + $0x28] sm:$0xff] %v583
        %600 = vst [vmem:[#allocation2 + $0x30] sm:$0xff] %v584
        %601 = vst [vmem:[#allocation2 + $0x38] sm:$0xff] %v585
        %602 = vst [vmem:[#allocation2 + $0x40] sm:$0xff] %v586
        %603 = vst [vmem:[#allocation2 + $0x48] sm:$0xff] %v587
        %604 = vst [vmem:[#allocation2 + $0x50] sm:$0xff] %v588
        %605 = vst [vmem:[#allocation2 + $0x58] sm:$0xff] %v589
        %606 = vst [vmem:[#allocation2 + $0x60] sm:$0xff] %v590
        %607 = vst [vmem:[#allocation2 + $0x68] sm:$0xff] %v591
        %608 = vst [vmem:[#allocation2 + $0x70] sm:$0xff] %v592
        %609 = vst [vmem:[#allocation2 + $0x78] sm:$0xff] %v593
        %610 = vst [vmem:[#allocation2 + $0x80] sm:$0xff] %v594
        %p611 = scmp.gt.s32.totalorder %s38, 0
        // Predicated region
        $region89: #{tpu_custom_call.1} parent=63 // pred_check
          %p612 = pneg %p611
        $region90: #{tpu_custom_call.1} parent=63 // pred_check_branch
          %614 = sbr.rel (%p612) target = $region92
        $region91: #{tpu_custom_call.1} parent=63 // pred_region
          %v615 = vld [vmem:[%s498] sm:$0xff]
          %616 = vst [vmem:[#allocation2] sm:$0xff] %v615
        $region92: #{tpu_custom_call.1} parent=63 // pred_fallthru
          _
        %p617 = scmp.eq.s32.totalorder %s38, 0
        // Predicated region
        $region93: #{tpu_custom_call.1} parent=63 // pred_check
          %p618 = pneg %p617
        $region94: #{tpu_custom_call.1} parent=63 // pred_check_branch
          %620 = sbr.rel (%p618) target = $region96
        $region95: #{tpu_custom_call.1} parent=63 // pred_region
          %621 = vst [vmem:[#allocation2] sm:$0xff] 0.0
        $region96: #{tpu_custom_call.1} parent=63 // pred_fallthru
          _
        %p622 = scmp.lt.s32.totalorder %s38, 1
        // Predicated region
        $region97: #{tpu_custom_call.1} parent=63 // pred_check
          %p623 = pneg %p622
        $region98: #{tpu_custom_call.1} parent=63 // pred_check_branch
          %625 = sbr.rel (%p623) target = $region100
        $region99: #{tpu_custom_call.1} parent=63 // pred_region
          %v626 = vld [vmem:[%s507] sm:$0xff]
          %627 = vst [vmem:[#allocation2 + $0x88] sm:$0xff] %v626
        $region100: #{tpu_custom_call.1} parent=63 // pred_fallthru
          _
        %p628 = scmp.eq.s32.totalorder %s38, 1
        // Predicated region
        $region101: #{tpu_custom_call.1} parent=63 // pred_check
          %p629 = pneg %p628
        $region102: #{tpu_custom_call.1} parent=63 // pred_check_branch
          %631 = sbr.rel (%p629) target = $region104
        $region103: #{tpu_custom_call.1} parent=63 // pred_region
          %632 = vst [vmem:[#allocation2 + $0x88] sm:$0xff] 0.0
        $region104: #{tpu_custom_call.1} parent=63 // pred_fallthru
          _
        %v633 = vld [vmem:[#allocation9] sm:$0x7f]
        %v634 = vld [vmem:[#allocation2 + $0x5] sm:$0xff]
        %v635 = vld [vmem:[#allocation2 + $0xd] sm:$0xff]
        %v636 = vld [vmem:[#allocation2 + $0x15] sm:$0xff]
        %v637 = vld [vmem:[#allocation2 + $0x1d] sm:$0xff]
        %v638 = vld [vmem:[#allocation2 + $0x25] sm:$0xff]
        %v639 = vld [vmem:[#allocation2 + $0x2d] sm:$0xff]
        %v640 = vld [vmem:[#allocation2 + $0x35] sm:$0xff]
        %v641 = vld [vmem:[#allocation2 + $0x3d] sm:$0xff]
        %v642 = vld [vmem:[#allocation2 + $0x45] sm:$0xff]
        %v643 = vld [vmem:[#allocation2 + $0x4d] sm:$0xff]
        %v644 = vld [vmem:[#allocation2 + $0x55] sm:$0xff]
        %v645 = vld [vmem:[#allocation2 + $0x5d] sm:$0xff]
        %v646 = vld [vmem:[#allocation2 + $0x65] sm:$0xff]
        %v647 = vld [vmem:[#allocation2 + $0x6d] sm:$0xff]
        %v648 = vld [vmem:[#allocation2 + $0x75] sm:$0xff]
        %v649 = vld [vmem:[#allocation2 + $0x7d] sm:$0xff]
        %v650 = vlaneseq
        %v651 = vshrl.u32 %v650, 7
        %v652 = vsub.s32 0, %v651
        %v653 = vrot.slane %v633, %v652
        %v654 = vmul.f32 %v634, %v653
        %v655 = vmul.f32 %v635, %v653
        %v656 = vmul.f32 %v636, %v653
        %v657 = vmul.f32 %v637, %v653
        %v658 = vmul.f32 %v638, %v653
        %v659 = vmul.f32 %v639, %v653
        %v660 = vmul.f32 %v640, %v653
        %v661 = vmul.f32 %v641, %v653
        %v662 = vmul.f32 %v642, %v653
        %v663 = vmul.f32 %v643, %v653
        %v664 = vmul.f32 %v644, %v653
        %v665 = vmul.f32 %v645, %v653
        %v666 = vmul.f32 %v646, %v653
        %v667 = vmul.f32 %v647, %v653
        %v668 = vmul.f32 %v648, %v653
        %v669 = vmul.f32 %v649, %v653
        %v670 = vld [vmem:[#allocation2 + $0x6] sm:$0xff]
        %v671 = vld [vmem:[#allocation2 + $0xe] sm:$0xff]
        %v672 = vld [vmem:[#allocation2 + $0x16] sm:$0xff]
        %v673 = vld [vmem:[#allocation2 + $0x1e] sm:$0xff]
        %v674 = vld [vmem:[#allocation2 + $0x26] sm:$0xff]
        %v675 = vld [vmem:[#allocation2 + $0x2e] sm:$0xff]
        %v676 = vld [vmem:[#allocation2 + $0x36] sm:$0xff]
        %v677 = vld [vmem:[#allocation2 + $0x3e] sm:$0xff]
        %v678 = vld [vmem:[#allocation2 + $0x46] sm:$0xff]
        %v679 = vld [vmem:[#allocation2 + $0x4e] sm:$0xff]
        %v680 = vld [vmem:[#allocation2 + $0x56] sm:$0xff]
        %v681 = vld [vmem:[#allocation2 + $0x5e] sm:$0xff]
        %v682 = vld [vmem:[#allocation2 + $0x66] sm:$0xff]
        %v683 = vld [vmem:[#allocation2 + $0x6e] sm:$0xff]
        %v684 = vld [vmem:[#allocation2 + $0x76] sm:$0xff]
        %v685 = vld [vmem:[#allocation2 + $0x7e] sm:$0xff]
        %v686 = vlaneseq
        %v687 = vshrl.u32 %v686, 7
        %v688 = vsub.s32 1, %v687
        %v689 = vrot.slane %v633, %v688
        %v690 = vmul.f32 %v670, %v689
        %v691 = vmul.f32 %v671, %v689
        %v692 = vmul.f32 %v672, %v689
        %v693 = vmul.f32 %v673, %v689
        %v694 = vmul.f32 %v674, %v689
        %v695 = vmul.f32 %v675, %v689
        %v696 = vmul.f32 %v676, %v689
        %v697 = vmul.f32 %v677, %v689
        %v698 = vmul.f32 %v678, %v689
        %v699 = vmul.f32 %v679, %v689
        %v700 = vmul.f32 %v680, %v689
        %v701 = vmul.f32 %v681, %v689
        %v702 = vmul.f32 %v682, %v689
        %v703 = vmul.f32 %v683, %v689
        %v704 = vmul.f32 %v684, %v689
        %v705 = vmul.f32 %v685, %v689
        %v706 = vadd.f32 %v654, %v690
        %v707 = vadd.f32 %v655, %v691
        %v708 = vadd.f32 %v656, %v692
        %v709 = vadd.f32 %v657, %v693
        %v710 = vadd.f32 %v658, %v694
        %v711 = vadd.f32 %v659, %v695
        %v712 = vadd.f32 %v660, %v696
        %v713 = vadd.f32 %v661, %v697
        %v714 = vadd.f32 %v662, %v698
        %v715 = vadd.f32 %v663, %v699
        %v716 = vadd.f32 %v664, %v700
        %v717 = vadd.f32 %v665, %v701
        %v718 = vadd.f32 %v666, %v702
        %v719 = vadd.f32 %v667, %v703
        %v720 = vadd.f32 %v668, %v704
        %v721 = vadd.f32 %v669, %v705
        %v722 = vld [vmem:[#allocation2 + $0x7] sm:$0xff]
        %v723 = vld [vmem:[#allocation2 + $0xf] sm:$0xff]
        %v724 = vld [vmem:[#allocation2 + $0x17] sm:$0xff]
        %v725 = vld [vmem:[#allocation2 + $0x1f] sm:$0xff]
        %v726 = vld [vmem:[#allocation2 + $0x27] sm:$0xff]
        %v727 = vld [vmem:[#allocation2 + $0x2f] sm:$0xff]
        %v728 = vld [vmem:[#allocation2 + $0x37] sm:$0xff]
        %v729 = vld [vmem:[#allocation2 + $0x3f] sm:$0xff]
        %v730 = vld [vmem:[#allocation2 + $0x47] sm:$0xff]
        %v731 = vld [vmem:[#allocation2 + $0x4f] sm:$0xff]
        %v732 = vld [vmem:[#allocation2 + $0x57] sm:$0xff]
        %v733 = vld [vmem:[#allocation2 + $0x5f] sm:$0xff]
        %v734 = vld [vmem:[#allocation2 + $0x67] sm:$0xff]
        %v735 = vld [vmem:[#allocation2 + $0x6f] sm:$0xff]
        %v736 = vld [vmem:[#allocation2 + $0x77] sm:$0xff]
        %v737 = vld [vmem:[#allocation2 + $0x7f] sm:$0xff]
        %v738 = vlaneseq
        %v739 = vshrl.u32 %v738, 7
        %v740 = vsub.s32 2, %v739
        %v741 = vrot.slane %v633, %v740
        %v742 = vmul.f32 %v722, %v741
        %v743 = vmul.f32 %v723, %v741
        %v744 = vmul.f32 %v724, %v741
        %v745 = vmul.f32 %v725, %v741
        %v746 = vmul.f32 %v726, %v741
        %v747 = vmul.f32 %v727, %v741
        %v748 = vmul.f32 %v728, %v741
        %v749 = vmul.f32 %v729, %v741
        %v750 = vmul.f32 %v730, %v741
        %v751 = vmul.f32 %v731, %v741
        %v752 = vmul.f32 %v732, %v741
        %v753 = vmul.f32 %v733, %v741
        %v754 = vmul.f32 %v734, %v741
        %v755 = vmul.f32 %v735, %v741
        %v756 = vmul.f32 %v736, %v741
        %v757 = vmul.f32 %v737, %v741
        %v758 = vadd.f32 %v706, %v742
        %v759 = vadd.f32 %v707, %v743
        %v760 = vadd.f32 %v708, %v744
        %v761 = vadd.f32 %v709, %v745
        %v762 = vadd.f32 %v710, %v746
        %v763 = vadd.f32 %v711, %v747
        %v764 = vadd.f32 %v712, %v748
        %v765 = vadd.f32 %v713, %v749
        %v766 = vadd.f32 %v714, %v750
        %v767 = vadd.f32 %v715, %v751
        %v768 = vadd.f32 %v716, %v752
        %v769 = vadd.f32 %v717, %v753
        %v770 = vadd.f32 %v718, %v754
        %v771 = vadd.f32 %v719, %v755
        %v772 = vadd.f32 %v720, %v756
        %v773 = vadd.f32 %v721, %v757
        %v774 = vld [vmem:[#allocation2 + $0x8] sm:$0xff]
        %v775 = vld [vmem:[#allocation2 + $0x10] sm:$0xff]
        %v776 = vld [vmem:[#allocation2 + $0x18] sm:$0xff]
        %v777 = vld [vmem:[#allocation2 + $0x20] sm:$0xff]
        %v778 = vld [vmem:[#allocation2 + $0x28] sm:$0xff]
        %v779 = vld [vmem:[#allocation2 + $0x30] sm:$0xff]
        %v780 = vld [vmem:[#allocation2 + $0x38] sm:$0xff]
        %v781 = vld [vmem:[#allocation2 + $0x40] sm:$0xff]
        %v782 = vld [vmem:[#allocation2 + $0x48] sm:$0xff]
        %v783 = vld [vmem:[#allocation2 + $0x50] sm:$0xff]
        %v784 = vld [vmem:[#allocation2 + $0x58] sm:$0xff]
        %v785 = vld [vmem:[#allocation2 + $0x60] sm:$0xff]
        %v786 = vld [vmem:[#allocation2 + $0x68] sm:$0xff]
        %v787 = vld [vmem:[#allocation2 + $0x70] sm:$0xff]
        %v788 = vld [vmem:[#allocation2 + $0x78] sm:$0xff]
        %v789 = vld [vmem:[#allocation2 + $0x80] sm:$0xff]
        %v790 = vlaneseq
        %v791 = vshrl.u32 %v790, 7
        %v792 = vsub.s32 3, %v791
        %v793 = vrot.slane %v633, %v792
        %v794 = vmul.f32 %v774, %v793
        %v795 = vmul.f32 %v775, %v793
        %v796 = vmul.f32 %v776, %v793
        %v797 = vmul.f32 %v777, %v793
        %v798 = vmul.f32 %v778, %v793
        %v799 = vmul.f32 %v779, %v793
        %v800 = vmul.f32 %v780, %v793
        %v801 = vmul.f32 %v781, %v793
        %v802 = vmul.f32 %v782, %v793
        %v803 = vmul.f32 %v783, %v793
        %v804 = vmul.f32 %v784, %v793
        %v805 = vmul.f32 %v785, %v793
        %v806 = vmul.f32 %v786, %v793
        %v807 = vmul.f32 %v787, %v793
        %v808 = vmul.f32 %v788, %v793
        %v809 = vmul.f32 %v789, %v793
        %v810 = vadd.f32 %v758, %v794
        %v811 = vadd.f32 %v759, %v795
        %v812 = vadd.f32 %v760, %v796
        %v813 = vadd.f32 %v761, %v797
        %v814 = vadd.f32 %v762, %v798
        %v815 = vadd.f32 %v763, %v799
        %v816 = vadd.f32 %v764, %v800
        %v817 = vadd.f32 %v765, %v801
        %v818 = vadd.f32 %v766, %v802
        %v819 = vadd.f32 %v767, %v803
        %v820 = vadd.f32 %v768, %v804
        %v821 = vadd.f32 %v769, %v805
        %v822 = vadd.f32 %v770, %v806
        %v823 = vadd.f32 %v771, %v807
        %v824 = vadd.f32 %v772, %v808
        %v825 = vadd.f32 %v773, %v809
        %v826 = vld [vmem:[#allocation2 + $0x9] sm:$0xff]
        %v827 = vld [vmem:[#allocation2 + $0x11] sm:$0xff]
        %v828 = vld [vmem:[#allocation2 + $0x19] sm:$0xff]
        %v829 = vld [vmem:[#allocation2 + $0x21] sm:$0xff]
        %v830 = vld [vmem:[#allocation2 + $0x29] sm:$0xff]
        %v831 = vld [vmem:[#allocation2 + $0x31] sm:$0xff]
        %v832 = vld [vmem:[#allocation2 + $0x39] sm:$0xff]
        %v833 = vld [vmem:[#allocation2 + $0x41] sm:$0xff]
        %v834 = vld [vmem:[#allocation2 + $0x49] sm:$0xff]
        %v835 = vld [vmem:[#allocation2 + $0x51] sm:$0xff]
        %v836 = vld [vmem:[#allocation2 + $0x59] sm:$0xff]
        %v837 = vld [vmem:[#allocation2 + $0x61] sm:$0xff]
        %v838 = vld [vmem:[#allocation2 + $0x69] sm:$0xff]
        %v839 = vld [vmem:[#allocation2 + $0x71] sm:$0xff]
        %v840 = vld [vmem:[#allocation2 + $0x79] sm:$0xff]
        %v841 = vld [vmem:[#allocation2 + $0x81] sm:$0xff]
        %v842 = vlaneseq
        %v843 = vshrl.u32 %v842, 7
        %v844 = vsub.s32 4, %v843
        %v845 = vrot.slane %v633, %v844
        %v846 = vmul.f32 %v826, %v845
        %v847 = vmul.f32 %v827, %v845
        %v848 = vmul.f32 %v828, %v845
        %v849 = vmul.f32 %v829, %v845
        %v850 = vmul.f32 %v830, %v845
        %v851 = vmul.f32 %v831, %v845
        %v852 = vmul.f32 %v832, %v845
        %v853 = vmul.f32 %v833, %v845
        %v854 = vmul.f32 %v834, %v845
        %v855 = vmul.f32 %v835, %v845
        %v856 = vmul.f32 %v836, %v845
        %v857 = vmul.f32 %v837, %v845
        %v858 = vmul.f32 %v838, %v845
        %v859 = vmul.f32 %v839, %v845
        %v860 = vmul.f32 %v840, %v845
        %v861 = vmul.f32 %v841, %v845
        %v862 = vadd.f32 %v810, %v846
        %v863 = vadd.f32 %v811, %v847
        %v864 = vadd.f32 %v812, %v848
        %v865 = vadd.f32 %v813, %v849
        %v866 = vadd.f32 %v814, %v850
        %v867 = vadd.f32 %v815, %v851
        %v868 = vadd.f32 %v816, %v852
        %v869 = vadd.f32 %v817, %v853
        %v870 = vadd.f32 %v818, %v854
        %v871 = vadd.f32 %v819, %v855
        %v872 = vadd.f32 %v820, %v856
        %v873 = vadd.f32 %v821, %v857
        %v874 = vadd.f32 %v822, %v858
        %v875 = vadd.f32 %v823, %v859
        %v876 = vadd.f32 %v824, %v860
        %v877 = vadd.f32 %v825, %v861
        %v878 = vld [vmem:[#allocation2 + $0xa] sm:$0xff]
        %v879 = vld [vmem:[#allocation2 + $0x12] sm:$0xff]
        %v880 = vld [vmem:[#allocation2 + $0x1a] sm:$0xff]
        %v881 = vld [vmem:[#allocation2 + $0x22] sm:$0xff]
        %v882 = vld [vmem:[#allocation2 + $0x2a] sm:$0xff]
        %v883 = vld [vmem:[#allocation2 + $0x32] sm:$0xff]
        %v884 = vld [vmem:[#allocation2 + $0x3a] sm:$0xff]
        %v885 = vld [vmem:[#allocation2 + $0x42] sm:$0xff]
        %v886 = vld [vmem:[#allocation2 + $0x4a] sm:$0xff]
        %v887 = vld [vmem:[#allocation2 + $0x52] sm:$0xff]
        %v888 = vld [vmem:[#allocation2 + $0x5a] sm:$0xff]
        %v889 = vld [vmem:[#allocation2 + $0x62] sm:$0xff]
        %v890 = vld [vmem:[#allocation2 + $0x6a] sm:$0xff]
        %v891 = vld [vmem:[#allocation2 + $0x72] sm:$0xff]
        %v892 = vld [vmem:[#allocation2 + $0x7a] sm:$0xff]
        %v893 = vld [vmem:[#allocation2 + $0x82] sm:$0xff]
        %v894 = vlaneseq
        %v895 = vshrl.u32 %v894, 7
        %v896 = vsub.s32 5, %v895
        %v897 = vrot.slane %v633, %v896
        %v898 = vmul.f32 %v878, %v897
        %v899 = vmul.f32 %v879, %v897
        %v900 = vmul.f32 %v880, %v897
        %v901 = vmul.f32 %v881, %v897
        %v902 = vmul.f32 %v882, %v897
        %v903 = vmul.f32 %v883, %v897
        %v904 = vmul.f32 %v884, %v897
        %v905 = vmul.f32 %v885, %v897
        %v906 = vmul.f32 %v886, %v897
        %v907 = vmul.f32 %v887, %v897
        %v908 = vmul.f32 %v888, %v897
        %v909 = vmul.f32 %v889, %v897
        %v910 = vmul.f32 %v890, %v897
        %v911 = vmul.f32 %v891, %v897
        %v912 = vmul.f32 %v892, %v897
        %v913 = vmul.f32 %v893, %v897
        %v914 = vadd.f32 %v862, %v898
        %v915 = vadd.f32 %v863, %v899
        %v916 = vadd.f32 %v864, %v900
        %v917 = vadd.f32 %v865, %v901
        %v918 = vadd.f32 %v866, %v902
        %v919 = vadd.f32 %v867, %v903
        %v920 = vadd.f32 %v868, %v904
        %v921 = vadd.f32 %v869, %v905
        %v922 = vadd.f32 %v870, %v906
        %v923 = vadd.f32 %v871, %v907
        %v924 = vadd.f32 %v872, %v908
        %v925 = vadd.f32 %v873, %v909
        %v926 = vadd.f32 %v874, %v910
        %v927 = vadd.f32 %v875, %v911
        %v928 = vadd.f32 %v876, %v912
        %v929 = vadd.f32 %v877, %v913
        %v930 = vld [vmem:[#allocation2 + $0xb] sm:$0xff]
        %v931 = vld [vmem:[#allocation2 + $0x13] sm:$0xff]
        %v932 = vld [vmem:[#allocation2 + $0x1b] sm:$0xff]
        %v933 = vld [vmem:[#allocation2 + $0x23] sm:$0xff]
        %v934 = vld [vmem:[#allocation2 + $0x2b] sm:$0xff]
        %v935 = vld [vmem:[#allocation2 + $0x33] sm:$0xff]
        %v936 = vld [vmem:[#allocation2 + $0x3b] sm:$0xff]
        %v937 = vld [vmem:[#allocation2 + $0x43] sm:$0xff]
        %v938 = vld [vmem:[#allocation2 + $0x4b] sm:$0xff]
        %v939 = vld [vmem:[#allocation2 + $0x53] sm:$0xff]
        %v940 = vld [vmem:[#allocation2 + $0x5b] sm:$0xff]
        %v941 = vld [vmem:[#allocation2 + $0x63] sm:$0xff]
        %v942 = vld [vmem:[#allocation2 + $0x6b] sm:$0xff]
        %v943 = vld [vmem:[#allocation2 + $0x73] sm:$0xff]
        %v944 = vld [vmem:[#allocation2 + $0x7b] sm:$0xff]
        %v945 = vld [vmem:[#allocation2 + $0x83] sm:$0xff]
        %v946 = vlaneseq
        %v947 = vshrl.u32 %v946, 7
        %v948 = vsub.s32 6, %v947
        %v949 = vrot.slane %v633, %v948
        %v950 = vmul.f32 %v930, %v949
        %v951 = vmul.f32 %v931, %v949
        %v952 = vmul.f32 %v932, %v949
        %v953 = vmul.f32 %v933, %v949
        %v954 = vmul.f32 %v934, %v949
        %v955 = vmul.f32 %v935, %v949
        %v956 = vmul.f32 %v936, %v949
        %v957 = vmul.f32 %v937, %v949
        %v958 = vmul.f32 %v938, %v949
        %v959 = vmul.f32 %v939, %v949
        %v960 = vmul.f32 %v940, %v949
        %v961 = vmul.f32 %v941, %v949
        %v962 = vmul.f32 %v942, %v949
        %v963 = vmul.f32 %v943, %v949
        %v964 = vmul.f32 %v944, %v949
        %v965 = vmul.f32 %v945, %v949
        %v966 = vadd.f32 %v914, %v950
        %v967 = vadd.f32 %v915, %v951
        %v968 = vadd.f32 %v916, %v952
        %v969 = vadd.f32 %v917, %v953
        %v970 = vadd.f32 %v918, %v954
        %v971 = vadd.f32 %v919, %v955
        %v972 = vadd.f32 %v920, %v956
        %v973 = vadd.f32 %v921, %v957
        %v974 = vadd.f32 %v922, %v958
        %v975 = vadd.f32 %v923, %v959
        %v976 = vadd.f32 %v924, %v960
        %v977 = vadd.f32 %v925, %v961
        %v978 = vadd.f32 %v926, %v962
        %v979 = vadd.f32 %v927, %v963
        %v980 = vadd.f32 %v928, %v964
        %v981 = vadd.f32 %v929, %v965
        %v982 = vld [vmem:[%s4] sm:$0x1]
        %v984 = vlaneseq
        %v985 = vshrl.u32 %v984, 7
        %v986 = vsub.s32 0, %v985
        %v987 = vrot.slane %v982, %v986
        %v989 = vadd.f32 %v966, %v987
        %v990 = vadd.f32 %v967, %v987
        %v991 = vadd.f32 %v968, %v987
        %v992 = vadd.f32 %v969, %v987
        %v993 = vadd.f32 %v970, %v987
        %v994 = vadd.f32 %v971, %v987
        %v995 = vadd.f32 %v972, %v987
        %v996 = vadd.f32 %v973, %v987
        %v997 = vadd.f32 %v974, %v987
        %v998 = vadd.f32 %v975, %v987
        %v999 = vadd.f32 %v976, %v987
        %v1000 = vadd.f32 %v977, %v987
        %v1001 = vadd.f32 %v978, %v987
        %v1002 = vadd.f32 %v979, %v987
        %v1003 = vadd.f32 %v980, %v987
        %v1004 = vadd.f32 %v981, %v987
        %v1005 = vld [vmem:[%s5] sm:$0x1]
        %v1006 = vld [vmem:[%s6] sm:$0x1]
        %1007 = vadd.xlane.f32.xlu0 %v989
        %v1008 = vpop.xlane.xlu0 %1007
        %1009 = vadd.xlane.f32.xlu0 %v990
        %v1010 = vpop.xlane.xlu0 %1009
        %1011 = vadd.xlane.f32.xlu0 %v991
        %v1012 = vpop.xlane.xlu0 %1011
        %1013 = vadd.xlane.f32.xlu0 %v992
        %v1014 = vpop.xlane.xlu0 %1013
        %1015 = vadd.xlane.f32.xlu0 %v993
        %v1016 = vpop.xlane.xlu0 %1015
        %1017 = vadd.xlane.f32.xlu0 %v994
        %v1018 = vpop.xlane.xlu0 %1017
        %1019 = vadd.xlane.f32.xlu0 %v995
        %v1020 = vpop.xlane.xlu0 %1019
        %1021 = vadd.xlane.f32.xlu0 %v996
        %v1022 = vpop.xlane.xlu0 %1021
        %1023 = vadd.xlane.f32.xlu0 %v997
        %v1024 = vpop.xlane.xlu0 %1023
        %1025 = vadd.xlane.f32.xlu0 %v998
        %v1026 = vpop.xlane.xlu0 %1025
        %1027 = vadd.xlane.f32.xlu0 %v999
        %v1028 = vpop.xlane.xlu0 %1027
        %1029 = vadd.xlane.f32.xlu0 %v1000
        %v1030 = vpop.xlane.xlu0 %1029
        %1031 = vadd.xlane.f32.xlu0 %v1001
        %v1032 = vpop.xlane.xlu0 %1031
        %1033 = vadd.xlane.f32.xlu0 %v1002
        %v1034 = vpop.xlane.xlu0 %1033
        %1035 = vadd.xlane.f32.xlu0 %v1003
        %v1036 = vpop.xlane.xlu0 %1035
        %1037 = vadd.xlane.f32.xlu0 %v1004
        %v1038 = vpop.xlane.xlu0 %1037
        %v1039 = vrcp.pop 128.0
        %v1040 = vmul.f32 %v1008, %v1039
        %v1041 = vmul.f32 %v1010, %v1039
        %v1042 = vmul.f32 %v1012, %v1039
        %v1043 = vmul.f32 %v1014, %v1039
        %v1044 = vmul.f32 %v1016, %v1039
        %v1045 = vmul.f32 %v1018, %v1039
        %v1046 = vmul.f32 %v1020, %v1039
        %v1047 = vmul.f32 %v1022, %v1039
        %v1048 = vmul.f32 %v1024, %v1039
        %v1049 = vmul.f32 %v1026, %v1039
        %v1050 = vmul.f32 %v1028, %v1039
        %v1051 = vmul.f32 %v1030, %v1039
        %v1052 = vmul.f32 %v1032, %v1039
        %v1053 = vmul.f32 %v1034, %v1039
        %v1054 = vmul.f32 %v1036, %v1039
        %v1055 = vmul.f32 %v1038, %v1039
        %v1056 = vmul.f32 %v989, %v989
        %v1057 = vmul.f32 %v990, %v990
        %v1058 = vmul.f32 %v991, %v991
        %v1059 = vmul.f32 %v992, %v992
        %v1060 = vmul.f32 %v993, %v993
        %v1061 = vmul.f32 %v994, %v994
        %v1062 = vmul.f32 %v995, %v995
        %v1063 = vmul.f32 %v996, %v996
        %v1064 = vmul.f32 %v997, %v997
        %v1065 = vmul.f32 %v998, %v998
        %v1066 = vmul.f32 %v999, %v999
        %v1067 = vmul.f32 %v1000, %v1000
        %v1068 = vmul.f32 %v1001, %v1001
        %v1069 = vmul.f32 %v1002, %v1002
        %v1070 = vmul.f32 %v1003, %v1003
        %v1071 = vmul.f32 %v1004, %v1004
        %1072 = vadd.xlane.f32.xlu0 %v1056
        %v1073 = vpop.xlane.xlu0 %1072
        %1074 = vadd.xlane.f32.xlu0 %v1057
        %v1075 = vpop.xlane.xlu0 %1074
        %1076 = vadd.xlane.f32.xlu0 %v1058
        %v1077 = vpop.xlane.xlu0 %1076
        %1078 = vadd.xlane.f32.xlu0 %v1059
        %v1079 = vpop.xlane.xlu0 %1078
        %1080 = vadd.xlane.f32.xlu0 %v1060
        %v1081 = vpop.xlane.xlu0 %1080
        %1082 = vadd.xlane.f32.xlu0 %v1061
        %v1083 = vpop.xlane.xlu0 %1082
        %1084 = vadd.xlane.f32.xlu0 %v1062
        %v1085 = vpop.xlane.xlu0 %1084
        %1086 = vadd.xlane.f32.xlu0 %v1063
        %v1087 = vpop.xlane.xlu0 %1086
        %1088 = vadd.xlane.f32.xlu0 %v1064
        %v1089 = vpop.xlane.xlu0 %1088
        %1090 = vadd.xlane.f32.xlu0 %v1065
        %v1091 = vpop.xlane.xlu0 %1090
        %1092 = vadd.xlane.f32.xlu0 %v1066
        %v1093 = vpop.xlane.xlu0 %1092
        %1094 = vadd.xlane.f32.xlu0 %v1067
        %v1095 = vpop.xlane.xlu0 %1094
        %1096 = vadd.xlane.f32.xlu0 %v1068
        %v1097 = vpop.xlane.xlu0 %1096
        %1098 = vadd.xlane.f32.xlu0 %v1069
        %v1099 = vpop.xlane.xlu0 %1098
        %1100 = vadd.xlane.f32.xlu0 %v1070
        %v1101 = vpop.xlane.xlu0 %1100
        %1102 = vadd.xlane.f32.xlu0 %v1071
        %v1103 = vpop.xlane.xlu0 %1102
        %v1104 = vmul.f32 %v1073, %v1039
        %v1105 = vmul.f32 %v1075, %v1039
        %v1106 = vmul.f32 %v1077, %v1039
        %v1107 = vmul.f32 %v1079, %v1039
        %v1108 = vmul.f32 %v1081, %v1039
        %v1109 = vmul.f32 %v1083, %v1039
        %v1110 = vmul.f32 %v1085, %v1039
        %v1111 = vmul.f32 %v1087, %v1039
        %v1112 = vmul.f32 %v1089, %v1039
        %v1113 = vmul.f32 %v1091, %v1039
        %v1114 = vmul.f32 %v1093, %v1039
        %v1115 = vmul.f32 %v1095, %v1039
        %v1116 = vmul.f32 %v1097, %v1039
        %v1117 = vmul.f32 %v1099, %v1039
        %v1118 = vmul.f32 %v1101, %v1039
        %v1119 = vmul.f32 %v1103, %v1039
        %v1120 = vmul.f32 %v1040, %v1040
        %v1121 = vmul.f32 %v1041, %v1041
        %v1122 = vmul.f32 %v1042, %v1042
        %v1123 = vmul.f32 %v1043, %v1043
        %v1124 = vmul.f32 %v1044, %v1044
        %v1125 = vmul.f32 %v1045, %v1045
        %v1126 = vmul.f32 %v1046, %v1046
        %v1127 = vmul.f32 %v1047, %v1047
        %v1128 = vmul.f32 %v1048, %v1048
        %v1129 = vmul.f32 %v1049, %v1049
        %v1130 = vmul.f32 %v1050, %v1050
        %v1131 = vmul.f32 %v1051, %v1051
        %v1132 = vmul.f32 %v1052, %v1052
        %v1133 = vmul.f32 %v1053, %v1053
        %v1134 = vmul.f32 %v1054, %v1054
        %v1135 = vmul.f32 %v1055, %v1055
        %v1136 = vsub.f32 %v1104, %v1120
        %v1137 = vsub.f32 %v1105, %v1121
        %v1138 = vsub.f32 %v1106, %v1122
        %v1139 = vsub.f32 %v1107, %v1123
        %v1140 = vsub.f32 %v1108, %v1124
        %v1141 = vsub.f32 %v1109, %v1125
        %v1142 = vsub.f32 %v1110, %v1126
        %v1143 = vsub.f32 %v1111, %v1127
        %v1144 = vsub.f32 %v1112, %v1128
        %v1145 = vsub.f32 %v1113, %v1129
        %v1146 = vsub.f32 %v1114, %v1130
        %v1147 = vsub.f32 %v1115, %v1131
        %v1148 = vsub.f32 %v1116, %v1132
        %v1149 = vsub.f32 %v1117, %v1133
        %v1150 = vsub.f32 %v1118, %v1134
        %v1151 = vsub.f32 %v1119, %v1135
        %v1152 = vmax.f32 %v1136, 0.0
        %v1153 = vmax.f32 %v1137, 0.0
        %v1154 = vmax.f32 %v1138, 0.0
        %v1155 = vmax.f32 %v1139, 0.0
        %v1156 = vmax.f32 %v1140, 0.0
        %v1157 = vmax.f32 %v1141, 0.0
        %v1158 = vmax.f32 %v1142, 0.0
        %v1159 = vmax.f32 %v1143, 0.0
        %v1160 = vmax.f32 %v1144, 0.0
        %v1161 = vmax.f32 %v1145, 0.0
        %v1162 = vmax.f32 %v1146, 0.0
        %v1163 = vmax.f32 %v1147, 0.0
        %v1164 = vmax.f32 %v1148, 0.0
        %v1165 = vmax.f32 %v1149, 0.0
        %v1166 = vmax.f32 %v1150, 0.0
        %v1167 = vmax.f32 %v1151, 0.0
        %v1168 = vsub.f32 %v989, %v1040
        %v1169 = vsub.f32 %v990, %v1041
        %v1170 = vsub.f32 %v991, %v1042
        %v1171 = vsub.f32 %v992, %v1043
        %v1172 = vsub.f32 %v993, %v1044
        %v1173 = vsub.f32 %v994, %v1045
        %v1174 = vsub.f32 %v995, %v1046
        %v1175 = vsub.f32 %v996, %v1047
        %v1176 = vsub.f32 %v997, %v1048
        %v1177 = vsub.f32 %v998, %v1049
        %v1178 = vsub.f32 %v999, %v1050
        %v1179 = vsub.f32 %v1000, %v1051
        %v1180 = vsub.f32 %v1001, %v1052
        %v1181 = vsub.f32 %v1002, %v1053
        %v1182 = vsub.f32 %v1003, %v1054
        %v1183 = vsub.f32 %v1004, %v1055
        %v1184 = vadd.f32 %v1152, 1e-05
        %v1185 = vadd.f32 %v1153, 1e-05
        %v1186 = vadd.f32 %v1154, 1e-05
        %v1187 = vadd.f32 %v1155, 1e-05
        %v1188 = vadd.f32 %v1156, 1e-05
        %v1189 = vadd.f32 %v1157, 1e-05
        %v1190 = vadd.f32 %v1158, 1e-05
        %v1191 = vadd.f32 %v1159, 1e-05
        %v1192 = vadd.f32 %v1160, 1e-05
        %v1193 = vadd.f32 %v1161, 1e-05
        %v1194 = vadd.f32 %v1162, 1e-05
        %v1195 = vadd.f32 %v1163, 1e-05
        %v1196 = vadd.f32 %v1164, 1e-05
        %v1197 = vadd.f32 %v1165, 1e-05
        %v1198 = vadd.f32 %v1166, 1e-05
        %v1199 = vadd.f32 %v1167, 1e-05
        %v1200 = vrsqrt.pop %v1184
        %v1201 = vrsqrt.pop %v1185
        %v1202 = vrsqrt.pop %v1186
        %v1203 = vrsqrt.pop %v1187
        %v1204 = vrsqrt.pop %v1188
        %v1205 = vrsqrt.pop %v1189
        %v1206 = vrsqrt.pop %v1190
        %v1207 = vrsqrt.pop %v1191
        %v1208 = vrsqrt.pop %v1192
        %v1209 = vrsqrt.pop %v1193
        %v1210 = vrsqrt.pop %v1194
        %v1211 = vrsqrt.pop %v1195
        %v1212 = vrsqrt.pop %v1196
        %v1213 = vrsqrt.pop %v1197
        %v1214 = vrsqrt.pop %v1198
        %v1215 = vrsqrt.pop %v1199
        %v1216 = vmul.f32 %v1168, %v1200
        %v1217 = vmul.f32 %v1169, %v1201
        %v1218 = vmul.f32 %v1170, %v1202
        %v1219 = vmul.f32 %v1171, %v1203
        %v1220 = vmul.f32 %v1172, %v1204
        %v1221 = vmul.f32 %v1173, %v1205
        %v1222 = vmul.f32 %v1174, %v1206
        %v1223 = vmul.f32 %v1175, %v1207
        %v1224 = vmul.f32 %v1176, %v1208
        %v1225 = vmul.f32 %v1177, %v1209
        %v1226 = vmul.f32 %v1178, %v1210
        %v1227 = vmul.f32 %v1179, %v1211
        %v1228 = vmul.f32 %v1180, %v1212
        %v1229 = vmul.f32 %v1181, %v1213
        %v1230 = vmul.f32 %v1182, %v1214
        %v1231 = vmul.f32 %v1183, %v1215
        %v1233 = vlaneseq
        %v1234 = vshrl.u32 %v1233, 7
        %v1235 = vsub.s32 0, %v1234
        %v1236 = vrot.slane %v1005, %v1235
        %v1238 = vmul.f32 %v1216, %v1236
        %v1239 = vmul.f32 %v1217, %v1236
        %v1240 = vmul.f32 %v1218, %v1236
        %v1241 = vmul.f32 %v1219, %v1236
        %v1242 = vmul.f32 %v1220, %v1236
        %v1243 = vmul.f32 %v1221, %v1236
        %v1244 = vmul.f32 %v1222, %v1236
        %v1245 = vmul.f32 %v1223, %v1236
        %v1246 = vmul.f32 %v1224, %v1236
        %v1247 = vmul.f32 %v1225, %v1236
        %v1248 = vmul.f32 %v1226, %v1236
        %v1249 = vmul.f32 %v1227, %v1236
        %v1250 = vmul.f32 %v1228, %v1236
        %v1251 = vmul.f32 %v1229, %v1236
        %v1252 = vmul.f32 %v1230, %v1236
        %v1253 = vmul.f32 %v1231, %v1236
        %v1255 = vlaneseq
        %v1256 = vshrl.u32 %v1255, 7
        %v1257 = vsub.s32 0, %v1256
        %v1258 = vrot.slane %v1006, %v1257
        %v1260 = vadd.f32 %v1238, %v1258
        %v1261 = vadd.f32 %v1239, %v1258
        %v1262 = vadd.f32 %v1240, %v1258
        %v1263 = vadd.f32 %v1241, %v1258
        %v1264 = vadd.f32 %v1242, %v1258
        %v1265 = vadd.f32 %v1243, %v1258
        %v1266 = vadd.f32 %v1244, %v1258
        %v1267 = vadd.f32 %v1245, %v1258
        %v1268 = vadd.f32 %v1246, %v1258
        %v1269 = vadd.f32 %v1247, %v1258
        %v1270 = vadd.f32 %v1248, %v1258
        %v1271 = vadd.f32 %v1249, %v1258
        %v1272 = vadd.f32 %v1250, %v1258
        %v1273 = vadd.f32 %v1251, %v1258
        %v1274 = vadd.f32 %v1252, %v1258
        %v1275 = vadd.f32 %v1253, %v1258
        %v1276 = vpack.c.bf16 %v1261, %v1260
        %v1277 = vpack.c.bf16 %v1263, %v1262
        %v1278 = vpack.c.bf16 %v1265, %v1264
        %v1279 = vpack.c.bf16 %v1267, %v1266
        %v1280 = vpack.c.bf16 %v1269, %v1268
        %v1281 = vpack.c.bf16 %v1271, %v1270
        %v1282 = vpack.c.bf16 %v1273, %v1272
        %v1283 = vpack.c.bf16 %v1275, %v1274
        %v1284 = vld [vmem:[#allocation11] sm:$0xff]
        %v1285 = vld [vmem:[#allocation11 + $0x8] sm:$0xff]
        %v1286 = vld [vmem:[#allocation11 + $0x10] sm:$0xff]
        %v1287 = vld [vmem:[#allocation11 + $0x18] sm:$0xff]
        %v1288 = vld [vmem:[#allocation11 + $0x20] sm:$0xff]
        %v1289 = vld [vmem:[#allocation11 + $0x28] sm:$0xff]
        %v1290 = vld [vmem:[#allocation11 + $0x30] sm:$0xff]
        %v1291 = vld [vmem:[#allocation11 + $0x38] sm:$0xff]
        %v1292 = vld [vmem:[#allocation11 + $0x40] sm:$0xff]
        %v1293 = vld [vmem:[#allocation11 + $0x48] sm:$0xff]
        %v1294 = vld [vmem:[#allocation11 + $0x50] sm:$0xff]
        %v1295 = vld [vmem:[#allocation11 + $0x58] sm:$0xff]
        %v1296 = vld [vmem:[#allocation11 + $0x60] sm:$0xff]
        %v1297 = vld [vmem:[#allocation11 + $0x68] sm:$0xff]
        %v1298 = vld [vmem:[#allocation11 + $0x70] sm:$0xff]
        %v1299 = vld [vmem:[#allocation11 + $0x78] sm:$0xff]
        %v1300 = vld [vmem:[#allocation11 + $0x80] sm:$0xff]
        %v1301 = vld [vmem:[#allocation11 + $0x88] sm:$0xff]
        %v1302 = vld [vmem:[#allocation11 + $0x90] sm:$0xff]
        %v1303 = vld [vmem:[#allocation11 + $0x98] sm:$0xff]
        %v1304 = vld [vmem:[#allocation11 + $0xa0] sm:$0xff]
        %v1305 = vld [vmem:[#allocation11 + $0xa8] sm:$0xff]
        %v1306 = vld [vmem:[#allocation11 + $0xb0] sm:$0xff]
        %v1307 = vld [vmem:[#allocation11 + $0xb8] sm:$0xff]
        %v1308 = vld [vmem:[#allocation11 + $0xc0] sm:$0xff]
        %v1309 = vld [vmem:[#allocation11 + $0xc8] sm:$0xff]
        %v1310 = vld [vmem:[#allocation11 + $0xd0] sm:$0xff]
        %v1311 = vld [vmem:[#allocation11 + $0xd8] sm:$0xff]
        %v1312 = vld [vmem:[#allocation11 + $0xe0] sm:$0xff]
        %v1313 = vld [vmem:[#allocation11 + $0xe8] sm:$0xff]
        %v1314 = vld [vmem:[#allocation11 + $0xf0] sm:$0xff]
        %v1315 = vld [vmem:[#allocation11 + $0xf8] sm:$0xff]
        %v1316 = vld [vmem:[%s8] sm:$0xf]
        %v1318 = vlaneseq
        %v1319 = vshrl.u32 %v1318, 7
        %v1320 = vsub.s32 0, %v1319
        %v1321 = vrot.slane %v1316, %v1320
        %v1322 = vlaneseq
        %v1323 = vshrl.u32 %v1322, 7
        %v1324 = vsub.s32 1, %v1323
        %v1325 = vrot.slane %v1316, %v1324
        %v1326 = vlaneseq
        %v1327 = vshrl.u32 %v1326, 7
        %v1328 = vsub.s32 2, %v1327
        %v1329 = vrot.slane %v1316, %v1328
        %v1330 = vlaneseq
        %v1331 = vshrl.u32 %v1330, 7
        %v1332 = vsub.s32 3, %v1331
        %v1333 = vrot.slane %v1316, %v1332
        %v1370 = vunpack.c.l.b16 %v1284
        %v1371 = vunpack.c.h.b16 %v1284
        %v1372 = vunpack.c.l.b16 %v1285
        %v1373 = vunpack.c.h.b16 %v1285
        %v1374 = vunpack.c.l.b16 %v1286
        %v1375 = vunpack.c.h.b16 %v1286
        %v1376 = vunpack.c.l.b16 %v1287
        %v1377 = vunpack.c.h.b16 %v1287
        %v1378 = vunpack.c.l.b16 %v1288
        %v1379 = vunpack.c.h.b16 %v1288
        %v1380 = vunpack.c.l.b16 %v1289
        %v1381 = vunpack.c.h.b16 %v1289
        %v1382 = vunpack.c.l.b16 %v1290
        %v1383 = vunpack.c.h.b16 %v1290
        %v1384 = vunpack.c.l.b16 %v1291
        %v1385 = vunpack.c.h.b16 %v1291
        %v1386 = vunpack.c.l.b16 %v1292
        %v1387 = vunpack.c.h.b16 %v1292
        %v1388 = vunpack.c.l.b16 %v1293
        %v1389 = vunpack.c.h.b16 %v1293
        %v1390 = vunpack.c.l.b16 %v1294
        %v1391 = vunpack.c.h.b16 %v1294
        %v1392 = vunpack.c.l.b16 %v1295
        %v1393 = vunpack.c.h.b16 %v1295
        %v1394 = vunpack.c.l.b16 %v1296
        %v1395 = vunpack.c.h.b16 %v1296
        %v1396 = vunpack.c.l.b16 %v1297
        %v1397 = vunpack.c.h.b16 %v1297
        %v1398 = vunpack.c.l.b16 %v1298
        %v1399 = vunpack.c.h.b16 %v1298
        %v1400 = vunpack.c.l.b16 %v1299
        %v1401 = vunpack.c.h.b16 %v1299
        %v1402 = vunpack.c.l.b16 %v1300
        %v1403 = vunpack.c.h.b16 %v1300
        %v1404 = vunpack.c.l.b16 %v1301
        %v1405 = vunpack.c.h.b16 %v1301
        %v1406 = vunpack.c.l.b16 %v1302
        %v1407 = vunpack.c.h.b16 %v1302
        %v1408 = vunpack.c.l.b16 %v1303
        %v1409 = vunpack.c.h.b16 %v1303
        %v1410 = vunpack.c.l.b16 %v1304
        %v1411 = vunpack.c.h.b16 %v1304
        %v1412 = vunpack.c.l.b16 %v1305
        %v1413 = vunpack.c.h.b16 %v1305
        %v1414 = vunpack.c.l.b16 %v1306
        %v1415 = vunpack.c.h.b16 %v1306
        %v1416 = vunpack.c.l.b16 %v1307
        %v1417 = vunpack.c.h.b16 %v1307
        %v1418 = vunpack.c.l.b16 %v1308
        %v1419 = vunpack.c.h.b16 %v1308
        %v1420 = vunpack.c.l.b16 %v1309
        %v1421 = vunpack.c.h.b16 %v1309
        %v1422 = vunpack.c.l.b16 %v1310
        %v1423 = vunpack.c.h.b16 %v1310
        %v1424 = vunpack.c.l.b16 %v1311
        %v1425 = vunpack.c.h.b16 %v1311
        %v1426 = vunpack.c.l.b16 %v1312
        %v1427 = vunpack.c.h.b16 %v1312
        %v1428 = vunpack.c.l.b16 %v1313
        %v1429 = vunpack.c.h.b16 %v1313
        %v1430 = vunpack.c.l.b16 %v1314
        %v1431 = vunpack.c.h.b16 %v1314
        %v1432 = vunpack.c.l.b16 %v1315
        %v1433 = vunpack.c.h.b16 %v1315
        %v1434 = vpack.c.b16 %v1374, %v1370
        %v1435 = vpack.c.b16 %v1375, %v1371
        %v1436 = vpack.c.b16 %v1376, %v1372
        %v1437 = vpack.c.b16 %v1377, %v1373
        %v1438 = vpack.c.b16 %v1382, %v1378
        %v1439 = vpack.c.b16 %v1383, %v1379
        %v1440 = vpack.c.b16 %v1384, %v1380
        %v1441 = vpack.c.b16 %v1385, %v1381
        %v1442 = vpack.c.b16 %v1390, %v1386
        %v1443 = vpack.c.b16 %v1391, %v1387
        %v1444 = vpack.c.b16 %v1392, %v1388
        %v1445 = vpack.c.b16 %v1393, %v1389
        %v1446 = vpack.c.b16 %v1398, %v1394
        %v1447 = vpack.c.b16 %v1399, %v1395
        %v1448 = vpack.c.b16 %v1400, %v1396
        %v1449 = vpack.c.b16 %v1401, %v1397
        %v1450 = vpack.c.b16 %v1406, %v1402
        %v1451 = vpack.c.b16 %v1407, %v1403
        %v1452 = vpack.c.b16 %v1408, %v1404
        %v1453 = vpack.c.b16 %v1409, %v1405
        %v1454 = vpack.c.b16 %v1414, %v1410
        %v1455 = vpack.c.b16 %v1415, %v1411
        %v1456 = vpack.c.b16 %v1416, %v1412
        %v1457 = vpack.c.b16 %v1417, %v1413
        %v1458 = vpack.c.b16 %v1422, %v1418
        %v1459 = vpack.c.b16 %v1423, %v1419
        %v1460 = vpack.c.b16 %v1424, %v1420
        %v1461 = vpack.c.b16 %v1425, %v1421
        %v1462 = vpack.c.b16 %v1430, %v1426
        %v1463 = vpack.c.b16 %v1431, %v1427
        %v1464 = vpack.c.b16 %v1432, %v1428
        %v1465 = vpack.c.b16 %v1433, %v1429
        %1498 = vmatprep.subr.bf16.mxu0 %v1463
        %1499 = vmatpush1.bf16.msra.mxu0 %v1462
        %1500 = vmatprep.subr.bf16.mxu0 %v1459
        %1501 = vmatpush1.bf16.msra.mxu0 %v1458
        %1502 = vmatprep.subr.bf16.mxu0 %v1455
        %1503 = vmatpush1.bf16.msra.mxu0 %v1454
        %1504 = vmatprep.subr.bf16.mxu0 %v1451
        %1505 = vmatpush1.bf16.msra.mxu0 %v1450
        %1506 = vmatprep.subr.bf16.mxu0 %v1447
        %1507 = vmatpush1.bf16.msra.mxu0 %v1446
        %1508 = vmatprep.subr.bf16.mxu0 %v1443
        %1509 = vmatpush1.bf16.msra.mxu0 %v1442
        %1510 = vmatprep.subr.bf16.mxu0 %v1439
        %1511 = vmatpush1.bf16.msra.mxu0 %v1438
        %1512 = vmatprep.subr.bf16.mxu0 %v1435
        %1513 = vmatpush1.bf16.msra.mxu0 %v1434
        %1514 = vmatprep.subr.bf16.mxu0 0
        %1515 = vmatpush2.bf16.msra.mxu0 0
        %1516 = vmatprep.subr.bf16.mxu0 0
        %1517 = vmatpush2.bf16.msra.mxu0 0
        %1518 = vmatprep.subr.bf16.mxu0 0
        %1519 = vmatpush2.bf16.msra.mxu0 0
        %1520 = vmatprep.subr.bf16.mxu0 0
        %1521 = vmatpush2.bf16.msra.mxu0 0
        %1522 = vmatprep.subr.bf16.mxu0 0
        %1523 = vmatpush2.bf16.msra.mxu0 0
        %1524 = vmatprep.subr.bf16.mxu0 0
        %1525 = vmatpush2.bf16.msra.mxu0 0
        %1526 = vmatprep.subr.bf16.mxu0 0
        %1527 = vmatpush2.bf16.msra.mxu0 0
        %1528 = vmatprep.subr.bf16.mxu0 0
        %1529 = vmatpush2.bf16.msra.mxu0 0
        %1530 = vmatprep.mubr.bf16.mxu0 0
        %1531 = vmatmul.mubr.bf16.gmra.mxu0 %v1276
        %v1532 = vpop.f32.mrf.mxu0
        %v1533 = vadd.f32 %v1321, %v1532
        %v1534 = vpop.f32.mrf.mxu0
        %v1535 = vadd.f32 %v1325, %v1534
        %v1536 = vpop.f32.mrf.mxu0
        %v1537 = vadd.f32 %v1321, %v1536
        %v1538 = vpop.f32.mrf.mxu0
        %v1539 = vadd.f32 %v1325, %v1538
        %1540 = vmatprep.mubr.bf16.mxu0 0
        %1541 = vmatmul.mubr.bf16.gmra.mxu0 %v1277
        %v1542 = vpop.f32.mrf.mxu0
        %v1543 = vadd.f32 %v1321, %v1542
        %v1544 = vpop.f32.mrf.mxu0
        %v1545 = vadd.f32 %v1325, %v1544
        %v1546 = vpop.f32.mrf.mxu0
        %v1547 = vadd.f32 %v1321, %v1546
        %v1548 = vpop.f32.mrf.mxu0
        %v1549 = vadd.f32 %v1325, %v1548
        %1550 = vmatprep.mubr.bf16.mxu0 0
        %1551 = vmatmul.mubr.bf16.gmra.mxu0 %v1278
        %v1552 = vpop.f32.mrf.mxu0
        %v1553 = vadd.f32 %v1321, %v1552
        %v1554 = vpop.f32.mrf.mxu0
        %v1555 = vadd.f32 %v1325, %v1554
        %v1556 = vpop.f32.mrf.mxu0
        %v1557 = vadd.f32 %v1321, %v1556
        %v1558 = vpop.f32.mrf.mxu0
        %v1559 = vadd.f32 %v1325, %v1558
        %1560 = vmatprep.mubr.bf16.mxu0 0
        %1561 = vmatmul.mubr.bf16.gmra.mxu0 %v1279
        %v1562 = vpop.f32.mrf.mxu0
        %v1563 = vadd.f32 %v1321, %v1562
        %v1564 = vpop.f32.mrf.mxu0
        %v1565 = vadd.f32 %v1325, %v1564
        %v1566 = vpop.f32.mrf.mxu0
        %v1567 = vadd.f32 %v1321, %v1566
        %v1568 = vpop.f32.mrf.mxu0
        %v1569 = vadd.f32 %v1325, %v1568
        %1570 = vmatprep.mubr.bf16.mxu0 0
        %1571 = vmatmul.mubr.bf16.gmra.mxu0 %v1280
        %v1572 = vpop.f32.mrf.mxu0
        %v1573 = vadd.f32 %v1321, %v1572
        %v1574 = vpop.f32.mrf.mxu0
        %v1575 = vadd.f32 %v1325, %v1574
        %v1576 = vpop.f32.mrf.mxu0
        %v1577 = vadd.f32 %v1321, %v1576
        %v1578 = vpop.f32.mrf.mxu0
        %v1579 = vadd.f32 %v1325, %v1578
        %1580 = vmatprep.mubr.bf16.mxu0 0
        %1581 = vmatmul.mubr.bf16.gmra.mxu0 %v1281
        %v1582 = vpop.f32.mrf.mxu0
        %v1583 = vadd.f32 %v1321, %v1582
        %v1584 = vpop.f32.mrf.mxu0
        %v1585 = vadd.f32 %v1325, %v1584
        %v1586 = vpop.f32.mrf.mxu0
        %v1587 = vadd.f32 %v1321, %v1586
        %v1588 = vpop.f32.mrf.mxu0
        %v1589 = vadd.f32 %v1325, %v1588
        %1590 = vmatprep.mubr.bf16.mxu0 0
        %1591 = vmatmul.mubr.bf16.gmra.mxu0 %v1282
        %v1592 = vpop.f32.mrf.mxu0
        %v1593 = vadd.f32 %v1321, %v1592
        %v1594 = vpop.f32.mrf.mxu0
        %v1595 = vadd.f32 %v1325, %v1594
        %v1596 = vpop.f32.mrf.mxu0
        %v1597 = vadd.f32 %v1321, %v1596
        %v1598 = vpop.f32.mrf.mxu0
        %v1599 = vadd.f32 %v1325, %v1598
        %1600 = vmatprep.mubr.bf16.mxu0 0
        %1601 = vmatmul.mubr.bf16.gmra.mxu0 %v1283
        %v1602 = vpop.f32.mrf.mxu0
        %v1603 = vadd.f32 %v1321, %v1602
        %v1604 = vpop.f32.mrf.mxu0
        %v1605 = vadd.f32 %v1325, %v1604
        %v1606 = vpop.f32.mrf.mxu0
        %v1607 = vadd.f32 %v1321, %v1606
        %v1608 = vpop.f32.mrf.mxu0
        %v1609 = vadd.f32 %v1325, %v1608
        %1610 = vdwg.mxu0
        %1611 = vmatprep.subr.bf16.mxu0 %v1465
        %1612 = vmatpush1.bf16.msra.mxu0 %v1464
        %1613 = vmatprep.subr.bf16.mxu0 %v1461
        %1614 = vmatpush1.bf16.msra.mxu0 %v1460
        %1615 = vmatprep.subr.bf16.mxu0 %v1457
        %1616 = vmatpush1.bf16.msra.mxu0 %v1456
        %1617 = vmatprep.subr.bf16.mxu0 %v1453
        %1618 = vmatpush1.bf16.msra.mxu0 %v1452
        %1619 = vmatprep.subr.bf16.mxu0 %v1449
        %1620 = vmatpush1.bf16.msra.mxu0 %v1448
        %1621 = vmatprep.subr.bf16.mxu0 %v1445
        %1622 = vmatpush1.bf16.msra.mxu0 %v1444
        %1623 = vmatprep.subr.bf16.mxu0 %v1441
        %1624 = vmatpush1.bf16.msra.mxu0 %v1440
        %1625 = vmatprep.subr.bf16.mxu0 %v1437
        %1626 = vmatpush1.bf16.msra.mxu0 %v1436
        %1627 = vmatprep.subr.bf16.mxu0 0
        %1628 = vmatpush2.bf16.msra.mxu0 0
        %1629 = vmatprep.subr.bf16.mxu0 0
        %1630 = vmatpush2.bf16.msra.mxu0 0
        %1631 = vmatprep.subr.bf16.mxu0 0
        %1632 = vmatpush2.bf16.msra.mxu0 0
        %1633 = vmatprep.subr.bf16.mxu0 0
        %1634 = vmatpush2.bf16.msra.mxu0 0
        %1635 = vmatprep.subr.bf16.mxu0 0
        %1636 = vmatpush2.bf16.msra.mxu0 0
        %1637 = vmatprep.subr.bf16.mxu0 0
        %1638 = vmatpush2.bf16.msra.mxu0 0
        %1639 = vmatprep.subr.bf16.mxu0 0
        %1640 = vmatpush2.bf16.msra.mxu0 0
        %1641 = vmatprep.subr.bf16.mxu0 0
        %1642 = vmatpush2.bf16.msra.mxu0 0
        %1643 = vmatprep.mubr.bf16.mxu0 0
        %1644 = vmatmul.mubr.bf16.gmra.mxu0 %v1276
        %v1645 = vpop.f32.mrf.mxu0
        %v1646 = vadd.f32 %v1329, %v1645
        %v1647 = vpop.f32.mrf.mxu0
        %v1648 = vadd.f32 %v1333, %v1647
        %v1649 = vpop.f32.mrf.mxu0
        %v1650 = vadd.f32 %v1329, %v1649
        %v1651 = vpop.f32.mrf.mxu0
        %v1652 = vadd.f32 %v1333, %v1651
        %1653 = vmatprep.mubr.bf16.mxu0 0
        %1654 = vmatmul.mubr.bf16.gmra.mxu0 %v1277
        %v1655 = vpop.f32.mrf.mxu0
        %v1656 = vadd.f32 %v1329, %v1655
        %v1657 = vpop.f32.mrf.mxu0
        %v1658 = vadd.f32 %v1333, %v1657
        %v1659 = vpop.f32.mrf.mxu0
        %v1660 = vadd.f32 %v1329, %v1659
        %v1661 = vpop.f32.mrf.mxu0
        %v1662 = vadd.f32 %v1333, %v1661
        %1663 = vmatprep.mubr.bf16.mxu0 0
        %1664 = vmatmul.mubr.bf16.gmra.mxu0 %v1278
        %v1665 = vpop.f32.mrf.mxu0
        %v1666 = vadd.f32 %v1329, %v1665
        %v1667 = vpop.f32.mrf.mxu0
        %v1668 = vadd.f32 %v1333, %v1667
        %v1669 = vpop.f32.mrf.mxu0
        %v1670 = vadd.f32 %v1329, %v1669
        %v1671 = vpop.f32.mrf.mxu0
        %v1672 = vadd.f32 %v1333, %v1671
        %1673 = vmatprep.mubr.bf16.mxu0 0
        %1674 = vmatmul.mubr.bf16.gmra.mxu0 %v1279
        %v1675 = vpop.f32.mrf.mxu0
        %v1676 = vadd.f32 %v1329, %v1675
        %v1677 = vpop.f32.mrf.mxu0
        %v1678 = vadd.f32 %v1333, %v1677
        %v1679 = vpop.f32.mrf.mxu0
        %v1680 = vadd.f32 %v1329, %v1679
        %v1681 = vpop.f32.mrf.mxu0
        %v1682 = vadd.f32 %v1333, %v1681
        %1683 = vmatprep.mubr.bf16.mxu0 0
        %1684 = vmatmul.mubr.bf16.gmra.mxu0 %v1280
        %v1685 = vpop.f32.mrf.mxu0
        %v1686 = vadd.f32 %v1329, %v1685
        %v1687 = vpop.f32.mrf.mxu0
        %v1688 = vadd.f32 %v1333, %v1687
        %v1689 = vpop.f32.mrf.mxu0
        %v1690 = vadd.f32 %v1329, %v1689
        %v1691 = vpop.f32.mrf.mxu0
        %v1692 = vadd.f32 %v1333, %v1691
        %1693 = vmatprep.mubr.bf16.mxu0 0
        %1694 = vmatmul.mubr.bf16.gmra.mxu0 %v1281
        %v1695 = vpop.f32.mrf.mxu0
        %v1696 = vadd.f32 %v1329, %v1695
        %v1697 = vpop.f32.mrf.mxu0
        %v1698 = vadd.f32 %v1333, %v1697
        %v1699 = vpop.f32.mrf.mxu0
        %v1700 = vadd.f32 %v1329, %v1699
        %v1701 = vpop.f32.mrf.mxu0
        %v1702 = vadd.f32 %v1333, %v1701
        %1703 = vmatprep.mubr.bf16.mxu0 0
        %1704 = vmatmul.mubr.bf16.gmra.mxu0 %v1282
        %v1705 = vpop.f32.mrf.mxu0
        %v1706 = vadd.f32 %v1329, %v1705
        %v1707 = vpop.f32.mrf.mxu0
        %v1708 = vadd.f32 %v1333, %v1707
        %v1709 = vpop.f32.mrf.mxu0
        %v1710 = vadd.f32 %v1329, %v1709
        %v1711 = vpop.f32.mrf.mxu0
        %v1712 = vadd.f32 %v1333, %v1711
        %1713 = vmatprep.mubr.bf16.mxu0 0
        %1714 = vmatmul.mubr.bf16.gmra.mxu0 %v1283
        %v1715 = vpop.f32.mrf.mxu0
        %v1716 = vadd.f32 %v1329, %v1715
        %v1717 = vpop.f32.mrf.mxu0
        %v1718 = vadd.f32 %v1333, %v1717
        %v1719 = vpop.f32.mrf.mxu0
        %v1720 = vadd.f32 %v1329, %v1719
        %v1721 = vpop.f32.mrf.mxu0
        %v1722 = vadd.f32 %v1333, %v1721
        %1723 = vdwg.mxu0
        %v1724 = vmul.f32 %v1533, %v1533
        %v1725 = vmul.f32 %v1535, %v1535
        %v1726 = vmul.f32 %v1646, %v1646
        %v1727 = vmul.f32 %v1648, %v1648
        %v1728 = vmul.f32 %v1537, %v1537
        %v1729 = vmul.f32 %v1539, %v1539
        %v1730 = vmul.f32 %v1650, %v1650
        %v1731 = vmul.f32 %v1652, %v1652
        %v1732 = vmul.f32 %v1543, %v1543
        %v1733 = vmul.f32 %v1545, %v1545
        %v1734 = vmul.f32 %v1656, %v1656
        %v1735 = vmul.f32 %v1658, %v1658
        %v1736 = vmul.f32 %v1547, %v1547
        %v1737 = vmul.f32 %v1549, %v1549
        %v1738 = vmul.f32 %v1660, %v1660
        %v1739 = vmul.f32 %v1662, %v1662
        %v1740 = vmul.f32 %v1553, %v1553
        %v1741 = vmul.f32 %v1555, %v1555
        %v1742 = vmul.f32 %v1666, %v1666
        %v1743 = vmul.f32 %v1668, %v1668
        %v1744 = vmul.f32 %v1557, %v1557
        %v1745 = vmul.f32 %v1559, %v1559
        %v1746 = vmul.f32 %v1670, %v1670
        %v1747 = vmul.f32 %v1672, %v1672
        %v1748 = vmul.f32 %v1563, %v1563
        %v1749 = vmul.f32 %v1565, %v1565
        %v1750 = vmul.f32 %v1676, %v1676
        %v1751 = vmul.f32 %v1678, %v1678
        %v1752 = vmul.f32 %v1567, %v1567
        %v1753 = vmul.f32 %v1569, %v1569
        %v1754 = vmul.f32 %v1680, %v1680
        %v1755 = vmul.f32 %v1682, %v1682
        %v1756 = vmul.f32 %v1573, %v1573
        %v1757 = vmul.f32 %v1575, %v1575
        %v1758 = vmul.f32 %v1686, %v1686
        %v1759 = vmul.f32 %v1688, %v1688
        %v1760 = vmul.f32 %v1577, %v1577
        %v1761 = vmul.f32 %v1579, %v1579
        %v1762 = vmul.f32 %v1690, %v1690
        %v1763 = vmul.f32 %v1692, %v1692
        %v1764 = vmul.f32 %v1583, %v1583
        %v1765 = vmul.f32 %v1585, %v1585
        %v1766 = vmul.f32 %v1696, %v1696
        %v1767 = vmul.f32 %v1698, %v1698
        %v1768 = vmul.f32 %v1587, %v1587
        %v1769 = vmul.f32 %v1589, %v1589
        %v1770 = vmul.f32 %v1700, %v1700
        %v1771 = vmul.f32 %v1702, %v1702
        %v1772 = vmul.f32 %v1593, %v1593
        %v1773 = vmul.f32 %v1595, %v1595
        %v1774 = vmul.f32 %v1706, %v1706
        %v1775 = vmul.f32 %v1708, %v1708
        %v1776 = vmul.f32 %v1597, %v1597
        %v1777 = vmul.f32 %v1599, %v1599
        %v1778 = vmul.f32 %v1710, %v1710
        %v1779 = vmul.f32 %v1712, %v1712
        %v1780 = vmul.f32 %v1603, %v1603
        %v1781 = vmul.f32 %v1605, %v1605
        %v1782 = vmul.f32 %v1716, %v1716
        %v1783 = vmul.f32 %v1718, %v1718
        %v1784 = vmul.f32 %v1607, %v1607
        %v1785 = vmul.f32 %v1609, %v1609
        %v1786 = vmul.f32 %v1720, %v1720
        %v1787 = vmul.f32 %v1722, %v1722
        %v1788 = vmul.f32 %v1533, %v1724
        %v1789 = vmul.f32 %v1535, %v1725
        %v1790 = vmul.f32 %v1646, %v1726
        %v1791 = vmul.f32 %v1648, %v1727
        %v1792 = vmul.f32 %v1537, %v1728
        %v1793 = vmul.f32 %v1539, %v1729
        %v1794 = vmul.f32 %v1650, %v1730
        %v1795 = vmul.f32 %v1652, %v1731
        %v1796 = vmul.f32 %v1543, %v1732
        %v1797 = vmul.f32 %v1545, %v1733
        %v1798 = vmul.f32 %v1656, %v1734
        %v1799 = vmul.f32 %v1658, %v1735
        %v1800 = vmul.f32 %v1547, %v1736
        %v1801 = vmul.f32 %v1549, %v1737
        %v1802 = vmul.f32 %v1660, %v1738
        %v1803 = vmul.f32 %v1662, %v1739
        %v1804 = vmul.f32 %v1553, %v1740
        %v1805 = vmul.f32 %v1555, %v1741
        %v1806 = vmul.f32 %v1666, %v1742
        %v1807 = vmul.f32 %v1668, %v1743
        %v1808 = vmul.f32 %v1557, %v1744
        %v1809 = vmul.f32 %v1559, %v1745
        %v1810 = vmul.f32 %v1670, %v1746
        %v1811 = vmul.f32 %v1672, %v1747
        %v1812 = vmul.f32 %v1563, %v1748
        %v1813 = vmul.f32 %v1565, %v1749
        %v1814 = vmul.f32 %v1676, %v1750
        %v1815 = vmul.f32 %v1678, %v1751
        %v1816 = vmul.f32 %v1567, %v1752
        %v1817 = vmul.f32 %v1569, %v1753
        %v1818 = vmul.f32 %v1680, %v1754
        %v1819 = vmul.f32 %v1682, %v1755
        %v1820 = vmul.f32 %v1573, %v1756
        %v1821 = vmul.f32 %v1575, %v1757
        %v1822 = vmul.f32 %v1686, %v1758
        %v1823 = vmul.f32 %v1688, %v1759
        %v1824 = vmul.f32 %v1577, %v1760
        %v1825 = vmul.f32 %v1579, %v1761
        %v1826 = vmul.f32 %v1690, %v1762
        %v1827 = vmul.f32 %v1692, %v1763
        %v1828 = vmul.f32 %v1583, %v1764
        %v1829 = vmul.f32 %v1585, %v1765
        %v1830 = vmul.f32 %v1696, %v1766
        %v1831 = vmul.f32 %v1698, %v1767
        %v1832 = vmul.f32 %v1587, %v1768
        %v1833 = vmul.f32 %v1589, %v1769
        %v1834 = vmul.f32 %v1700, %v1770
        %v1835 = vmul.f32 %v1702, %v1771
        %v1836 = vmul.f32 %v1593, %v1772
        %v1837 = vmul.f32 %v1595, %v1773
        %v1838 = vmul.f32 %v1706, %v1774
        %v1839 = vmul.f32 %v1708, %v1775
        %v1840 = vmul.f32 %v1597, %v1776
        %v1841 = vmul.f32 %v1599, %v1777
        %v1842 = vmul.f32 %v1710, %v1778
        %v1843 = vmul.f32 %v1712, %v1779
        %v1844 = vmul.f32 %v1603, %v1780
        %v1845 = vmul.f32 %v1605, %v1781
        %v1846 = vmul.f32 %v1716, %v1782
        %v1847 = vmul.f32 %v1718, %v1783
        %v1848 = vmul.f32 %v1607, %v1784
        %v1849 = vmul.f32 %v1609, %v1785
        %v1850 = vmul.f32 %v1720, %v1786
        %v1851 = vmul.f32 %v1722, %v1787
        %v1852 = vmul.f32 %v1788, 0.044715
        %v1853 = vmul.f32 %v1789, 0.044715
        %v1854 = vmul.f32 %v1790, 0.044715
        %v1855 = vmul.f32 %v1791, 0.044715
        %v1856 = vmul.f32 %v1792, 0.044715
        %v1857 = vmul.f32 %v1793, 0.044715
        %v1858 = vmul.f32 %v1794, 0.044715
        %v1859 = vmul.f32 %v1795, 0.044715
        %v1860 = vmul.f32 %v1796, 0.044715
        %v1861 = vmul.f32 %v1797, 0.044715
        %v1862 = vmul.f32 %v1798, 0.044715
        %v1863 = vmul.f32 %v1799, 0.044715
        %v1864 = vmul.f32 %v1800, 0.044715
        %v1865 = vmul.f32 %v1801, 0.044715
        %v1866 = vmul.f32 %v1802, 0.044715
        %v1867 = vmul.f32 %v1803, 0.044715
        %v1868 = vmul.f32 %v1804, 0.044715
        %v1869 = vmul.f32 %v1805, 0.044715
        %v1870 = vmul.f32 %v1806, 0.044715
        %v1871 = vmul.f32 %v1807, 0.044715
        %v1872 = vmul.f32 %v1808, 0.044715
        %v1873 = vmul.f32 %v1809, 0.044715
        %v1874 = vmul.f32 %v1810, 0.044715
        %v1875 = vmul.f32 %v1811, 0.044715
        %v1876 = vmul.f32 %v1812, 0.044715
        %v1877 = vmul.f32 %v1813, 0.044715
        %v1878 = vmul.f32 %v1814, 0.044715
        %v1879 = vmul.f32 %v1815, 0.044715
        %v1880 = vmul.f32 %v1816, 0.044715
        %v1881 = vmul.f32 %v1817, 0.044715
        %v1882 = vmul.f32 %v1818, 0.044715
        %v1883 = vmul.f32 %v1819, 0.044715
        %v1884 = vmul.f32 %v1820, 0.044715
        %v1885 = vmul.f32 %v1821, 0.044715
        %v1886 = vmul.f32 %v1822, 0.044715
        %v1887 = vmul.f32 %v1823, 0.044715
        %v1888 = vmul.f32 %v1824, 0.044715
        %v1889 = vmul.f32 %v1825, 0.044715
        %v1890 = vmul.f32 %v1826, 0.044715
        %v1891 = vmul.f32 %v1827, 0.044715
        %v1892 = vmul.f32 %v1828, 0.044715
        %v1893 = vmul.f32 %v1829, 0.044715
        %v1894 = vmul.f32 %v1830, 0.044715
        %v1895 = vmul.f32 %v1831, 0.044715
        %v1896 = vmul.f32 %v1832, 0.044715
        %v1897 = vmul.f32 %v1833, 0.044715
        %v1898 = vmul.f32 %v1834, 0.044715
        %v1899 = vmul.f32 %v1835, 0.044715
        %v1900 = vmul.f32 %v1836, 0.044715
        %v1901 = vmul.f32 %v1837, 0.044715
        %v1902 = vmul.f32 %v1838, 0.044715
        %v1903 = vmul.f32 %v1839, 0.044715
        %v1904 = vmul.f32 %v1840, 0.044715
        %v1905 = vmul.f32 %v1841, 0.044715
        %v1906 = vmul.f32 %v1842, 0.044715
        %v1907 = vmul.f32 %v1843, 0.044715
        %v1908 = vmul.f32 %v1844, 0.044715
        %v1909 = vmul.f32 %v1845, 0.044715
        %v1910 = vmul.f32 %v1846, 0.044715
        %v1911 = vmul.f32 %v1847, 0.044715
        %v1912 = vmul.f32 %v1848, 0.044715
        %v1913 = vmul.f32 %v1849, 0.044715
        %v1914 = vmul.f32 %v1850, 0.044715
        %v1915 = vmul.f32 %v1851, 0.044715
        %v1916 = vadd.f32 %v1533, %v1852
        %v1917 = vadd.f32 %v1535, %v1853
        %v1918 = vadd.f32 %v1646, %v1854
        %v1919 = vadd.f32 %v1648, %v1855
        %v1920 = vadd.f32 %v1537, %v1856
        %v1921 = vadd.f32 %v1539, %v1857
        %v1922 = vadd.f32 %v1650, %v1858
        %v1923 = vadd.f32 %v1652, %v1859
        %v1924 = vadd.f32 %v1543, %v1860
        %v1925 = vadd.f32 %v1545, %v1861
        %v1926 = vadd.f32 %v1656, %v1862
        %v1927 = vadd.f32 %v1658, %v1863
        %v1928 = vadd.f32 %v1547, %v1864
        %v1929 = vadd.f32 %v1549, %v1865
        %v1930 = vadd.f32 %v1660, %v1866
        %v1931 = vadd.f32 %v1662, %v1867
        %v1932 = vadd.f32 %v1553, %v1868
        %v1933 = vadd.f32 %v1555, %v1869
        %v1934 = vadd.f32 %v1666, %v1870
        %v1935 = vadd.f32 %v1668, %v1871
        %v1936 = vadd.f32 %v1557, %v1872
        %v1937 = vadd.f32 %v1559, %v1873
        %v1938 = vadd.f32 %v1670, %v1874
        %v1939 = vadd.f32 %v1672, %v1875
        %v1940 = vadd.f32 %v1563, %v1876
        %v1941 = vadd.f32 %v1565, %v1877
        %v1942 = vadd.f32 %v1676, %v1878
        %v1943 = vadd.f32 %v1678, %v1879
        %v1944 = vadd.f32 %v1567, %v1880
        %v1945 = vadd.f32 %v1569, %v1881
        %v1946 = vadd.f32 %v1680, %v1882
        %v1947 = vadd.f32 %v1682, %v1883
        %v1948 = vadd.f32 %v1573, %v1884
        %v1949 = vadd.f32 %v1575, %v1885
        %v1950 = vadd.f32 %v1686, %v1886
        %v1951 = vadd.f32 %v1688, %v1887
        %v1952 = vadd.f32 %v1577, %v1888
        %v1953 = vadd.f32 %v1579, %v1889
        %v1954 = vadd.f32 %v1690, %v1890
        %v1955 = vadd.f32 %v1692, %v1891
        %v1956 = vadd.f32 %v1583, %v1892
        %v1957 = vadd.f32 %v1585, %v1893
        %v1958 = vadd.f32 %v1696, %v1894
        %v1959 = vadd.f32 %v1698, %v1895
        %v1960 = vadd.f32 %v1587, %v1896
        %v1961 = vadd.f32 %v1589, %v1897
        %v1962 = vadd.f32 %v1700, %v1898
        %v1963 = vadd.f32 %v1702, %v1899
        %v1964 = vadd.f32 %v1593, %v1900
        %v1965 = vadd.f32 %v1595, %v1901
        %v1966 = vadd.f32 %v1706, %v1902
        %v1967 = vadd.f32 %v1708, %v1903
        %v1968 = vadd.f32 %v1597, %v1904
        %v1969 = vadd.f32 %v1599, %v1905
        %v1970 = vadd.f32 %v1710, %v1906
        %v1971 = vadd.f32 %v1712, %v1907
        %v1972 = vadd.f32 %v1603, %v1908
        %v1973 = vadd.f32 %v1605, %v1909
        %v1974 = vadd.f32 %v1716, %v1910
        %v1975 = vadd.f32 %v1718, %v1911
        %v1976 = vadd.f32 %v1607, %v1912
        %v1977 = vadd.f32 %v1609, %v1913
        %v1978 = vadd.f32 %v1720, %v1914
        %v1979 = vadd.f32 %v1722, %v1915
        %v1980 = vmul.f32 %v1916, 0.7978846
        %v1981 = vmul.f32 %v1917, 0.7978846
        %v1982 = vmul.f32 %v1918, 0.7978846
        %v1983 = vmul.f32 %v1919, 0.7978846
        %v1984 = vmul.f32 %v1920, 0.7978846
        %v1985 = vmul.f32 %v1921, 0.7978846
        %v1986 = vmul.f32 %v1922, 0.7978846
        %v1987 = vmul.f32 %v1923, 0.7978846
        %v1988 = vmul.f32 %v1924, 0.7978846
        %v1989 = vmul.f32 %v1925, 0.7978846
        %v1990 = vmul.f32 %v1926, 0.7978846
        %v1991 = vmul.f32 %v1927, 0.7978846
        %v1992 = vmul.f32 %v1928, 0.7978846
        %v1993 = vmul.f32 %v1929, 0.7978846
        %v1994 = vmul.f32 %v1930, 0.7978846
        %v1995 = vmul.f32 %v1931, 0.7978846
        %v1996 = vmul.f32 %v1932, 0.7978846
        %v1997 = vmul.f32 %v1933, 0.7978846
        %v1998 = vmul.f32 %v1934, 0.7978846
        %v1999 = vmul.f32 %v1935, 0.7978846
        %v2000 = vmul.f32 %v1936, 0.7978846
        %v2001 = vmul.f32 %v1937, 0.7978846
        %v2002 = vmul.f32 %v1938, 0.7978846
        %v2003 = vmul.f32 %v1939, 0.7978846
        %v2004 = vmul.f32 %v1940, 0.7978846
        %v2005 = vmul.f32 %v1941, 0.7978846
        %v2006 = vmul.f32 %v1942, 0.7978846
        %v2007 = vmul.f32 %v1943, 0.7978846
        %v2008 = vmul.f32 %v1944, 0.7978846
        %v2009 = vmul.f32 %v1945, 0.7978846
        %v2010 = vmul.f32 %v1946, 0.7978846
        %v2011 = vmul.f32 %v1947, 0.7978846
        %v2012 = vmul.f32 %v1948, 0.7978846
        %v2013 = vmul.f32 %v1949, 0.7978846
        %v2014 = vmul.f32 %v1950, 0.7978846
        %v2015 = vmul.f32 %v1951, 0.7978846
        %v2016 = vmul.f32 %v1952, 0.7978846
        %v2017 = vmul.f32 %v1953, 0.7978846
        %v2018 = vmul.f32 %v1954, 0.7978846
        %v2019 = vmul.f32 %v1955, 0.7978846
        %v2020 = vmul.f32 %v1956, 0.7978846
        %v2021 = vmul.f32 %v1957, 0.7978846
        %v2022 = vmul.f32 %v1958, 0.7978846
        %v2023 = vmul.f32 %v1959, 0.7978846
        %v2024 = vmul.f32 %v1960, 0.7978846
        %v2025 = vmul.f32 %v1961, 0.7978846
        %v2026 = vmul.f32 %v1962, 0.7978846
        %v2027 = vmul.f32 %v1963, 0.7978846
        %v2028 = vmul.f32 %v1964, 0.7978846
        %v2029 = vmul.f32 %v1965, 0.7978846
        %v2030 = vmul.f32 %v1966, 0.7978846
        %v2031 = vmul.f32 %v1967, 0.7978846
        %v2032 = vmul.f32 %v1968, 0.7978846
        %v2033 = vmul.f32 %v1969, 0.7978846
        %v2034 = vmul.f32 %v1970, 0.7978846
        %v2035 = vmul.f32 %v1971, 0.7978846
        %v2036 = vmul.f32 %v1972, 0.7978846
        %v2037 = vmul.f32 %v1973, 0.7978846
        %v2038 = vmul.f32 %v1974, 0.7978846
        %v2039 = vmul.f32 %v1975, 0.7978846
        %v2040 = vmul.f32 %v1976, 0.7978846
        %v2041 = vmul.f32 %v1977, 0.7978846
        %v2042 = vmul.f32 %v1978, 0.7978846
        %v2043 = vmul.f32 %v1979, 0.7978846
        %v2044 = vtanh.pop %v1980
        %v2045 = vtanh.pop %v1981
        %v2046 = vtanh.pop %v1982
        %v2047 = vtanh.pop %v1983
        %v2048 = vtanh.pop %v1984
        %v2049 = vtanh.pop %v1985
        %v2050 = vtanh.pop %v1986
        %v2051 = vtanh.pop %v1987
        %v2052 = vtanh.pop %v1988
        %v2053 = vtanh.pop %v1989
        %v2054 = vtanh.pop %v1990
        %v2055 = vtanh.pop %v1991
        %v2056 = vtanh.pop %v1992
        %v2057 = vtanh.pop %v1993
        %v2058 = vtanh.pop %v1994
        %v2059 = vtanh.pop %v1995
        %v2060 = vtanh.pop %v1996
        %v2061 = vtanh.pop %v1997
        %v2062 = vtanh.pop %v1998
        %v2063 = vtanh.pop %v1999
        %v2064 = vtanh.pop %v2000
        %v2065 = vtanh.pop %v2001
        %v2066 = vtanh.pop %v2002
        %v2067 = vtanh.pop %v2003
        %v2068 = vtanh.pop %v2004
        %v2069 = vtanh.pop %v2005
        %v2070 = vtanh.pop %v2006
        %v2071 = vtanh.pop %v2007
        %v2072 = vtanh.pop %v2008
        %v2073 = vtanh.pop %v2009
        %v2074 = vtanh.pop %v2010
        %v2075 = vtanh.pop %v2011
        %v2076 = vtanh.pop %v2012
        %v2077 = vtanh.pop %v2013
        %v2078 = vtanh.pop %v2014
        %v2079 = vtanh.pop %v2015
        %v2080 = vtanh.pop %v2016
        %v2081 = vtanh.pop %v2017
        %v2082 = vtanh.pop %v2018
        %v2083 = vtanh.pop %v2019
        %v2084 = vtanh.pop %v2020
        %v2085 = vtanh.pop %v2021
        %v2086 = vtanh.pop %v2022
        %v2087 = vtanh.pop %v2023
        %v2088 = vtanh.pop %v2024
        %v2089 = vtanh.pop %v2025
        %v2090 = vtanh.pop %v2026
        %v2091 = vtanh.pop %v2027
        %v2092 = vtanh.pop %v2028
        %v2093 = vtanh.pop %v2029
        %v2094 = vtanh.pop %v2030
        %v2095 = vtanh.pop %v2031
        %v2096 = vtanh.pop %v2032
        %v2097 = vtanh.pop %v2033
        %v2098 = vtanh.pop %v2034
        %v2099 = vtanh.pop %v2035
        %v2100 = vtanh.pop %v2036
        %v2101 = vtanh.pop %v2037
        %v2102 = vtanh.pop %v2038
        %v2103 = vtanh.pop %v2039
        %v2104 = vtanh.pop %v2040
        %v2105 = vtanh.pop %v2041
        %v2106 = vtanh.pop %v2042
        %v2107 = vtanh.pop %v2043
        %v2108 = vadd.f32 %v2044, 1.0
        %v2109 = vadd.f32 %v2045, 1.0
        %v2110 = vadd.f32 %v2046, 1.0
        %v2111 = vadd.f32 %v2047, 1.0
        %v2112 = vadd.f32 %v2048, 1.0
        %v2113 = vadd.f32 %v2049, 1.0
        %v2114 = vadd.f32 %v2050, 1.0
        %v2115 = vadd.f32 %v2051, 1.0
        %v2116 = vadd.f32 %v2052, 1.0
        %v2117 = vadd.f32 %v2053, 1.0
        %v2118 = vadd.f32 %v2054, 1.0
        %v2119 = vadd.f32 %v2055, 1.0
        %v2120 = vadd.f32 %v2056, 1.0
        %v2121 = vadd.f32 %v2057, 1.0
        %v2122 = vadd.f32 %v2058, 1.0
        %v2123 = vadd.f32 %v2059, 1.0
        %v2124 = vadd.f32 %v2060, 1.0
        %v2125 = vadd.f32 %v2061, 1.0
        %v2126 = vadd.f32 %v2062, 1.0
        %v2127 = vadd.f32 %v2063, 1.0
        %v2128 = vadd.f32 %v2064, 1.0
        %v2129 = vadd.f32 %v2065, 1.0
        %v2130 = vadd.f32 %v2066, 1.0
        %v2131 = vadd.f32 %v2067, 1.0
        %v2132 = vadd.f32 %v2068, 1.0
        %v2133 = vadd.f32 %v2069, 1.0
        %v2134 = vadd.f32 %v2070, 1.0
        %v2135 = vadd.f32 %v2071, 1.0
        %v2136 = vadd.f32 %v2072, 1.0
        %v2137 = vadd.f32 %v2073, 1.0
        %v2138 = vadd.f32 %v2074, 1.0
        %v2139 = vadd.f32 %v2075, 1.0
        %v2140 = vadd.f32 %v2076, 1.0
        %v2141 = vadd.f32 %v2077, 1.0
        %v2142 = vadd.f32 %v2078, 1.0
        %v2143 = vadd.f32 %v2079, 1.0
        %v2144 = vadd.f32 %v2080, 1.0
        %v2145 = vadd.f32 %v2081, 1.0
        %v2146 = vadd.f32 %v2082, 1.0
        %v2147 = vadd.f32 %v2083, 1.0
        %v2148 = vadd.f32 %v2084, 1.0
        %v2149 = vadd.f32 %v2085, 1.0
        %v2150 = vadd.f32 %v2086, 1.0
        %v2151 = vadd.f32 %v2087, 1.0
        %v2152 = vadd.f32 %v2088, 1.0
        %v2153 = vadd.f32 %v2089, 1.0
        %v2154 = vadd.f32 %v2090, 1.0
        %v2155 = vadd.f32 %v2091, 1.0
        %v2156 = vadd.f32 %v2092, 1.0
        %v2157 = vadd.f32 %v2093, 1.0
        %v2158 = vadd.f32 %v2094, 1.0
        %v2159 = vadd.f32 %v2095, 1.0
        %v2160 = vadd.f32 %v2096, 1.0
        %v2161 = vadd.f32 %v2097, 1.0
        %v2162 = vadd.f32 %v2098, 1.0
        %v2163 = vadd.f32 %v2099, 1.0
        %v2164 = vadd.f32 %v2100, 1.0
        %v2165 = vadd.f32 %v2101, 1.0
        %v2166 = vadd.f32 %v2102, 1.0
        %v2167 = vadd.f32 %v2103, 1.0
        %v2168 = vadd.f32 %v2104, 1.0
        %v2169 = vadd.f32 %v2105, 1.0
        %v2170 = vadd.f32 %v2106, 1.0
        %v2171 = vadd.f32 %v2107, 1.0
        %v2172 = vmul.f32 %v2108, 0.5
        %v2173 = vmul.f32 %v2109, 0.5
        %v2174 = vmul.f32 %v2110, 0.5
        %v2175 = vmul.f32 %v2111, 0.5
        %v2176 = vmul.f32 %v2112, 0.5
        %v2177 = vmul.f32 %v2113, 0.5
        %v2178 = vmul.f32 %v2114, 0.5
        %v2179 = vmul.f32 %v2115, 0.5
        %v2180 = vmul.f32 %v2116, 0.5
        %v2181 = vmul.f32 %v2117, 0.5
        %v2182 = vmul.f32 %v2118, 0.5
        %v2183 = vmul.f32 %v2119, 0.5
        %v2184 = vmul.f32 %v2120, 0.5
        %v2185 = vmul.f32 %v2121, 0.5
        %v2186 = vmul.f32 %v2122, 0.5
        %v2187 = vmul.f32 %v2123, 0.5
        %v2188 = vmul.f32 %v2124, 0.5
        %v2189 = vmul.f32 %v2125, 0.5
        %v2190 = vmul.f32 %v2126, 0.5
        %v2191 = vmul.f32 %v2127, 0.5
        %v2192 = vmul.f32 %v2128, 0.5
        %v2193 = vmul.f32 %v2129, 0.5
        %v2194 = vmul.f32 %v2130, 0.5
        %v2195 = vmul.f32 %v2131, 0.5
        %v2196 = vmul.f32 %v2132, 0.5
        %v2197 = vmul.f32 %v2133, 0.5
        %v2198 = vmul.f32 %v2134, 0.5
        %v2199 = vmul.f32 %v2135, 0.5
        %v2200 = vmul.f32 %v2136, 0.5
        %v2201 = vmul.f32 %v2137, 0.5
        %v2202 = vmul.f32 %v2138, 0.5
        %v2203 = vmul.f32 %v2139, 0.5
        %v2204 = vmul.f32 %v2140, 0.5
        %v2205 = vmul.f32 %v2141, 0.5
        %v2206 = vmul.f32 %v2142, 0.5
        %v2207 = vmul.f32 %v2143, 0.5
        %v2208 = vmul.f32 %v2144, 0.5
        %v2209 = vmul.f32 %v2145, 0.5
        %v2210 = vmul.f32 %v2146, 0.5
        %v2211 = vmul.f32 %v2147, 0.5
        %v2212 = vmul.f32 %v2148, 0.5
        %v2213 = vmul.f32 %v2149, 0.5
        %v2214 = vmul.f32 %v2150, 0.5
        %v2215 = vmul.f32 %v2151, 0.5
        %v2216 = vmul.f32 %v2152, 0.5
        %v2217 = vmul.f32 %v2153, 0.5
        %v2218 = vmul.f32 %v2154, 0.5
        %v2219 = vmul.f32 %v2155, 0.5
        %v2220 = vmul.f32 %v2156, 0.5
        %v2221 = vmul.f32 %v2157, 0.5
        %v2222 = vmul.f32 %v2158, 0.5
        %v2223 = vmul.f32 %v2159, 0.5
        %v2224 = vmul.f32 %v2160, 0.5
        %v2225 = vmul.f32 %v2161, 0.5
        %v2226 = vmul.f32 %v2162, 0.5
        %v2227 = vmul.f32 %v2163, 0.5
        %v2228 = vmul.f32 %v2164, 0.5
        %v2229 = vmul.f32 %v2165, 0.5
        %v2230 = vmul.f32 %v2166, 0.5
        %v2231 = vmul.f32 %v2167, 0.5
        %v2232 = vmul.f32 %v2168, 0.5
        %v2233 = vmul.f32 %v2169, 0.5
        %v2234 = vmul.f32 %v2170, 0.5
        %v2235 = vmul.f32 %v2171, 0.5
        %v2236 = vmul.f32 %v1533, %v2172
        %v2237 = vmul.f32 %v1535, %v2173
        %v2238 = vmul.f32 %v1646, %v2174
        %v2239 = vmul.f32 %v1648, %v2175
        %v2240 = vmul.f32 %v1537, %v2176
        %v2241 = vmul.f32 %v1539, %v2177
        %v2242 = vmul.f32 %v1650, %v2178
        %v2243 = vmul.f32 %v1652, %v2179
        %v2244 = vmul.f32 %v1543, %v2180
        %v2245 = vmul.f32 %v1545, %v2181
        %v2246 = vmul.f32 %v1656, %v2182
        %v2247 = vmul.f32 %v1658, %v2183
        %v2248 = vmul.f32 %v1547, %v2184
        %v2249 = vmul.f32 %v1549, %v2185
        %v2250 = vmul.f32 %v1660, %v2186
        %v2251 = vmul.f32 %v1662, %v2187
        %v2252 = vmul.f32 %v1553, %v2188
        %v2253 = vmul.f32 %v1555, %v2189
        %v2254 = vmul.f32 %v1666, %v2190
        %v2255 = vmul.f32 %v1668, %v2191
        %v2256 = vmul.f32 %v1557, %v2192
        %v2257 = vmul.f32 %v1559, %v2193
        %v2258 = vmul.f32 %v1670, %v2194
        %v2259 = vmul.f32 %v1672, %v2195
        %v2260 = vmul.f32 %v1563, %v2196
        %v2261 = vmul.f32 %v1565, %v2197
        %v2262 = vmul.f32 %v1676, %v2198
        %v2263 = vmul.f32 %v1678, %v2199
        %v2264 = vmul.f32 %v1567, %v2200
        %v2265 = vmul.f32 %v1569, %v2201
        %v2266 = vmul.f32 %v1680, %v2202
        %v2267 = vmul.f32 %v1682, %v2203
        %v2268 = vmul.f32 %v1573, %v2204
        %v2269 = vmul.f32 %v1575, %v2205
        %v2270 = vmul.f32 %v1686, %v2206
        %v2271 = vmul.f32 %v1688, %v2207
        %v2272 = vmul.f32 %v1577, %v2208
        %v2273 = vmul.f32 %v1579, %v2209
        %v2274 = vmul.f32 %v1690, %v2210
        %v2275 = vmul.f32 %v1692, %v2211
        %v2276 = vmul.f32 %v1583, %v2212
        %v2277 = vmul.f32 %v1585, %v2213
        %v2278 = vmul.f32 %v1696, %v2214
        %v2279 = vmul.f32 %v1698, %v2215
        %v2280 = vmul.f32 %v1587, %v2216
        %v2281 = vmul.f32 %v1589, %v2217
        %v2282 = vmul.f32 %v1700, %v2218
        %v2283 = vmul.f32 %v1702, %v2219
        %v2284 = vmul.f32 %v1593, %v2220
        %v2285 = vmul.f32 %v1595, %v2221
        %v2286 = vmul.f32 %v1706, %v2222
        %v2287 = vmul.f32 %v1708, %v2223
        %v2288 = vmul.f32 %v1597, %v2224
        %v2289 = vmul.f32 %v1599, %v2225
        %v2290 = vmul.f32 %v1710, %v2226
        %v2291 = vmul.f32 %v1712, %v2227
        %v2292 = vmul.f32 %v1603, %v2228
        %v2293 = vmul.f32 %v1605, %v2229
        %v2294 = vmul.f32 %v1716, %v2230
        %v2295 = vmul.f32 %v1718, %v2231
        %v2296 = vmul.f32 %v1607, %v2232
        %v2297 = vmul.f32 %v1609, %v2233
        %v2298 = vmul.f32 %v1720, %v2234
        %v2299 = vmul.f32 %v1722, %v2235
        %v2300 = vpack.c.bf16 %v2240, %v2236
        %v2301 = vpack.c.bf16 %v2241, %v2237
        %v2302 = vpack.c.bf16 %v2242, %v2238
        %v2303 = vpack.c.bf16 %v2243, %v2239
        %v2304 = vpack.c.bf16 %v2248, %v2244
        %v2305 = vpack.c.bf16 %v2249, %v2245
        %v2306 = vpack.c.bf16 %v2250, %v2246
        %v2307 = vpack.c.bf16 %v2251, %v2247
        %v2308 = vpack.c.bf16 %v2256, %v2252
        %v2309 = vpack.c.bf16 %v2257, %v2253
        %v2310 = vpack.c.bf16 %v2258, %v2254
        %v2311 = vpack.c.bf16 %v2259, %v2255
        %v2312 = vpack.c.bf16 %v2264, %v2260
        %v2313 = vpack.c.bf16 %v2265, %v2261
        %v2314 = vpack.c.bf16 %v2266, %v2262
        %v2315 = vpack.c.bf16 %v2267, %v2263
        %v2316 = vpack.c.bf16 %v2272, %v2268
        %v2317 = vpack.c.bf16 %v2273, %v2269
        %v2318 = vpack.c.bf16 %v2274, %v2270
        %v2319 = vpack.c.bf16 %v2275, %v2271
        %v2320 = vpack.c.bf16 %v2280, %v2276
        %v2321 = vpack.c.bf16 %v2281, %v2277
        %v2322 = vpack.c.bf16 %v2282, %v2278
        %v2323 = vpack.c.bf16 %v2283, %v2279
        %v2324 = vpack.c.bf16 %v2288, %v2284
        %v2325 = vpack.c.bf16 %v2289, %v2285
        %v2326 = vpack.c.bf16 %v2290, %v2286
        %v2327 = vpack.c.bf16 %v2291, %v2287
        %v2328 = vpack.c.bf16 %v2296, %v2292
        %v2329 = vpack.c.bf16 %v2297, %v2293
        %v2330 = vpack.c.bf16 %v2298, %v2294
        %v2331 = vpack.c.bf16 %v2299, %v2295
        %v2332 = vld [vmem:[#allocation12] sm:$0xf]
        %v2333 = vld [vmem:[#allocation12 + $0x4] sm:$0xf]
        %v2334 = vld [vmem:[#allocation12 + $0x8] sm:$0xf]
        %v2335 = vld [vmem:[#allocation12 + $0xc] sm:$0xf]
        %v2336 = vld [vmem:[#allocation12 + $0x10] sm:$0xf]
        %v2337 = vld [vmem:[#allocation12 + $0x14] sm:$0xf]
        %v2338 = vld [vmem:[#allocation12 + $0x18] sm:$0xf]
        %v2339 = vld [vmem:[#allocation12 + $0x1c] sm:$0xf]
        %v2340 = vld [vmem:[#allocation12 + $0x20] sm:$0xf]
        %v2341 = vld [vmem:[#allocation12 + $0x24] sm:$0xf]
        %v2342 = vld [vmem:[#allocation12 + $0x28] sm:$0xf]
        %v2343 = vld [vmem:[#allocation12 + $0x2c] sm:$0xf]
        %v2344 = vld [vmem:[#allocation12 + $0x30] sm:$0xf]
        %v2345 = vld [vmem:[#allocation12 + $0x34] sm:$0xf]
        %v2346 = vld [vmem:[#allocation12 + $0x38] sm:$0xf]
        %v2347 = vld [vmem:[#allocation12 + $0x3c] sm:$0xf]
        %v2348 = vld [vmem:[#allocation12 + $0x40] sm:$0xf]
        %v2349 = vld [vmem:[#allocation12 + $0x44] sm:$0xf]
        %v2350 = vld [vmem:[#allocation12 + $0x48] sm:$0xf]
        %v2351 = vld [vmem:[#allocation12 + $0x4c] sm:$0xf]
        %v2352 = vld [vmem:[#allocation12 + $0x50] sm:$0xf]
        %v2353 = vld [vmem:[#allocation12 + $0x54] sm:$0xf]
        %v2354 = vld [vmem:[#allocation12 + $0x58] sm:$0xf]
        %v2355 = vld [vmem:[#allocation12 + $0x5c] sm:$0xf]
        %v2356 = vld [vmem:[#allocation12 + $0x60] sm:$0xf]
        %v2357 = vld [vmem:[#allocation12 + $0x64] sm:$0xf]
        %v2358 = vld [vmem:[#allocation12 + $0x68] sm:$0xf]
        %v2359 = vld [vmem:[#allocation12 + $0x6c] sm:$0xf]
        %v2360 = vld [vmem:[#allocation12 + $0x70] sm:$0xf]
        %v2361 = vld [vmem:[#allocation12 + $0x74] sm:$0xf]
        %v2362 = vld [vmem:[#allocation12 + $0x78] sm:$0xf]
        %v2363 = vld [vmem:[#allocation12 + $0x7c] sm:$0xf]
        %v2364 = vld [vmem:[#allocation12 + $0x80] sm:$0xf]
        %v2365 = vld [vmem:[#allocation12 + $0x84] sm:$0xf]
        %v2366 = vld [vmem:[#allocation12 + $0x88] sm:$0xf]
        %v2367 = vld [vmem:[#allocation12 + $0x8c] sm:$0xf]
        %v2368 = vld [vmem:[#allocation12 + $0x90] sm:$0xf]
        %v2369 = vld [vmem:[#allocation12 + $0x94] sm:$0xf]
        %v2370 = vld [vmem:[#allocation12 + $0x98] sm:$0xf]
        %v2371 = vld [vmem:[#allocation12 + $0x9c] sm:$0xf]
        %v2372 = vld [vmem:[#allocation12 + $0xa0] sm:$0xf]
        %v2373 = vld [vmem:[#allocation12 + $0xa4] sm:$0xf]
        %v2374 = vld [vmem:[#allocation12 + $0xa8] sm:$0xf]
        %v2375 = vld [vmem:[#allocation12 + $0xac] sm:$0xf]
        %v2376 = vld [vmem:[#allocation12 + $0xb0] sm:$0xf]
        %v2377 = vld [vmem:[#allocation12 + $0xb4] sm:$0xf]
        %v2378 = vld [vmem:[#allocation12 + $0xb8] sm:$0xf]
        %v2379 = vld [vmem:[#allocation12 + $0xbc] sm:$0xf]
        %v2380 = vld [vmem:[#allocation12 + $0xc0] sm:$0xf]
        %v2381 = vld [vmem:[#allocation12 + $0xc4] sm:$0xf]
        %v2382 = vld [vmem:[#allocation12 + $0xc8] sm:$0xf]
        %v2383 = vld [vmem:[#allocation12 + $0xcc] sm:$0xf]
        %v2384 = vld [vmem:[#allocation12 + $0xd0] sm:$0xf]
        %v2385 = vld [vmem:[#allocation12 + $0xd4] sm:$0xf]
        %v2386 = vld [vmem:[#allocation12 + $0xd8] sm:$0xf]
        %v2387 = vld [vmem:[#allocation12 + $0xdc] sm:$0xf]
        %v2388 = vld [vmem:[#allocation12 + $0xe0] sm:$0xf]
        %v2389 = vld [vmem:[#allocation12 + $0xe4] sm:$0xf]
        %v2390 = vld [vmem:[#allocation12 + $0xe8] sm:$0xf]
        %v2391 = vld [vmem:[#allocation12 + $0xec] sm:$0xf]
        %v2392 = vld [vmem:[#allocation12 + $0xf0] sm:$0xf]
        %v2393 = vld [vmem:[#allocation12 + $0xf4] sm:$0xf]
        %v2394 = vld [vmem:[#allocation12 + $0xf8] sm:$0xf]
        %v2395 = vld [vmem:[#allocation12 + $0xfc] sm:$0xf]
        %v2396 = vld [vmem:[%s10] sm:$0x1]
        %v2398 = vlaneseq
        %v2399 = vshrl.u32 %v2398, 7
        %v2400 = vsub.s32 0, %v2399
        %v2401 = vrot.slane %v2396, %v2400
        %v2467 = vunpack.c.l.b16 %v2332
        %v2468 = vunpack.c.l.b16 %v2333
        %v2469 = vunpack.c.l.b16 %v2334
        %v2470 = vunpack.c.l.b16 %v2335
        %v2471 = vunpack.c.l.b16 %v2336
        %v2472 = vunpack.c.l.b16 %v2337
        %v2473 = vunpack.c.l.b16 %v2338
        %v2474 = vunpack.c.l.b16 %v2339
        %v2475 = vunpack.c.l.b16 %v2340
        %v2476 = vunpack.c.l.b16 %v2341
        %v2477 = vunpack.c.l.b16 %v2342
        %v2478 = vunpack.c.l.b16 %v2343
        %v2479 = vunpack.c.l.b16 %v2344
        %v2480 = vunpack.c.l.b16 %v2345
        %v2481 = vunpack.c.l.b16 %v2346
        %v2482 = vunpack.c.l.b16 %v2347
        %v2483 = vunpack.c.l.b16 %v2348
        %v2484 = vunpack.c.l.b16 %v2349
        %v2485 = vunpack.c.l.b16 %v2350
        %v2486 = vunpack.c.l.b16 %v2351
        %v2487 = vunpack.c.l.b16 %v2352
        %v2488 = vunpack.c.l.b16 %v2353
        %v2489 = vunpack.c.l.b16 %v2354
        %v2490 = vunpack.c.l.b16 %v2355
        %v2491 = vunpack.c.l.b16 %v2356
        %v2492 = vunpack.c.l.b16 %v2357
        %v2493 = vunpack.c.l.b16 %v2358
        %v2494 = vunpack.c.l.b16 %v2359
        %v2495 = vunpack.c.l.b16 %v2360
        %v2496 = vunpack.c.l.b16 %v2361
        %v2497 = vunpack.c.l.b16 %v2362
        %v2498 = vunpack.c.l.b16 %v2363
        %v2499 = vunpack.c.l.b16 %v2364
        %v2500 = vunpack.c.l.b16 %v2365
        %v2501 = vunpack.c.l.b16 %v2366
        %v2502 = vunpack.c.l.b16 %v2367
        %v2503 = vunpack.c.l.b16 %v2368
        %v2504 = vunpack.c.l.b16 %v2369
        %v2505 = vunpack.c.l.b16 %v2370
        %v2506 = vunpack.c.l.b16 %v2371
        %v2507 = vunpack.c.l.b16 %v2372
        %v2508 = vunpack.c.l.b16 %v2373
        %v2509 = vunpack.c.l.b16 %v2374
        %v2510 = vunpack.c.l.b16 %v2375
        %v2511 = vunpack.c.l.b16 %v2376
        %v2512 = vunpack.c.l.b16 %v2377
        %v2513 = vunpack.c.l.b16 %v2378
        %v2514 = vunpack.c.l.b16 %v2379
        %v2515 = vunpack.c.l.b16 %v2380
        %v2516 = vunpack.c.l.b16 %v2381
        %v2517 = vunpack.c.l.b16 %v2382
        %v2518 = vunpack.c.l.b16 %v2383
        %v2519 = vunpack.c.l.b16 %v2384
        %v2520 = vunpack.c.l.b16 %v2385
        %v2521 = vunpack.c.l.b16 %v2386
        %v2522 = vunpack.c.l.b16 %v2387
        %v2523 = vunpack.c.l.b16 %v2388
        %v2524 = vunpack.c.l.b16 %v2389
        %v2525 = vunpack.c.l.b16 %v2390
        %v2526 = vunpack.c.l.b16 %v2391
        %v2527 = vunpack.c.l.b16 %v2392
        %v2528 = vunpack.c.l.b16 %v2393
        %v2529 = vunpack.c.l.b16 %v2394
        %v2530 = vunpack.c.l.b16 %v2395
        %v2531 = vpack.c.b16 %v2468, %v2467
        %v2532 = vpack.c.b16 %v2470, %v2469
        %v2533 = vpack.c.b16 %v2472, %v2471
        %v2534 = vpack.c.b16 %v2474, %v2473
        %v2535 = vpack.c.b16 %v2476, %v2475
        %v2536 = vpack.c.b16 %v2478, %v2477
        %v2537 = vpack.c.b16 %v2480, %v2479
        %v2538 = vpack.c.b16 %v2482, %v2481
        %v2539 = vpack.c.b16 %v2484, %v2483
        %v2540 = vpack.c.b16 %v2486, %v2485
        %v2541 = vpack.c.b16 %v2488, %v2487
        %v2542 = vpack.c.b16 %v2490, %v2489
        %v2543 = vpack.c.b16 %v2492, %v2491
        %v2544 = vpack.c.b16 %v2494, %v2493
        %v2545 = vpack.c.b16 %v2496, %v2495
        %v2546 = vpack.c.b16 %v2498, %v2497
        %v2547 = vpack.c.b16 %v2500, %v2499
        %v2548 = vpack.c.b16 %v2502, %v2501
        %v2549 = vpack.c.b16 %v2504, %v2503
        %v2550 = vpack.c.b16 %v2506, %v2505
        %v2551 = vpack.c.b16 %v2508, %v2507
        %v2552 = vpack.c.b16 %v2510, %v2509
        %v2553 = vpack.c.b16 %v2512, %v2511
        %v2554 = vpack.c.b16 %v2514, %v2513
        %v2555 = vpack.c.b16 %v2516, %v2515
        %v2556 = vpack.c.b16 %v2518, %v2517
        %v2557 = vpack.c.b16 %v2520, %v2519
        %v2558 = vpack.c.b16 %v2522, %v2521
        %v2559 = vpack.c.b16 %v2524, %v2523
        %v2560 = vpack.c.b16 %v2526, %v2525
        %v2561 = vpack.c.b16 %v2528, %v2527
        %v2562 = vpack.c.b16 %v2530, %v2529
        %2595 = vmatprep.subr.bf16.mxu0 0
        %2596 = vmatpush1.bf16.msra.mxu0 %v2538
        %2597 = vmatprep.subr.bf16.mxu0 0
        %2598 = vmatpush1.bf16.msra.mxu0 %v2537
        %2599 = vmatprep.subr.bf16.mxu0 0
        %2600 = vmatpush1.bf16.msra.mxu0 %v2536
        %2601 = vmatprep.subr.bf16.mxu0 0
        %2602 = vmatpush1.bf16.msra.mxu0 %v2535
        %2603 = vmatprep.subr.bf16.mxu0 0
        %2604 = vmatpush1.bf16.msra.mxu0 %v2534
        %2605 = vmatprep.subr.bf16.mxu0 0
        %2606 = vmatpush1.bf16.msra.mxu0 %v2533
        %2607 = vmatprep.subr.bf16.mxu0 0
        %2608 = vmatpush1.bf16.msra.mxu0 %v2532
        %2609 = vmatprep.subr.bf16.mxu0 0
        %2610 = vmatpush1.bf16.msra.mxu0 %v2531
        %2611 = vmatprep.subr.bf16.mxu0 0
        %2612 = vmatpush2.bf16.msra.mxu0 %v2546
        %2613 = vmatprep.subr.bf16.mxu0 0
        %2614 = vmatpush2.bf16.msra.mxu0 %v2545
        %2615 = vmatprep.subr.bf16.mxu0 0
        %2616 = vmatpush2.bf16.msra.mxu0 %v2544
        %2617 = vmatprep.subr.bf16.mxu0 0
        %2618 = vmatpush2.bf16.msra.mxu0 %v2543
        %2619 = vmatprep.subr.bf16.mxu0 0
        %2620 = vmatpush2.bf16.msra.mxu0 %v2542
        %2621 = vmatprep.subr.bf16.mxu0 0
        %2622 = vmatpush2.bf16.msra.mxu0 %v2541
        %2623 = vmatprep.subr.bf16.mxu0 0
        %2624 = vmatpush2.bf16.msra.mxu0 %v2540
        %2625 = vmatprep.subr.bf16.mxu0 0
        %2626 = vmatpush2.bf16.msra.mxu0 %v2539
        %2627 = vmatprep.mubr.bf16.mxu0 %v2301
        %2628 = vmatmul.mubr.bf16.gmra.mxu0 %v2300
        %v2629 = vpop.f32.mrf.mxu0
        %v2630 = vadd.f32 %v2401, %v2629
        %v2631 = vpop.f32.mrf.mxu0
        %v2632 = vpop.f32.mrf.mxu0
        %v2633 = vadd.f32 %v2401, %v2632
        %v2634 = vpop.f32.mrf.mxu0
        %2635 = vmatprep.mubr.bf16.mxu0 %v2305
        %2636 = vmatmul.mubr.bf16.gmra.mxu0 %v2304
        %v2637 = vpop.f32.mrf.mxu0
        %v2638 = vadd.f32 %v2401, %v2637
        %v2639 = vpop.f32.mrf.mxu0
        %v2640 = vpop.f32.mrf.mxu0
        %v2641 = vadd.f32 %v2401, %v2640
        %v2642 = vpop.f32.mrf.mxu0
        %2643 = vmatprep.mubr.bf16.mxu0 %v2309
        %2644 = vmatmul.mubr.bf16.gmra.mxu0 %v2308
        %v2645 = vpop.f32.mrf.mxu0
        %v2646 = vadd.f32 %v2401, %v2645
        %v2647 = vpop.f32.mrf.mxu0
        %v2648 = vpop.f32.mrf.mxu0
        %v2649 = vadd.f32 %v2401, %v2648
        %v2650 = vpop.f32.mrf.mxu0
        %2651 = vmatprep.mubr.bf16.mxu0 %v2313
        %2652 = vmatmul.mubr.bf16.gmra.mxu0 %v2312
        %v2653 = vpop.f32.mrf.mxu0
        %v2654 = vadd.f32 %v2401, %v2653
        %v2655 = vpop.f32.mrf.mxu0
        %v2656 = vpop.f32.mrf.mxu0
        %v2657 = vadd.f32 %v2401, %v2656
        %v2658 = vpop.f32.mrf.mxu0
        %2659 = vmatprep.mubr.bf16.mxu0 %v2317
        %2660 = vmatmul.mubr.bf16.gmra.mxu0 %v2316
        %v2661 = vpop.f32.mrf.mxu0
        %v2662 = vadd.f32 %v2401, %v2661
        %v2663 = vpop.f32.mrf.mxu0
        %v2664 = vpop.f32.mrf.mxu0
        %v2665 = vadd.f32 %v2401, %v2664
        %v2666 = vpop.f32.mrf.mxu0
        %2667 = vmatprep.mubr.bf16.mxu0 %v2321
        %2668 = vmatmul.mubr.bf16.gmra.mxu0 %v2320
        %v2669 = vpop.f32.mrf.mxu0
        %v2670 = vadd.f32 %v2401, %v2669
        %v2671 = vpop.f32.mrf.mxu0
        %v2672 = vpop.f32.mrf.mxu0
        %v2673 = vadd.f32 %v2401, %v2672
        %v2674 = vpop.f32.mrf.mxu0
        %2675 = vmatprep.mubr.bf16.mxu0 %v2325
        %2676 = vmatmul.mubr.bf16.gmra.mxu0 %v2324
        %v2677 = vpop.f32.mrf.mxu0
        %v2678 = vadd.f32 %v2401, %v2677
        %v2679 = vpop.f32.mrf.mxu0
        %v2680 = vpop.f32.mrf.mxu0
        %v2681 = vadd.f32 %v2401, %v2680
        %v2682 = vpop.f32.mrf.mxu0
        %2683 = vmatprep.mubr.bf16.mxu0 %v2329
        %2684 = vmatmul.mubr.bf16.gmra.mxu0 %v2328
        %v2685 = vpop.f32.mrf.mxu0
        %v2686 = vadd.f32 %v2401, %v2685
        %v2687 = vpop.f32.mrf.mxu0
        %v2688 = vpop.f32.mrf.mxu0
        %v2689 = vadd.f32 %v2401, %v2688
        %v2690 = vpop.f32.mrf.mxu0
        %2691 = vdwg.mxu0
        %2692 = vmatprep.subr.bf16.mxu0 0
        %2693 = vmatpush1.bf16.msra.mxu0 %v2554
        %2694 = vmatprep.subr.bf16.mxu0 0
        %2695 = vmatpush1.bf16.msra.mxu0 %v2553
        %2696 = vmatprep.subr.bf16.mxu0 0
        %2697 = vmatpush1.bf16.msra.mxu0 %v2552
        %2698 = vmatprep.subr.bf16.mxu0 0
        %2699 = vmatpush1.bf16.msra.mxu0 %v2551
        %2700 = vmatprep.subr.bf16.mxu0 0
        %2701 = vmatpush1.bf16.msra.mxu0 %v2550
        %2702 = vmatprep.subr.bf16.mxu0 0
        %2703 = vmatpush1.bf16.msra.mxu0 %v2549
        %2704 = vmatprep.subr.bf16.mxu0 0
        %2705 = vmatpush1.bf16.msra.mxu0 %v2548
        %2706 = vmatprep.subr.bf16.mxu0 0
        %2707 = vmatpush1.bf16.msra.mxu0 %v2547
        %2708 = vmatprep.subr.bf16.mxu0 0
        %2709 = vmatpush2.bf16.msra.mxu0 %v2562
        %2710 = vmatprep.subr.bf16.mxu0 0
        %2711 = vmatpush2.bf16.msra.mxu0 %v2561
        %2712 = vmatprep.subr.bf16.mxu0 0
        %2713 = vmatpush2.bf16.msra.mxu0 %v2560
        %2714 = vmatprep.subr.bf16.mxu0 0
        %2715 = vmatpush2.bf16.msra.mxu0 %v2559
        %2716 = vmatprep.subr.bf16.mxu0 0
        %2717 = vmatpush2.bf16.msra.mxu0 %v2558
        %2718 = vmatprep.subr.bf16.mxu0 0
        %2719 = vmatpush2.bf16.msra.mxu0 %v2557
        %2720 = vmatprep.subr.bf16.mxu0 0
        %2721 = vmatpush2.bf16.msra.mxu0 %v2556
        %2722 = vmatprep.subr.bf16.mxu0 0
        %2723 = vmatpush2.bf16.msra.mxu0 %v2555
        %2724 = vmatprep.mubr.bf16.mxu0 %v2303
        %2725 = vmatmul.mubr.bf16.gmra.mxu0 %v2302
        %v2726 = vpop.f32.mrf.mxu0
        %v2727 = vadd.f32 %v2630, %v2726
        %v2728 = vpop.f32.mrf.mxu0
        %v2729 = vpop.f32.mrf.mxu0
        %v2730 = vadd.f32 %v2633, %v2729
        %v2731 = vpop.f32.mrf.mxu0
        %2732 = vmatprep.mubr.bf16.mxu0 %v2307
        %2733 = vmatmul.mubr.bf16.gmra.mxu0 %v2306
        %v2734 = vpop.f32.mrf.mxu0
        %v2735 = vadd.f32 %v2638, %v2734
        %v2736 = vpop.f32.mrf.mxu0
        %v2737 = vpop.f32.mrf.mxu0
        %v2738 = vadd.f32 %v2641, %v2737
        %v2739 = vpop.f32.mrf.mxu0
        %2740 = vmatprep.mubr.bf16.mxu0 %v2311
        %2741 = vmatmul.mubr.bf16.gmra.mxu0 %v2310
        %v2742 = vpop.f32.mrf.mxu0
        %v2743 = vadd.f32 %v2646, %v2742
        %v2744 = vpop.f32.mrf.mxu0
        %v2745 = vpop.f32.mrf.mxu0
        %v2746 = vadd.f32 %v2649, %v2745
        %v2747 = vpop.f32.mrf.mxu0
        %2748 = vmatprep.mubr.bf16.mxu0 %v2315
        %2749 = vmatmul.mubr.bf16.gmra.mxu0 %v2314
        %v2750 = vpop.f32.mrf.mxu0
        %v2751 = vadd.f32 %v2654, %v2750
        %v2752 = vpop.f32.mrf.mxu0
        %v2753 = vpop.f32.mrf.mxu0
        %v2754 = vadd.f32 %v2657, %v2753
        %v2755 = vpop.f32.mrf.mxu0
        %2756 = vmatprep.mubr.bf16.mxu0 %v2319
        %2757 = vmatmul.mubr.bf16.gmra.mxu0 %v2318
        %v2758 = vpop.f32.mrf.mxu0
        %v2759 = vadd.f32 %v2662, %v2758
        %v2760 = vpop.f32.mrf.mxu0
        %v2761 = vpop.f32.mrf.mxu0
        %v2762 = vadd.f32 %v2665, %v2761
        %v2763 = vpop.f32.mrf.mxu0
        %2764 = vmatprep.mubr.bf16.mxu0 %v2323
        %2765 = vmatmul.mubr.bf16.gmra.mxu0 %v2322
        %v2766 = vpop.f32.mrf.mxu0
        %v2767 = vadd.f32 %v2670, %v2766
        %v2768 = vpop.f32.mrf.mxu0
        %v2769 = vpop.f32.mrf.mxu0
        %v2770 = vadd.f32 %v2673, %v2769
        %v2771 = vpop.f32.mrf.mxu0
        %2772 = vmatprep.mubr.bf16.mxu0 %v2327
        %2773 = vmatmul.mubr.bf16.gmra.mxu0 %v2326
        %v2774 = vpop.f32.mrf.mxu0
        %v2775 = vadd.f32 %v2678, %v2774
        %v2776 = vpop.f32.mrf.mxu0
        %v2777 = vpop.f32.mrf.mxu0
        %v2778 = vadd.f32 %v2681, %v2777
        %v2779 = vpop.f32.mrf.mxu0
        %2780 = vmatprep.mubr.bf16.mxu0 %v2331
        %2781 = vmatmul.mubr.bf16.gmra.mxu0 %v2330
        %v2782 = vpop.f32.mrf.mxu0
        %v2783 = vadd.f32 %v2686, %v2782
        %v2784 = vpop.f32.mrf.mxu0
        %v2785 = vpop.f32.mrf.mxu0
        %v2786 = vadd.f32 %v2689, %v2785
        %v2787 = vpop.f32.mrf.mxu0
        %2788 = vdwg.mxu0
        %v2789 = vadd.f32 %v579, %v2727
        %v2790 = vadd.f32 %v580, %v2730
        %v2791 = vadd.f32 %v581, %v2735
        %v2792 = vadd.f32 %v582, %v2738
        %v2793 = vadd.f32 %v583, %v2743
        %v2794 = vadd.f32 %v584, %v2746
        %v2795 = vadd.f32 %v585, %v2751
        %v2796 = vadd.f32 %v586, %v2754
        %v2797 = vadd.f32 %v587, %v2759
        %v2798 = vadd.f32 %v588, %v2762
        %v2799 = vadd.f32 %v589, %v2767
        %v2800 = vadd.f32 %v590, %v2770
        %v2801 = vadd.f32 %v591, %v2775
        %v2802 = vadd.f32 %v592, %v2778
        %v2803 = vadd.f32 %v593, %v2783
        %v2804 = vadd.f32 %v594, %v2786
        %2805 = vst [vmem:[%s567] sm:$0xff] %v2789
        %2806 = vst [vmem:[%s567 + $0x8] sm:$0xff] %v2790
        %2807 = vst [vmem:[%s567 + $0x10] sm:$0xff] %v2791
        %2808 = vst [vmem:[%s567 + $0x18] sm:$0xff] %v2792
        %2809 = vst [vmem:[%s567 + $0x20] sm:$0xff] %v2793
        %2810 = vst [vmem:[%s567 + $0x28] sm:$0xff] %v2794
        %2811 = vst [vmem:[%s567 + $0x30] sm:$0xff] %v2795
        %2812 = vst [vmem:[%s567 + $0x38] sm:$0xff] %v2796
        %2813 = vst [vmem:[%s567 + $0x40] sm:$0xff] %v2797
        %2814 = vst [vmem:[%s567 + $0x48] sm:$0xff] %v2798
        %2815 = vst [vmem:[%s567 + $0x50] sm:$0xff] %v2799
        %2816 = vst [vmem:[%s567 + $0x58] sm:$0xff] %v2800
        %2817 = vst [vmem:[%s567 + $0x60] sm:$0xff] %v2801
        %2818 = vst [vmem:[%s567 + $0x68] sm:$0xff] %v2802
        %2819 = vst [vmem:[%s567 + $0x70] sm:$0xff] %v2803
        %2820 = vst [vmem:[%s567 + $0x78] sm:$0xff] %v2804
        %s2821 = sand.u32 %s323, 1
        %s2822 = scalar_lea.sflag [#allocation5], %s2821
        %s2823 = sand.u32 %s323, 1
        %s2824 = smul.addr %s2823, 128
        %s2825 = scalar_lea.vmem [#allocation14], %s2824
        // Predicated region
        $region105: #{tpu_custom_call.1} parent=63 // pred_check
          %p2826 = pneg %p333
        $region106: #{tpu_custom_call.1} parent=63 // pred_check_branch
          %2828 = sbr.rel (%p2826) target = $region108
        $region107: #{tpu_custom_call.1} parent=63 // pred_region
          %s2829 = smul.u32 16, %s38
          %s2831 = ssub.s32 2048, 2048
          %2832 = vsyncadd %s2822, %s2831
          %s2833 = smul.addr %s37, 32
          %s2834 = sadd.s32 %s2829, %s2833
          %s2835 = smul.addr %s2834, 128
          %s2836 = scalar_lea.hbm %s11, %s2835
          %s2837 = sshll.u32 %s2825, 4
          %s2838 = int_to_ptr.vmem [resolvable:$true] %s2837
          %2843 = dma.vmem_to_hbm [thread:$0]  %s2838, 2048, %s2836, %s2822, 128, 128, 8
        $region108: #{tpu_custom_call.1} parent=63 // pred_fallthru
          _
      $region64: #{tpu_custom_call.1} parent=5 // pred_fallthru
        _
      %p2844 = scmp.le.s32.totalorder 2, %s28
      // Predicated region
      $region109: #{tpu_custom_call.1} parent=5 // pred_check
        %p2845 = pneg %p2844
      $region110: #{tpu_custom_call.1} parent=5 // pred_check_branch
        %2847 = sbr.rel (%p2845) target = $region112
      $region111: #{tpu_custom_call.1} parent=5 // pred_region
        %s2848 = ssub.s32 %s28, 2
        // Predicated region
        $region113: #{tpu_custom_call.1} parent=111 // pred_check
          %p2849 = pneg %p339
        $region114: #{tpu_custom_call.1} parent=111 // pred_check_branch
          %2851 = sbr.rel (%p2849) target = $region116
        $region115: #{tpu_custom_call.1} parent=111 // pred_region
          %s2852 = sand.u32 %s324, 1
          %s2853 = scalar_lea.sflag [#allocation5], %s2852
          %s2854 = sand.u32 %s324, 1
          %s2855 = smul.addr %s2854, 128
          %s2856 = scalar_lea.vmem [#allocation14], %s2855
          %2857 = dma.done %s2853, 2048
        $region116: #{tpu_custom_call.1} parent=111 // pred_fallthru
          _
      $region112: #{tpu_custom_call.1} parent=5 // pred_fallthru
        _
    $region6: #{tpu_custom_call.1} parent=1 // loop_footer
      %s32 = sadd.s32 1, %s28
    $region7: #{tpu_custom_call.1} parent=1 // loop_footer_branch
      %27 = sbr.rel target = $region3
    $region8: #{tpu_custom_call.1} parent=1 // loop_exit
      _
    %2858 = vsyncpa [#allocation4], 1
    %s2859 = scalar_lea.sflag [#allocation4], 1
    %2860 = vsyncpa %s2859, 1
    %2861 = vsyncpa [#allocation7], 1
    %s2862 = scalar_lea.sflag [#allocation7], 1
    %2863 = vsyncpa %s2862, 1
    %2864 = vsyncpa [#allocation10], 1
    %2865 = vsyncpa [#allocation13], 1
    %2866 = vsyncpa [#allocation5], 1
    %s2867 = scalar_lea.sflag [#allocation5], 1
    %2868 = vsyncpa %s2867, 1

</llo_original>
